<compile_context>
chip_gen: v7x
topology: tpu7x:2x2x1
jax: 0.10.0
libtpu: 0.0.40
codegen_flags: <defaults>
</compile_context>

<pallas_src>
import functools

import jax
import jax.numpy as jnp
from jax.experimental import pallas as pl
from jax.experimental.pallas import tpu as pltpu

# ---- scaled-down hyperparameters (architecture-faithful) --------------------
N_EMBD     = 128           # reference: 384
BLOCK_SIZE = 64            # reference: 64
N_HEAD     = 4             # reference: 4
HEAD_SIZE  = N_EMBD // N_HEAD
N_LAYER    = 2             # reference: 4
VOCAB_SIZE = 128           # reference: len(chars) (0 in the snippet -> pick 128)
LN_EPS     = 1e-5          # torch.nn.LayerNorm default


def _layernorm(x, gamma, beta):
    """LayerNorm over the last axis (biased variance, like torch), f32."""
    mean = jnp.mean(x, axis=-1, keepdims=True)
    var = jnp.mean((x - mean) ** 2, axis=-1, keepdims=True)
    return (x - mean) * jax.lax.rsqrt(var + LN_EPS) * gamma + beta


# -----------------------------------------------------------------------------
# Single fused kernel: all transformer blocks + final LayerNorm + lm_head.
# Activations are (batch*seqlen, C); attention is batched over (head, batch).
# -----------------------------------------------------------------------------
def llm_fwd_kernel(x_ref, wqkv_ref, wo_ref, bo_ref, w1_ref, b1_ref,
                   w2_ref, b2_ref, g1_ref, be1_ref, g2_ref, be2_ref,
                   gf_ref, bef_ref, wlm_ref, blm_ref, o_ref,
                   *, batch, seqlen):
    C = N_EMBD
    HB = N_HEAD * batch
    x = x_ref[...]                                        # (M, C) f32, M = batch*seqlen

    # causal mask, hoisted (shared across layers / heads / batch)
    row = jax.lax.broadcasted_iota(jnp.int32, (seqlen, seqlen), 0)
    col = jax.lax.broadcasted_iota(jnp.int32, (seqlen, seqlen), 1)
    causal = col <= row
    neg_big = jnp.float32(-1e30)     # robust vs -inf if a row were fully masked

    # N_LAYER is tiny (2) -> static unroll; switch to a grid axis / fori_loop
    # over the stacked weight refs if the layer count grows.
    for l in range(N_LAYER):
        # ---- fused QKV projection (bf16 MXU, f32 acc), immediate bf16 cast ---
        xb = x.astype(jnp.bfloat16)
        qkv = jnp.dot(xb, wqkv_ref[l],
                      preferred_element_type=jnp.float32).astype(jnp.bfloat16)  # (M, 3C)

        # ---- split heads: lane slices -> batched (H*B, T, hs), idx = h*B + b --
        def split_heads(off):
            cols = [qkv[:, off + h * HEAD_SIZE: off + (h + 1) * HEAD_SIZE]
                    for h in range(N_HEAD)]
            s = jnp.stack(cols, axis=0)                   # (H, M, hs)
            return s.reshape(HB, seqlen, HEAD_SIZE)       # (H*B, T, hs)

        qh = split_heads(0)          # 1/sqrt(head_size) scale pre-baked into Wq
        kh = split_heads(C)
        vh = split_heads(2 * C)

        # ---- batched scores + softmax + P.V (single MXU stream over H*B) -----
        wei = jnp.einsum('bqd,bkd->bqk', qh, kh,
                         preferred_element_type=jnp.float32)     # (HB, T, T) f32
        wei = jnp.where(causal, wei, neg_big)
        wei = jnp.exp(wei - jnp.max(wei, axis=-1, keepdims=True))
        wei = wei * pl.reciprocal(jnp.sum(wei, axis=-1, keepdims=True),
                                  approx=True)
        # TODO(synk): nn.Dropout (attn probs / proj / ffn) is stochastic in
        # train mode; treated as identity here (inference semantics).
        ho = jnp.einsum('bqk,bkd->bqd', wei.astype(jnp.bfloat16), vh,
                        preferred_element_type=jnp.float32)      # (HB, T, hs)

        # ---- re-assemble heads lane-wise, ONE fused Wo matmul over all rows ---
        ho = ho.reshape(N_HEAD, batch * seqlen, HEAD_SIZE).astype(jnp.bfloat16)
        attn_in = jnp.concatenate([ho[h] for h in range(N_HEAD)], axis=1)  # (M, C)
        attn = jnp.dot(attn_in, wo_ref[l],
                       preferred_element_type=jnp.float32) + bo_ref[l]     # (M, C)

        # ---- post-norm residual 1 ---------------------------------------------
        x = _layernorm(x + attn, g1_ref[l], be1_ref[l])

        # ---- feed-forward: Linear(C,4C) -> ReLU -> Linear(4C,C) ---------------
        h1 = jnp.dot(x.astype(jnp.bfloat16), w1_ref[l],
                     preferred_element_type=jnp.float32) + b1_ref[l]       # (M, 4C)
        h1 = jnp.maximum(h1, 0.0).astype(jnp.bfloat16)   # bf16 right after bias+ReLU
        ff = jnp.dot(h1, w2_ref[l],
                     preferred_element_type=jnp.float32) + b2_ref[l]       # (M, C)

        # ---- post-norm residual 2 ---------------------------------------------
        x = _layernorm(x + ff, g2_ref[l], be2_ref[l])

    # ---- final LayerNorm + lm_head (lane-dense (M, V) output) -----------------
    xn = _layernorm(x, gf_ref[...], bef_ref[...])
    o_ref[...] = jnp.dot(xn.astype(jnp.bfloat16), wlm_ref[...],
                         preferred_element_type=jnp.float32) + blm_ref[...]


# -----------------------------------------------------------------------------
# Parameter initialization (deterministic, matches module shapes).
# MXU weights stored bf16; biases / LN params f32; attention scale baked in Wq.
# -----------------------------------------------------------------------------
def init_params(key):
    keys = iter(jax.random.split(key, N_LAYER * 6 + 3))

    def lin(fan_in, fan_out):   # torch init in module: normal(0, 0.02), zero bias
        return 0.02 * jax.random.normal(next(keys), (fan_in, fan_out), jnp.float32)

    scale = HEAD_SIZE ** (-0.5)
    wqkv, wo, bo, w1, b1, w2, b2 = [], [], [], [], [], [], []
    g1, be1, g2, be2 = [], [], [], []
    for _ in range(N_LAYER):
        wq = lin(N_EMBD, N_EMBD) * scale          # bake attention scale into Wq
        wk = lin(N_EMBD, N_EMBD)
        wv = lin(N_EMBD, N_EMBD)
        wqkv.append(jnp.concatenate([wq, wk, wv], axis=1))    # (C, 3C)
        wo.append(lin(N_EMBD, N_EMBD))
        bo.append(jnp.zeros((1, N_EMBD), jnp.float32))
        w1.append(lin(N_EMBD, 4 * N_EMBD))
        b1.append(jnp.zeros((1, 4 * N_EMBD), jnp.float32))
        w2.append(lin(4 * N_EMBD, N_EMBD))
        b2.append(jnp.zeros((1, N_EMBD), jnp.float32))
        g1.append(jnp.ones((1, N_EMBD), jnp.float32))
        be1.append(jnp.zeros((1, N_EMBD), jnp.float32))
        g2.append(jnp.ones((1, N_EMBD), jnp.float32))
        be2.append(jnp.zeros((1, N_EMBD), jnp.float32))

    params = {
        "tok_emb": 0.02 * jax.random.normal(next(keys), (VOCAB_SIZE, N_EMBD), jnp.float32),
        "pos_emb": 0.02 * jax.random.normal(next(keys), (BLOCK_SIZE, N_EMBD), jnp.float32),
        "wqkv": jnp.stack(wqkv).astype(jnp.bfloat16),   # (L, C, 3C)
        "wo":   jnp.stack(wo).astype(jnp.bfloat16),     # (L, C, C)
        "bo":   jnp.stack(bo),                          # (L, 1, C)
        "w1":   jnp.stack(w1).astype(jnp.bfloat16),     # (L, C, 4C)
        "b1":   jnp.stack(b1),                          # (L, 1, 4C)
        "w2":   jnp.stack(w2).astype(jnp.bfloat16),     # (L, 4C, C)
        "b2":   jnp.stack(b2),                          # (L, 1, C)
        "g1":   jnp.stack(g1), "be1": jnp.stack(be1),
        "g2":   jnp.stack(g2), "be2": jnp.stack(be2),
        "lnf_g": jnp.ones((1, N_EMBD), jnp.float32),
        "lnf_b": jnp.zeros((1, N_EMBD), jnp.float32),
        "w_lm": lin(N_EMBD, VOCAB_SIZE).astype(jnp.bfloat16),
        "b_lm": jnp.zeros((1, VOCAB_SIZE), jnp.float32),
    }
    return params


# -----------------------------------------------------------------------------
# Helpers: TPU-generation check, cost estimate, full-array BlockSpec.
# -----------------------------------------------------------------------------
def _detect_multi_tensorcore():
    """v7x has 2 TensorCores per chip; v5e/v6e have 1."""
    try:
        kind = jax.devices()[0].device_kind.lower()
    except Exception:
        return False
    return ("v7" in kind) or ("7x" in kind)


_MULTI_TC = _detect_multi_tensorcore()


def _full_block_spec(a):
    n, shape = a.ndim, a.shape

    def idx(b):
        return (0,) * n

    return pl.BlockSpec(shape, idx)


def _cost_estimate(B, T, weight_args):
    M = B * T
    C, V, H, hs = N_EMBD, VOCAB_SIZE, N_HEAD, HEAD_SIZE
    macs_per_layer = (M * C * 3 * C              # QKV
                      + 2 * B * H * T * T * hs   # scores + P.V
                      + M * C * C                # Wo
                      + 2 * M * C * 4 * C)       # FFN
    macs = N_LAYER * macs_per_layer + M * C * V  # + lm_head
    exps = N_LAYER * B * H * T * T
    rsqrts = (2 * N_LAYER + 1) * M
    recips = N_LAYER * B * H * T
    weight_bytes = sum(int(a.size) * a.dtype.itemsize for a in weight_args)
    bytes_accessed = M * C * 4 + M * V * 4 + weight_bytes
    return pl.CostEstimate(flops=int(2 * macs),
                           transcendentals=int(exps + rsqrts + recips),
                           bytes_accessed=int(bytes_accessed))


# -----------------------------------------------------------------------------
# Full forward pass (targets=None path of LargeLanguageModel.forward).
# Embedding gathers are glue (plain JAX); everything else is ONE pallas_call.
# -----------------------------------------------------------------------------
@jax.jit
def forward(params, index):
    B, T = index.shape
    tok_emb = params["tok_emb"][index]                 # (B, T, C)
    pos_emb = params["pos_emb"][:T]                    # (T, C)
    x = (tok_emb + pos_emb[None]).astype(jnp.float32).reshape(B * T, N_EMBD)

    weight_args = (params["wqkv"], params["wo"], params["bo"],
                   params["w1"], params["b1"], params["w2"], params["b2"],
                   params["g1"], params["be1"], params["g2"], params["be2"],
                   params["lnf_g"], params["lnf_b"], params["w_lm"], params["b_lm"])
    cost = _cost_estimate(B, T, weight_args)
    out_shape = jax.ShapeDtypeStruct((B * T, VOCAB_SIZE), jnp.float32)

    # TODO(synk): at realistic vocab/seq sizes, tile the (B*T) and V dims over a
    # lane-dense grid and raise vmem_limit_bytes (budget against 32 MiB scoped /
    # 64 MiB physical VMEM on v7x); at these toy sizes everything (~1 MB weights
    # + ~0.5 MB activations) fits in VMEM untiled.
    if _MULTI_TC:
        # v7x: shard the batch over a parallel grid so both TensorCores work.
        kernel = functools.partial(llm_fwd_kernel, batch=1, seqlen=T)
        in_specs = ([pl.BlockSpec((T, N_EMBD), lambda b: (b, 0))] +
                    [_full_block_spec(a) for a in weight_args])
        out_specs = pl.BlockSpec((T, VOCAB_SIZE), lambda b: (b, 0))
        logits_flat = pl.pallas_call(
            kernel,
            grid=(B,),
            in_specs=in_specs,
            out_specs=out_specs,
            out_shape=out_shape,
            compiler_params=pltpu.CompilerParams(
                dimension_semantics=("parallel",)),
            cost_estimate=cost,
        )(x, *weight_args)
    else:
        # v5e / v6e: single TensorCore -> keep one fused gridless invocation
        # (a grid would only add ~0.35 us/step serial overhead at this size).
        kernel = functools.partial(llm_fwd_kernel, batch=B, seqlen=T)
        vmem = pl.BlockSpec(memory_space=pltpu.MemorySpace.VMEM)
        logits_flat = pl.pallas_call(
            kernel,
            in_specs=[vmem] * (1 + len(weight_args)),
            out_specs=pl.BlockSpec(memory_space=pltpu.MemorySpace.VMEM),
            out_shape=out_shape,
            cost_estimate=cost,
        )(x, *weight_args)

    logits = logits_flat.reshape(B, T, VOCAB_SIZE)
    loss = None                                        # targets is None
    return logits, loss


# -----------------------------------------------------------------------------
# Pure-JAX reference (same dtypes / same math) for a tolerance check.
# -----------------------------------------------------------------------------
def reference_forward(params, index):
    B, T = index.shape
    C = N_EMBD
    x = (params["tok_emb"][index] + params["pos_emb"][:T][None]).astype(jnp.float32)
    causal = jnp.tril(jnp.ones((T, T), bool))
    for l in range(N_LAYER):
        qkv = jnp.einsum('btc,cd->btd', x.astype(jnp.bfloat16), params["wqkv"][l],
                         preferred_element_type=jnp.float32).astype(jnp.bfloat16)
        q, k, v = qkv[..., :C], qkv[..., C:2 * C], qkv[..., 2 * C:]

        def split(t):
            return t.reshape(B, T, N_HEAD, HEAD_SIZE).transpose(0, 2, 1, 3)

        qh, kh, vh = split(q), split(k), split(v)
        wei = jnp.einsum('bhqd,bhkd->bhqk', qh, kh,
                         preferred_element_type=jnp.float32)
        wei = jnp.where(causal, wei, -1e30)
        wei = jax.nn.softmax(wei, axis=-1)
        ho = jnp.einsum('bhqk,bhkd->bhqd', wei.astype(jnp.bfloat16), vh,
                        preferred_element_type=jnp.float32)
        ho = ho.transpose(0, 2, 1, 3).reshape(B, T, C).astype(jnp.bfloat16)
        attn = jnp.einsum('btc,cd->btd', ho, params["wo"][l],
                          preferred_element_type=jnp.float32) + params["bo"][l]
        x = _layernorm(x + attn, params["g1"][l], params["be1"][l])
        h1 = jnp.einsum('btc,cd->btd', x.astype(jnp.bfloat16), params["w1"][l],
                        preferred_element_type=jnp.float32) + params["b1"][l]
        h1 = jnp.maximum(h1, 0.0).astype(jnp.bfloat16)
        ff = jnp.einsum('btc,cd->btd', h1, params["w2"][l],
                        preferred_element_type=jnp.float32) + params["b2"][l]
        x = _layernorm(x + ff, params["g2"][l], params["be2"][l])
    x = _layernorm(x, params["lnf_g"], params["lnf_b"])
    return jnp.einsum('btc,cv->btv', x.astype(jnp.bfloat16), params["w_lm"],
                      preferred_element_type=jnp.float32) + params["b_lm"]


if __name__ == "__main__":
    key = jax.random.PRNGKey(0)
    pkey, ikey = jax.random.split(key)
    params = init_params(pkey)

    B, T = 2, BLOCK_SIZE
    index = jax.random.randint(ikey, (B, T), 0, VOCAB_SIZE, dtype=jnp.int32)

    logits, loss = forward(params, index)
    logits = jax.block_until_ready(logits)

    assert logits.shape == (B, T, VOCAB_SIZE)
    assert loss is None
    assert bool(jnp.all(jnp.isfinite(logits)))

    ref = jax.block_until_ready(reference_forward(params, index))
    max_err = float(jnp.max(jnp.abs(logits - ref)))
    assert max_err < 5e-2, f"max |pallas - reference| = {max_err}"

    print("KERNEL_OK")
</pallas_src>

<mosaic_0001>
module attributes {stable_mosaic.version = 11 : i64} {
  func.func @llm_fwd_kernel(%arg0: memref<128x128xf32, #tpu.memory_space<vmem>>, %arg1: memref<2x128x384xbf16, #tpu.memory_space<vmem>>, %arg2: memref<2x128x128xbf16, #tpu.memory_space<vmem>>, %arg3: memref<2x1x128xf32, #tpu.memory_space<vmem>>, %arg4: memref<2x128x512xbf16, #tpu.memory_space<vmem>>, %arg5: memref<2x1x512xf32, #tpu.memory_space<vmem>>, %arg6: memref<2x512x128xbf16, #tpu.memory_space<vmem>>, %arg7: memref<2x1x128xf32, #tpu.memory_space<vmem>>, %arg8: memref<2x1x128xf32, #tpu.memory_space<vmem>>, %arg9: memref<2x1x128xf32, #tpu.memory_space<vmem>>, %arg10: memref<2x1x128xf32, #tpu.memory_space<vmem>>, %arg11: memref<2x1x128xf32, #tpu.memory_space<vmem>>, %arg12: memref<1x128xf32, #tpu.memory_space<vmem>>, %arg13: memref<1x128xf32, #tpu.memory_space<vmem>>, %arg14: memref<128x128xbf16, #tpu.memory_space<vmem>>, %arg15: memref<1x128xf32, #tpu.memory_space<vmem>>, %arg16: memref<128x128xf32, #tpu.memory_space<vmem>>) attributes {dimension_semantics = [], scalar_prefetch = 0 : i64, scratch_operands = 0 : i64, tpu.core_type = #tpu.core_type<tc>} {
    %c0 = arith.constant 0 : index
    %c0_0 = arith.constant 0 : index
    %0 = vector.load %arg0[%c0, %c0_0] : memref<128x128xf32, #tpu.memory_space<vmem>>, vector<128x128xf32>
    %1 = tpu.iota {dimensions = array<i32: 0>} : vector<64x64xi32>
    %2 = tpu.iota {dimensions = array<i32: 1>} : vector<64x64xi32>
    %3 = arith.cmpi sle, %2, %1 : vector<64x64xi32>
    %4 = arith.truncf %0 : vector<128x128xf32> to vector<128x128xbf16>
    %c0_1 = arith.constant 0 : index
    %c0_2 = arith.constant 0 : index
    %c0_3 = arith.constant 0 : index
    %5 = vector.load %arg1[%c0_1, %c0_2, %c0_3] : memref<2x128x384xbf16, #tpu.memory_space<vmem>>, vector<1x128x384xbf16>
    %6 = vector.shape_cast %5 : vector<1x128x384xbf16> to vector<128x384xbf16>
    %cst = arith.constant dense<0.000000e+00> : vector<128x384xf32>
    %7 = tpu.matmul %4, %6, %cst {dimension_numbers = #tpu.dot_dimension_numbers<[1], [0], [0], [1], [0, 0, 1, 1], [], []>} : vector<128x128xbf16>, vector<128x384xbf16>, vector<128x384xf32> -> vector<128x384xf32>
    %8 = arith.truncf %7 : vector<128x384xf32> to vector<128x384xbf16>
    %9 = vector.extract_strided_slice %8 {offsets = [0, 0], sizes = [128, 32], strides = [1, 1]} : vector<128x384xbf16> to vector<128x32xbf16>
    %10 = vector.extract_strided_slice %8 {offsets = [0, 32], sizes = [128, 32], strides = [1, 1]} : vector<128x384xbf16> to vector<128x32xbf16>
    %11 = vector.extract_strided_slice %8 {offsets = [0, 64], sizes = [128, 32], strides = [1, 1]} : vector<128x384xbf16> to vector<128x32xbf16>
    %12 = vector.extract_strided_slice %8 {offsets = [0, 96], sizes = [128, 32], strides = [1, 1]} : vector<128x384xbf16> to vector<128x32xbf16>
    %13 = vector.shape_cast %9 : vector<128x32xbf16> to vector<1x128x32xbf16>
    %14 = vector.shape_cast %10 : vector<128x32xbf16> to vector<1x128x32xbf16>
    %15 = vector.shape_cast %11 : vector<128x32xbf16> to vector<1x128x32xbf16>
    %16 = vector.shape_cast %12 : vector<128x32xbf16> to vector<1x128x32xbf16>
    %17 = tpu.concatenate %13, %14, %15, %16 in 0 : vector<1x128x32xbf16>, vector<1x128x32xbf16>, vector<1x128x32xbf16>, vector<1x128x32xbf16> -> vector<4x128x32xbf16>
    %18 = vector.shape_cast %17 : vector<4x128x32xbf16> to vector<8x64x32xbf16>
    %19 = vector.extract_strided_slice %8 {offsets = [0, 128], sizes = [128, 32], strides = [1, 1]} : vector<128x384xbf16> to vector<128x32xbf16>
    %20 = vector.extract_strided_slice %8 {offsets = [0, 160], sizes = [128, 32], strides = [1, 1]} : vector<128x384xbf16> to vector<128x32xbf16>
    %21 = vector.extract_strided_slice %8 {offsets = [0, 192], sizes = [128, 32], strides = [1, 1]} : vector<128x384xbf16> to vector<128x32xbf16>
    %22 = vector.extract_strided_slice %8 {offsets = [0, 224], sizes = [128, 32], strides = [1, 1]} : vector<128x384xbf16> to vector<128x32xbf16>
    %23 = vector.shape_cast %19 : vector<128x32xbf16> to vector<1x128x32xbf16>
    %24 = vector.shape_cast %20 : vector<128x32xbf16> to vector<1x128x32xbf16>
    %25 = vector.shape_cast %21 : vector<128x32xbf16> to vector<1x128x32xbf16>
    %26 = vector.shape_cast %22 : vector<128x32xbf16> to vector<1x128x32xbf16>
    %27 = tpu.concatenate %23, %24, %25, %26 in 0 : vector<1x128x32xbf16>, vector<1x128x32xbf16>, vector<1x128x32xbf16>, vector<1x128x32xbf16> -> vector<4x128x32xbf16>
    %28 = vector.shape_cast %27 : vector<4x128x32xbf16> to vector<8x64x32xbf16>
    %29 = vector.extract_strided_slice %8 {offsets = [0, 256], sizes = [128, 32], strides = [1, 1]} : vector<128x384xbf16> to vector<128x32xbf16>
    %30 = vector.extract_strided_slice %8 {offsets = [0, 288], sizes = [128, 32], strides = [1, 1]} : vector<128x384xbf16> to vector<128x32xbf16>
    %31 = vector.extract_strided_slice %8 {offsets = [0, 320], sizes = [128, 32], strides = [1, 1]} : vector<128x384xbf16> to vector<128x32xbf16>
    %32 = vector.extract_strided_slice %8 {offsets = [0, 352], sizes = [128, 32], strides = [1, 1]} : vector<128x384xbf16> to vector<128x32xbf16>
    %33 = vector.shape_cast %29 : vector<128x32xbf16> to vector<1x128x32xbf16>
    %34 = vector.shape_cast %30 : vector<128x32xbf16> to vector<1x128x32xbf16>
    %35 = vector.shape_cast %31 : vector<128x32xbf16> to vector<1x128x32xbf16>
    %36 = vector.shape_cast %32 : vector<128x32xbf16> to vector<1x128x32xbf16>
    %37 = tpu.concatenate %33, %34, %35, %36 in 0 : vector<1x128x32xbf16>, vector<1x128x32xbf16>, vector<1x128x32xbf16>, vector<1x128x32xbf16> -> vector<4x128x32xbf16>
    %38 = vector.shape_cast %37 : vector<4x128x32xbf16> to vector<8x64x32xbf16>
    "tpu.trace_start"() <{level = 10 : i32, message = "bqd,bkd->bqk"}> : () -> ()
    %cst_4 = arith.constant dense<0.000000e+00> : vector<8x64x64xf32>
    %39 = tpu.matmul %18, %28, %cst_4 {dimension_numbers = #tpu.dot_dimension_numbers<[2], [2], [1], [1], [0, 0, 0, 1, 1, 1], [0], [0]>} : vector<8x64x32xbf16>, vector<8x64x32xbf16>, vector<8x64x64xf32> -> vector<8x64x64xf32>
    %cst_5 = arith.constant -1.000000e+30 : f32
    "tpu.trace_stop"() : () -> ()
    %40 = vector.shape_cast %3 : vector<64x64xi1> to vector<1x64x64xi1>
    %41 = vector.broadcast %40 : vector<1x64x64xi1> to vector<8x64x64xi1>
    %42 = vector.broadcast %cst_5 : f32 to vector<8x64x64xf32>
    %43 = arith.select %41, %39, %42 : vector<8x64x64xi1>, vector<8x64x64xf32>
    %cst_6 = arith.constant dense<0xFF800000> : vector<8x64xf32>
    %44 = vector.multi_reduction <maximumf>, %43, %cst_6 [2] : vector<8x64x64xf32> to vector<8x64xf32>
    %45 = vector.shape_cast %44 : vector<8x64xf32> to vector<8x64x1xf32>
    %46 = vector.broadcast %45 : vector<8x64x1xf32> to vector<8x64x64xf32>
    %47 = arith.subf %43, %46 : vector<8x64x64xf32>
    %48 = math.exp %47 : vector<8x64x64xf32>
    %cst_7 = arith.constant dense<0.000000e+00> : vector<8x64xf32>
    %49 = vector.multi_reduction <add>, %48, %cst_7 [2] : vector<8x64x64xf32> to vector<8x64xf32>
    %50 = vector.shape_cast %49 : vector<8x64xf32> to vector<8x64x1xf32>
    %51 = tpu.reciprocal %50 {approx = true} : vector<8x64x1xf32> -> vector<8x64x1xf32>
    %52 = vector.broadcast %51 : vector<8x64x1xf32> to vector<8x64x64xf32>
    %53 = arith.mulf %48, %52 : vector<8x64x64xf32>
    %54 = arith.truncf %53 : vector<8x64x64xf32> to vector<8x64x64xbf16>
    "tpu.trace_start"() <{level = 10 : i32, message = "bqk,bkd->bqd"}> : () -> ()
    %cst_8 = arith.constant dense<0.000000e+00> : vector<8x64x32xf32>
    %55 = tpu.matmul %54, %38, %cst_8 {dimension_numbers = #tpu.dot_dimension_numbers<[2], [1], [1], [2], [0, 0, 0, 1, 1, 2], [0], [0]>} : vector<8x64x64xbf16>, vector<8x64x32xbf16>, vector<8x64x32xf32> -> vector<8x64x32xf32>
    "tpu.trace_stop"() : () -> ()
    %56 = vector.shape_cast %55 : vector<8x64x32xf32> to vector<4x128x32xf32>
    %57 = arith.truncf %56 : vector<4x128x32xf32> to vector<4x128x32xbf16>
    %58 = vector.extract_strided_slice %57 {offsets = [0, 0, 0], sizes = [1, 128, 32], strides = [1, 1, 1]} : vector<4x128x32xbf16> to vector<1x128x32xbf16>
    %59 = vector.shape_cast %58 : vector<1x128x32xbf16> to vector<128x32xbf16>
    %60 = vector.extract_strided_slice %57 {offsets = [1, 0, 0], sizes = [1, 128, 32], strides = [1, 1, 1]} : vector<4x128x32xbf16> to vector<1x128x32xbf16>
    %61 = vector.shape_cast %60 : vector<1x128x32xbf16> to vector<128x32xbf16>
    %62 = vector.extract_strided_slice %57 {offsets = [2, 0, 0], sizes = [1, 128, 32], strides = [1, 1, 1]} : vector<4x128x32xbf16> to vector<1x128x32xbf16>
    %63 = vector.shape_cast %62 : vector<1x128x32xbf16> to vector<128x32xbf16>
    %64 = vector.extract_strided_slice %57 {offsets = [3, 0, 0], sizes = [1, 128, 32], strides = [1, 1, 1]} : vector<4x128x32xbf16> to vector<1x128x32xbf16>
    %65 = vector.shape_cast %64 : vector<1x128x32xbf16> to vector<128x32xbf16>
    %66 = tpu.concatenate %59, %61, %63, %65 in 1 : vector<128x32xbf16>, vector<128x32xbf16>, vector<128x32xbf16>, vector<128x32xbf16> -> vector<128x128xbf16>
    %c0_9 = arith.constant 0 : index
    %c0_10 = arith.constant 0 : index
    %c0_11 = arith.constant 0 : index
    %67 = vector.load %arg2[%c0_9, %c0_10, %c0_11] : memref<2x128x128xbf16, #tpu.memory_space<vmem>>, vector<1x128x128xbf16>
    %68 = vector.shape_cast %67 : vector<1x128x128xbf16> to vector<128x128xbf16>
    %cst_12 = arith.constant dense<0.000000e+00> : vector<128x128xf32>
    %69 = tpu.matmul %66, %68, %cst_12 {dimension_numbers = #tpu.dot_dimension_numbers<[1], [0], [0], [1], [0, 0, 1, 1], [], []>} : vector<128x128xbf16>, vector<128x128xbf16>, vector<128x128xf32> -> vector<128x128xf32>
    %c0_13 = arith.constant 0 : index
    %c0_14 = arith.constant 0 : index
    %c0_15 = arith.constant 0 : index
    %70 = vector.load %arg3[%c0_13, %c0_14, %c0_15] : memref<2x1x128xf32, #tpu.memory_space<vmem>>, vector<1x1x128xf32>
    %71 = vector.shape_cast %70 : vector<1x1x128xf32> to vector<1x128xf32>
    %72 = vector.broadcast %71 : vector<1x128xf32> to vector<128x128xf32>
    %73 = arith.addf %69, %72 : vector<128x128xf32>
    %74 = arith.addf %0, %73 : vector<128x128xf32>
    %c0_16 = arith.constant 0 : index
    %c0_17 = arith.constant 0 : index
    %c0_18 = arith.constant 0 : index
    %75 = vector.load %arg8[%c0_16, %c0_17, %c0_18] : memref<2x1x128xf32, #tpu.memory_space<vmem>>, vector<1x1x128xf32>
    %76 = vector.shape_cast %75 : vector<1x1x128xf32> to vector<1x128xf32>
    %c0_19 = arith.constant 0 : index
    %c0_20 = arith.constant 0 : index
    %c0_21 = arith.constant 0 : index
    %77 = vector.load %arg9[%c0_19, %c0_20, %c0_21] : memref<2x1x128xf32, #tpu.memory_space<vmem>>, vector<1x1x128xf32>
    %78 = vector.shape_cast %77 : vector<1x1x128xf32> to vector<1x128xf32>
    %cst_22 = arith.constant dense<0.000000e+00> : vector<128xf32>
    %79 = vector.multi_reduction <add>, %74, %cst_22 [1] : vector<128x128xf32> to vector<128xf32>
    %80 = vector.shape_cast %79 : vector<128xf32> to vector<128x1xf32>
    %cst_23 = arith.constant 1.280000e+02 : f32
    %81 = vector.broadcast %cst_23 : f32 to vector<128x1xf32>
    %82 = arith.divf %80, %81 : vector<128x1xf32>
    %83 = vector.broadcast %82 : vector<128x1xf32> to vector<128x128xf32>
    %84 = arith.subf %74, %83 : vector<128x128xf32>
    %85 = arith.mulf %84, %84 : vector<128x128xf32>
    %cst_24 = arith.constant dense<0.000000e+00> : vector<128xf32>
    %86 = vector.multi_reduction <add>, %85, %cst_24 [1] : vector<128x128xf32> to vector<128xf32>
    %87 = vector.shape_cast %86 : vector<128xf32> to vector<128x1xf32>
    %cst_25 = arith.constant 1.280000e+02 : f32
    %88 = vector.broadcast %cst_25 : f32 to vector<128x1xf32>
    %89 = arith.divf %87, %88 : vector<128x1xf32>
    %90 = vector.broadcast %82 : vector<128x1xf32> to vector<128x128xf32>
    %91 = arith.subf %74, %90 : vector<128x128xf32>
    %cst_26 = arith.constant 9.99999974E-6 : f32
    %92 = vector.broadcast %cst_26 : f32 to vector<128x1xf32>
    %93 = arith.addf %89, %92 : vector<128x1xf32>
    %94 = math.rsqrt %93 : vector<128x1xf32>
    %95 = vector.broadcast %94 : vector<128x1xf32> to vector<128x128xf32>
    %96 = arith.mulf %91, %95 : vector<128x128xf32>
    %97 = vector.broadcast %76 : vector<1x128xf32> to vector<128x128xf32>
    %98 = arith.mulf %96, %97 : vector<128x128xf32>
    %99 = vector.broadcast %78 : vector<1x128xf32> to vector<128x128xf32>
    %100 = arith.addf %98, %99 : vector<128x128xf32>
    %101 = arith.truncf %100 : vector<128x128xf32> to vector<128x128xbf16>
    %c0_27 = arith.constant 0 : index
    %c0_28 = arith.constant 0 : index
    %c0_29 = arith.constant 0 : index
    %102 = vector.load %arg4[%c0_27, %c0_28, %c0_29] : memref<2x128x512xbf16, #tpu.memory_space<vmem>>, vector<1x128x512xbf16>
    %103 = vector.shape_cast %102 : vector<1x128x512xbf16> to vector<128x512xbf16>
    %cst_30 = arith.constant dense<0.000000e+00> : vector<128x512xf32>
    %104 = tpu.matmul %101, %103, %cst_30 {dimension_numbers = #tpu.dot_dimension_numbers<[1], [0], [0], [1], [0, 0, 1, 1], [], []>} : vector<128x128xbf16>, vector<128x512xbf16>, vector<128x512xf32> -> vector<128x512xf32>
    %c0_31 = arith.constant 0 : index
    %c0_32 = arith.constant 0 : index
    %c0_33 = arith.constant 0 : index
    %105 = vector.load %arg5[%c0_31, %c0_32, %c0_33] : memref<2x1x512xf32, #tpu.memory_space<vmem>>, vector<1x1x512xf32>
    %106 = vector.shape_cast %105 : vector<1x1x512xf32> to vector<1x512xf32>
    %107 = vector.broadcast %106 : vector<1x512xf32> to vector<128x512xf32>
    %108 = arith.addf %104, %107 : vector<128x512xf32>
    %cst_34 = arith.constant 0.000000e+00 : f32
    %109 = vector.broadcast %cst_34 : f32 to vector<128x512xf32>
    %110 = arith.maximumf %108, %109 : vector<128x512xf32>
    %111 = arith.truncf %110 : vector<128x512xf32> to vector<128x512xbf16>
    %c0_35 = arith.constant 0 : index
    %c0_36 = arith.constant 0 : index
    %c0_37 = arith.constant 0 : index
    %112 = vector.load %arg6[%c0_35, %c0_36, %c0_37] : memref<2x512x128xbf16, #tpu.memory_space<vmem>>, vector<1x512x128xbf16>
    %113 = vector.shape_cast %112 : vector<1x512x128xbf16> to vector<512x128xbf16>
    %cst_38 = arith.constant dense<0.000000e+00> : vector<128x128xf32>
    %114 = tpu.matmul %111, %113, %cst_38 {dimension_numbers = #tpu.dot_dimension_numbers<[1], [0], [0], [1], [0, 0, 1, 1], [], []>} : vector<128x512xbf16>, vector<512x128xbf16>, vector<128x128xf32> -> vector<128x128xf32>
    %c0_39 = arith.constant 0 : index
    %c0_40 = arith.constant 0 : index
    %c0_41 = arith.constant 0 : index
    %115 = vector.load %arg7[%c0_39, %c0_40, %c0_41] : memref<2x1x128xf32, #tpu.memory_space<vmem>>, vector<1x1x128xf32>
    %116 = vector.shape_cast %115 : vector<1x1x128xf32> to vector<1x128xf32>
    %117 = vector.broadcast %116 : vector<1x128xf32> to vector<128x128xf32>
    %118 = arith.addf %114, %117 : vector<128x128xf32>
    %119 = arith.addf %100, %118 : vector<128x128xf32>
    %c0_42 = arith.constant 0 : index
    %c0_43 = arith.constant 0 : index
    %c0_44 = arith.constant 0 : index
    %120 = vector.load %arg10[%c0_42, %c0_43, %c0_44] : memref<2x1x128xf32, #tpu.memory_space<vmem>>, vector<1x1x128xf32>
    %121 = vector.shape_cast %120 : vector<1x1x128xf32> to vector<1x128xf32>
    %c0_45 = arith.constant 0 : index
    %c0_46 = arith.constant 0 : index
    %c0_47 = arith.constant 0 : index
    %122 = vector.load %arg11[%c0_45, %c0_46, %c0_47] : memref<2x1x128xf32, #tpu.memory_space<vmem>>, vector<1x1x128xf32>
    %123 = vector.shape_cast %122 : vector<1x1x128xf32> to vector<1x128xf32>
    %cst_48 = arith.constant dense<0.000000e+00> : vector<128xf32>
    %124 = vector.multi_reduction <add>, %119, %cst_48 [1] : vector<128x128xf32> to vector<128xf32>
    %125 = vector.shape_cast %124 : vector<128xf32> to vector<128x1xf32>
    %cst_49 = arith.constant 1.280000e+02 : f32
    %126 = vector.broadcast %cst_49 : f32 to vector<128x1xf32>
    %127 = arith.divf %125, %126 : vector<128x1xf32>
    %128 = vector.broadcast %127 : vector<128x1xf32> to vector<128x128xf32>
    %129 = arith.subf %119, %128 : vector<128x128xf32>
    %130 = arith.mulf %129, %129 : vector<128x128xf32>
    %cst_50 = arith.constant dense<0.000000e+00> : vector<128xf32>
    %131 = vector.multi_reduction <add>, %130, %cst_50 [1] : vector<128x128xf32> to vector<128xf32>
    %132 = vector.shape_cast %131 : vector<128xf32> to vector<128x1xf32>
    %cst_51 = arith.constant 1.280000e+02 : f32
    %133 = vector.broadcast %cst_51 : f32 to vector<128x1xf32>
    %134 = arith.divf %132, %133 : vector<128x1xf32>
    %135 = vector.broadcast %127 : vector<128x1xf32> to vector<128x128xf32>
    %136 = arith.subf %119, %135 : vector<128x128xf32>
    %cst_52 = arith.constant 9.99999974E-6 : f32
    %137 = vector.broadcast %cst_52 : f32 to vector<128x1xf32>
    %138 = arith.addf %134, %137 : vector<128x1xf32>
    %139 = math.rsqrt %138 : vector<128x1xf32>
    %140 = vector.broadcast %139 : vector<128x1xf32> to vector<128x128xf32>
    %141 = arith.mulf %136, %140 : vector<128x128xf32>
    %142 = vector.broadcast %121 : vector<1x128xf32> to vector<128x128xf32>
    %143 = arith.mulf %141, %142 : vector<128x128xf32>
    %144 = vector.broadcast %123 : vector<1x128xf32> to vector<128x128xf32>
    %145 = arith.addf %143, %144 : vector<128x128xf32>
    %146 = arith.truncf %145 : vector<128x128xf32> to vector<128x128xbf16>
    %c1 = arith.constant 1 : index
    %c0_53 = arith.constant 0 : index
    %c0_54 = arith.constant 0 : index
    %147 = vector.load %arg1[%c1, %c0_53, %c0_54] : memref<2x128x384xbf16, #tpu.memory_space<vmem>>, vector<1x128x384xbf16>
    %148 = vector.shape_cast %147 : vector<1x128x384xbf16> to vector<128x384xbf16>
    %cst_55 = arith.constant dense<0.000000e+00> : vector<128x384xf32>
    %149 = tpu.matmul %146, %148, %cst_55 {dimension_numbers = #tpu.dot_dimension_numbers<[1], [0], [0], [1], [0, 0, 1, 1], [], []>} : vector<128x128xbf16>, vector<128x384xbf16>, vector<128x384xf32> -> vector<128x384xf32>
    %150 = arith.truncf %149 : vector<128x384xf32> to vector<128x384xbf16>
    %151 = vector.extract_strided_slice %150 {offsets = [0, 0], sizes = [128, 32], strides = [1, 1]} : vector<128x384xbf16> to vector<128x32xbf16>
    %152 = vector.extract_strided_slice %150 {offsets = [0, 32], sizes = [128, 32], strides = [1, 1]} : vector<128x384xbf16> to vector<128x32xbf16>
    %153 = vector.extract_strided_slice %150 {offsets = [0, 64], sizes = [128, 32], strides = [1, 1]} : vector<128x384xbf16> to vector<128x32xbf16>
    %154 = vector.extract_strided_slice %150 {offsets = [0, 96], sizes = [128, 32], strides = [1, 1]} : vector<128x384xbf16> to vector<128x32xbf16>
    %155 = vector.shape_cast %151 : vector<128x32xbf16> to vector<1x128x32xbf16>
    %156 = vector.shape_cast %152 : vector<128x32xbf16> to vector<1x128x32xbf16>
    %157 = vector.shape_cast %153 : vector<128x32xbf16> to vector<1x128x32xbf16>
    %158 = vector.shape_cast %154 : vector<128x32xbf16> to vector<1x128x32xbf16>
    %159 = tpu.concatenate %155, %156, %157, %158 in 0 : vector<1x128x32xbf16>, vector<1x128x32xbf16>, vector<1x128x32xbf16>, vector<1x128x32xbf16> -> vector<4x128x32xbf16>
    %160 = vector.shape_cast %159 : vector<4x128x32xbf16> to vector<8x64x32xbf16>
    %161 = vector.extract_strided_slice %150 {offsets = [0, 128], sizes = [128, 32], strides = [1, 1]} : vector<128x384xbf16> to vector<128x32xbf16>
    %162 = vector.extract_strided_slice %150 {offsets = [0, 160], sizes = [128, 32], strides = [1, 1]} : vector<128x384xbf16> to vector<128x32xbf16>
    %163 = vector.extract_strided_slice %150 {offsets = [0, 192], sizes = [128, 32], strides = [1, 1]} : vector<128x384xbf16> to vector<128x32xbf16>
    %164 = vector.extract_strided_slice %150 {offsets = [0, 224], sizes = [128, 32], strides = [1, 1]} : vector<128x384xbf16> to vector<128x32xbf16>
    %165 = vector.shape_cast %161 : vector<128x32xbf16> to vector<1x128x32xbf16>
    %166 = vector.shape_cast %162 : vector<128x32xbf16> to vector<1x128x32xbf16>
    %167 = vector.shape_cast %163 : vector<128x32xbf16> to vector<1x128x32xbf16>
    %168 = vector.shape_cast %164 : vector<128x32xbf16> to vector<1x128x32xbf16>
    %169 = tpu.concatenate %165, %166, %167, %168 in 0 : vector<1x128x32xbf16>, vector<1x128x32xbf16>, vector<1x128x32xbf16>, vector<1x128x32xbf16> -> vector<4x128x32xbf16>
    %170 = vector.shape_cast %169 : vector<4x128x32xbf16> to vector<8x64x32xbf16>
    %171 = vector.extract_strided_slice %150 {offsets = [0, 256], sizes = [128, 32], strides = [1, 1]} : vector<128x384xbf16> to vector<128x32xbf16>
    %172 = vector.extract_strided_slice %150 {offsets = [0, 288], sizes = [128, 32], strides = [1, 1]} : vector<128x384xbf16> to vector<128x32xbf16>
    %173 = vector.extract_strided_slice %150 {offsets = [0, 320], sizes = [128, 32], strides = [1, 1]} : vector<128x384xbf16> to vector<128x32xbf16>
    %174 = vector.extract_strided_slice %150 {offsets = [0, 352], sizes = [128, 32], strides = [1, 1]} : vector<128x384xbf16> to vector<128x32xbf16>
    %175 = vector.shape_cast %171 : vector<128x32xbf16> to vector<1x128x32xbf16>
    %176 = vector.shape_cast %172 : vector<128x32xbf16> to vector<1x128x32xbf16>
    %177 = vector.shape_cast %173 : vector<128x32xbf16> to vector<1x128x32xbf16>
    %178 = vector.shape_cast %174 : vector<128x32xbf16> to vector<1x128x32xbf16>
    %179 = tpu.concatenate %175, %176, %177, %178 in 0 : vector<1x128x32xbf16>, vector<1x128x32xbf16>, vector<1x128x32xbf16>, vector<1x128x32xbf16> -> vector<4x128x32xbf16>
    %180 = vector.shape_cast %179 : vector<4x128x32xbf16> to vector<8x64x32xbf16>
    "tpu.trace_start"() <{level = 10 : i32, message = "bqd,bkd->bqk"}> : () -> ()
    %cst_56 = arith.constant dense<0.000000e+00> : vector<8x64x64xf32>
    %181 = tpu.matmul %160, %170, %cst_56 {dimension_numbers = #tpu.dot_dimension_numbers<[2], [2], [1], [1], [0, 0, 0, 1, 1, 1], [0], [0]>} : vector<8x64x32xbf16>, vector<8x64x32xbf16>, vector<8x64x64xf32> -> vector<8x64x64xf32>
    %cst_57 = arith.constant -1.000000e+30 : f32
    "tpu.trace_stop"() : () -> ()
    %182 = vector.shape_cast %3 : vector<64x64xi1> to vector<1x64x64xi1>
    %183 = vector.broadcast %182 : vector<1x64x64xi1> to vector<8x64x64xi1>
    %184 = vector.broadcast %cst_57 : f32 to vector<8x64x64xf32>
    %185 = arith.select %183, %181, %184 : vector<8x64x64xi1>, vector<8x64x64xf32>
    %cst_58 = arith.constant dense<0xFF800000> : vector<8x64xf32>
    %186 = vector.multi_reduction <maximumf>, %185, %cst_58 [2] : vector<8x64x64xf32> to vector<8x64xf32>
    %187 = vector.shape_cast %186 : vector<8x64xf32> to vector<8x64x1xf32>
    %188 = vector.broadcast %187 : vector<8x64x1xf32> to vector<8x64x64xf32>
    %189 = arith.subf %185, %188 : vector<8x64x64xf32>
    %190 = math.exp %189 : vector<8x64x64xf32>
    %cst_59 = arith.constant dense<0.000000e+00> : vector<8x64xf32>
    %191 = vector.multi_reduction <add>, %190, %cst_59 [2] : vector<8x64x64xf32> to vector<8x64xf32>
    %192 = vector.shape_cast %191 : vector<8x64xf32> to vector<8x64x1xf32>
    %193 = tpu.reciprocal %192 {approx = true} : vector<8x64x1xf32> -> vector<8x64x1xf32>
    %194 = vector.broadcast %193 : vector<8x64x1xf32> to vector<8x64x64xf32>
    %195 = arith.mulf %190, %194 : vector<8x64x64xf32>
    %196 = arith.truncf %195 : vector<8x64x64xf32> to vector<8x64x64xbf16>
    "tpu.trace_start"() <{level = 10 : i32, message = "bqk,bkd->bqd"}> : () -> ()
    %cst_60 = arith.constant dense<0.000000e+00> : vector<8x64x32xf32>
    %197 = tpu.matmul %196, %180, %cst_60 {dimension_numbers = #tpu.dot_dimension_numbers<[2], [1], [1], [2], [0, 0, 0, 1, 1, 2], [0], [0]>} : vector<8x64x64xbf16>, vector<8x64x32xbf16>, vector<8x64x32xf32> -> vector<8x64x32xf32>
    "tpu.trace_stop"() : () -> ()
    %198 = vector.shape_cast %197 : vector<8x64x32xf32> to vector<4x128x32xf32>
    %199 = arith.truncf %198 : vector<4x128x32xf32> to vector<4x128x32xbf16>
    %200 = vector.extract_strided_slice %199 {offsets = [0, 0, 0], sizes = [1, 128, 32], strides = [1, 1, 1]} : vector<4x128x32xbf16> to vector<1x128x32xbf16>
    %201 = vector.shape_cast %200 : vector<1x128x32xbf16> to vector<128x32xbf16>
    %202 = vector.extract_strided_slice %199 {offsets = [1, 0, 0], sizes = [1, 128, 32], strides = [1, 1, 1]} : vector<4x128x32xbf16> to vector<1x128x32xbf16>
    %203 = vector.shape_cast %202 : vector<1x128x32xbf16> to vector<128x32xbf16>
    %204 = vector.extract_strided_slice %199 {offsets = [2, 0, 0], sizes = [1, 128, 32], strides = [1, 1, 1]} : vector<4x128x32xbf16> to vector<1x128x32xbf16>
    %205 = vector.shape_cast %204 : vector<1x128x32xbf16> to vector<128x32xbf16>
    %206 = vector.extract_strided_slice %199 {offsets = [3, 0, 0], sizes = [1, 128, 32], strides = [1, 1, 1]} : vector<4x128x32xbf16> to vector<1x128x32xbf16>
    %207 = vector.shape_cast %206 : vector<1x128x32xbf16> to vector<128x32xbf16>
    %208 = tpu.concatenate %201, %203, %205, %207 in 1 : vector<128x32xbf16>, vector<128x32xbf16>, vector<128x32xbf16>, vector<128x32xbf16> -> vector<128x128xbf16>
    %c1_61 = arith.constant 1 : index
    %c0_62 = arith.constant 0 : index
    %c0_63 = arith.constant 0 : index
    %209 = vector.load %arg2[%c1_61, %c0_62, %c0_63] : memref<2x128x128xbf16, #tpu.memory_space<vmem>>, vector<1x128x128xbf16>
    %210 = vector.shape_cast %209 : vector<1x128x128xbf16> to vector<128x128xbf16>
    %cst_64 = arith.constant dense<0.000000e+00> : vector<128x128xf32>
    %211 = tpu.matmul %208, %210, %cst_64 {dimension_numbers = #tpu.dot_dimension_numbers<[1], [0], [0], [1], [0, 0, 1, 1], [], []>} : vector<128x128xbf16>, vector<128x128xbf16>, vector<128x128xf32> -> vector<128x128xf32>
    %c1_65 = arith.constant 1 : index
    %c0_66 = arith.constant 0 : index
    %c0_67 = arith.constant 0 : index
    %212 = vector.load %arg3[%c1_65, %c0_66, %c0_67] : memref<2x1x128xf32, #tpu.memory_space<vmem>>, vector<1x1x128xf32>
    %213 = vector.shape_cast %212 : vector<1x1x128xf32> to vector<1x128xf32>
    %214 = vector.broadcast %213 : vector<1x128xf32> to vector<128x128xf32>
    %215 = arith.addf %211, %214 : vector<128x128xf32>
    %216 = arith.addf %145, %215 : vector<128x128xf32>
    %c1_68 = arith.constant 1 : index
    %c0_69 = arith.constant 0 : index
    %c0_70 = arith.constant 0 : index
    %217 = vector.load %arg8[%c1_68, %c0_69, %c0_70] : memref<2x1x128xf32, #tpu.memory_space<vmem>>, vector<1x1x128xf32>
    %218 = vector.shape_cast %217 : vector<1x1x128xf32> to vector<1x128xf32>
    %c1_71 = arith.constant 1 : index
    %c0_72 = arith.constant 0 : index
    %c0_73 = arith.constant 0 : index
    %219 = vector.load %arg9[%c1_71, %c0_72, %c0_73] : memref<2x1x128xf32, #tpu.memory_space<vmem>>, vector<1x1x128xf32>
    %220 = vector.shape_cast %219 : vector<1x1x128xf32> to vector<1x128xf32>
    %cst_74 = arith.constant dense<0.000000e+00> : vector<128xf32>
    %221 = vector.multi_reduction <add>, %216, %cst_74 [1] : vector<128x128xf32> to vector<128xf32>
    %222 = vector.shape_cast %221 : vector<128xf32> to vector<128x1xf32>
    %cst_75 = arith.constant 1.280000e+02 : f32
    %223 = vector.broadcast %cst_75 : f32 to vector<128x1xf32>
    %224 = arith.divf %222, %223 : vector<128x1xf32>
    %225 = vector.broadcast %224 : vector<128x1xf32> to vector<128x128xf32>
    %226 = arith.subf %216, %225 : vector<128x128xf32>
    %227 = arith.mulf %226, %226 : vector<128x128xf32>
    %cst_76 = arith.constant dense<0.000000e+00> : vector<128xf32>
    %228 = vector.multi_reduction <add>, %227, %cst_76 [1] : vector<128x128xf32> to vector<128xf32>
    %229 = vector.shape_cast %228 : vector<128xf32> to vector<128x1xf32>
    %cst_77 = arith.constant 1.280000e+02 : f32
    %230 = vector.broadcast %cst_77 : f32 to vector<128x1xf32>
    %231 = arith.divf %229, %230 : vector<128x1xf32>
    %232 = vector.broadcast %224 : vector<128x1xf32> to vector<128x128xf32>
    %233 = arith.subf %216, %232 : vector<128x128xf32>
    %cst_78 = arith.constant 9.99999974E-6 : f32
    %234 = vector.broadcast %cst_78 : f32 to vector<128x1xf32>
    %235 = arith.addf %231, %234 : vector<128x1xf32>
    %236 = math.rsqrt %235 : vector<128x1xf32>
    %237 = vector.broadcast %236 : vector<128x1xf32> to vector<128x128xf32>
    %238 = arith.mulf %233, %237 : vector<128x128xf32>
    %239 = vector.broadcast %218 : vector<1x128xf32> to vector<128x128xf32>
    %240 = arith.mulf %238, %239 : vector<128x128xf32>
    %241 = vector.broadcast %220 : vector<1x128xf32> to vector<128x128xf32>
    %242 = arith.addf %240, %241 : vector<128x128xf32>
    %243 = arith.truncf %242 : vector<128x128xf32> to vector<128x128xbf16>
    %c1_79 = arith.constant 1 : index
    %c0_80 = arith.constant 0 : index
    %c0_81 = arith.constant 0 : index
    %244 = vector.load %arg4[%c1_79, %c0_80, %c0_81] : memref<2x128x512xbf16, #tpu.memory_space<vmem>>, vector<1x128x512xbf16>
    %245 = vector.shape_cast %244 : vector<1x128x512xbf16> to vector<128x512xbf16>
    %cst_82 = arith.constant dense<0.000000e+00> : vector<128x512xf32>
    %246 = tpu.matmul %243, %245, %cst_82 {dimension_numbers = #tpu.dot_dimension_numbers<[1], [0], [0], [1], [0, 0, 1, 1], [], []>} : vector<128x128xbf16>, vector<128x512xbf16>, vector<128x512xf32> -> vector<128x512xf32>
    %c1_83 = arith.constant 1 : index
    %c0_84 = arith.constant 0 : index
    %c0_85 = arith.constant 0 : index
    %247 = vector.load %arg5[%c1_83, %c0_84, %c0_85] : memref<2x1x512xf32, #tpu.memory_space<vmem>>, vector<1x1x512xf32>
    %248 = vector.shape_cast %247 : vector<1x1x512xf32> to vector<1x512xf32>
    %249 = vector.broadcast %248 : vector<1x512xf32> to vector<128x512xf32>
    %250 = arith.addf %246, %249 : vector<128x512xf32>
    %cst_86 = arith.constant 0.000000e+00 : f32
    %251 = vector.broadcast %cst_86 : f32 to vector<128x512xf32>
    %252 = arith.maximumf %250, %251 : vector<128x512xf32>
    %253 = arith.truncf %252 : vector<128x512xf32> to vector<128x512xbf16>
    %c1_87 = arith.constant 1 : index
    %c0_88 = arith.constant 0 : index
    %c0_89 = arith.constant 0 : index
    %254 = vector.load %arg6[%c1_87, %c0_88, %c0_89] : memref<2x512x128xbf16, #tpu.memory_space<vmem>>, vector<1x512x128xbf16>
    %255 = vector.shape_cast %254 : vector<1x512x128xbf16> to vector<512x128xbf16>
    %cst_90 = arith.constant dense<0.000000e+00> : vector<128x128xf32>
    %256 = tpu.matmul %253, %255, %cst_90 {dimension_numbers = #tpu.dot_dimension_numbers<[1], [0], [0], [1], [0, 0, 1, 1], [], []>} : vector<128x512xbf16>, vector<512x128xbf16>, vector<128x128xf32> -> vector<128x128xf32>
    %c1_91 = arith.constant 1 : index
    %c0_92 = arith.constant 0 : index
    %c0_93 = arith.constant 0 : index
    %257 = vector.load %arg7[%c1_91, %c0_92, %c0_93] : memref<2x1x128xf32, #tpu.memory_space<vmem>>, vector<1x1x128xf32>
    %258 = vector.shape_cast %257 : vector<1x1x128xf32> to vector<1x128xf32>
    %259 = vector.broadcast %258 : vector<1x128xf32> to vector<128x128xf32>
    %260 = arith.addf %256, %259 : vector<128x128xf32>
    %261 = arith.addf %242, %260 : vector<128x128xf32>
    %c1_94 = arith.constant 1 : index
    %c0_95 = arith.constant 0 : index
    %c0_96 = arith.constant 0 : index
    %262 = vector.load %arg10[%c1_94, %c0_95, %c0_96] : memref<2x1x128xf32, #tpu.memory_space<vmem>>, vector<1x1x128xf32>
    %263 = vector.shape_cast %262 : vector<1x1x128xf32> to vector<1x128xf32>
    %c1_97 = arith.constant 1 : index
    %c0_98 = arith.constant 0 : index
    %c0_99 = arith.constant 0 : index
    %264 = vector.load %arg11[%c1_97, %c0_98, %c0_99] : memref<2x1x128xf32, #tpu.memory_space<vmem>>, vector<1x1x128xf32>
    %265 = vector.shape_cast %264 : vector<1x1x128xf32> to vector<1x128xf32>
    %cst_100 = arith.constant dense<0.000000e+00> : vector<128xf32>
    %266 = vector.multi_reduction <add>, %261, %cst_100 [1] : vector<128x128xf32> to vector<128xf32>
    %267 = vector.shape_cast %266 : vector<128xf32> to vector<128x1xf32>
    %cst_101 = arith.constant 1.280000e+02 : f32
    %268 = vector.broadcast %cst_101 : f32 to vector<128x1xf32>
    %269 = arith.divf %267, %268 : vector<128x1xf32>
    %270 = vector.broadcast %269 : vector<128x1xf32> to vector<128x128xf32>
    %271 = arith.subf %261, %270 : vector<128x128xf32>
    %272 = arith.mulf %271, %271 : vector<128x128xf32>
    %cst_102 = arith.constant dense<0.000000e+00> : vector<128xf32>
    %273 = vector.multi_reduction <add>, %272, %cst_102 [1] : vector<128x128xf32> to vector<128xf32>
    %274 = vector.shape_cast %273 : vector<128xf32> to vector<128x1xf32>
    %cst_103 = arith.constant 1.280000e+02 : f32
    %275 = vector.broadcast %cst_103 : f32 to vector<128x1xf32>
    %276 = arith.divf %274, %275 : vector<128x1xf32>
    %277 = vector.broadcast %269 : vector<128x1xf32> to vector<128x128xf32>
    %278 = arith.subf %261, %277 : vector<128x128xf32>
    %cst_104 = arith.constant 9.99999974E-6 : f32
    %279 = vector.broadcast %cst_104 : f32 to vector<128x1xf32>
    %280 = arith.addf %276, %279 : vector<128x1xf32>
    %281 = math.rsqrt %280 : vector<128x1xf32>
    %282 = vector.broadcast %281 : vector<128x1xf32> to vector<128x128xf32>
    %283 = arith.mulf %278, %282 : vector<128x128xf32>
    %284 = vector.broadcast %263 : vector<1x128xf32> to vector<128x128xf32>
    %285 = arith.mulf %283, %284 : vector<128x128xf32>
    %286 = vector.broadcast %265 : vector<1x128xf32> to vector<128x128xf32>
    %287 = arith.addf %285, %286 : vector<128x128xf32>
    %c0_105 = arith.constant 0 : index
    %c0_106 = arith.constant 0 : index
    %288 = vector.load %arg12[%c0_105, %c0_106] : memref<1x128xf32, #tpu.memory_space<vmem>>, vector<1x128xf32>
    %c0_107 = arith.constant 0 : index
    %c0_108 = arith.constant 0 : index
    %289 = vector.load %arg13[%c0_107, %c0_108] : memref<1x128xf32, #tpu.memory_space<vmem>>, vector<1x128xf32>
    %cst_109 = arith.constant dense<0.000000e+00> : vector<128xf32>
    %290 = vector.multi_reduction <add>, %287, %cst_109 [1] : vector<128x128xf32> to vector<128xf32>
    %291 = vector.shape_cast %290 : vector<128xf32> to vector<128x1xf32>
    %cst_110 = arith.constant 1.280000e+02 : f32
    %292 = vector.broadcast %cst_110 : f32 to vector<128x1xf32>
    %293 = arith.divf %291, %292 : vector<128x1xf32>
    %294 = vector.broadcast %293 : vector<128x1xf32> to vector<128x128xf32>
    %295 = arith.subf %287, %294 : vector<128x128xf32>
    %296 = arith.mulf %295, %295 : vector<128x128xf32>
    %cst_111 = arith.constant dense<0.000000e+00> : vector<128xf32>
    %297 = vector.multi_reduction <add>, %296, %cst_111 [1] : vector<128x128xf32> to vector<128xf32>
    %298 = vector.shape_cast %297 : vector<128xf32> to vector<128x1xf32>
    %cst_112 = arith.constant 1.280000e+02 : f32
    %299 = vector.broadcast %cst_112 : f32 to vector<128x1xf32>
    %300 = arith.divf %298, %299 : vector<128x1xf32>
    %301 = vector.broadcast %293 : vector<128x1xf32> to vector<128x128xf32>
    %302 = arith.subf %287, %301 : vector<128x128xf32>
    %cst_113 = arith.constant 9.99999974E-6 : f32
    %303 = vector.broadcast %cst_113 : f32 to vector<128x1xf32>
    %304 = arith.addf %300, %303 : vector<128x1xf32>
    %305 = math.rsqrt %304 : vector<128x1xf32>
    %306 = vector.broadcast %305 : vector<128x1xf32> to vector<128x128xf32>
    %307 = arith.mulf %302, %306 : vector<128x128xf32>
    %308 = vector.broadcast %288 : vector<1x128xf32> to vector<128x128xf32>
    %309 = arith.mulf %307, %308 : vector<128x128xf32>
    %310 = vector.broadcast %289 : vector<1x128xf32> to vector<128x128xf32>
    %311 = arith.addf %309, %310 : vector<128x128xf32>
    %312 = arith.truncf %311 : vector<128x128xf32> to vector<128x128xbf16>
    %c0_114 = arith.constant 0 : index
    %c0_115 = arith.constant 0 : index
    %313 = vector.load %arg14[%c0_114, %c0_115] : memref<128x128xbf16, #tpu.memory_space<vmem>>, vector<128x128xbf16>
    %cst_116 = arith.constant dense<0.000000e+00> : vector<128x128xf32>
    %314 = tpu.matmul %312, %313, %cst_116 {dimension_numbers = #tpu.dot_dimension_numbers<[1], [0], [0], [1], [0, 0, 1, 1], [], []>} : vector<128x128xbf16>, vector<128x128xbf16>, vector<128x128xf32> -> vector<128x128xf32>
    %c0_117 = arith.constant 0 : index
    %c0_118 = arith.constant 0 : index
    %315 = vector.load %arg15[%c0_117, %c0_118] : memref<1x128xf32, #tpu.memory_space<vmem>>, vector<1x128xf32>
    %316 = vector.broadcast %315 : vector<1x128xf32> to vector<128x128xf32>
    %317 = arith.addf %314, %316 : vector<128x128xf32>
    %c0_119 = arith.constant 0 : index
    %c0_120 = arith.constant 0 : index
    %318 = vector.load %arg16[%c0_119, %c0_120] : memref<128x128xf32, #tpu.memory_space<vmem>>, vector<128x128xf32>
    tpu.vector_store %arg16[%c0_119, %c0_120], %317 {strides = array<i32>} : memref<128x128xf32, #tpu.memory_space<vmem>>, vector<128x128xf32>,
    return
  }
}

</mosaic_0001>

<llo_original>
// kernel: forward.1
$region0: #{forward.1}
  #allocation0 [shape = 'u32[]', space=smem, size = 0x4, offset = 0x4, fixed_abs, tag = 'smem constant byte address 0x4 - core index']
  #allocation1 [shape = 'u32[144,128]{1,0:T(1,128)}', space=vmem, size = 0x12000, scoped, tag = 'internal scratch']
  %s0 = inlined_call_operand.vmem [shape: f32[128,128], index: 0, kind: input, shape index: {}]
  %s1 = inlined_call_operand.vmem [shape: bf16[2,128,384], index: 1, kind: input, shape index: {}]
  %s2 = inlined_call_operand.vmem [shape: bf16[2,128,128], index: 2, kind: input, shape index: {}]
  %s3 = inlined_call_operand.hbm [shape: f32[2,1,128], index: 3, kind: input, shape index: {}]
  %s4 = inlined_call_operand.vmem [shape: bf16[2,128,512], index: 4, kind: input, shape index: {}]
  %s5 = inlined_call_operand.hbm [shape: f32[2,1,512], index: 5, kind: input, shape index: {}]
  %s6 = inlined_call_operand.vmem [shape: bf16[2,512,128], index: 6, kind: input, shape index: {}]
  %s7 = inlined_call_operand.hbm [shape: f32[2,1,128], index: 7, kind: input, shape index: {}]
  %s8 = inlined_call_operand.hbm [shape: f32[2,1,128], index: 8, kind: input, shape index: {}]
  %s9 = inlined_call_operand.hbm [shape: f32[2,1,128], index: 9, kind: input, shape index: {}]
  %s10 = inlined_call_operand.hbm [shape: f32[2,1,128], index: 10, kind: input, shape index: {}]
  %s11 = inlined_call_operand.hbm [shape: f32[2,1,128], index: 11, kind: input, shape index: {}]
  %s12 = inlined_call_operand.hbm [shape: f32[1,128], index: 12, kind: input, shape index: {}]
  %s13 = inlined_call_operand.hbm [shape: f32[1,128], index: 13, kind: input, shape index: {}]
  %s14 = inlined_call_operand.hbm [shape: bf16[128,128], index: 14, kind: input, shape index: {}]
  %s15 = inlined_call_operand.hbm [shape: f32[1,128], index: 15, kind: input, shape index: {}]
  %s16 = inlined_call_operand.hbm [shape: f32[128,128], index: 16, kind: output, shape index: {}]
  %s17 = sld [smem:[#allocation0]]
  $region118: #{forward.1} parent=0
    _
  %s19 = ssub.s32 1, %s17
  %s20 = scalar_select 0, %s19, %s17
  $region1: #{forward.1} parent=0
    #allocation2 [shape = 'u8[1024]{0}', space=vmem, size = 0x400, scoped, tag = 'input window, operand 3, single buffered']
    #allocation3 [shape = 's32[1]{0}', space=sflag, size = 0x4, scoped, tag = 'scoped memory for forward.1']
    #allocation4 [shape = 's32[1]{0}', space=sflag, size = 0x4, scoped, tag = 'scoped memory for forward.1']
    #allocation5 [shape = 'u8[4096]{0}', space=vmem, size = 0x1000, scoped, tag = 'input window, operand 5, single buffered']
    #allocation6 [shape = 's32[1]{0}', space=sflag, size = 0x4, scoped, tag = 'scoped memory for forward.1']
    #allocation7 [shape = 'u8[1024]{0}', space=vmem, size = 0x400, scoped, tag = 'input window, operand 7, single buffered']
    #allocation8 [shape = 'u8[1024]{0}', space=vmem, size = 0x400, scoped, tag = 'input window, operand 8, single buffered']
    #allocation9 [shape = 's32[1]{0}', space=sflag, size = 0x4, scoped, tag = 'scoped memory for forward.1']
    #allocation10 [shape = 'u8[1024]{0}', space=vmem, size = 0x400, scoped, tag = 'input window, operand 9, single buffered']
    #allocation11 [shape = 'u8[1024]{0}', space=vmem, size = 0x400, scoped, tag = 'input window, operand 10, single buffered']
    #allocation12 [shape = 's32[1]{0}', space=sflag, size = 0x4, scoped, tag = 'scoped memory for forward.1']
    #allocation13 [shape = 'u8[1024]{0}', space=vmem, size = 0x400, scoped, tag = 'input window, operand 11, single buffered']
    #allocation14 [shape = 'u8[512]{0}', space=vmem, size = 0x400, scoped, tag = 'input window, operand 12, single buffered']
    #allocation15 [shape = 's32[1]{0}', space=sflag, size = 0x4, scoped, tag = 'scoped memory for forward.1']
    #allocation16 [shape = 'u8[512]{0}', space=vmem, size = 0x400, scoped, tag = 'input window, operand 13, single buffered']
    #allocation17 [shape = 'u8[32768]{0}', space=vmem, size = 0x8000, scoped, tag = 'input window, operand 14, single buffered']
    #allocation18 [shape = 's32[1]{0}', space=sflag, size = 0x4, scoped, tag = 'scoped memory for forward.1']
    #allocation19 [shape = 'u8[512]{0}', space=vmem, size = 0x400, scoped, tag = 'input window, operand 15, single buffered']
    #allocation20 [shape = 'u8[65536]{0}', space=vmem, size = 0x10000, scoped, tag = 'output window, operand 0, single buffered']
    %21 = vsyncpa [#allocation3], 0
    %22 = vsyncpa [#allocation6], 0
    %23 = vsyncpa [#allocation9], 0
    %24 = vsyncpa [#allocation12], 0
    %25 = vsyncpa [#allocation15], 0
    %26 = vsyncpa [#allocation18], 0
    %27 = vsyncpa [#allocation4], 0
    // Predicated region
    $region2: #{forward.1} parent=1 // pred_check
      _
    $region3: #{forward.1} parent=1 // pred_check_branch
      %29 = sbr.rel (0) target = $region5
    $region4: #{forward.1} parent=1 // pred_region
      _
    $region5: #{forward.1} parent=1 // pred_fallthru
      _
    // Predicated region
    $region6: #{forward.1} parent=1 // pred_check
      _
    $region7: #{forward.1} parent=1 // pred_check_branch
      %31 = sbr.rel (0) target = $region9
    $region8: #{forward.1} parent=1 // pred_region
      _
    $region9: #{forward.1} parent=1 // pred_fallthru
      _
    // Predicated region
    $region10: #{forward.1} parent=1 // pred_check
      _
    $region11: #{forward.1} parent=1 // pred_check_branch
      %33 = sbr.rel (0) target = $region13
    $region12: #{forward.1} parent=1 // pred_region
      _
    $region13: #{forward.1} parent=1 // pred_fallthru
      _
    // Predicated region
    $region14: #{forward.1} parent=1 // pred_check
      _
    $region15: #{forward.1} parent=1 // pred_check_branch
      %35 = sbr.rel (0) target = $region17
    $region16: #{forward.1} parent=1 // pred_region
      %s37 = ssub.s32 32, 32
      %38 = vsyncadd [#allocation3], %s37
      %s39 = sshll.u32 [#allocation2], 4
      %s40 = int_to_ptr.vmem [resolvable:$true] %s39
      %45 = dma.hbm_to_vmem [thread:$0]  %s3, 32, %s40, [#allocation3], 16, 16, 1
    $region17: #{forward.1} parent=1 // pred_fallthru
      _
    // Predicated region
    $region18: #{forward.1} parent=1 // pred_check
      _
    $region19: #{forward.1} parent=1 // pred_check_branch
      %47 = sbr.rel (0) target = $region21
    $region20: #{forward.1} parent=1 // pred_region
      _
    $region21: #{forward.1} parent=1 // pred_fallthru
      _
    // Predicated region
    $region22: #{forward.1} parent=1 // pred_check
      _
    $region23: #{forward.1} parent=1 // pred_check_branch
      %49 = sbr.rel (0) target = $region25
    $region24: #{forward.1} parent=1 // pred_region
      %s51 = ssub.s32 128, 128
      %52 = vsyncadd [#allocation6], %s51
      %s53 = sshll.u32 [#allocation5], 4
      %s54 = int_to_ptr.vmem [resolvable:$true] %s53
      %59 = dma.hbm_to_vmem [thread:$0]  %s5, 128, %s54, [#allocation6], 64, 64, 4
    $region25: #{forward.1} parent=1 // pred_fallthru
      _
    // Predicated region
    $region26: #{forward.1} parent=1 // pred_check
      _
    $region27: #{forward.1} parent=1 // pred_check_branch
      %61 = sbr.rel (0) target = $region29
    $region28: #{forward.1} parent=1 // pred_region
      _
    $region29: #{forward.1} parent=1 // pred_fallthru
      _
    // Predicated region
    $region30: #{forward.1} parent=1 // pred_check
      _
    $region31: #{forward.1} parent=1 // pred_check_branch
      %63 = sbr.rel (0) target = $region33
    $region32: #{forward.1} parent=1 // pred_region
      %s65 = ssub.s32 32, 32
      %66 = vsyncadd [#allocation6], %s65
      %s67 = sshll.u32 [#allocation7], 4
      %s68 = int_to_ptr.vmem [resolvable:$true] %s67
      %73 = dma.hbm_to_vmem [thread:$0]  %s7, 32, %s68, [#allocation6], 16, 16, 1
    $region33: #{forward.1} parent=1 // pred_fallthru
      _
    // Predicated region
    $region34: #{forward.1} parent=1 // pred_check
      _
    $region35: #{forward.1} parent=1 // pred_check_branch
      %75 = sbr.rel (0) target = $region37
    $region36: #{forward.1} parent=1 // pred_region
      %s77 = ssub.s32 32, 32
      %78 = vsyncadd [#allocation9], %s77
      %s79 = sshll.u32 [#allocation8], 4
      %s80 = int_to_ptr.vmem [resolvable:$true] %s79
      %85 = dma.hbm_to_vmem [thread:$0]  %s8, 32, %s80, [#allocation9], 16, 16, 1
    $region37: #{forward.1} parent=1 // pred_fallthru
      _
    // Predicated region
    $region38: #{forward.1} parent=1 // pred_check
      _
    $region39: #{forward.1} parent=1 // pred_check_branch
      %87 = sbr.rel (0) target = $region41
    $region40: #{forward.1} parent=1 // pred_region
      %s89 = ssub.s32 32, 32
      %90 = vsyncadd [#allocation9], %s89
      %s91 = sshll.u32 [#allocation10], 4
      %s92 = int_to_ptr.vmem [resolvable:$true] %s91
      %97 = dma.hbm_to_vmem [thread:$0]  %s9, 32, %s92, [#allocation9], 16, 16, 1
    $region41: #{forward.1} parent=1 // pred_fallthru
      _
    // Predicated region
    $region42: #{forward.1} parent=1 // pred_check
      _
    $region43: #{forward.1} parent=1 // pred_check_branch
      %99 = sbr.rel (0) target = $region45
    $region44: #{forward.1} parent=1 // pred_region
      %s101 = ssub.s32 32, 32
      %102 = vsyncadd [#allocation12], %s101
      %s103 = sshll.u32 [#allocation11], 4
      %s104 = int_to_ptr.vmem [resolvable:$true] %s103
      %109 = dma.hbm_to_vmem [thread:$0]  %s10, 32, %s104, [#allocation12], 16, 16, 1
    $region45: #{forward.1} parent=1 // pred_fallthru
      _
    // Predicated region
    $region46: #{forward.1} parent=1 // pred_check
      _
    $region47: #{forward.1} parent=1 // pred_check_branch
      %111 = sbr.rel (0) target = $region49
    $region48: #{forward.1} parent=1 // pred_region
      %s113 = ssub.s32 32, 32
      %114 = vsyncadd [#allocation12], %s113
      %s115 = sshll.u32 [#allocation13], 4
      %s116 = int_to_ptr.vmem [resolvable:$true] %s115
      %121 = dma.hbm_to_vmem [thread:$0]  %s11, 32, %s116, [#allocation12], 16, 16, 1
    $region49: #{forward.1} parent=1 // pred_fallthru
      _
    // Predicated region
    $region50: #{forward.1} parent=1 // pred_check
      _
    $region51: #{forward.1} parent=1 // pred_check_branch
      %123 = sbr.rel (0) target = $region53
    $region52: #{forward.1} parent=1 // pred_region
      %s125 = ssub.s32 16, 16
      %126 = vsyncadd [#allocation15], %s125
      %s128 = sshll.u32 [#allocation14], 4
      %s129 = int_to_ptr.vmem [resolvable:$true] %s128
      %131 = dma.hbm_to_vmem [thread:$0]  %s12, 16, %s129, [#allocation15]
    $region53: #{forward.1} parent=1 // pred_fallthru
      _
    // Predicated region
    $region54: #{forward.1} parent=1 // pred_check
      _
    $region55: #{forward.1} parent=1 // pred_check_branch
      %133 = sbr.rel (0) target = $region57
    $region56: #{forward.1} parent=1 // pred_region
      %s135 = ssub.s32 16, 16
      %136 = vsyncadd [#allocation15], %s135
      %s138 = sshll.u32 [#allocation16], 4
      %s139 = int_to_ptr.vmem [resolvable:$true] %s138
      %141 = dma.hbm_to_vmem [thread:$0]  %s13, 16, %s139, [#allocation15]
    $region57: #{forward.1} parent=1 // pred_fallthru
      _
    // Predicated region
    $region58: #{forward.1} parent=1 // pred_check
      _
    $region59: #{forward.1} parent=1 // pred_check_branch
      %143 = sbr.rel (0) target = $region61
    $region60: #{forward.1} parent=1 // pred_region
      %s145 = ssub.s32 1024, 1024
      %146 = vsyncadd [#allocation18], %s145
      %s147 = sshll.u32 [#allocation17], 4
      %s148 = int_to_ptr.vmem [resolvable:$true] %s147
      %153 = dma.hbm_to_vmem [thread:$0]  %s14, 1024, %s148, [#allocation18], 64, 64, 4
    $region61: #{forward.1} parent=1 // pred_fallthru
      _
    // Predicated region
    $region62: #{forward.1} parent=1 // pred_check
      _
    $region63: #{forward.1} parent=1 // pred_check_branch
      %155 = sbr.rel (0) target = $region65
    $region64: #{forward.1} parent=1 // pred_region
      %s157 = ssub.s32 16, 16
      %158 = vsyncadd [#allocation18], %s157
      %s160 = sshll.u32 [#allocation19], 4
      %s161 = int_to_ptr.vmem [resolvable:$true] %s160
      %163 = dma.hbm_to_vmem [thread:$0]  %s15, 16, %s161, [#allocation18]
    $region65: #{forward.1} parent=1 // pred_fallthru
      _
    // Predicated region
    $region66: #{forward.1} parent=1 // pred_check
      _
    $region67: #{forward.1} parent=1 // pred_check_branch
      %165 = sbr.rel (0) target = $region69
    $region68: #{forward.1} parent=1 // pred_region
      %166 = dma.done [#allocation3], 32
    $region69: #{forward.1} parent=1 // pred_fallthru
      _
    // Predicated region
    $region70: #{forward.1} parent=1 // pred_check
      _
    $region71: #{forward.1} parent=1 // pred_check_branch
      %168 = sbr.rel (0) target = $region73
    $region72: #{forward.1} parent=1 // pred_region
      %169 = dma.done [#allocation6], 128
    $region73: #{forward.1} parent=1 // pred_fallthru
      _
    // Predicated region
    $region74: #{forward.1} parent=1 // pred_check
      _
    $region75: #{forward.1} parent=1 // pred_check_branch
      %171 = sbr.rel (0) target = $region77
    $region76: #{forward.1} parent=1 // pred_region
      %172 = dma.done [#allocation6], 32
    $region77: #{forward.1} parent=1 // pred_fallthru
      _
    // Predicated region
    $region78: #{forward.1} parent=1 // pred_check
      _
    $region79: #{forward.1} parent=1 // pred_check_branch
      %174 = sbr.rel (0) target = $region81
    $region80: #{forward.1} parent=1 // pred_region
      %175 = dma.done [#allocation9], 32
    $region81: #{forward.1} parent=1 // pred_fallthru
      _
    // Predicated region
    $region82: #{forward.1} parent=1 // pred_check
      _
    $region83: #{forward.1} parent=1 // pred_check_branch
      %177 = sbr.rel (0) target = $region85
    $region84: #{forward.1} parent=1 // pred_region
      %178 = dma.done [#allocation9], 32
    $region85: #{forward.1} parent=1 // pred_fallthru
      _
    // Predicated region
    $region86: #{forward.1} parent=1 // pred_check
      _
    $region87: #{forward.1} parent=1 // pred_check_branch
      %180 = sbr.rel (0) target = $region89
    $region88: #{forward.1} parent=1 // pred_region
      %181 = dma.done [#allocation12], 32
    $region89: #{forward.1} parent=1 // pred_fallthru
      _
    // Predicated region
    $region90: #{forward.1} parent=1 // pred_check
      _
    $region91: #{forward.1} parent=1 // pred_check_branch
      %183 = sbr.rel (0) target = $region93
    $region92: #{forward.1} parent=1 // pred_region
      %184 = dma.done [#allocation12], 32
    $region93: #{forward.1} parent=1 // pred_fallthru
      _
    // Predicated region
    $region94: #{forward.1} parent=1 // pred_check
      _
    $region95: #{forward.1} parent=1 // pred_check_branch
      %186 = sbr.rel (0) target = $region97
    $region96: #{forward.1} parent=1 // pred_region
      %187 = dma.done [#allocation15], 16
    $region97: #{forward.1} parent=1 // pred_fallthru
      _
    // Predicated region
    $region98: #{forward.1} parent=1 // pred_check
      _
    $region99: #{forward.1} parent=1 // pred_check_branch
      %189 = sbr.rel (0) target = $region101
    $region100: #{forward.1} parent=1 // pred_region
      %190 = dma.done [#allocation15], 16
    $region101: #{forward.1} parent=1 // pred_fallthru
      _
    // Predicated region
    $region102: #{forward.1} parent=1 // pred_check
      _
    $region103: #{forward.1} parent=1 // pred_check_branch
      %192 = sbr.rel (0) target = $region105
    $region104: #{forward.1} parent=1 // pred_region
      %193 = dma.done [#allocation18], 1024
    $region105: #{forward.1} parent=1 // pred_fallthru
      _
    // Predicated region
    $region106: #{forward.1} parent=1 // pred_check
      _
    $region107: #{forward.1} parent=1 // pred_check_branch
      %195 = sbr.rel (0) target = $region109
    $region108: #{forward.1} parent=1 // pred_region
      %196 = dma.done [#allocation18], 16
    $region109: #{forward.1} parent=1 // pred_fallthru
      _
    %v198 = vld [vmem:[%s0] sm:$0xff]
    %v199 = vld [vmem:[%s0 + $0x8] sm:$0xff]
    %v200 = vld [vmem:[%s0 + $0x10] sm:$0xff]
    %v201 = vld [vmem:[%s0 + $0x18] sm:$0xff]
    %v202 = vld [vmem:[%s0 + $0x20] sm:$0xff]
    %v203 = vld [vmem:[%s0 + $0x28] sm:$0xff]
    %v204 = vld [vmem:[%s0 + $0x30] sm:$0xff]
    %v205 = vld [vmem:[%s0 + $0x38] sm:$0xff]
    %v206 = vld [vmem:[%s0 + $0x40] sm:$0xff]
    %v207 = vld [vmem:[%s0 + $0x48] sm:$0xff]
    %v208 = vld [vmem:[%s0 + $0x50] sm:$0xff]
    %v209 = vld [vmem:[%s0 + $0x58] sm:$0xff]
    %v210 = vld [vmem:[%s0 + $0x60] sm:$0xff]
    %v211 = vld [vmem:[%s0 + $0x68] sm:$0xff]
    %v212 = vld [vmem:[%s0 + $0x70] sm:$0xff]
    %v213 = vld [vmem:[%s0 + $0x78] sm:$0xff]
    %v214 = vlaneseq
    %v215 = vshrl.u32 %v214, 7
    %v216 = vadd.s32 %v215, 8
    %v217 = vadd.s32 %v215, 16
    %v218 = vadd.s32 %v215, 24
    %v219 = vadd.s32 %v215, 32
    %v220 = vadd.s32 %v215, 40
    %v221 = vadd.s32 %v215, 48
    %v222 = vadd.s32 %v215, 56
    %v223 = vlaneseq
    %v224 = vand.u32 %v223, 127
    %vm225 = vcmp.le.s32.totalorder %v224, %v215
    %vm226 = vcmp.le.s32.totalorder %v224, %v216
    %vm227 = vcmp.le.s32.totalorder %v224, %v217
    %vm228 = vcmp.le.s32.totalorder %v224, %v218
    %vm229 = vcmp.le.s32.totalorder %v224, %v219
    %vm230 = vcmp.le.s32.totalorder %v224, %v220
    %vm231 = vcmp.le.s32.totalorder %v224, %v221
    %vm232 = vcmp.le.s32.totalorder %v224, %v222
    %v233 = vpack.c.bf16 %v199, %v198
    %v234 = vpack.c.bf16 %v201, %v200
    %v235 = vpack.c.bf16 %v203, %v202
    %v236 = vpack.c.bf16 %v205, %v204
    %v237 = vpack.c.bf16 %v207, %v206
    %v238 = vpack.c.bf16 %v209, %v208
    %v239 = vpack.c.bf16 %v211, %v210
    %v240 = vpack.c.bf16 %v213, %v212
    %v241 = vld [vmem:[%s1] sm:$0xff]
    %v242 = vld [vmem:[%s1 + $0x8] sm:$0xf]
    %v243 = vld [vmem:[%s1 + $0xc] sm:$0xff]
    %v244 = vld [vmem:[%s1 + $0x14] sm:$0xf]
    %v245 = vld [vmem:[%s1 + $0x18] sm:$0xff]
    %v246 = vld [vmem:[%s1 + $0x20] sm:$0xf]
    %v247 = vld [vmem:[%s1 + $0x24] sm:$0xff]
    %v248 = vld [vmem:[%s1 + $0x2c] sm:$0xf]
    %v249 = vld [vmem:[%s1 + $0x30] sm:$0xff]
    %v250 = vld [vmem:[%s1 + $0x38] sm:$0xf]
    %v251 = vld [vmem:[%s1 + $0x3c] sm:$0xff]
    %v252 = vld [vmem:[%s1 + $0x44] sm:$0xf]
    %v253 = vld [vmem:[%s1 + $0x48] sm:$0xff]
    %v254 = vld [vmem:[%s1 + $0x50] sm:$0xf]
    %v255 = vld [vmem:[%s1 + $0x54] sm:$0xff]
    %v256 = vld [vmem:[%s1 + $0x5c] sm:$0xf]
    %v257 = vld [vmem:[%s1 + $0x60] sm:$0xff]
    %v258 = vld [vmem:[%s1 + $0x68] sm:$0xf]
    %v259 = vld [vmem:[%s1 + $0x6c] sm:$0xff]
    %v260 = vld [vmem:[%s1 + $0x74] sm:$0xf]
    %v261 = vld [vmem:[%s1 + $0x78] sm:$0xff]
    %v262 = vld [vmem:[%s1 + $0x80] sm:$0xf]
    %v263 = vld [vmem:[%s1 + $0x84] sm:$0xff]
    %v264 = vld [vmem:[%s1 + $0x8c] sm:$0xf]
    %v265 = vld [vmem:[%s1 + $0x90] sm:$0xff]
    %v266 = vld [vmem:[%s1 + $0x98] sm:$0xf]
    %v267 = vld [vmem:[%s1 + $0x9c] sm:$0xff]
    %v268 = vld [vmem:[%s1 + $0xa4] sm:$0xf]
    %v269 = vld [vmem:[%s1 + $0xa8] sm:$0xff]
    %v270 = vld [vmem:[%s1 + $0xb0] sm:$0xf]
    %v271 = vld [vmem:[%s1 + $0xb4] sm:$0xff]
    %v272 = vld [vmem:[%s1 + $0xbc] sm:$0xf]
    %v305 = vunpack.c.l.b16 %v241
    %v306 = vunpack.c.h.b16 %v241
    %v307 = vunpack.c.l.b16 %v242
    %v308 = vunpack.c.l.b16 %v243
    %v309 = vunpack.c.h.b16 %v243
    %v310 = vunpack.c.l.b16 %v244
    %v311 = vunpack.c.l.b16 %v245
    %v312 = vunpack.c.h.b16 %v245
    %v313 = vunpack.c.l.b16 %v246
    %v314 = vunpack.c.l.b16 %v247
    %v315 = vunpack.c.h.b16 %v247
    %v316 = vunpack.c.l.b16 %v248
    %v317 = vunpack.c.l.b16 %v249
    %v318 = vunpack.c.h.b16 %v249
    %v319 = vunpack.c.l.b16 %v250
    %v320 = vunpack.c.l.b16 %v251
    %v321 = vunpack.c.h.b16 %v251
    %v322 = vunpack.c.l.b16 %v252
    %v323 = vunpack.c.l.b16 %v253
    %v324 = vunpack.c.h.b16 %v253
    %v325 = vunpack.c.l.b16 %v254
    %v326 = vunpack.c.l.b16 %v255
    %v327 = vunpack.c.h.b16 %v255
    %v328 = vunpack.c.l.b16 %v256
    %v329 = vunpack.c.l.b16 %v257
    %v330 = vunpack.c.h.b16 %v257
    %v331 = vunpack.c.l.b16 %v258
    %v332 = vunpack.c.l.b16 %v259
    %v333 = vunpack.c.h.b16 %v259
    %v334 = vunpack.c.l.b16 %v260
    %v335 = vunpack.c.l.b16 %v261
    %v336 = vunpack.c.h.b16 %v261
    %v337 = vunpack.c.l.b16 %v262
    %v338 = vunpack.c.l.b16 %v263
    %v339 = vunpack.c.h.b16 %v263
    %v340 = vunpack.c.l.b16 %v264
    %v341 = vunpack.c.l.b16 %v265
    %v342 = vunpack.c.h.b16 %v265
    %v343 = vunpack.c.l.b16 %v266
    %v344 = vunpack.c.l.b16 %v267
    %v345 = vunpack.c.h.b16 %v267
    %v346 = vunpack.c.l.b16 %v268
    %v347 = vunpack.c.l.b16 %v269
    %v348 = vunpack.c.h.b16 %v269
    %v349 = vunpack.c.l.b16 %v270
    %v350 = vunpack.c.l.b16 %v271
    %v351 = vunpack.c.h.b16 %v271
    %v352 = vunpack.c.l.b16 %v272
    %v353 = vpack.c.b16 %v308, %v305
    %v354 = vpack.c.b16 %v309, %v306
    %v355 = vpack.c.b16 %v310, %v307
    %v356 = vpack.c.b16 %v314, %v311
    %v357 = vpack.c.b16 %v315, %v312
    %v358 = vpack.c.b16 %v316, %v313
    %v359 = vpack.c.b16 %v320, %v317
    %v360 = vpack.c.b16 %v321, %v318
    %v361 = vpack.c.b16 %v322, %v319
    %v362 = vpack.c.b16 %v326, %v323
    %v363 = vpack.c.b16 %v327, %v324
    %v364 = vpack.c.b16 %v328, %v325
    %v365 = vpack.c.b16 %v332, %v329
    %v366 = vpack.c.b16 %v333, %v330
    %v367 = vpack.c.b16 %v334, %v331
    %v368 = vpack.c.b16 %v338, %v335
    %v369 = vpack.c.b16 %v339, %v336
    %v370 = vpack.c.b16 %v340, %v337
    %v371 = vpack.c.b16 %v344, %v341
    %v372 = vpack.c.b16 %v345, %v342
    %v373 = vpack.c.b16 %v346, %v343
    %v374 = vpack.c.b16 %v350, %v347
    %v375 = vpack.c.b16 %v351, %v348
    %v376 = vpack.c.b16 %v352, %v349
    %401 = vmatprep.subr.bf16.mxu0 %v354
    %402 = vmatpush1.bf16.msra.mxu0 %v353
    %403 = vmatprep.subr.bf16.mxu0 %v357
    %404 = vmatpush1.bf16.msra.mxu0 %v356
    %405 = vmatprep.subr.bf16.mxu0 %v360
    %406 = vmatpush1.bf16.msra.mxu0 %v359
    %407 = vmatprep.subr.bf16.mxu0 %v363
    %408 = vmatpush1.bf16.msra.mxu0 %v362
    %409 = vmatprep.subr.bf16.mxu0 %v366
    %410 = vmatpush1.bf16.msra.mxu0 %v365
    %411 = vmatprep.subr.bf16.mxu0 %v369
    %412 = vmatpush1.bf16.msra.mxu0 %v368
    %413 = vmatprep.subr.bf16.mxu0 %v372
    %414 = vmatpush1.bf16.msra.mxu0 %v371
    %415 = vmatprep.subr.bf16.mxu0 %v375
    %416 = vmatpush1.bf16.msra.mxu0 %v374
    %417 = vmatprep.subr.bf16.mxu0 0
    %418 = vmatpush1.bf16.msra.mxu0 0
    %419 = vmatprep.subr.bf16.mxu0 0
    %420 = vmatpush1.bf16.msra.mxu0 0
    %421 = vmatprep.subr.bf16.mxu0 0
    %422 = vmatpush1.bf16.msra.mxu0 0
    %423 = vmatprep.subr.bf16.mxu0 0
    %424 = vmatpush1.bf16.msra.mxu0 0
    %425 = vmatprep.subr.bf16.mxu0 0
    %426 = vmatpush1.bf16.msra.mxu0 0
    %427 = vmatprep.subr.bf16.mxu0 0
    %428 = vmatpush1.bf16.msra.mxu0 0
    %429 = vmatprep.subr.bf16.mxu0 0
    %430 = vmatpush1.bf16.msra.mxu0 0
    %431 = vmatprep.subr.bf16.mxu0 0
    %432 = vmatpush1.bf16.msra.mxu0 0
    %433 = vmatprep.mubr.bf16.mxu0 0
    %434 = vmatmul.mubr.bf16.gmra.mrb[0].mxu0 %v233
    %v435 = vpop.f32.mrb[0].mxu0
    %v436 = vadd.f32 0.0, %v435
    %v437 = vpop.f32.mrb[0].mxu0
    %v438 = vadd.f32 0.0, %v437
    %v439 = vpop.f32.mrb[0].mxu0
    %v440 = vadd.f32 0.0, %v439
    %v441 = vpop.f32.mrb[0].mxu0
    %v442 = vadd.f32 0.0, %v441
    %443 = vmatprep.mubr.bf16.mxu0 0
    %444 = vmatmul.mubr.bf16.gmra.mrb[0].mxu0 %v234
    %v445 = vpop.f32.mrb[0].mxu0
    %v446 = vadd.f32 0.0, %v445
    %v447 = vpop.f32.mrb[0].mxu0
    %v448 = vadd.f32 0.0, %v447
    %v449 = vpop.f32.mrb[0].mxu0
    %v450 = vadd.f32 0.0, %v449
    %v451 = vpop.f32.mrb[0].mxu0
    %v452 = vadd.f32 0.0, %v451
    %453 = vmatprep.mubr.bf16.mxu0 0
    %454 = vmatmul.mubr.bf16.gmra.mrb[0].mxu0 %v235
    %v455 = vpop.f32.mrb[0].mxu0
    %v456 = vadd.f32 0.0, %v455
    %v457 = vpop.f32.mrb[0].mxu0
    %v458 = vadd.f32 0.0, %v457
    %v459 = vpop.f32.mrb[0].mxu0
    %v460 = vadd.f32 0.0, %v459
    %v461 = vpop.f32.mrb[0].mxu0
    %v462 = vadd.f32 0.0, %v461
    %463 = vmatprep.mubr.bf16.mxu0 0
    %464 = vmatmul.mubr.bf16.gmra.mrb[0].mxu0 %v236
    %v465 = vpop.f32.mrb[0].mxu0
    %v466 = vadd.f32 0.0, %v465
    %v467 = vpop.f32.mrb[0].mxu0
    %v468 = vadd.f32 0.0, %v467
    %v469 = vpop.f32.mrb[0].mxu0
    %v470 = vadd.f32 0.0, %v469
    %v471 = vpop.f32.mrb[0].mxu0
    %v472 = vadd.f32 0.0, %v471
    %473 = vmatprep.mubr.bf16.mxu0 0
    %474 = vmatmul.mubr.bf16.gmra.mrb[0].mxu0 %v237
    %v475 = vpop.f32.mrb[0].mxu0
    %v476 = vadd.f32 0.0, %v475
    %v477 = vpop.f32.mrb[0].mxu0
    %v478 = vadd.f32 0.0, %v477
    %v479 = vpop.f32.mrb[0].mxu0
    %v480 = vadd.f32 0.0, %v479
    %v481 = vpop.f32.mrb[0].mxu0
    %v482 = vadd.f32 0.0, %v481
    %483 = vmatprep.mubr.bf16.mxu0 0
    %484 = vmatmul.mubr.bf16.gmra.mrb[0].mxu0 %v238
    %v485 = vpop.f32.mrb[0].mxu0
    %v486 = vadd.f32 0.0, %v485
    %v487 = vpop.f32.mrb[0].mxu0
    %v488 = vadd.f32 0.0, %v487
    %v489 = vpop.f32.mrb[0].mxu0
    %v490 = vadd.f32 0.0, %v489
    %v491 = vpop.f32.mrb[0].mxu0
    %v492 = vadd.f32 0.0, %v491
    %493 = vmatprep.mubr.bf16.mxu0 0
    %494 = vmatmul.mubr.bf16.gmra.mrb[0].mxu0 %v239
    %v495 = vpop.f32.mrb[0].mxu0
    %v496 = vadd.f32 0.0, %v495
    %v497 = vpop.f32.mrb[0].mxu0
    %v498 = vadd.f32 0.0, %v497
    %v499 = vpop.f32.mrb[0].mxu0
    %v500 = vadd.f32 0.0, %v499
    %v501 = vpop.f32.mrb[0].mxu0
    %v502 = vadd.f32 0.0, %v501
    %503 = vmatprep.mubr.bf16.mxu0 0
    %504 = vmatmul.mubr.bf16.gmra.mrb[0].mxu0 %v240
    %v505 = vpop.f32.mrb[0].mxu0
    %v506 = vadd.f32 0.0, %v505
    %v507 = vpop.f32.mrb[0].mxu0
    %v508 = vadd.f32 0.0, %v507
    %v509 = vpop.f32.mrb[0].mxu0
    %v510 = vadd.f32 0.0, %v509
    %v511 = vpop.f32.mrb[0].mxu0
    %v512 = vadd.f32 0.0, %v511
    %513 = vdwg.mxu0
    %514 = vmatprep.subr.bf16.mxu0 0
    %515 = vmatpush1.bf16.msra.mxu0 %v355
    %516 = vmatprep.subr.bf16.mxu0 0
    %517 = vmatpush1.bf16.msra.mxu0 %v358
    %518 = vmatprep.subr.bf16.mxu0 0
    %519 = vmatpush1.bf16.msra.mxu0 %v361
    %520 = vmatprep.subr.bf16.mxu0 0
    %521 = vmatpush1.bf16.msra.mxu0 %v364
    %522 = vmatprep.subr.bf16.mxu0 0
    %523 = vmatpush1.bf16.msra.mxu0 %v367
    %524 = vmatprep.subr.bf16.mxu0 0
    %525 = vmatpush1.bf16.msra.mxu0 %v370
    %526 = vmatprep.subr.bf16.mxu0 0
    %527 = vmatpush1.bf16.msra.mxu0 %v373
    %528 = vmatprep.subr.bf16.mxu0 0
    %529 = vmatpush1.bf16.msra.mxu0 %v376
    %530 = vmatprep.subr.bf16.mxu0 0
    %531 = vmatpush1.bf16.msra.mxu0 0
    %532 = vmatprep.subr.bf16.mxu0 0
    %533 = vmatpush1.bf16.msra.mxu0 0
    %534 = vmatprep.subr.bf16.mxu0 0
    %535 = vmatpush1.bf16.msra.mxu0 0
    %536 = vmatprep.subr.bf16.mxu0 0
    %537 = vmatpush1.bf16.msra.mxu0 0
    %538 = vmatprep.subr.bf16.mxu0 0
    %539 = vmatpush1.bf16.msra.mxu0 0
    %540 = vmatprep.subr.bf16.mxu0 0
    %541 = vmatpush1.bf16.msra.mxu0 0
    %542 = vmatprep.subr.bf16.mxu0 0
    %543 = vmatpush1.bf16.msra.mxu0 0
    %544 = vmatprep.subr.bf16.mxu0 0
    %545 = vmatpush1.bf16.msra.mxu0 0
    %546 = vmatprep.mubr.bf16.mxu0 0
    %547 = vmatmul.mubr.bf16.gmra.mrb[0].mxu0 %v233
    %v548 = vpop.f32.mrb[0].mxu0
    %v549 = vadd.f32 0.0, %v548
    %v550 = vpop.f32.mrb[0].mxu0
    %v551 = vpop.f32.mrb[0].mxu0
    %v552 = vadd.f32 0.0, %v551
    %v553 = vpop.f32.mrb[0].mxu0
    %554 = vmatprep.mubr.bf16.mxu0 0
    %555 = vmatmul.mubr.bf16.gmra.mrb[0].mxu0 %v234
    %v556 = vpop.f32.mrb[0].mxu0
    %v557 = vadd.f32 0.0, %v556
    %v558 = vpop.f32.mrb[0].mxu0
    %v559 = vpop.f32.mrb[0].mxu0
    %v560 = vadd.f32 0.0, %v559
    %v561 = vpop.f32.mrb[0].mxu0
    %562 = vmatprep.mubr.bf16.mxu0 0
    %563 = vmatmul.mubr.bf16.gmra.mrb[0].mxu0 %v235
    %v564 = vpop.f32.mrb[0].mxu0
    %v565 = vadd.f32 0.0, %v564
    %v566 = vpop.f32.mrb[0].mxu0
    %v567 = vpop.f32.mrb[0].mxu0
    %v568 = vadd.f32 0.0, %v567
    %v569 = vpop.f32.mrb[0].mxu0
    %570 = vmatprep.mubr.bf16.mxu0 0
    %571 = vmatmul.mubr.bf16.gmra.mrb[0].mxu0 %v236
    %v572 = vpop.f32.mrb[0].mxu0
    %v573 = vadd.f32 0.0, %v572
    %v574 = vpop.f32.mrb[0].mxu0
    %v575 = vpop.f32.mrb[0].mxu0
    %v576 = vadd.f32 0.0, %v575
    %v577 = vpop.f32.mrb[0].mxu0
    %578 = vmatprep.mubr.bf16.mxu0 0
    %579 = vmatmul.mubr.bf16.gmra.mrb[0].mxu0 %v237
    %v580 = vpop.f32.mrb[0].mxu0
    %v581 = vadd.f32 0.0, %v580
    %v582 = vpop.f32.mrb[0].mxu0
    %v583 = vpop.f32.mrb[0].mxu0
    %v584 = vadd.f32 0.0, %v583
    %v585 = vpop.f32.mrb[0].mxu0
    %586 = vmatprep.mubr.bf16.mxu0 0
    %587 = vmatmul.mubr.bf16.gmra.mrb[0].mxu0 %v238
    %v588 = vpop.f32.mrb[0].mxu0
    %v589 = vadd.f32 0.0, %v588
    %v590 = vpop.f32.mrb[0].mxu0
    %v591 = vpop.f32.mrb[0].mxu0
    %v592 = vadd.f32 0.0, %v591
    %v593 = vpop.f32.mrb[0].mxu0
    %594 = vmatprep.mubr.bf16.mxu0 0
    %595 = vmatmul.mubr.bf16.gmra.mrb[0].mxu0 %v239
    %v596 = vpop.f32.mrb[0].mxu0
    %v597 = vadd.f32 0.0, %v596
    %v598 = vpop.f32.mrb[0].mxu0
    %v599 = vpop.f32.mrb[0].mxu0
    %v600 = vadd.f32 0.0, %v599
    %v601 = vpop.f32.mrb[0].mxu0
    %602 = vmatprep.mubr.bf16.mxu0 0
    %603 = vmatmul.mubr.bf16.gmra.mrb[0].mxu0 %v240
    %v604 = vpop.f32.mrb[0].mxu0
    %v605 = vadd.f32 0.0, %v604
    %v606 = vpop.f32.mrb[0].mxu0
    %v607 = vpop.f32.mrb[0].mxu0
    %v608 = vadd.f32 0.0, %v607
    %v609 = vpop.f32.mrb[0].mxu0
    %610 = vdwg.mxu0
    %v611 = vpack.c.bf16 %v440, %v436
    %v612 = vpack.c.bf16 %v442, %v438
    %v613 = vpack.c.bf16 %v552, %v549
    %v614 = vpack.c.bf16 %v450, %v446
    %v615 = vpack.c.bf16 %v452, %v448
    %v616 = vpack.c.bf16 %v560, %v557
    %v617 = vpack.c.bf16 %v460, %v456
    %v618 = vpack.c.bf16 %v462, %v458
    %v619 = vpack.c.bf16 %v568, %v565
    %v620 = vpack.c.bf16 %v470, %v466
    %v621 = vpack.c.bf16 %v472, %v468
    %v622 = vpack.c.bf16 %v576, %v573
    %v623 = vpack.c.bf16 %v480, %v476
    %v624 = vpack.c.bf16 %v482, %v478
    %v625 = vpack.c.bf16 %v584, %v581
    %v626 = vpack.c.bf16 %v490, %v486
    %v627 = vpack.c.bf16 %v492, %v488
    %v628 = vpack.c.bf16 %v592, %v589
    %v629 = vpack.c.bf16 %v500, %v496
    %v630 = vpack.c.bf16 %v502, %v498
    %v631 = vpack.c.bf16 %v600, %v597
    %v632 = vpack.c.bf16 %v510, %v506
    %v633 = vpack.c.bf16 %v512, %v508
    %v634 = vpack.c.bf16 %v608, %v605
    %643 = vrot.lane.b32.xlu0 %v611, 96
    %v644 = vpop.permute.xlu0 %643
    %645 = vrot.lane.b32.xlu0 %v614, 96
    %v646 = vpop.permute.xlu0 %645
    %647 = vrot.lane.b32.xlu0 %v617, 96
    %v648 = vpop.permute.xlu0 %647
    %649 = vrot.lane.b32.xlu0 %v620, 96
    %v650 = vpop.permute.xlu0 %649
    %651 = vrot.lane.b32.xlu0 %v623, 96
    %v652 = vpop.permute.xlu0 %651
    %653 = vrot.lane.b32.xlu0 %v626, 96
    %v654 = vpop.permute.xlu0 %653
    %655 = vrot.lane.b32.xlu0 %v629, 96
    %v656 = vpop.permute.xlu0 %655
    %657 = vrot.lane.b32.xlu0 %v632, 96
    %v658 = vpop.permute.xlu0 %657
    %659 = vrot.lane.b32.xlu0 %v611, 64
    %v660 = vpop.permute.xlu0 %659
    %661 = vrot.lane.b32.xlu0 %v614, 64
    %v662 = vpop.permute.xlu0 %661
    %663 = vrot.lane.b32.xlu0 %v617, 64
    %v664 = vpop.permute.xlu0 %663
    %665 = vrot.lane.b32.xlu0 %v620, 64
    %v666 = vpop.permute.xlu0 %665
    %667 = vrot.lane.b32.xlu0 %v623, 64
    %v668 = vpop.permute.xlu0 %667
    %669 = vrot.lane.b32.xlu0 %v626, 64
    %v670 = vpop.permute.xlu0 %669
    %671 = vrot.lane.b32.xlu0 %v629, 64
    %v672 = vpop.permute.xlu0 %671
    %673 = vrot.lane.b32.xlu0 %v632, 64
    %v674 = vpop.permute.xlu0 %673
    %675 = vrot.lane.b32.xlu0 %v611, 32
    %v676 = vpop.permute.xlu0 %675
    %677 = vrot.lane.b32.xlu0 %v614, 32
    %v678 = vpop.permute.xlu0 %677
    %679 = vrot.lane.b32.xlu0 %v617, 32
    %v680 = vpop.permute.xlu0 %679
    %681 = vrot.lane.b32.xlu0 %v620, 32
    %v682 = vpop.permute.xlu0 %681
    %683 = vrot.lane.b32.xlu0 %v623, 32
    %v684 = vpop.permute.xlu0 %683
    %685 = vrot.lane.b32.xlu0 %v626, 32
    %v686 = vpop.permute.xlu0 %685
    %687 = vrot.lane.b32.xlu0 %v629, 32
    %v688 = vpop.permute.xlu0 %687
    %689 = vrot.lane.b32.xlu0 %v632, 32
    %v690 = vpop.permute.xlu0 %689
    %699 = vrot.lane.b32.xlu0 %v612, 96
    %v700 = vpop.permute.xlu0 %699
    %701 = vrot.lane.b32.xlu0 %v615, 96
    %v702 = vpop.permute.xlu0 %701
    %703 = vrot.lane.b32.xlu0 %v618, 96
    %v704 = vpop.permute.xlu0 %703
    %705 = vrot.lane.b32.xlu0 %v621, 96
    %v706 = vpop.permute.xlu0 %705
    %707 = vrot.lane.b32.xlu0 %v624, 96
    %v708 = vpop.permute.xlu0 %707
    %709 = vrot.lane.b32.xlu0 %v627, 96
    %v710 = vpop.permute.xlu0 %709
    %711 = vrot.lane.b32.xlu0 %v630, 96
    %v712 = vpop.permute.xlu0 %711
    %713 = vrot.lane.b32.xlu0 %v633, 96
    %v714 = vpop.permute.xlu0 %713
    %715 = vrot.lane.b32.xlu0 %v612, 64
    %v716 = vpop.permute.xlu0 %715
    %717 = vrot.lane.b32.xlu0 %v615, 64
    %v718 = vpop.permute.xlu0 %717
    %719 = vrot.lane.b32.xlu0 %v618, 64
    %v720 = vpop.permute.xlu0 %719
    %721 = vrot.lane.b32.xlu0 %v621, 64
    %v722 = vpop.permute.xlu0 %721
    %723 = vrot.lane.b32.xlu0 %v624, 64
    %v724 = vpop.permute.xlu0 %723
    %725 = vrot.lane.b32.xlu0 %v627, 64
    %v726 = vpop.permute.xlu0 %725
    %727 = vrot.lane.b32.xlu0 %v630, 64
    %v728 = vpop.permute.xlu0 %727
    %729 = vrot.lane.b32.xlu0 %v633, 64
    %v730 = vpop.permute.xlu0 %729
    %731 = vrot.lane.b32.xlu0 %v612, 32
    %v732 = vpop.permute.xlu0 %731
    %733 = vrot.lane.b32.xlu0 %v615, 32
    %v734 = vpop.permute.xlu0 %733
    %735 = vrot.lane.b32.xlu0 %v618, 32
    %v736 = vpop.permute.xlu0 %735
    %737 = vrot.lane.b32.xlu0 %v621, 32
    %v738 = vpop.permute.xlu0 %737
    %739 = vrot.lane.b32.xlu0 %v624, 32
    %v740 = vpop.permute.xlu0 %739
    %741 = vrot.lane.b32.xlu0 %v627, 32
    %v742 = vpop.permute.xlu0 %741
    %743 = vrot.lane.b32.xlu0 %v630, 32
    %v744 = vpop.permute.xlu0 %743
    %745 = vrot.lane.b32.xlu0 %v633, 32
    %v746 = vpop.permute.xlu0 %745
    %755 = vrot.lane.b32.xlu0 %v613, 96
    %v756 = vpop.permute.xlu0 %755
    %757 = vrot.lane.b32.xlu0 %v616, 96
    %v758 = vpop.permute.xlu0 %757
    %759 = vrot.lane.b32.xlu0 %v619, 96
    %v760 = vpop.permute.xlu0 %759
    %761 = vrot.lane.b32.xlu0 %v622, 96
    %v762 = vpop.permute.xlu0 %761
    %763 = vrot.lane.b32.xlu0 %v625, 96
    %v764 = vpop.permute.xlu0 %763
    %765 = vrot.lane.b32.xlu0 %v628, 96
    %v766 = vpop.permute.xlu0 %765
    %767 = vrot.lane.b32.xlu0 %v631, 96
    %v768 = vpop.permute.xlu0 %767
    %769 = vrot.lane.b32.xlu0 %v634, 96
    %v770 = vpop.permute.xlu0 %769
    %779 = vrot.lane.b32.xlu0 %v613, 64
    %v780 = vpop.permute.xlu0 %779
    %781 = vrot.lane.b32.xlu0 %v616, 64
    %v782 = vpop.permute.xlu0 %781
    %783 = vrot.lane.b32.xlu0 %v619, 64
    %v784 = vpop.permute.xlu0 %783
    %785 = vrot.lane.b32.xlu0 %v622, 64
    %v786 = vpop.permute.xlu0 %785
    %787 = vrot.lane.b32.xlu0 %v625, 64
    %v788 = vpop.permute.xlu0 %787
    %789 = vrot.lane.b32.xlu0 %v628, 64
    %v790 = vpop.permute.xlu0 %789
    %791 = vrot.lane.b32.xlu0 %v631, 64
    %v792 = vpop.permute.xlu0 %791
    %793 = vrot.lane.b32.xlu0 %v634, 64
    %v794 = vpop.permute.xlu0 %793
    %803 = vrot.lane.b32.xlu0 %v613, 32
    %v804 = vpop.permute.xlu0 %803
    %805 = vrot.lane.b32.xlu0 %v616, 32
    %v806 = vpop.permute.xlu0 %805
    %807 = vrot.lane.b32.xlu0 %v619, 32
    %v808 = vpop.permute.xlu0 %807
    %809 = vrot.lane.b32.xlu0 %v622, 32
    %v810 = vpop.permute.xlu0 %809
    %811 = vrot.lane.b32.xlu0 %v625, 32
    %v812 = vpop.permute.xlu0 %811
    %813 = vrot.lane.b32.xlu0 %v628, 32
    %v814 = vpop.permute.xlu0 %813
    %815 = vrot.lane.b32.xlu0 %v631, 32
    %v816 = vpop.permute.xlu0 %815
    %817 = vrot.lane.b32.xlu0 %v634, 32
    %v818 = vpop.permute.xlu0 %817
    %vm827 = vcmask 261120
    %v829 = vsel %vm827, %v611, 0
    %v832 = vsel %vm827, %v614, 0
    %v835 = vsel %vm827, %v617, 0
    %v838 = vsel %vm827, %v620, 0
    %v841 = vsel %vm827, %v612, 0
    %v844 = vsel %vm827, %v615, 0
    %v847 = vsel %vm827, %v618, 0
    %v850 = vsel %vm827, %v621, 0
    %852 = vmatprep.subr.bf16.mxu0 0
    %853 = vmatpush1.bf16.xpose.msra.mxu0 %v841
    %854 = vmatprep.subr.bf16.mxu0 0
    %855 = vmatpush1.bf16.xpose.msra.mxu0 %v844
    %856 = vmatprep.subr.bf16.mxu0 0
    %857 = vmatpush1.bf16.xpose.msra.mxu0 %v847
    %858 = vmatprep.subr.bf16.mxu0 0
    %859 = vmatpush1.bf16.xpose.msra.mxu0 %v850
    %860 = vmatprep.subr.bf16.mxu0 0
    %861 = vmatpush1.bf16.xpose.msra.mxu0 0
    %862 = vmatprep.subr.bf16.mxu0 0
    %863 = vmatpush1.bf16.xpose.msra.mxu0 0
    %864 = vmatprep.subr.bf16.mxu0 0
    %865 = vmatpush1.bf16.xpose.msra.mxu0 0
    %866 = vmatprep.subr.bf16.mxu0 0
    %867 = vmatpush1.bf16.xpose.msra.mxu0 0
    %868 = vmatprep.subr.bf16.mxu0 0
    %869 = vmatpush1.bf16.xpose.msra.mxu0 0
    %870 = vmatprep.subr.bf16.mxu0 0
    %871 = vmatpush1.bf16.xpose.msra.mxu0 0
    %872 = vmatprep.subr.bf16.mxu0 0
    %873 = vmatpush1.bf16.xpose.msra.mxu0 0
    %874 = vmatprep.subr.bf16.mxu0 0
    %875 = vmatpush1.bf16.xpose.msra.mxu0 0
    %876 = vmatprep.subr.bf16.mxu0 0
    %877 = vmatpush1.bf16.xpose.msra.mxu0 0
    %878 = vmatprep.subr.bf16.mxu0 0
    %879 = vmatpush1.bf16.xpose.msra.mxu0 0
    %880 = vmatprep.subr.bf16.mxu0 0
    %881 = vmatpush1.bf16.xpose.msra.mxu0 0
    %882 = vmatprep.subr.bf16.mxu0 0
    %883 = vmatpush1.bf16.xpose.msra.mxu0 0
    %884 = vmatprep.mubr.bf16.mxu0 0
    %885 = vmatmul.mubr.bf16.gmra.mrb[0].mxu0 %v829
    %v886 = vpop.f32.mrb[0].mxu0
    %v887 = vadd.f32 0.0, %v886
    %v888 = vpop.f32.mrb[0].mxu0
    %v889 = vpop.f32.mrb[0].mxu0
    %v890 = vadd.f32 0.0, %v889
    %v891 = vpop.f32.mrb[0].mxu0
    %892 = vmatprep.mubr.bf16.mxu0 0
    %893 = vmatmul.mubr.bf16.gmra.mrb[0].mxu0 %v832
    %v894 = vpop.f32.mrb[0].mxu0
    %v895 = vadd.f32 0.0, %v894
    %v896 = vpop.f32.mrb[0].mxu0
    %v897 = vpop.f32.mrb[0].mxu0
    %v898 = vadd.f32 0.0, %v897
    %v899 = vpop.f32.mrb[0].mxu0
    %900 = vmatprep.mubr.bf16.mxu0 0
    %901 = vmatmul.mubr.bf16.gmra.mrb[0].mxu0 %v835
    %v902 = vpop.f32.mrb[0].mxu0
    %v903 = vadd.f32 0.0, %v902
    %v904 = vpop.f32.mrb[0].mxu0
    %v905 = vpop.f32.mrb[0].mxu0
    %v906 = vadd.f32 0.0, %v905
    %v907 = vpop.f32.mrb[0].mxu0
    %908 = vmatprep.mubr.bf16.mxu0 0
    %909 = vmatmul.mubr.bf16.gmra.mrb[0].mxu0 %v838
    %v910 = vpop.f32.mrb[0].mxu0
    %v911 = vadd.f32 0.0, %v910
    %v912 = vpop.f32.mrb[0].mxu0
    %v913 = vpop.f32.mrb[0].mxu0
    %v914 = vadd.f32 0.0, %v913
    %v915 = vpop.f32.mrb[0].mxu0
    %916 = vdwg.mxu0
    %v918 = vsel %vm827, %v623, 0
    %v921 = vsel %vm827, %v626, 0
    %v924 = vsel %vm827, %v629, 0
    %v927 = vsel %vm827, %v632, 0
    %v930 = vsel %vm827, %v624, 0
    %v933 = vsel %vm827, %v627, 0
    %v936 = vsel %vm827, %v630, 0
    %v939 = vsel %vm827, %v633, 0
    %941 = vmatprep.subr.bf16.mxu0 0
    %942 = vmatpush1.bf16.xpose.msra.mxu0 %v930
    %943 = vmatprep.subr.bf16.mxu0 0
    %944 = vmatpush1.bf16.xpose.msra.mxu0 %v933
    %945 = vmatprep.subr.bf16.mxu0 0
    %946 = vmatpush1.bf16.xpose.msra.mxu0 %v936
    %947 = vmatprep.subr.bf16.mxu0 0
    %948 = vmatpush1.bf16.xpose.msra.mxu0 %v939
    %949 = vmatprep.subr.bf16.mxu0 0
    %950 = vmatpush1.bf16.xpose.msra.mxu0 0
    %951 = vmatprep.subr.bf16.mxu0 0
    %952 = vmatpush1.bf16.xpose.msra.mxu0 0
    %953 = vmatprep.subr.bf16.mxu0 0
    %954 = vmatpush1.bf16.xpose.msra.mxu0 0
    %955 = vmatprep.subr.bf16.mxu0 0
    %956 = vmatpush1.bf16.xpose.msra.mxu0 0
    %957 = vmatprep.subr.bf16.mxu0 0
    %958 = vmatpush1.bf16.xpose.msra.mxu0 0
    %959 = vmatprep.subr.bf16.mxu0 0
    %960 = vmatpush1.bf16.xpose.msra.mxu0 0
    %961 = vmatprep.subr.bf16.mxu0 0
    %962 = vmatpush1.bf16.xpose.msra.mxu0 0
    %963 = vmatprep.subr.bf16.mxu0 0
    %964 = vmatpush1.bf16.xpose.msra.mxu0 0
    %965 = vmatprep.subr.bf16.mxu0 0
    %966 = vmatpush1.bf16.xpose.msra.mxu0 0
    %967 = vmatprep.subr.bf16.mxu0 0
    %968 = vmatpush1.bf16.xpose.msra.mxu0 0
    %969 = vmatprep.subr.bf16.mxu0 0
    %970 = vmatpush1.bf16.xpose.msra.mxu0 0
    %971 = vmatprep.subr.bf16.mxu0 0
    %972 = vmatpush1.bf16.xpose.msra.mxu0 0
    %973 = vmatprep.mubr.bf16.mxu0 0
    %974 = vmatmul.mubr.bf16.gmra.mrb[0].mxu0 %v918
    %v975 = vpop.f32.mrb[0].mxu0
    %v976 = vadd.f32 0.0, %v975
    %v977 = vpop.f32.mrb[0].mxu0
    %v978 = vpop.f32.mrb[0].mxu0
    %v979 = vadd.f32 0.0, %v978
    %v980 = vpop.f32.mrb[0].mxu0
    %981 = vmatprep.mubr.bf16.mxu0 0
    %982 = vmatmul.mubr.bf16.gmra.mrb[0].mxu0 %v921
    %v983 = vpop.f32.mrb[0].mxu0
    %v984 = vadd.f32 0.0, %v983
    %v985 = vpop.f32.mrb[0].mxu0
    %v986 = vpop.f32.mrb[0].mxu0
    %v987 = vadd.f32 0.0, %v986
    %v988 = vpop.f32.mrb[0].mxu0
    %989 = vmatprep.mubr.bf16.mxu0 0
    %990 = vmatmul.mubr.bf16.gmra.mrb[0].mxu0 %v924
    %v991 = vpop.f32.mrb[0].mxu0
    %v992 = vadd.f32 0.0, %v991
    %v993 = vpop.f32.mrb[0].mxu0
    %v994 = vpop.f32.mrb[0].mxu0
    %v995 = vadd.f32 0.0, %v994
    %v996 = vpop.f32.mrb[0].mxu0
    %997 = vmatprep.mubr.bf16.mxu0 0
    %998 = vmatmul.mubr.bf16.gmra.mrb[0].mxu0 %v927
    %v999 = vpop.f32.mrb[0].mxu0
    %v1000 = vadd.f32 0.0, %v999
    %v1001 = vpop.f32.mrb[0].mxu0
    %v1002 = vpop.f32.mrb[0].mxu0
    %v1003 = vadd.f32 0.0, %v1002
    %v1004 = vpop.f32.mrb[0].mxu0
    %1005 = vdwg.mxu0
    %v1007 = vsel %vm827, %v644, 0
    %v1010 = vsel %vm827, %v646, 0
    %v1013 = vsel %vm827, %v648, 0
    %v1016 = vsel %vm827, %v650, 0
    %v1019 = vsel %vm827, %v700, 0
    %v1022 = vsel %vm827, %v702, 0
    %v1025 = vsel %vm827, %v704, 0
    %v1028 = vsel %vm827, %v706, 0
    %1030 = vmatprep.subr.bf16.mxu0 0
    %1031 = vmatpush1.bf16.xpose.msra.mxu0 %v1019
    %1032 = vmatprep.subr.bf16.mxu0 0
    %1033 = vmatpush1.bf16.xpose.msra.mxu0 %v1022
    %1034 = vmatprep.subr.bf16.mxu0 0
    %1035 = vmatpush1.bf16.xpose.msra.mxu0 %v1025
    %1036 = vmatprep.subr.bf16.mxu0 0
    %1037 = vmatpush1.bf16.xpose.msra.mxu0 %v1028
    %1038 = vmatprep.subr.bf16.mxu0 0
    %1039 = vmatpush1.bf16.xpose.msra.mxu0 0
    %1040 = vmatprep.subr.bf16.mxu0 0
    %1041 = vmatpush1.bf16.xpose.msra.mxu0 0
    %1042 = vmatprep.subr.bf16.mxu0 0
    %1043 = vmatpush1.bf16.xpose.msra.mxu0 0
    %1044 = vmatprep.subr.bf16.mxu0 0
    %1045 = vmatpush1.bf16.xpose.msra.mxu0 0
    %1046 = vmatprep.subr.bf16.mxu0 0
    %1047 = vmatpush1.bf16.xpose.msra.mxu0 0
    %1048 = vmatprep.subr.bf16.mxu0 0
    %1049 = vmatpush1.bf16.xpose.msra.mxu0 0
    %1050 = vmatprep.subr.bf16.mxu0 0
    %1051 = vmatpush1.bf16.xpose.msra.mxu0 0
    %1052 = vmatprep.subr.bf16.mxu0 0
    %1053 = vmatpush1.bf16.xpose.msra.mxu0 0
    %1054 = vmatprep.subr.bf16.mxu0 0
    %1055 = vmatpush1.bf16.xpose.msra.mxu0 0
    %1056 = vmatprep.subr.bf16.mxu0 0
    %1057 = vmatpush1.bf16.xpose.msra.mxu0 0
    %1058 = vmatprep.subr.bf16.mxu0 0
    %1059 = vmatpush1.bf16.xpose.msra.mxu0 0
    %1060 = vmatprep.subr.bf16.mxu0 0
    %1061 = vmatpush1.bf16.xpose.msra.mxu0 0
    %1062 = vmatprep.mubr.bf16.mxu0 0
    %1063 = vmatmul.mubr.bf16.gmra.mrb[0].mxu0 %v1007
    %v1064 = vpop.f32.mrb[0].mxu0
    %v1065 = vadd.f32 0.0, %v1064
    %v1066 = vpop.f32.mrb[0].mxu0
    %v1067 = vpop.f32.mrb[0].mxu0
    %v1068 = vadd.f32 0.0, %v1067
    %v1069 = vpop.f32.mrb[0].mxu0
    %1070 = vmatprep.mubr.bf16.mxu0 0
    %1071 = vmatmul.mubr.bf16.gmra.mrb[0].mxu0 %v1010
    %v1072 = vpop.f32.mrb[0].mxu0
    %v1073 = vadd.f32 0.0, %v1072
    %v1074 = vpop.f32.mrb[0].mxu0
    %v1075 = vpop.f32.mrb[0].mxu0
    %v1076 = vadd.f32 0.0, %v1075
    %v1077 = vpop.f32.mrb[0].mxu0
    %1078 = vmatprep.mubr.bf16.mxu0 0
    %1079 = vmatmul.mubr.bf16.gmra.mrb[0].mxu0 %v1013
    %v1080 = vpop.f32.mrb[0].mxu0
    %v1081 = vadd.f32 0.0, %v1080
    %v1082 = vpop.f32.mrb[0].mxu0
    %v1083 = vpop.f32.mrb[0].mxu0
    %v1084 = vadd.f32 0.0, %v1083
    %v1085 = vpop.f32.mrb[0].mxu0
    %1086 = vmatprep.mubr.bf16.mxu0 0
    %1087 = vmatmul.mubr.bf16.gmra.mrb[0].mxu0 %v1016
    %v1088 = vpop.f32.mrb[0].mxu0
    %v1089 = vadd.f32 0.0, %v1088
    %v1090 = vpop.f32.mrb[0].mxu0
    %v1091 = vpop.f32.mrb[0].mxu0
    %v1092 = vadd.f32 0.0, %v1091
    %v1093 = vpop.f32.mrb[0].mxu0
    %1094 = vdwg.mxu0
    %v1096 = vsel %vm827, %v652, 0
    %v1099 = vsel %vm827, %v654, 0
    %v1102 = vsel %vm827, %v656, 0
    %v1105 = vsel %vm827, %v658, 0
    %v1108 = vsel %vm827, %v708, 0
    %v1111 = vsel %vm827, %v710, 0
    %v1114 = vsel %vm827, %v712, 0
    %v1117 = vsel %vm827, %v714, 0
    %1119 = vmatprep.subr.bf16.mxu0 0
    %1120 = vmatpush1.bf16.xpose.msra.mxu0 %v1108
    %1121 = vmatprep.subr.bf16.mxu0 0
    %1122 = vmatpush1.bf16.xpose.msra.mxu0 %v1111
    %1123 = vmatprep.subr.bf16.mxu0 0
    %1124 = vmatpush1.bf16.xpose.msra.mxu0 %v1114
    %1125 = vmatprep.subr.bf16.mxu0 0
    %1126 = vmatpush1.bf16.xpose.msra.mxu0 %v1117
    %1127 = vmatprep.subr.bf16.mxu0 0
    %1128 = vmatpush1.bf16.xpose.msra.mxu0 0
    %1129 = vmatprep.subr.bf16.mxu0 0
    %1130 = vmatpush1.bf16.xpose.msra.mxu0 0
    %1131 = vmatprep.subr.bf16.mxu0 0
    %1132 = vmatpush1.bf16.xpose.msra.mxu0 0
    %1133 = vmatprep.subr.bf16.mxu0 0
    %1134 = vmatpush1.bf16.xpose.msra.mxu0 0
    %1135 = vmatprep.subr.bf16.mxu0 0
    %1136 = vmatpush1.bf16.xpose.msra.mxu0 0
    %1137 = vmatprep.subr.bf16.mxu0 0
    %1138 = vmatpush1.bf16.xpose.msra.mxu0 0
    %1139 = vmatprep.subr.bf16.mxu0 0
    %1140 = vmatpush1.bf16.xpose.msra.mxu0 0
    %1141 = vmatprep.subr.bf16.mxu0 0
    %1142 = vmatpush1.bf16.xpose.msra.mxu0 0
    %1143 = vmatprep.subr.bf16.mxu0 0
    %1144 = vmatpush1.bf16.xpose.msra.mxu0 0
    %1145 = vmatprep.subr.bf16.mxu0 0
    %1146 = vmatpush1.bf16.xpose.msra.mxu0 0
    %1147 = vmatprep.subr.bf16.mxu0 0
    %1148 = vmatpush1.bf16.xpose.msra.mxu0 0
    %1149 = vmatprep.subr.bf16.mxu0 0
    %1150 = vmatpush1.bf16.xpose.msra.mxu0 0
    %1151 = vmatprep.mubr.bf16.mxu0 0
    %1152 = vmatmul.mubr.bf16.gmra.mrb[0].mxu0 %v1096
    %v1153 = vpop.f32.mrb[0].mxu0
    %v1154 = vadd.f32 0.0, %v1153
    %v1155 = vpop.f32.mrb[0].mxu0
    %v1156 = vpop.f32.mrb[0].mxu0
    %v1157 = vadd.f32 0.0, %v1156
    %v1158 = vpop.f32.mrb[0].mxu0
    %1159 = vmatprep.mubr.bf16.mxu0 0
    %1160 = vmatmul.mubr.bf16.gmra.mrb[0].mxu0 %v1099
    %v1161 = vpop.f32.mrb[0].mxu0
    %v1162 = vadd.f32 0.0, %v1161
    %v1163 = vpop.f32.mrb[0].mxu0
    %v1164 = vpop.f32.mrb[0].mxu0
    %v1165 = vadd.f32 0.0, %v1164
    %v1166 = vpop.f32.mrb[0].mxu0
    %1167 = vmatprep.mubr.bf16.mxu0 0
    %1168 = vmatmul.mubr.bf16.gmra.mrb[0].mxu0 %v1102
    %v1169 = vpop.f32.mrb[0].mxu0
    %v1170 = vadd.f32 0.0, %v1169
    %v1171 = vpop.f32.mrb[0].mxu0
    %v1172 = vpop.f32.mrb[0].mxu0
    %v1173 = vadd.f32 0.0, %v1172
    %v1174 = vpop.f32.mrb[0].mxu0
    %1175 = vmatprep.mubr.bf16.mxu0 0
    %1176 = vmatmul.mubr.bf16.gmra.mrb[0].mxu0 %v1105
    %v1177 = vpop.f32.mrb[0].mxu0
    %v1178 = vadd.f32 0.0, %v1177
    %v1179 = vpop.f32.mrb[0].mxu0
    %v1180 = vpop.f32.mrb[0].mxu0
    %v1181 = vadd.f32 0.0, %v1180
    %v1182 = vpop.f32.mrb[0].mxu0
    %1183 = vdwg.mxu0
    %v1185 = vsel %vm827, %v660, 0
    %v1188 = vsel %vm827, %v662, 0
    %v1191 = vsel %vm827, %v664, 0
    %v1194 = vsel %vm827, %v666, 0
    %v1197 = vsel %vm827, %v716, 0
    %v1200 = vsel %vm827, %v718, 0
    %v1203 = vsel %vm827, %v720, 0
    %v1206 = vsel %vm827, %v722, 0
    %1208 = vmatprep.subr.bf16.mxu0 0
    %1209 = vmatpush1.bf16.xpose.msra.mxu0 %v1197
    %1210 = vmatprep.subr.bf16.mxu0 0
    %1211 = vmatpush1.bf16.xpose.msra.mxu0 %v1200
    %1212 = vmatprep.subr.bf16.mxu0 0
    %1213 = vmatpush1.bf16.xpose.msra.mxu0 %v1203
    %1214 = vmatprep.subr.bf16.mxu0 0
    %1215 = vmatpush1.bf16.xpose.msra.mxu0 %v1206
    %1216 = vmatprep.subr.bf16.mxu0 0
    %1217 = vmatpush1.bf16.xpose.msra.mxu0 0
    %1218 = vmatprep.subr.bf16.mxu0 0
    %1219 = vmatpush1.bf16.xpose.msra.mxu0 0
    %1220 = vmatprep.subr.bf16.mxu0 0
    %1221 = vmatpush1.bf16.xpose.msra.mxu0 0
    %1222 = vmatprep.subr.bf16.mxu0 0
    %1223 = vmatpush1.bf16.xpose.msra.mxu0 0
    %1224 = vmatprep.subr.bf16.mxu0 0
    %1225 = vmatpush1.bf16.xpose.msra.mxu0 0
    %1226 = vmatprep.subr.bf16.mxu0 0
    %1227 = vmatpush1.bf16.xpose.msra.mxu0 0
    %1228 = vmatprep.subr.bf16.mxu0 0
    %1229 = vmatpush1.bf16.xpose.msra.mxu0 0
    %1230 = vmatprep.subr.bf16.mxu0 0
    %1231 = vmatpush1.bf16.xpose.msra.mxu0 0
    %1232 = vmatprep.subr.bf16.mxu0 0
    %1233 = vmatpush1.bf16.xpose.msra.mxu0 0
    %1234 = vmatprep.subr.bf16.mxu0 0
    %1235 = vmatpush1.bf16.xpose.msra.mxu0 0
    %1236 = vmatprep.subr.bf16.mxu0 0
    %1237 = vmatpush1.bf16.xpose.msra.mxu0 0
    %1238 = vmatprep.subr.bf16.mxu0 0
    %1239 = vmatpush1.bf16.xpose.msra.mxu0 0
    %1240 = vmatprep.mubr.bf16.mxu0 0
    %1241 = vmatmul.mubr.bf16.gmra.mrb[0].mxu0 %v1185
    %v1242 = vpop.f32.mrb[0].mxu0
    %v1243 = vadd.f32 0.0, %v1242
    %v1244 = vpop.f32.mrb[0].mxu0
    %v1245 = vpop.f32.mrb[0].mxu0
    %v1246 = vadd.f32 0.0, %v1245
    %v1247 = vpop.f32.mrb[0].mxu0
    %1248 = vmatprep.mubr.bf16.mxu0 0
    %1249 = vmatmul.mubr.bf16.gmra.mrb[0].mxu0 %v1188
    %v1250 = vpop.f32.mrb[0].mxu0
    %v1251 = vadd.f32 0.0, %v1250
    %v1252 = vpop.f32.mrb[0].mxu0
    %v1253 = vpop.f32.mrb[0].mxu0
    %v1254 = vadd.f32 0.0, %v1253
    %v1255 = vpop.f32.mrb[0].mxu0
    %1256 = vmatprep.mubr.bf16.mxu0 0
    %1257 = vmatmul.mubr.bf16.gmra.mrb[0].mxu0 %v1191
    %v1258 = vpop.f32.mrb[0].mxu0
    %v1259 = vadd.f32 0.0, %v1258
    %v1260 = vpop.f32.mrb[0].mxu0
    %v1261 = vpop.f32.mrb[0].mxu0
    %v1262 = vadd.f32 0.0, %v1261
    %v1263 = vpop.f32.mrb[0].mxu0
    %1264 = vmatprep.mubr.bf16.mxu0 0
    %1265 = vmatmul.mubr.bf16.gmra.mrb[0].mxu0 %v1194
    %v1266 = vpop.f32.mrb[0].mxu0
    %v1267 = vadd.f32 0.0, %v1266
    %v1268 = vpop.f32.mrb[0].mxu0
    %v1269 = vpop.f32.mrb[0].mxu0
    %v1270 = vadd.f32 0.0, %v1269
    %v1271 = vpop.f32.mrb[0].mxu0
    %1272 = vdwg.mxu0
    %v1274 = vsel %vm827, %v668, 0
    %v1277 = vsel %vm827, %v670, 0
    %v1280 = vsel %vm827, %v672, 0
    %v1283 = vsel %vm827, %v674, 0
    %v1286 = vsel %vm827, %v724, 0
    %v1289 = vsel %vm827, %v726, 0
    %v1292 = vsel %vm827, %v728, 0
    %v1295 = vsel %vm827, %v730, 0
    %1297 = vmatprep.subr.bf16.mxu0 0
    %1298 = vmatpush1.bf16.xpose.msra.mxu0 %v1286
    %1299 = vmatprep.subr.bf16.mxu0 0
    %1300 = vmatpush1.bf16.xpose.msra.mxu0 %v1289
    %1301 = vmatprep.subr.bf16.mxu0 0
    %1302 = vmatpush1.bf16.xpose.msra.mxu0 %v1292
    %1303 = vmatprep.subr.bf16.mxu0 0
    %1304 = vmatpush1.bf16.xpose.msra.mxu0 %v1295
    %1305 = vmatprep.subr.bf16.mxu0 0
    %1306 = vmatpush1.bf16.xpose.msra.mxu0 0
    %1307 = vmatprep.subr.bf16.mxu0 0
    %1308 = vmatpush1.bf16.xpose.msra.mxu0 0
    %1309 = vmatprep.subr.bf16.mxu0 0
    %1310 = vmatpush1.bf16.xpose.msra.mxu0 0
    %1311 = vmatprep.subr.bf16.mxu0 0
    %1312 = vmatpush1.bf16.xpose.msra.mxu0 0
    %1313 = vmatprep.subr.bf16.mxu0 0
    %1314 = vmatpush1.bf16.xpose.msra.mxu0 0
    %1315 = vmatprep.subr.bf16.mxu0 0
    %1316 = vmatpush1.bf16.xpose.msra.mxu0 0
    %1317 = vmatprep.subr.bf16.mxu0 0
    %1318 = vmatpush1.bf16.xpose.msra.mxu0 0
    %1319 = vmatprep.subr.bf16.mxu0 0
    %1320 = vmatpush1.bf16.xpose.msra.mxu0 0
    %1321 = vmatprep.subr.bf16.mxu0 0
    %1322 = vmatpush1.bf16.xpose.msra.mxu0 0
    %1323 = vmatprep.subr.bf16.mxu0 0
    %1324 = vmatpush1.bf16.xpose.msra.mxu0 0
    %1325 = vmatprep.subr.bf16.mxu0 0
    %1326 = vmatpush1.bf16.xpose.msra.mxu0 0
    %1327 = vmatprep.subr.bf16.mxu0 0
    %1328 = vmatpush1.bf16.xpose.msra.mxu0 0
    %1329 = vmatprep.mubr.bf16.mxu0 0
    %1330 = vmatmul.mubr.bf16.gmra.mrb[0].mxu0 %v1274
    %v1331 = vpop.f32.mrb[0].mxu0
    %v1332 = vadd.f32 0.0, %v1331
    %v1333 = vpop.f32.mrb[0].mxu0
    %v1334 = vpop.f32.mrb[0].mxu0
    %v1335 = vadd.f32 0.0, %v1334
    %v1336 = vpop.f32.mrb[0].mxu0
    %1337 = vmatprep.mubr.bf16.mxu0 0
    %1338 = vmatmul.mubr.bf16.gmra.mrb[0].mxu0 %v1277
    %v1339 = vpop.f32.mrb[0].mxu0
    %v1340 = vadd.f32 0.0, %v1339
    %v1341 = vpop.f32.mrb[0].mxu0
    %v1342 = vpop.f32.mrb[0].mxu0
    %v1343 = vadd.f32 0.0, %v1342
    %v1344 = vpop.f32.mrb[0].mxu0
    %1345 = vmatprep.mubr.bf16.mxu0 0
    %1346 = vmatmul.mubr.bf16.gmra.mrb[0].mxu0 %v1280
    %v1347 = vpop.f32.mrb[0].mxu0
    %v1348 = vadd.f32 0.0, %v1347
    %v1349 = vpop.f32.mrb[0].mxu0
    %v1350 = vpop.f32.mrb[0].mxu0
    %v1351 = vadd.f32 0.0, %v1350
    %v1352 = vpop.f32.mrb[0].mxu0
    %1353 = vmatprep.mubr.bf16.mxu0 0
    %1354 = vmatmul.mubr.bf16.gmra.mrb[0].mxu0 %v1283
    %v1355 = vpop.f32.mrb[0].mxu0
    %v1356 = vadd.f32 0.0, %v1355
    %v1357 = vpop.f32.mrb[0].mxu0
    %v1358 = vpop.f32.mrb[0].mxu0
    %v1359 = vadd.f32 0.0, %v1358
    %v1360 = vpop.f32.mrb[0].mxu0
    %1361 = vdwg.mxu0
    %v1363 = vsel %vm827, %v676, 0
    %v1366 = vsel %vm827, %v678, 0
    %v1369 = vsel %vm827, %v680, 0
    %v1372 = vsel %vm827, %v682, 0
    %v1375 = vsel %vm827, %v732, 0
    %v1378 = vsel %vm827, %v734, 0
    %v1381 = vsel %vm827, %v736, 0
    %v1384 = vsel %vm827, %v738, 0
    %1386 = vmatprep.subr.bf16.mxu0 0
    %1387 = vmatpush1.bf16.xpose.msra.mxu0 %v1375
    %1388 = vmatprep.subr.bf16.mxu0 0
    %1389 = vmatpush1.bf16.xpose.msra.mxu0 %v1378
    %1390 = vmatprep.subr.bf16.mxu0 0
    %1391 = vmatpush1.bf16.xpose.msra.mxu0 %v1381
    %1392 = vmatprep.subr.bf16.mxu0 0
    %1393 = vmatpush1.bf16.xpose.msra.mxu0 %v1384
    %1394 = vmatprep.subr.bf16.mxu0 0
    %1395 = vmatpush1.bf16.xpose.msra.mxu0 0
    %1396 = vmatprep.subr.bf16.mxu0 0
    %1397 = vmatpush1.bf16.xpose.msra.mxu0 0
    %1398 = vmatprep.subr.bf16.mxu0 0
    %1399 = vmatpush1.bf16.xpose.msra.mxu0 0
    %1400 = vmatprep.subr.bf16.mxu0 0
    %1401 = vmatpush1.bf16.xpose.msra.mxu0 0
    %1402 = vmatprep.subr.bf16.mxu0 0
    %1403 = vmatpush1.bf16.xpose.msra.mxu0 0
    %1404 = vmatprep.subr.bf16.mxu0 0
    %1405 = vmatpush1.bf16.xpose.msra.mxu0 0
    %1406 = vmatprep.subr.bf16.mxu0 0
    %1407 = vmatpush1.bf16.xpose.msra.mxu0 0
    %1408 = vmatprep.subr.bf16.mxu0 0
    %1409 = vmatpush1.bf16.xpose.msra.mxu0 0
    %1410 = vmatprep.subr.bf16.mxu0 0
    %1411 = vmatpush1.bf16.xpose.msra.mxu0 0
    %1412 = vmatprep.subr.bf16.mxu0 0
    %1413 = vmatpush1.bf16.xpose.msra.mxu0 0
    %1414 = vmatprep.subr.bf16.mxu0 0
    %1415 = vmatpush1.bf16.xpose.msra.mxu0 0
    %1416 = vmatprep.subr.bf16.mxu0 0
    %1417 = vmatpush1.bf16.xpose.msra.mxu0 0
    %1418 = vmatprep.mubr.bf16.mxu0 0
    %1419 = vmatmul.mubr.bf16.gmra.mrb[0].mxu0 %v1363
    %v1420 = vpop.f32.mrb[0].mxu0
    %v1421 = vadd.f32 0.0, %v1420
    %v1422 = vpop.f32.mrb[0].mxu0
    %v1423 = vpop.f32.mrb[0].mxu0
    %v1424 = vadd.f32 0.0, %v1423
    %v1425 = vpop.f32.mrb[0].mxu0
    %1426 = vmatprep.mubr.bf16.mxu0 0
    %1427 = vmatmul.mubr.bf16.gmra.mrb[0].mxu0 %v1366
    %v1428 = vpop.f32.mrb[0].mxu0
    %v1429 = vadd.f32 0.0, %v1428
    %v1430 = vpop.f32.mrb[0].mxu0
    %v1431 = vpop.f32.mrb[0].mxu0
    %v1432 = vadd.f32 0.0, %v1431
    %v1433 = vpop.f32.mrb[0].mxu0
    %1434 = vmatprep.mubr.bf16.mxu0 0
    %1435 = vmatmul.mubr.bf16.gmra.mrb[0].mxu0 %v1369
    %v1436 = vpop.f32.mrb[0].mxu0
    %v1437 = vadd.f32 0.0, %v1436
    %v1438 = vpop.f32.mrb[0].mxu0
    %v1439 = vpop.f32.mrb[0].mxu0
    %v1440 = vadd.f32 0.0, %v1439
    %v1441 = vpop.f32.mrb[0].mxu0
    %1442 = vmatprep.mubr.bf16.mxu0 0
    %1443 = vmatmul.mubr.bf16.gmra.mrb[0].mxu0 %v1372
    %v1444 = vpop.f32.mrb[0].mxu0
    %v1445 = vadd.f32 0.0, %v1444
    %v1446 = vpop.f32.mrb[0].mxu0
    %v1447 = vpop.f32.mrb[0].mxu0
    %v1448 = vadd.f32 0.0, %v1447
    %v1449 = vpop.f32.mrb[0].mxu0
    %1450 = vdwg.mxu0
    %v1452 = vsel %vm827, %v684, 0
    %v1455 = vsel %vm827, %v686, 0
    %v1458 = vsel %vm827, %v688, 0
    %v1461 = vsel %vm827, %v690, 0
    %v1464 = vsel %vm827, %v740, 0
    %v1467 = vsel %vm827, %v742, 0
    %v1470 = vsel %vm827, %v744, 0
    %v1473 = vsel %vm827, %v746, 0
    %1475 = vmatprep.subr.bf16.mxu0 0
    %1476 = vmatpush1.bf16.xpose.msra.mxu0 %v1464
    %1477 = vmatprep.subr.bf16.mxu0 0
    %1478 = vmatpush1.bf16.xpose.msra.mxu0 %v1467
    %1479 = vmatprep.subr.bf16.mxu0 0
    %1480 = vmatpush1.bf16.xpose.msra.mxu0 %v1470
    %1481 = vmatprep.subr.bf16.mxu0 0
    %1482 = vmatpush1.bf16.xpose.msra.mxu0 %v1473
    %1483 = vmatprep.subr.bf16.mxu0 0
    %1484 = vmatpush1.bf16.xpose.msra.mxu0 0
    %1485 = vmatprep.subr.bf16.mxu0 0
    %1486 = vmatpush1.bf16.xpose.msra.mxu0 0
    %1487 = vmatprep.subr.bf16.mxu0 0
    %1488 = vmatpush1.bf16.xpose.msra.mxu0 0
    %1489 = vmatprep.subr.bf16.mxu0 0
    %1490 = vmatpush1.bf16.xpose.msra.mxu0 0
    %1491 = vmatprep.subr.bf16.mxu0 0
    %1492 = vmatpush1.bf16.xpose.msra.mxu0 0
    %1493 = vmatprep.subr.bf16.mxu0 0
    %1494 = vmatpush1.bf16.xpose.msra.mxu0 0
    %1495 = vmatprep.subr.bf16.mxu0 0
    %1496 = vmatpush1.bf16.xpose.msra.mxu0 0
    %1497 = vmatprep.subr.bf16.mxu0 0
    %1498 = vmatpush1.bf16.xpose.msra.mxu0 0
    %1499 = vmatprep.subr.bf16.mxu0 0
    %1500 = vmatpush1.bf16.xpose.msra.mxu0 0
    %1501 = vmatprep.subr.bf16.mxu0 0
    %1502 = vmatpush1.bf16.xpose.msra.mxu0 0
    %1503 = vmatprep.subr.bf16.mxu0 0
    %1504 = vmatpush1.bf16.xpose.msra.mxu0 0
    %1505 = vmatprep.subr.bf16.mxu0 0
    %1506 = vmatpush1.bf16.xpose.msra.mxu0 0
    %1507 = vmatprep.mubr.bf16.mxu0 0
    %1508 = vmatmul.mubr.bf16.gmra.mrb[0].mxu0 %v1452
    %v1509 = vpop.f32.mrb[0].mxu0
    %v1510 = vadd.f32 0.0, %v1509
    %v1511 = vpop.f32.mrb[0].mxu0
    %v1512 = vpop.f32.mrb[0].mxu0
    %v1513 = vadd.f32 0.0, %v1512
    %v1514 = vpop.f32.mrb[0].mxu0
    %1515 = vmatprep.mubr.bf16.mxu0 0
    %1516 = vmatmul.mubr.bf16.gmra.mrb[0].mxu0 %v1455
    %v1517 = vpop.f32.mrb[0].mxu0
    %v1518 = vadd.f32 0.0, %v1517
    %v1519 = vpop.f32.mrb[0].mxu0
    %v1520 = vpop.f32.mrb[0].mxu0
    %v1521 = vadd.f32 0.0, %v1520
    %v1522 = vpop.f32.mrb[0].mxu0
    %1523 = vmatprep.mubr.bf16.mxu0 0
    %1524 = vmatmul.mubr.bf16.gmra.mrb[0].mxu0 %v1458
    %v1525 = vpop.f32.mrb[0].mxu0
    %v1526 = vadd.f32 0.0, %v1525
    %v1527 = vpop.f32.mrb[0].mxu0
    %v1528 = vpop.f32.mrb[0].mxu0
    %v1529 = vadd.f32 0.0, %v1528
    %v1530 = vpop.f32.mrb[0].mxu0
    %1531 = vmatprep.mubr.bf16.mxu0 0
    %1532 = vmatmul.mubr.bf16.gmra.mrb[0].mxu0 %v1461
    %v1533 = vpop.f32.mrb[0].mxu0
    %v1534 = vadd.f32 0.0, %v1533
    %v1535 = vpop.f32.mrb[0].mxu0
    %v1536 = vpop.f32.mrb[0].mxu0
    %v1537 = vadd.f32 0.0, %v1536
    %v1538 = vpop.f32.mrb[0].mxu0
    %1539 = vdwg.mxu0
    %v1540 = vsel %vm225, 1, 0
    %v1541 = vsel %vm226, 1, 0
    %v1542 = vsel %vm227, 1, 0
    %v1543 = vsel %vm228, 1, 0
    %v1544 = vsel %vm229, 1, 0
    %v1545 = vsel %vm230, 1, 0
    %v1546 = vsel %vm231, 1, 0
    %v1547 = vsel %vm232, 1, 0
    %vm1548 = vcmp.eq.s32.totalorder %v1540, 1
    %vm1549 = vcmp.eq.s32.totalorder %v1541, 1
    %vm1550 = vcmp.eq.s32.totalorder %v1542, 1
    %vm1551 = vcmp.eq.s32.totalorder %v1543, 1
    %vm1552 = vcmp.eq.s32.totalorder %v1544, 1
    %vm1553 = vcmp.eq.s32.totalorder %v1545, 1
    %vm1554 = vcmp.eq.s32.totalorder %v1546, 1
    %vm1555 = vcmp.eq.s32.totalorder %v1547, 1
    %v1556 = vsel %vm1548, %v887, -1e+30
    %v1557 = vsel %vm1549, %v890, -1e+30
    %v1558 = vsel %vm1550, %v895, -1e+30
    %v1559 = vsel %vm1551, %v898, -1e+30
    %v1560 = vsel %vm1552, %v903, -1e+30
    %v1561 = vsel %vm1553, %v906, -1e+30
    %v1562 = vsel %vm1554, %v911, -1e+30
    %v1563 = vsel %vm1555, %v914, -1e+30
    %v1564 = vsel %vm1548, %v976, -1e+30
    %v1565 = vsel %vm1549, %v979, -1e+30
    %v1566 = vsel %vm1550, %v984, -1e+30
    %v1567 = vsel %vm1551, %v987, -1e+30
    %v1568 = vsel %vm1552, %v992, -1e+30
    %v1569 = vsel %vm1553, %v995, -1e+30
    %v1570 = vsel %vm1554, %v1000, -1e+30
    %v1571 = vsel %vm1555, %v1003, -1e+30
    %v1572 = vsel %vm1548, %v1065, -1e+30
    %v1573 = vsel %vm1549, %v1068, -1e+30
    %v1574 = vsel %vm1550, %v1073, -1e+30
    %v1575 = vsel %vm1551, %v1076, -1e+30
    %v1576 = vsel %vm1552, %v1081, -1e+30
    %v1577 = vsel %vm1553, %v1084, -1e+30
    %v1578 = vsel %vm1554, %v1089, -1e+30
    %v1579 = vsel %vm1555, %v1092, -1e+30
    %v1580 = vsel %vm1548, %v1154, -1e+30
    %v1581 = vsel %vm1549, %v1157, -1e+30
    %v1582 = vsel %vm1550, %v1162, -1e+30
    %v1583 = vsel %vm1551, %v1165, -1e+30
    %v1584 = vsel %vm1552, %v1170, -1e+30
    %v1585 = vsel %vm1553, %v1173, -1e+30
    %v1586 = vsel %vm1554, %v1178, -1e+30
    %v1587 = vsel %vm1555, %v1181, -1e+30
    %v1588 = vsel %vm1548, %v1243, -1e+30
    %v1589 = vsel %vm1549, %v1246, -1e+30
    %v1590 = vsel %vm1550, %v1251, -1e+30
    %v1591 = vsel %vm1551, %v1254, -1e+30
    %v1592 = vsel %vm1552, %v1259, -1e+30
    %v1593 = vsel %vm1553, %v1262, -1e+30
    %v1594 = vsel %vm1554, %v1267, -1e+30
    %v1595 = vsel %vm1555, %v1270, -1e+30
    %v1596 = vsel %vm1548, %v1332, -1e+30
    %v1597 = vsel %vm1549, %v1335, -1e+30
    %v1598 = vsel %vm1550, %v1340, -1e+30
    %v1599 = vsel %vm1551, %v1343, -1e+30
    %v1600 = vsel %vm1552, %v1348, -1e+30
    %v1601 = vsel %vm1553, %v1351, -1e+30
    %v1602 = vsel %vm1554, %v1356, -1e+30
    %v1603 = vsel %vm1555, %v1359, -1e+30
    %v1604 = vsel %vm1548, %v1421, -1e+30
    %v1605 = vsel %vm1549, %v1424, -1e+30
    %v1606 = vsel %vm1550, %v1429, -1e+30
    %v1607 = vsel %vm1551, %v1432, -1e+30
    %v1608 = vsel %vm1552, %v1437, -1e+30
    %v1609 = vsel %vm1553, %v1440, -1e+30
    %v1610 = vsel %vm1554, %v1445, -1e+30
    %v1611 = vsel %vm1555, %v1448, -1e+30
    %v1612 = vsel %vm1548, %v1510, -1e+30
    %v1613 = vsel %vm1549, %v1513, -1e+30
    %v1614 = vsel %vm1550, %v1518, -1e+30
    %v1615 = vsel %vm1551, %v1521, -1e+30
    %v1616 = vsel %vm1552, %v1526, -1e+30
    %v1617 = vsel %vm1553, %v1529, -1e+30
    %v1618 = vsel %vm1554, %v1534, -1e+30
    %v1619 = vsel %vm1555, %v1537, -1e+30
    %vm1620 = vcmask 523264
    %v1621 = vsel %vm1620, %v1556, -inf
    %1622 = vmax.xlane.f32.xlu0 %v1621
    %v1623 = vpop.xlane.xlu0 %1622
    %v1624 = vsel %vm1620, %v1557, -inf
    %1625 = vmax.xlane.f32.xlu0 %v1624
    %v1626 = vpop.xlane.xlu0 %1625
    %v1627 = vsel %vm1620, %v1558, -inf
    %1628 = vmax.xlane.f32.xlu0 %v1627
    %v1629 = vpop.xlane.xlu0 %1628
    %v1630 = vsel %vm1620, %v1559, -inf
    %1631 = vmax.xlane.f32.xlu0 %v1630
    %v1632 = vpop.xlane.xlu0 %1631
    %v1633 = vsel %vm1620, %v1560, -inf
    %1634 = vmax.xlane.f32.xlu0 %v1633
    %v1635 = vpop.xlane.xlu0 %1634
    %v1636 = vsel %vm1620, %v1561, -inf
    %1637 = vmax.xlane.f32.xlu0 %v1636
    %v1638 = vpop.xlane.xlu0 %1637
    %v1639 = vsel %vm1620, %v1562, -inf
    %1640 = vmax.xlane.f32.xlu0 %v1639
    %v1641 = vpop.xlane.xlu0 %1640
    %v1642 = vsel %vm1620, %v1563, -inf
    %1643 = vmax.xlane.f32.xlu0 %v1642
    %v1644 = vpop.xlane.xlu0 %1643
    %v1645 = vsel %vm1620, %v1564, -inf
    %1646 = vmax.xlane.f32.xlu0 %v1645
    %v1647 = vpop.xlane.xlu0 %1646
    %v1648 = vsel %vm1620, %v1565, -inf
    %1649 = vmax.xlane.f32.xlu0 %v1648
    %v1650 = vpop.xlane.xlu0 %1649
    %v1651 = vsel %vm1620, %v1566, -inf
    %1652 = vmax.xlane.f32.xlu0 %v1651
    %v1653 = vpop.xlane.xlu0 %1652
    %v1654 = vsel %vm1620, %v1567, -inf
    %1655 = vmax.xlane.f32.xlu0 %v1654
    %v1656 = vpop.xlane.xlu0 %1655
    %v1657 = vsel %vm1620, %v1568, -inf
    %1658 = vmax.xlane.f32.xlu0 %v1657
    %v1659 = vpop.xlane.xlu0 %1658
    %v1660 = vsel %vm1620, %v1569, -inf
    %1661 = vmax.xlane.f32.xlu0 %v1660
    %v1662 = vpop.xlane.xlu0 %1661
    %v1663 = vsel %vm1620, %v1570, -inf
    %1664 = vmax.xlane.f32.xlu0 %v1663
    %v1665 = vpop.xlane.xlu0 %1664
    %v1666 = vsel %vm1620, %v1571, -inf
    %1667 = vmax.xlane.f32.xlu0 %v1666
    %v1668 = vpop.xlane.xlu0 %1667
    %v1669 = vsel %vm1620, %v1572, -inf
    %1670 = vmax.xlane.f32.xlu0 %v1669
    %v1671 = vpop.xlane.xlu0 %1670
    %v1672 = vsel %vm1620, %v1573, -inf
    %1673 = vmax.xlane.f32.xlu0 %v1672
    %v1674 = vpop.xlane.xlu0 %1673
    %v1675 = vsel %vm1620, %v1574, -inf
    %1676 = vmax.xlane.f32.xlu0 %v1675
    %v1677 = vpop.xlane.xlu0 %1676
    %v1678 = vsel %vm1620, %v1575, -inf
    %1679 = vmax.xlane.f32.xlu0 %v1678
    %v1680 = vpop.xlane.xlu0 %1679
    %v1681 = vsel %vm1620, %v1576, -inf
    %1682 = vmax.xlane.f32.xlu0 %v1681
    %v1683 = vpop.xlane.xlu0 %1682
    %v1684 = vsel %vm1620, %v1577, -inf
    %1685 = vmax.xlane.f32.xlu0 %v1684
    %v1686 = vpop.xlane.xlu0 %1685
    %v1687 = vsel %vm1620, %v1578, -inf
    %1688 = vmax.xlane.f32.xlu0 %v1687
    %v1689 = vpop.xlane.xlu0 %1688
    %v1690 = vsel %vm1620, %v1579, -inf
    %1691 = vmax.xlane.f32.xlu0 %v1690
    %v1692 = vpop.xlane.xlu0 %1691
    %v1693 = vsel %vm1620, %v1580, -inf
    %1694 = vmax.xlane.f32.xlu0 %v1693
    %v1695 = vpop.xlane.xlu0 %1694
    %v1696 = vsel %vm1620, %v1581, -inf
    %1697 = vmax.xlane.f32.xlu0 %v1696
    %v1698 = vpop.xlane.xlu0 %1697
    %v1699 = vsel %vm1620, %v1582, -inf
    %1700 = vmax.xlane.f32.xlu0 %v1699
    %v1701 = vpop.xlane.xlu0 %1700
    %v1702 = vsel %vm1620, %v1583, -inf
    %1703 = vmax.xlane.f32.xlu0 %v1702
    %v1704 = vpop.xlane.xlu0 %1703
    %v1705 = vsel %vm1620, %v1584, -inf
    %1706 = vmax.xlane.f32.xlu0 %v1705
    %v1707 = vpop.xlane.xlu0 %1706
    %v1708 = vsel %vm1620, %v1585, -inf
    %1709 = vmax.xlane.f32.xlu0 %v1708
    %v1710 = vpop.xlane.xlu0 %1709
    %v1711 = vsel %vm1620, %v1586, -inf
    %1712 = vmax.xlane.f32.xlu0 %v1711
    %v1713 = vpop.xlane.xlu0 %1712
    %v1714 = vsel %vm1620, %v1587, -inf
    %1715 = vmax.xlane.f32.xlu0 %v1714
    %v1716 = vpop.xlane.xlu0 %1715
    %v1717 = vsel %vm1620, %v1588, -inf
    %1718 = vmax.xlane.f32.xlu0 %v1717
    %v1719 = vpop.xlane.xlu0 %1718
    %v1720 = vsel %vm1620, %v1589, -inf
    %1721 = vmax.xlane.f32.xlu0 %v1720
    %v1722 = vpop.xlane.xlu0 %1721
    %v1723 = vsel %vm1620, %v1590, -inf
    %1724 = vmax.xlane.f32.xlu0 %v1723
    %v1725 = vpop.xlane.xlu0 %1724
    %v1726 = vsel %vm1620, %v1591, -inf
    %1727 = vmax.xlane.f32.xlu0 %v1726
    %v1728 = vpop.xlane.xlu0 %1727
    %v1729 = vsel %vm1620, %v1592, -inf
    %1730 = vmax.xlane.f32.xlu0 %v1729
    %v1731 = vpop.xlane.xlu0 %1730
    %v1732 = vsel %vm1620, %v1593, -inf
    %1733 = vmax.xlane.f32.xlu0 %v1732
    %v1734 = vpop.xlane.xlu0 %1733
    %v1735 = vsel %vm1620, %v1594, -inf
    %1736 = vmax.xlane.f32.xlu0 %v1735
    %v1737 = vpop.xlane.xlu0 %1736
    %v1738 = vsel %vm1620, %v1595, -inf
    %1739 = vmax.xlane.f32.xlu0 %v1738
    %v1740 = vpop.xlane.xlu0 %1739
    %v1741 = vsel %vm1620, %v1596, -inf
    %1742 = vmax.xlane.f32.xlu0 %v1741
    %v1743 = vpop.xlane.xlu0 %1742
    %v1744 = vsel %vm1620, %v1597, -inf
    %1745 = vmax.xlane.f32.xlu0 %v1744
    %v1746 = vpop.xlane.xlu0 %1745
    %v1747 = vsel %vm1620, %v1598, -inf
    %1748 = vmax.xlane.f32.xlu0 %v1747
    %v1749 = vpop.xlane.xlu0 %1748
    %v1750 = vsel %vm1620, %v1599, -inf
    %1751 = vmax.xlane.f32.xlu0 %v1750
    %v1752 = vpop.xlane.xlu0 %1751
    %v1753 = vsel %vm1620, %v1600, -inf
    %1754 = vmax.xlane.f32.xlu0 %v1753
    %v1755 = vpop.xlane.xlu0 %1754
    %v1756 = vsel %vm1620, %v1601, -inf
    %1757 = vmax.xlane.f32.xlu0 %v1756
    %v1758 = vpop.xlane.xlu0 %1757
    %v1759 = vsel %vm1620, %v1602, -inf
    %1760 = vmax.xlane.f32.xlu0 %v1759
    %v1761 = vpop.xlane.xlu0 %1760
    %v1762 = vsel %vm1620, %v1603, -inf
    %1763 = vmax.xlane.f32.xlu0 %v1762
    %v1764 = vpop.xlane.xlu0 %1763
    %v1765 = vsel %vm1620, %v1604, -inf
    %1766 = vmax.xlane.f32.xlu0 %v1765
    %v1767 = vpop.xlane.xlu0 %1766
    %v1768 = vsel %vm1620, %v1605, -inf
    %1769 = vmax.xlane.f32.xlu0 %v1768
    %v1770 = vpop.xlane.xlu0 %1769
    %v1771 = vsel %vm1620, %v1606, -inf
    %1772 = vmax.xlane.f32.xlu0 %v1771
    %v1773 = vpop.xlane.xlu0 %1772
    %v1774 = vsel %vm1620, %v1607, -inf
    %1775 = vmax.xlane.f32.xlu0 %v1774
    %v1776 = vpop.xlane.xlu0 %1775
    %v1777 = vsel %vm1620, %v1608, -inf
    %1778 = vmax.xlane.f32.xlu0 %v1777
    %v1779 = vpop.xlane.xlu0 %1778
    %v1780 = vsel %vm1620, %v1609, -inf
    %1781 = vmax.xlane.f32.xlu0 %v1780
    %v1782 = vpop.xlane.xlu0 %1781
    %v1783 = vsel %vm1620, %v1610, -inf
    %1784 = vmax.xlane.f32.xlu0 %v1783
    %v1785 = vpop.xlane.xlu0 %1784
    %v1786 = vsel %vm1620, %v1611, -inf
    %1787 = vmax.xlane.f32.xlu0 %v1786
    %v1788 = vpop.xlane.xlu0 %1787
    %v1789 = vsel %vm1620, %v1612, -inf
    %1790 = vmax.xlane.f32.xlu0 %v1789
    %v1791 = vpop.xlane.xlu0 %1790
    %v1792 = vsel %vm1620, %v1613, -inf
    %1793 = vmax.xlane.f32.xlu0 %v1792
    %v1794 = vpop.xlane.xlu0 %1793
    %v1795 = vsel %vm1620, %v1614, -inf
    %1796 = vmax.xlane.f32.xlu0 %v1795
    %v1797 = vpop.xlane.xlu0 %1796
    %v1798 = vsel %vm1620, %v1615, -inf
    %1799 = vmax.xlane.f32.xlu0 %v1798
    %v1800 = vpop.xlane.xlu0 %1799
    %v1801 = vsel %vm1620, %v1616, -inf
    %1802 = vmax.xlane.f32.xlu0 %v1801
    %v1803 = vpop.xlane.xlu0 %1802
    %v1804 = vsel %vm1620, %v1617, -inf
    %1805 = vmax.xlane.f32.xlu0 %v1804
    %v1806 = vpop.xlane.xlu0 %1805
    %v1807 = vsel %vm1620, %v1618, -inf
    %1808 = vmax.xlane.f32.xlu0 %v1807
    %v1809 = vpop.xlane.xlu0 %1808
    %v1810 = vsel %vm1620, %v1619, -inf
    %1811 = vmax.xlane.f32.xlu0 %v1810
    %v1812 = vpop.xlane.xlu0 %1811
    %v1813 = vsub.f32 %v1556, %v1623
    %v1814 = vsub.f32 %v1557, %v1626
    %v1815 = vsub.f32 %v1558, %v1629
    %v1816 = vsub.f32 %v1559, %v1632
    %v1817 = vsub.f32 %v1560, %v1635
    %v1818 = vsub.f32 %v1561, %v1638
    %v1819 = vsub.f32 %v1562, %v1641
    %v1820 = vsub.f32 %v1563, %v1644
    %v1821 = vsub.f32 %v1564, %v1647
    %v1822 = vsub.f32 %v1565, %v1650
    %v1823 = vsub.f32 %v1566, %v1653
    %v1824 = vsub.f32 %v1567, %v1656
    %v1825 = vsub.f32 %v1568, %v1659
    %v1826 = vsub.f32 %v1569, %v1662
    %v1827 = vsub.f32 %v1570, %v1665
    %v1828 = vsub.f32 %v1571, %v1668
    %v1829 = vsub.f32 %v1572, %v1671
    %v1830 = vsub.f32 %v1573, %v1674
    %v1831 = vsub.f32 %v1574, %v1677
    %v1832 = vsub.f32 %v1575, %v1680
    %v1833 = vsub.f32 %v1576, %v1683
    %v1834 = vsub.f32 %v1577, %v1686
    %v1835 = vsub.f32 %v1578, %v1689
    %v1836 = vsub.f32 %v1579, %v1692
    %v1837 = vsub.f32 %v1580, %v1695
    %v1838 = vsub.f32 %v1581, %v1698
    %v1839 = vsub.f32 %v1582, %v1701
    %v1840 = vsub.f32 %v1583, %v1704
    %v1841 = vsub.f32 %v1584, %v1707
    %v1842 = vsub.f32 %v1585, %v1710
    %v1843 = vsub.f32 %v1586, %v1713
    %v1844 = vsub.f32 %v1587, %v1716
    %v1845 = vsub.f32 %v1588, %v1719
    %v1846 = vsub.f32 %v1589, %v1722
    %v1847 = vsub.f32 %v1590, %v1725
    %v1848 = vsub.f32 %v1591, %v1728
    %v1849 = vsub.f32 %v1592, %v1731
    %v1850 = vsub.f32 %v1593, %v1734
    %v1851 = vsub.f32 %v1594, %v1737
    %v1852 = vsub.f32 %v1595, %v1740
    %v1853 = vsub.f32 %v1596, %v1743
    %v1854 = vsub.f32 %v1597, %v1746
    %v1855 = vsub.f32 %v1598, %v1749
    %v1856 = vsub.f32 %v1599, %v1752
    %v1857 = vsub.f32 %v1600, %v1755
    %v1858 = vsub.f32 %v1601, %v1758
    %v1859 = vsub.f32 %v1602, %v1761
    %v1860 = vsub.f32 %v1603, %v1764
    %v1861 = vsub.f32 %v1604, %v1767
    %v1862 = vsub.f32 %v1605, %v1770
    %v1863 = vsub.f32 %v1606, %v1773
    %v1864 = vsub.f32 %v1607, %v1776
    %v1865 = vsub.f32 %v1608, %v1779
    %v1866 = vsub.f32 %v1609, %v1782
    %v1867 = vsub.f32 %v1610, %v1785
    %v1868 = vsub.f32 %v1611, %v1788
    %v1869 = vsub.f32 %v1612, %v1791
    %v1870 = vsub.f32 %v1613, %v1794
    %v1871 = vsub.f32 %v1614, %v1797
    %v1872 = vsub.f32 %v1615, %v1800
    %v1873 = vsub.f32 %v1616, %v1803
    %v1874 = vsub.f32 %v1617, %v1806
    %v1875 = vsub.f32 %v1618, %v1809
    %v1876 = vsub.f32 %v1619, %v1812
    %v1877 = vmul.f32 %v1813, 1.442695
    %v1878 = vpow.pop %v1877
    %v1879 = vmul.f32 %v1814, 1.442695
    %v1880 = vpow.pop %v1879
    %v1881 = vmul.f32 %v1815, 1.442695
    %v1882 = vpow.pop %v1881
    %v1883 = vmul.f32 %v1816, 1.442695
    %v1884 = vpow.pop %v1883
    %v1885 = vmul.f32 %v1817, 1.442695
    %v1886 = vpow.pop %v1885
    %v1887 = vmul.f32 %v1818, 1.442695
    %v1888 = vpow.pop %v1887
    %v1889 = vmul.f32 %v1819, 1.442695
    %v1890 = vpow.pop %v1889
    %v1891 = vmul.f32 %v1820, 1.442695
    %v1892 = vpow.pop %v1891
    %v1893 = vmul.f32 %v1821, 1.442695
    %v1894 = vpow.pop %v1893
    %v1895 = vmul.f32 %v1822, 1.442695
    %v1896 = vpow.pop %v1895
    %v1897 = vmul.f32 %v1823, 1.442695
    %v1898 = vpow.pop %v1897
    %v1899 = vmul.f32 %v1824, 1.442695
    %v1900 = vpow.pop %v1899
    %v1901 = vmul.f32 %v1825, 1.442695
    %v1902 = vpow.pop %v1901
    %v1903 = vmul.f32 %v1826, 1.442695
    %v1904 = vpow.pop %v1903
    %v1905 = vmul.f32 %v1827, 1.442695
    %v1906 = vpow.pop %v1905
    %v1907 = vmul.f32 %v1828, 1.442695
    %v1908 = vpow.pop %v1907
    %v1909 = vmul.f32 %v1829, 1.442695
    %v1910 = vpow.pop %v1909
    %v1911 = vmul.f32 %v1830, 1.442695
    %v1912 = vpow.pop %v1911
    %v1913 = vmul.f32 %v1831, 1.442695
    %v1914 = vpow.pop %v1913
    %v1915 = vmul.f32 %v1832, 1.442695
    %v1916 = vpow.pop %v1915
    %v1917 = vmul.f32 %v1833, 1.442695
    %v1918 = vpow.pop %v1917
    %v1919 = vmul.f32 %v1834, 1.442695
    %v1920 = vpow.pop %v1919
    %v1921 = vmul.f32 %v1835, 1.442695
    %v1922 = vpow.pop %v1921
    %v1923 = vmul.f32 %v1836, 1.442695
    %v1924 = vpow.pop %v1923
    %v1925 = vmul.f32 %v1837, 1.442695
    %v1926 = vpow.pop %v1925
    %v1927 = vmul.f32 %v1838, 1.442695
    %v1928 = vpow.pop %v1927
    %v1929 = vmul.f32 %v1839, 1.442695
    %v1930 = vpow.pop %v1929
    %v1931 = vmul.f32 %v1840, 1.442695
    %v1932 = vpow.pop %v1931
    %v1933 = vmul.f32 %v1841, 1.442695
    %v1934 = vpow.pop %v1933
    %v1935 = vmul.f32 %v1842, 1.442695
    %v1936 = vpow.pop %v1935
    %v1937 = vmul.f32 %v1843, 1.442695
    %v1938 = vpow.pop %v1937
    %v1939 = vmul.f32 %v1844, 1.442695
    %v1940 = vpow.pop %v1939
    %v1941 = vmul.f32 %v1845, 1.442695
    %v1942 = vpow.pop %v1941
    %v1943 = vmul.f32 %v1846, 1.442695
    %v1944 = vpow.pop %v1943
    %v1945 = vmul.f32 %v1847, 1.442695
    %v1946 = vpow.pop %v1945
    %v1947 = vmul.f32 %v1848, 1.442695
    %v1948 = vpow.pop %v1947
    %v1949 = vmul.f32 %v1849, 1.442695
    %v1950 = vpow.pop %v1949
    %v1951 = vmul.f32 %v1850, 1.442695
    %v1952 = vpow.pop %v1951
    %v1953 = vmul.f32 %v1851, 1.442695
    %v1954 = vpow.pop %v1953
    %v1955 = vmul.f32 %v1852, 1.442695
    %v1956 = vpow.pop %v1955
    %v1957 = vmul.f32 %v1853, 1.442695
    %v1958 = vpow.pop %v1957
    %v1959 = vmul.f32 %v1854, 1.442695
    %v1960 = vpow.pop %v1959
    %v1961 = vmul.f32 %v1855, 1.442695
    %v1962 = vpow.pop %v1961
    %v1963 = vmul.f32 %v1856, 1.442695
    %v1964 = vpow.pop %v1963
    %v1965 = vmul.f32 %v1857, 1.442695
    %v1966 = vpow.pop %v1965
    %v1967 = vmul.f32 %v1858, 1.442695
    %v1968 = vpow.pop %v1967
    %v1969 = vmul.f32 %v1859, 1.442695
    %v1970 = vpow.pop %v1969
    %v1971 = vmul.f32 %v1860, 1.442695
    %v1972 = vpow.pop %v1971
    %v1973 = vmul.f32 %v1861, 1.442695
    %v1974 = vpow.pop %v1973
    %v1975 = vmul.f32 %v1862, 1.442695
    %v1976 = vpow.pop %v1975
    %v1977 = vmul.f32 %v1863, 1.442695
    %v1978 = vpow.pop %v1977
    %v1979 = vmul.f32 %v1864, 1.442695
    %v1980 = vpow.pop %v1979
    %v1981 = vmul.f32 %v1865, 1.442695
    %v1982 = vpow.pop %v1981
    %v1983 = vmul.f32 %v1866, 1.442695
    %v1984 = vpow.pop %v1983
    %v1985 = vmul.f32 %v1867, 1.442695
    %v1986 = vpow.pop %v1985
    %v1987 = vmul.f32 %v1868, 1.442695
    %v1988 = vpow.pop %v1987
    %v1989 = vmul.f32 %v1869, 1.442695
    %v1990 = vpow.pop %v1989
    %v1991 = vmul.f32 %v1870, 1.442695
    %v1992 = vpow.pop %v1991
    %v1993 = vmul.f32 %v1871, 1.442695
    %v1994 = vpow.pop %v1993
    %v1995 = vmul.f32 %v1872, 1.442695
    %v1996 = vpow.pop %v1995
    %v1997 = vmul.f32 %v1873, 1.442695
    %v1998 = vpow.pop %v1997
    %v1999 = vmul.f32 %v1874, 1.442695
    %v2000 = vpow.pop %v1999
    %v2001 = vmul.f32 %v1875, 1.442695
    %v2002 = vpow.pop %v2001
    %v2003 = vmul.f32 %v1876, 1.442695
    %v2004 = vpow.pop %v2003
    %v2005 = vsel %vm1620, %v1878, 0.0
    %2006 = vadd.xlane.f32.xlu0 %v2005
    %v2007 = vpop.xlane.xlu0 %2006
    %v2008 = vsel %vm1620, %v1880, 0.0
    %2009 = vadd.xlane.f32.xlu0 %v2008
    %v2010 = vpop.xlane.xlu0 %2009
    %v2011 = vsel %vm1620, %v1882, 0.0
    %2012 = vadd.xlane.f32.xlu0 %v2011
    %v2013 = vpop.xlane.xlu0 %2012
    %v2014 = vsel %vm1620, %v1884, 0.0
    %2015 = vadd.xlane.f32.xlu0 %v2014
    %v2016 = vpop.xlane.xlu0 %2015
    %v2017 = vsel %vm1620, %v1886, 0.0
    %2018 = vadd.xlane.f32.xlu0 %v2017
    %v2019 = vpop.xlane.xlu0 %2018
    %v2020 = vsel %vm1620, %v1888, 0.0
    %2021 = vadd.xlane.f32.xlu0 %v2020
    %v2022 = vpop.xlane.xlu0 %2021
    %v2023 = vsel %vm1620, %v1890, 0.0
    %2024 = vadd.xlane.f32.xlu0 %v2023
    %v2025 = vpop.xlane.xlu0 %2024
    %v2026 = vsel %vm1620, %v1892, 0.0
    %2027 = vadd.xlane.f32.xlu0 %v2026
    %v2028 = vpop.xlane.xlu0 %2027
    %v2029 = vsel %vm1620, %v1894, 0.0
    %2030 = vadd.xlane.f32.xlu0 %v2029
    %v2031 = vpop.xlane.xlu0 %2030
    %v2032 = vsel %vm1620, %v1896, 0.0
    %2033 = vadd.xlane.f32.xlu0 %v2032
    %v2034 = vpop.xlane.xlu0 %2033
    %v2035 = vsel %vm1620, %v1898, 0.0
    %2036 = vadd.xlane.f32.xlu0 %v2035
    %v2037 = vpop.xlane.xlu0 %2036
    %v2038 = vsel %vm1620, %v1900, 0.0
    %2039 = vadd.xlane.f32.xlu0 %v2038
    %v2040 = vpop.xlane.xlu0 %2039
    %v2041 = vsel %vm1620, %v1902, 0.0
    %2042 = vadd.xlane.f32.xlu0 %v2041
    %v2043 = vpop.xlane.xlu0 %2042
    %v2044 = vsel %vm1620, %v1904, 0.0
    %2045 = vadd.xlane.f32.xlu0 %v2044
    %v2046 = vpop.xlane.xlu0 %2045
    %v2047 = vsel %vm1620, %v1906, 0.0
    %2048 = vadd.xlane.f32.xlu0 %v2047
    %v2049 = vpop.xlane.xlu0 %2048
    %v2050 = vsel %vm1620, %v1908, 0.0
    %2051 = vadd.xlane.f32.xlu0 %v2050
    %v2052 = vpop.xlane.xlu0 %2051
    %v2053 = vsel %vm1620, %v1910, 0.0
    %2054 = vadd.xlane.f32.xlu0 %v2053
    %v2055 = vpop.xlane.xlu0 %2054
    %v2056 = vsel %vm1620, %v1912, 0.0
    %2057 = vadd.xlane.f32.xlu0 %v2056
    %v2058 = vpop.xlane.xlu0 %2057
    %v2059 = vsel %vm1620, %v1914, 0.0
    %2060 = vadd.xlane.f32.xlu0 %v2059
    %v2061 = vpop.xlane.xlu0 %2060
    %v2062 = vsel %vm1620, %v1916, 0.0
    %2063 = vadd.xlane.f32.xlu0 %v2062
    %v2064 = vpop.xlane.xlu0 %2063
    %v2065 = vsel %vm1620, %v1918, 0.0
    %2066 = vadd.xlane.f32.xlu0 %v2065
    %v2067 = vpop.xlane.xlu0 %2066
    %v2068 = vsel %vm1620, %v1920, 0.0
    %2069 = vadd.xlane.f32.xlu0 %v2068
    %v2070 = vpop.xlane.xlu0 %2069
    %v2071 = vsel %vm1620, %v1922, 0.0
    %2072 = vadd.xlane.f32.xlu0 %v2071
    %v2073 = vpop.xlane.xlu0 %2072
    %v2074 = vsel %vm1620, %v1924, 0.0
    %2075 = vadd.xlane.f32.xlu0 %v2074
    %v2076 = vpop.xlane.xlu0 %2075
    %v2077 = vsel %vm1620, %v1926, 0.0
    %2078 = vadd.xlane.f32.xlu0 %v2077
    %v2079 = vpop.xlane.xlu0 %2078
    %v2080 = vsel %vm1620, %v1928, 0.0
    %2081 = vadd.xlane.f32.xlu0 %v2080
    %v2082 = vpop.xlane.xlu0 %2081
    %v2083 = vsel %vm1620, %v1930, 0.0
    %2084 = vadd.xlane.f32.xlu0 %v2083
    %v2085 = vpop.xlane.xlu0 %2084
    %v2086 = vsel %vm1620, %v1932, 0.0
    %2087 = vadd.xlane.f32.xlu0 %v2086
    %v2088 = vpop.xlane.xlu0 %2087
    %v2089 = vsel %vm1620, %v1934, 0.0
    %2090 = vadd.xlane.f32.xlu0 %v2089
    %v2091 = vpop.xlane.xlu0 %2090
    %v2092 = vsel %vm1620, %v1936, 0.0
    %2093 = vadd.xlane.f32.xlu0 %v2092
    %v2094 = vpop.xlane.xlu0 %2093
    %v2095 = vsel %vm1620, %v1938, 0.0
    %2096 = vadd.xlane.f32.xlu0 %v2095
    %v2097 = vpop.xlane.xlu0 %2096
    %v2098 = vsel %vm1620, %v1940, 0.0
    %2099 = vadd.xlane.f32.xlu0 %v2098
    %v2100 = vpop.xlane.xlu0 %2099
    %v2101 = vsel %vm1620, %v1942, 0.0
    %2102 = vadd.xlane.f32.xlu0 %v2101
    %v2103 = vpop.xlane.xlu0 %2102
    %v2104 = vsel %vm1620, %v1944, 0.0
    %2105 = vadd.xlane.f32.xlu0 %v2104
    %v2106 = vpop.xlane.xlu0 %2105
    %v2107 = vsel %vm1620, %v1946, 0.0
    %2108 = vadd.xlane.f32.xlu0 %v2107
    %v2109 = vpop.xlane.xlu0 %2108
    %v2110 = vsel %vm1620, %v1948, 0.0
    %2111 = vadd.xlane.f32.xlu0 %v2110
    %v2112 = vpop.xlane.xlu0 %2111
    %v2113 = vsel %vm1620, %v1950, 0.0
    %2114 = vadd.xlane.f32.xlu0 %v2113
    %v2115 = vpop.xlane.xlu0 %2114
    %v2116 = vsel %vm1620, %v1952, 0.0
    %2117 = vadd.xlane.f32.xlu0 %v2116
    %v2118 = vpop.xlane.xlu0 %2117
    %v2119 = vsel %vm1620, %v1954, 0.0
    %2120 = vadd.xlane.f32.xlu0 %v2119
    %v2121 = vpop.xlane.xlu0 %2120
    %v2122 = vsel %vm1620, %v1956, 0.0
    %2123 = vadd.xlane.f32.xlu0 %v2122
    %v2124 = vpop.xlane.xlu0 %2123
    %v2125 = vsel %vm1620, %v1958, 0.0
    %2126 = vadd.xlane.f32.xlu0 %v2125
    %v2127 = vpop.xlane.xlu0 %2126
    %v2128 = vsel %vm1620, %v1960, 0.0
    %2129 = vadd.xlane.f32.xlu0 %v2128
    %v2130 = vpop.xlane.xlu0 %2129
    %v2131 = vsel %vm1620, %v1962, 0.0
    %2132 = vadd.xlane.f32.xlu0 %v2131
    %v2133 = vpop.xlane.xlu0 %2132
    %v2134 = vsel %vm1620, %v1964, 0.0
    %2135 = vadd.xlane.f32.xlu0 %v2134
    %v2136 = vpop.xlane.xlu0 %2135
    %v2137 = vsel %vm1620, %v1966, 0.0
    %2138 = vadd.xlane.f32.xlu0 %v2137
    %v2139 = vpop.xlane.xlu0 %2138
    %v2140 = vsel %vm1620, %v1968, 0.0
    %2141 = vadd.xlane.f32.xlu0 %v2140
    %v2142 = vpop.xlane.xlu0 %2141
    %v2143 = vsel %vm1620, %v1970, 0.0
    %2144 = vadd.xlane.f32.xlu0 %v2143
    %v2145 = vpop.xlane.xlu0 %2144
    %v2146 = vsel %vm1620, %v1972, 0.0
    %2147 = vadd.xlane.f32.xlu0 %v2146
    %v2148 = vpop.xlane.xlu0 %2147
    %v2149 = vsel %vm1620, %v1974, 0.0
    %2150 = vadd.xlane.f32.xlu0 %v2149
    %v2151 = vpop.xlane.xlu0 %2150
    %v2152 = vsel %vm1620, %v1976, 0.0
    %2153 = vadd.xlane.f32.xlu0 %v2152
    %v2154 = vpop.xlane.xlu0 %2153
    %v2155 = vsel %vm1620, %v1978, 0.0
    %2156 = vadd.xlane.f32.xlu0 %v2155
    %v2157 = vpop.xlane.xlu0 %2156
    %v2158 = vsel %vm1620, %v1980, 0.0
    %2159 = vadd.xlane.f32.xlu0 %v2158
    %v2160 = vpop.xlane.xlu0 %2159
    %v2161 = vsel %vm1620, %v1982, 0.0
    %2162 = vadd.xlane.f32.xlu0 %v2161
    %v2163 = vpop.xlane.xlu0 %2162
    %v2164 = vsel %vm1620, %v1984, 0.0
    %2165 = vadd.xlane.f32.xlu0 %v2164
    %v2166 = vpop.xlane.xlu0 %2165
    %v2167 = vsel %vm1620, %v1986, 0.0
    %2168 = vadd.xlane.f32.xlu0 %v2167
    %v2169 = vpop.xlane.xlu0 %2168
    %v2170 = vsel %vm1620, %v1988, 0.0
    %2171 = vadd.xlane.f32.xlu0 %v2170
    %v2172 = vpop.xlane.xlu0 %2171
    %v2173 = vsel %vm1620, %v1990, 0.0
    %2174 = vadd.xlane.f32.xlu0 %v2173
    %v2175 = vpop.xlane.xlu0 %2174
    %v2176 = vsel %vm1620, %v1992, 0.0
    %2177 = vadd.xlane.f32.xlu0 %v2176
    %v2178 = vpop.xlane.xlu0 %2177
    %v2179 = vsel %vm1620, %v1994, 0.0
    %2180 = vadd.xlane.f32.xlu0 %v2179
    %v2181 = vpop.xlane.xlu0 %2180
    %v2182 = vsel %vm1620, %v1996, 0.0
    %2183 = vadd.xlane.f32.xlu0 %v2182
    %v2184 = vpop.xlane.xlu0 %2183
    %v2185 = vsel %vm1620, %v1998, 0.0
    %2186 = vadd.xlane.f32.xlu0 %v2185
    %v2187 = vpop.xlane.xlu0 %2186
    %v2188 = vsel %vm1620, %v2000, 0.0
    %2189 = vadd.xlane.f32.xlu0 %v2188
    %v2190 = vpop.xlane.xlu0 %2189
    %v2191 = vsel %vm1620, %v2002, 0.0
    %2192 = vadd.xlane.f32.xlu0 %v2191
    %v2193 = vpop.xlane.xlu0 %2192
    %v2194 = vsel %vm1620, %v2004, 0.0
    %2195 = vadd.xlane.f32.xlu0 %v2194
    %v2196 = vpop.xlane.xlu0 %2195
    %v2197 = vrcp.pop %v2007
    %v2198 = vrcp.pop %v2010
    %v2199 = vrcp.pop %v2013
    %v2200 = vrcp.pop %v2016
    %v2201 = vrcp.pop %v2019
    %v2202 = vrcp.pop %v2022
    %v2203 = vrcp.pop %v2025
    %v2204 = vrcp.pop %v2028
    %v2205 = vrcp.pop %v2031
    %v2206 = vrcp.pop %v2034
    %v2207 = vrcp.pop %v2037
    %v2208 = vrcp.pop %v2040
    %v2209 = vrcp.pop %v2043
    %v2210 = vrcp.pop %v2046
    %v2211 = vrcp.pop %v2049
    %v2212 = vrcp.pop %v2052
    %v2213 = vrcp.pop %v2055
    %v2214 = vrcp.pop %v2058
    %v2215 = vrcp.pop %v2061
    %v2216 = vrcp.pop %v2064
    %v2217 = vrcp.pop %v2067
    %v2218 = vrcp.pop %v2070
    %v2219 = vrcp.pop %v2073
    %v2220 = vrcp.pop %v2076
    %v2221 = vrcp.pop %v2079
    %v2222 = vrcp.pop %v2082
    %v2223 = vrcp.pop %v2085
    %v2224 = vrcp.pop %v2088
    %v2225 = vrcp.pop %v2091
    %v2226 = vrcp.pop %v2094
    %v2227 = vrcp.pop %v2097
    %v2228 = vrcp.pop %v2100
    %v2229 = vrcp.pop %v2103
    %v2230 = vrcp.pop %v2106
    %v2231 = vrcp.pop %v2109
    %v2232 = vrcp.pop %v2112
    %v2233 = vrcp.pop %v2115
    %v2234 = vrcp.pop %v2118
    %v2235 = vrcp.pop %v2121
    %v2236 = vrcp.pop %v2124
    %v2237 = vrcp.pop %v2127
    %v2238 = vrcp.pop %v2130
    %v2239 = vrcp.pop %v2133
    %v2240 = vrcp.pop %v2136
    %v2241 = vrcp.pop %v2139
    %v2242 = vrcp.pop %v2142
    %v2243 = vrcp.pop %v2145
    %v2244 = vrcp.pop %v2148
    %v2245 = vrcp.pop %v2151
    %v2246 = vrcp.pop %v2154
    %v2247 = vrcp.pop %v2157
    %v2248 = vrcp.pop %v2160
    %v2249 = vrcp.pop %v2163
    %v2250 = vrcp.pop %v2166
    %v2251 = vrcp.pop %v2169
    %v2252 = vrcp.pop %v2172
    %v2253 = vrcp.pop %v2175
    %v2254 = vrcp.pop %v2178
    %v2255 = vrcp.pop %v2181
    %v2256 = vrcp.pop %v2184
    %v2257 = vrcp.pop %v2187
    %v2258 = vrcp.pop %v2190
    %v2259 = vrcp.pop %v2193
    %v2260 = vrcp.pop %v2196
    %v2261 = vmul.f32 %v1878, %v2197
    %v2262 = vmul.f32 %v1880, %v2198
    %v2263 = vmul.f32 %v1882, %v2199
    %v2264 = vmul.f32 %v1884, %v2200
    %v2265 = vmul.f32 %v1886, %v2201
    %v2266 = vmul.f32 %v1888, %v2202
    %v2267 = vmul.f32 %v1890, %v2203
    %v2268 = vmul.f32 %v1892, %v2204
    %v2269 = vmul.f32 %v1894, %v2205
    %v2270 = vmul.f32 %v1896, %v2206
    %v2271 = vmul.f32 %v1898, %v2207
    %v2272 = vmul.f32 %v1900, %v2208
    %v2273 = vmul.f32 %v1902, %v2209
    %v2274 = vmul.f32 %v1904, %v2210
    %v2275 = vmul.f32 %v1906, %v2211
    %v2276 = vmul.f32 %v1908, %v2212
    %v2277 = vmul.f32 %v1910, %v2213
    %v2278 = vmul.f32 %v1912, %v2214
    %v2279 = vmul.f32 %v1914, %v2215
    %v2280 = vmul.f32 %v1916, %v2216
    %v2281 = vmul.f32 %v1918, %v2217
    %v2282 = vmul.f32 %v1920, %v2218
    %v2283 = vmul.f32 %v1922, %v2219
    %v2284 = vmul.f32 %v1924, %v2220
    %v2285 = vmul.f32 %v1926, %v2221
    %v2286 = vmul.f32 %v1928, %v2222
    %v2287 = vmul.f32 %v1930, %v2223
    %v2288 = vmul.f32 %v1932, %v2224
    %v2289 = vmul.f32 %v1934, %v2225
    %v2290 = vmul.f32 %v1936, %v2226
    %v2291 = vmul.f32 %v1938, %v2227
    %v2292 = vmul.f32 %v1940, %v2228
    %v2293 = vmul.f32 %v1942, %v2229
    %v2294 = vmul.f32 %v1944, %v2230
    %v2295 = vmul.f32 %v1946, %v2231
    %v2296 = vmul.f32 %v1948, %v2232
    %v2297 = vmul.f32 %v1950, %v2233
    %v2298 = vmul.f32 %v1952, %v2234
    %v2299 = vmul.f32 %v1954, %v2235
    %v2300 = vmul.f32 %v1956, %v2236
    %v2301 = vmul.f32 %v1958, %v2237
    %v2302 = vmul.f32 %v1960, %v2238
    %v2303 = vmul.f32 %v1962, %v2239
    %v2304 = vmul.f32 %v1964, %v2240
    %v2305 = vmul.f32 %v1966, %v2241
    %v2306 = vmul.f32 %v1968, %v2242
    %v2307 = vmul.f32 %v1970, %v2243
    %v2308 = vmul.f32 %v1972, %v2244
    %v2309 = vmul.f32 %v1974, %v2245
    %v2310 = vmul.f32 %v1976, %v2246
    %v2311 = vmul.f32 %v1978, %v2247
    %v2312 = vmul.f32 %v1980, %v2248
    %v2313 = vmul.f32 %v1982, %v2249
    %v2314 = vmul.f32 %v1984, %v2250
    %v2315 = vmul.f32 %v1986, %v2251
    %v2316 = vmul.f32 %v1988, %v2252
    %v2317 = vmul.f32 %v1990, %v2253
    %v2318 = vmul.f32 %v1992, %v2254
    %v2319 = vmul.f32 %v1994, %v2255
    %v2320 = vmul.f32 %v1996, %v2256
    %v2321 = vmul.f32 %v1998, %v2257
    %v2322 = vmul.f32 %v2000, %v2258
    %v2323 = vmul.f32 %v2002, %v2259
    %v2324 = vmul.f32 %v2004, %v2260
    %v2325 = vpack.c.bf16 %v2262, %v2261
    %v2326 = vpack.c.bf16 %v2264, %v2263
    %v2327 = vpack.c.bf16 %v2266, %v2265
    %v2328 = vpack.c.bf16 %v2268, %v2267
    %v2329 = vpack.c.bf16 %v2270, %v2269
    %v2330 = vpack.c.bf16 %v2272, %v2271
    %v2331 = vpack.c.bf16 %v2274, %v2273
    %v2332 = vpack.c.bf16 %v2276, %v2275
    %v2333 = vpack.c.bf16 %v2278, %v2277
    %v2334 = vpack.c.bf16 %v2280, %v2279
    %v2335 = vpack.c.bf16 %v2282, %v2281
    %v2336 = vpack.c.bf16 %v2284, %v2283
    %v2337 = vpack.c.bf16 %v2286, %v2285
    %v2338 = vpack.c.bf16 %v2288, %v2287
    %v2339 = vpack.c.bf16 %v2290, %v2289
    %v2340 = vpack.c.bf16 %v2292, %v2291
    %v2341 = vpack.c.bf16 %v2294, %v2293
    %v2342 = vpack.c.bf16 %v2296, %v2295
    %v2343 = vpack.c.bf16 %v2298, %v2297
    %v2344 = vpack.c.bf16 %v2300, %v2299
    %v2345 = vpack.c.bf16 %v2302, %v2301
    %v2346 = vpack.c.bf16 %v2304, %v2303
    %v2347 = vpack.c.bf16 %v2306, %v2305
    %v2348 = vpack.c.bf16 %v2308, %v2307
    %v2349 = vpack.c.bf16 %v2310, %v2309
    %v2350 = vpack.c.bf16 %v2312, %v2311
    %v2351 = vpack.c.bf16 %v2314, %v2313
    %v2352 = vpack.c.bf16 %v2316, %v2315
    %v2353 = vpack.c.bf16 %v2318, %v2317
    %v2354 = vpack.c.bf16 %v2320, %v2319
    %v2355 = vpack.c.bf16 %v2322, %v2321
    %v2356 = vpack.c.bf16 %v2324, %v2323
    %v2358 = vsel %vm1620, %v2325, 0
    %v2361 = vsel %vm1620, %v2326, 0
    %v2364 = vsel %vm1620, %v2327, 0
    %v2367 = vsel %vm1620, %v2328, 0
    %2369 = vmatprep.subr.bf16.mxu0 0
    %2370 = vmatpush1.bf16.msra.mxu0 %v613
    %2371 = vmatprep.subr.bf16.mxu0 0
    %2372 = vmatpush1.bf16.msra.mxu0 %v616
    %2373 = vmatprep.subr.bf16.mxu0 0
    %2374 = vmatpush1.bf16.msra.mxu0 %v619
    %2375 = vmatprep.subr.bf16.mxu0 0
    %2376 = vmatpush1.bf16.msra.mxu0 %v622
    %2377 = vmatprep.subr.bf16.mxu0 0
    %2378 = vmatpush1.bf16.msra.mxu0 0
    %2379 = vmatprep.subr.bf16.mxu0 0
    %2380 = vmatpush1.bf16.msra.mxu0 0
    %2381 = vmatprep.subr.bf16.mxu0 0
    %2382 = vmatpush1.bf16.msra.mxu0 0
    %2383 = vmatprep.subr.bf16.mxu0 0
    %2384 = vmatpush1.bf16.msra.mxu0 0
    %2385 = vmatprep.subr.bf16.mxu0 0
    %2386 = vmatpush1.bf16.msra.mxu0 0
    %2387 = vmatprep.subr.bf16.mxu0 0
    %2388 = vmatpush1.bf16.msra.mxu0 0
    %2389 = vmatprep.subr.bf16.mxu0 0
    %2390 = vmatpush1.bf16.msra.mxu0 0
    %2391 = vmatprep.subr.bf16.mxu0 0
    %2392 = vmatpush1.bf16.msra.mxu0 0
    %2393 = vmatprep.subr.bf16.mxu0 0
    %2394 = vmatpush1.bf16.msra.mxu0 0
    %2395 = vmatprep.subr.bf16.mxu0 0
    %2396 = vmatpush1.bf16.msra.mxu0 0
    %2397 = vmatprep.subr.bf16.mxu0 0
    %2398 = vmatpush1.bf16.msra.mxu0 0
    %2399 = vmatprep.subr.bf16.mxu0 0
    %2400 = vmatpush1.bf16.msra.mxu0 0
    %2401 = vmatprep.mubr.bf16.mxu0 0
    %2402 = vmatmul.mubr.bf16.gmra.mrb[0].mxu0 %v2358
    %v2403 = vpop.f32.mrb[0].mxu0
    %v2404 = vadd.f32 0.0, %v2403
    %v2405 = vpop.f32.mrb[0].mxu0
    %v2406 = vpop.f32.mrb[0].mxu0
    %v2407 = vadd.f32 0.0, %v2406
    %v2408 = vpop.f32.mrb[0].mxu0
    %2409 = vmatprep.mubr.bf16.mxu0 0
    %2410 = vmatmul.mubr.bf16.gmra.mrb[0].mxu0 %v2361
    %v2411 = vpop.f32.mrb[0].mxu0
    %v2412 = vadd.f32 0.0, %v2411
    %v2413 = vpop.f32.mrb[0].mxu0
    %v2414 = vpop.f32.mrb[0].mxu0
    %v2415 = vadd.f32 0.0, %v2414
    %v2416 = vpop.f32.mrb[0].mxu0
    %2417 = vmatprep.mubr.bf16.mxu0 0
    %2418 = vmatmul.mubr.bf16.gmra.mrb[0].mxu0 %v2364
    %v2419 = vpop.f32.mrb[0].mxu0
    %v2420 = vadd.f32 0.0, %v2419
    %v2421 = vpop.f32.mrb[0].mxu0
    %v2422 = vpop.f32.mrb[0].mxu0
    %v2423 = vadd.f32 0.0, %v2422
    %v2424 = vpop.f32.mrb[0].mxu0
    %2425 = vmatprep.mubr.bf16.mxu0 0
    %2426 = vmatmul.mubr.bf16.gmra.mrb[0].mxu0 %v2367
    %v2427 = vpop.f32.mrb[0].mxu0
    %v2428 = vadd.f32 0.0, %v2427
    %v2429 = vpop.f32.mrb[0].mxu0
    %v2430 = vpop.f32.mrb[0].mxu0
    %v2431 = vadd.f32 0.0, %v2430
    %v2432 = vpop.f32.mrb[0].mxu0
    %2433 = vdwg.mxu0
    %v2435 = vsel %vm1620, %v2329, 0
    %v2438 = vsel %vm1620, %v2330, 0
    %v2441 = vsel %vm1620, %v2331, 0
    %v2444 = vsel %vm1620, %v2332, 0
    %2446 = vmatprep.subr.bf16.mxu0 0
    %2447 = vmatpush1.bf16.msra.mxu0 %v625
    %2448 = vmatprep.subr.bf16.mxu0 0
    %2449 = vmatpush1.bf16.msra.mxu0 %v628
    %2450 = vmatprep.subr.bf16.mxu0 0
    %2451 = vmatpush1.bf16.msra.mxu0 %v631
    %2452 = vmatprep.subr.bf16.mxu0 0
    %2453 = vmatpush1.bf16.msra.mxu0 %v634
    %2454 = vmatprep.subr.bf16.mxu0 0
    %2455 = vmatpush1.bf16.msra.mxu0 0
    %2456 = vmatprep.subr.bf16.mxu0 0
    %2457 = vmatpush1.bf16.msra.mxu0 0
    %2458 = vmatprep.subr.bf16.mxu0 0
    %2459 = vmatpush1.bf16.msra.mxu0 0
    %2460 = vmatprep.subr.bf16.mxu0 0
    %2461 = vmatpush1.bf16.msra.mxu0 0
    %2462 = vmatprep.subr.bf16.mxu0 0
    %2463 = vmatpush1.bf16.msra.mxu0 0
    %2464 = vmatprep.subr.bf16.mxu0 0
    %2465 = vmatpush1.bf16.msra.mxu0 0
    %2466 = vmatprep.subr.bf16.mxu0 0
    %2467 = vmatpush1.bf16.msra.mxu0 0
    %2468 = vmatprep.subr.bf16.mxu0 0
    %2469 = vmatpush1.bf16.msra.mxu0 0
    %2470 = vmatprep.subr.bf16.mxu0 0
    %2471 = vmatpush1.bf16.msra.mxu0 0
    %2472 = vmatprep.subr.bf16.mxu0 0
    %2473 = vmatpush1.bf16.msra.mxu0 0
    %2474 = vmatprep.subr.bf16.mxu0 0
    %2475 = vmatpush1.bf16.msra.mxu0 0
    %2476 = vmatprep.subr.bf16.mxu0 0
    %2477 = vmatpush1.bf16.msra.mxu0 0
    %2478 = vmatprep.mubr.bf16.mxu0 0
    %2479 = vmatmul.mubr.bf16.gmra.mrb[0].mxu0 %v2435
    %v2480 = vpop.f32.mrb[0].mxu0
    %v2481 = vadd.f32 0.0, %v2480
    %v2482 = vpop.f32.mrb[0].mxu0
    %v2483 = vpop.f32.mrb[0].mxu0
    %v2484 = vadd.f32 0.0, %v2483
    %v2485 = vpop.f32.mrb[0].mxu0
    %2486 = vmatprep.mubr.bf16.mxu0 0
    %2487 = vmatmul.mubr.bf16.gmra.mrb[0].mxu0 %v2438
    %v2488 = vpop.f32.mrb[0].mxu0
    %v2489 = vadd.f32 0.0, %v2488
    %v2490 = vpop.f32.mrb[0].mxu0
    %v2491 = vpop.f32.mrb[0].mxu0
    %v2492 = vadd.f32 0.0, %v2491
    %v2493 = vpop.f32.mrb[0].mxu0
    %2494 = vmatprep.mubr.bf16.mxu0 0
    %2495 = vmatmul.mubr.bf16.gmra.mrb[0].mxu0 %v2441
    %v2496 = vpop.f32.mrb[0].mxu0
    %v2497 = vadd.f32 0.0, %v2496
    %v2498 = vpop.f32.mrb[0].mxu0
    %v2499 = vpop.f32.mrb[0].mxu0
    %v2500 = vadd.f32 0.0, %v2499
    %v2501 = vpop.f32.mrb[0].mxu0
    %2502 = vmatprep.mubr.bf16.mxu0 0
    %2503 = vmatmul.mubr.bf16.gmra.mrb[0].mxu0 %v2444
    %v2504 = vpop.f32.mrb[0].mxu0
    %v2505 = vadd.f32 0.0, %v2504
    %v2506 = vpop.f32.mrb[0].mxu0
    %v2507 = vpop.f32.mrb[0].mxu0
    %v2508 = vadd.f32 0.0, %v2507
    %v2509 = vpop.f32.mrb[0].mxu0
    %2510 = vdwg.mxu0
    %v2512 = vsel %vm1620, %v2333, 0
    %v2515 = vsel %vm1620, %v2334, 0
    %v2518 = vsel %vm1620, %v2335, 0
    %v2521 = vsel %vm1620, %v2336, 0
    %2523 = vmatprep.subr.bf16.mxu0 0
    %2524 = vmatpush1.bf16.msra.mxu0 %v756
    %2525 = vmatprep.subr.bf16.mxu0 0
    %2526 = vmatpush1.bf16.msra.mxu0 %v758
    %2527 = vmatprep.subr.bf16.mxu0 0
    %2528 = vmatpush1.bf16.msra.mxu0 %v760
    %2529 = vmatprep.subr.bf16.mxu0 0
    %2530 = vmatpush1.bf16.msra.mxu0 %v762
    %2531 = vmatprep.subr.bf16.mxu0 0
    %2532 = vmatpush1.bf16.msra.mxu0 0
    %2533 = vmatprep.subr.bf16.mxu0 0
    %2534 = vmatpush1.bf16.msra.mxu0 0
    %2535 = vmatprep.subr.bf16.mxu0 0
    %2536 = vmatpush1.bf16.msra.mxu0 0
    %2537 = vmatprep.subr.bf16.mxu0 0
    %2538 = vmatpush1.bf16.msra.mxu0 0
    %2539 = vmatprep.subr.bf16.mxu0 0
    %2540 = vmatpush1.bf16.msra.mxu0 0
    %2541 = vmatprep.subr.bf16.mxu0 0
    %2542 = vmatpush1.bf16.msra.mxu0 0
    %2543 = vmatprep.subr.bf16.mxu0 0
    %2544 = vmatpush1.bf16.msra.mxu0 0
    %2545 = vmatprep.subr.bf16.mxu0 0
    %2546 = vmatpush1.bf16.msra.mxu0 0
    %2547 = vmatprep.subr.bf16.mxu0 0
    %2548 = vmatpush1.bf16.msra.mxu0 0
    %2549 = vmatprep.subr.bf16.mxu0 0
    %2550 = vmatpush1.bf16.msra.mxu0 0
    %2551 = vmatprep.subr.bf16.mxu0 0
    %2552 = vmatpush1.bf16.msra.mxu0 0
    %2553 = vmatprep.subr.bf16.mxu0 0
    %2554 = vmatpush1.bf16.msra.mxu0 0
    %2555 = vmatprep.mubr.bf16.mxu0 0
    %2556 = vmatmul.mubr.bf16.gmra.mrb[0].mxu0 %v2512
    %v2557 = vpop.f32.mrb[0].mxu0
    %v2558 = vadd.f32 0.0, %v2557
    %v2559 = vpop.f32.mrb[0].mxu0
    %v2560 = vpop.f32.mrb[0].mxu0
    %v2561 = vadd.f32 0.0, %v2560
    %v2562 = vpop.f32.mrb[0].mxu0
    %2563 = vmatprep.mubr.bf16.mxu0 0
    %2564 = vmatmul.mubr.bf16.gmra.mrb[0].mxu0 %v2515
    %v2565 = vpop.f32.mrb[0].mxu0
    %v2566 = vadd.f32 0.0, %v2565
    %v2567 = vpop.f32.mrb[0].mxu0
    %v2568 = vpop.f32.mrb[0].mxu0
    %v2569 = vadd.f32 0.0, %v2568
    %v2570 = vpop.f32.mrb[0].mxu0
    %2571 = vmatprep.mubr.bf16.mxu0 0
    %2572 = vmatmul.mubr.bf16.gmra.mrb[0].mxu0 %v2518
    %v2573 = vpop.f32.mrb[0].mxu0
    %v2574 = vadd.f32 0.0, %v2573
    %v2575 = vpop.f32.mrb[0].mxu0
    %v2576 = vpop.f32.mrb[0].mxu0
    %v2577 = vadd.f32 0.0, %v2576
    %v2578 = vpop.f32.mrb[0].mxu0
    %2579 = vmatprep.mubr.bf16.mxu0 0
    %2580 = vmatmul.mubr.bf16.gmra.mrb[0].mxu0 %v2521
    %v2581 = vpop.f32.mrb[0].mxu0
    %v2582 = vadd.f32 0.0, %v2581
    %v2583 = vpop.f32.mrb[0].mxu0
    %v2584 = vpop.f32.mrb[0].mxu0
    %v2585 = vadd.f32 0.0, %v2584
    %v2586 = vpop.f32.mrb[0].mxu0
    %2587 = vdwg.mxu0
    %v2589 = vsel %vm1620, %v2337, 0
    %v2592 = vsel %vm1620, %v2338, 0
    %v2595 = vsel %vm1620, %v2339, 0
    %v2598 = vsel %vm1620, %v2340, 0
    %2600 = vmatprep.subr.bf16.mxu0 0
    %2601 = vmatpush1.bf16.msra.mxu0 %v764
    %2602 = vmatprep.subr.bf16.mxu0 0
    %2603 = vmatpush1.bf16.msra.mxu0 %v766
    %2604 = vmatprep.subr.bf16.mxu0 0
    %2605 = vmatpush1.bf16.msra.mxu0 %v768
    %2606 = vmatprep.subr.bf16.mxu0 0
    %2607 = vmatpush1.bf16.msra.mxu0 %v770
    %2608 = vmatprep.subr.bf16.mxu0 0
    %2609 = vmatpush1.bf16.msra.mxu0 0
    %2610 = vmatprep.subr.bf16.mxu0 0
    %2611 = vmatpush1.bf16.msra.mxu0 0
    %2612 = vmatprep.subr.bf16.mxu0 0
    %2613 = vmatpush1.bf16.msra.mxu0 0
    %2614 = vmatprep.subr.bf16.mxu0 0
    %2615 = vmatpush1.bf16.msra.mxu0 0
    %2616 = vmatprep.subr.bf16.mxu0 0
    %2617 = vmatpush1.bf16.msra.mxu0 0
    %2618 = vmatprep.subr.bf16.mxu0 0
    %2619 = vmatpush1.bf16.msra.mxu0 0
    %2620 = vmatprep.subr.bf16.mxu0 0
    %2621 = vmatpush1.bf16.msra.mxu0 0
    %2622 = vmatprep.subr.bf16.mxu0 0
    %2623 = vmatpush1.bf16.msra.mxu0 0
    %2624 = vmatprep.subr.bf16.mxu0 0
    %2625 = vmatpush1.bf16.msra.mxu0 0
    %2626 = vmatprep.subr.bf16.mxu0 0
    %2627 = vmatpush1.bf16.msra.mxu0 0
    %2628 = vmatprep.subr.bf16.mxu0 0
    %2629 = vmatpush1.bf16.msra.mxu0 0
    %2630 = vmatprep.subr.bf16.mxu0 0
    %2631 = vmatpush1.bf16.msra.mxu0 0
    %2632 = vmatprep.mubr.bf16.mxu0 0
    %2633 = vmatmul.mubr.bf16.gmra.mrb[0].mxu0 %v2589
    %v2634 = vpop.f32.mrb[0].mxu0
    %v2635 = vadd.f32 0.0, %v2634
    %v2636 = vpop.f32.mrb[0].mxu0
    %v2637 = vpop.f32.mrb[0].mxu0
    %v2638 = vadd.f32 0.0, %v2637
    %v2639 = vpop.f32.mrb[0].mxu0
    %2640 = vmatprep.mubr.bf16.mxu0 0
    %2641 = vmatmul.mubr.bf16.gmra.mrb[0].mxu0 %v2592
    %v2642 = vpop.f32.mrb[0].mxu0
    %v2643 = vadd.f32 0.0, %v2642
    %v2644 = vpop.f32.mrb[0].mxu0
    %v2645 = vpop.f32.mrb[0].mxu0
    %v2646 = vadd.f32 0.0, %v2645
    %v2647 = vpop.f32.mrb[0].mxu0
    %2648 = vmatprep.mubr.bf16.mxu0 0
    %2649 = vmatmul.mubr.bf16.gmra.mrb[0].mxu0 %v2595
    %v2650 = vpop.f32.mrb[0].mxu0
    %v2651 = vadd.f32 0.0, %v2650
    %v2652 = vpop.f32.mrb[0].mxu0
    %v2653 = vpop.f32.mrb[0].mxu0
    %v2654 = vadd.f32 0.0, %v2653
    %v2655 = vpop.f32.mrb[0].mxu0
    %2656 = vmatprep.mubr.bf16.mxu0 0
    %2657 = vmatmul.mubr.bf16.gmra.mrb[0].mxu0 %v2598
    %v2658 = vpop.f32.mrb[0].mxu0
    %v2659 = vadd.f32 0.0, %v2658
    %v2660 = vpop.f32.mrb[0].mxu0
    %v2661 = vpop.f32.mrb[0].mxu0
    %v2662 = vadd.f32 0.0, %v2661
    %v2663 = vpop.f32.mrb[0].mxu0
    %2664 = vdwg.mxu0
    %v2666 = vsel %vm1620, %v2341, 0
    %v2669 = vsel %vm1620, %v2342, 0
    %v2672 = vsel %vm1620, %v2343, 0
    %v2675 = vsel %vm1620, %v2344, 0
    %2677 = vmatprep.subr.bf16.mxu0 0
    %2678 = vmatpush1.bf16.msra.mxu0 %v780
    %2679 = vmatprep.subr.bf16.mxu0 0
    %2680 = vmatpush1.bf16.msra.mxu0 %v782
    %2681 = vmatprep.subr.bf16.mxu0 0
    %2682 = vmatpush1.bf16.msra.mxu0 %v784
    %2683 = vmatprep.subr.bf16.mxu0 0
    %2684 = vmatpush1.bf16.msra.mxu0 %v786
    %2685 = vmatprep.subr.bf16.mxu0 0
    %2686 = vmatpush1.bf16.msra.mxu0 0
    %2687 = vmatprep.subr.bf16.mxu0 0
    %2688 = vmatpush1.bf16.msra.mxu0 0
    %2689 = vmatprep.subr.bf16.mxu0 0
    %2690 = vmatpush1.bf16.msra.mxu0 0
    %2691 = vmatprep.subr.bf16.mxu0 0
    %2692 = vmatpush1.bf16.msra.mxu0 0
    %2693 = vmatprep.subr.bf16.mxu0 0
    %2694 = vmatpush1.bf16.msra.mxu0 0
    %2695 = vmatprep.subr.bf16.mxu0 0
    %2696 = vmatpush1.bf16.msra.mxu0 0
    %2697 = vmatprep.subr.bf16.mxu0 0
    %2698 = vmatpush1.bf16.msra.mxu0 0
    %2699 = vmatprep.subr.bf16.mxu0 0
    %2700 = vmatpush1.bf16.msra.mxu0 0
    %2701 = vmatprep.subr.bf16.mxu0 0
    %2702 = vmatpush1.bf16.msra.mxu0 0
    %2703 = vmatprep.subr.bf16.mxu0 0
    %2704 = vmatpush1.bf16.msra.mxu0 0
    %2705 = vmatprep.subr.bf16.mxu0 0
    %2706 = vmatpush1.bf16.msra.mxu0 0
    %2707 = vmatprep.subr.bf16.mxu0 0
    %2708 = vmatpush1.bf16.msra.mxu0 0
    %2709 = vmatprep.mubr.bf16.mxu0 0
    %2710 = vmatmul.mubr.bf16.gmra.mrb[0].mxu0 %v2666
    %v2711 = vpop.f32.mrb[0].mxu0
    %v2712 = vadd.f32 0.0, %v2711
    %v2713 = vpop.f32.mrb[0].mxu0
    %v2714 = vpop.f32.mrb[0].mxu0
    %v2715 = vadd.f32 0.0, %v2714
    %v2716 = vpop.f32.mrb[0].mxu0
    %2717 = vmatprep.mubr.bf16.mxu0 0
    %2718 = vmatmul.mubr.bf16.gmra.mrb[0].mxu0 %v2669
    %v2719 = vpop.f32.mrb[0].mxu0
    %v2720 = vadd.f32 0.0, %v2719
    %v2721 = vpop.f32.mrb[0].mxu0
    %v2722 = vpop.f32.mrb[0].mxu0
    %v2723 = vadd.f32 0.0, %v2722
    %v2724 = vpop.f32.mrb[0].mxu0
    %2725 = vmatprep.mubr.bf16.mxu0 0
    %2726 = vmatmul.mubr.bf16.gmra.mrb[0].mxu0 %v2672
    %v2727 = vpop.f32.mrb[0].mxu0
    %v2728 = vadd.f32 0.0, %v2727
    %v2729 = vpop.f32.mrb[0].mxu0
    %v2730 = vpop.f32.mrb[0].mxu0
    %v2731 = vadd.f32 0.0, %v2730
    %v2732 = vpop.f32.mrb[0].mxu0
    %2733 = vmatprep.mubr.bf16.mxu0 0
    %2734 = vmatmul.mubr.bf16.gmra.mrb[0].mxu0 %v2675
    %v2735 = vpop.f32.mrb[0].mxu0
    %v2736 = vadd.f32 0.0, %v2735
    %v2737 = vpop.f32.mrb[0].mxu0
    %v2738 = vpop.f32.mrb[0].mxu0
    %v2739 = vadd.f32 0.0, %v2738
    %v2740 = vpop.f32.mrb[0].mxu0
    %2741 = vdwg.mxu0
    %v2743 = vsel %vm1620, %v2345, 0
    %v2746 = vsel %vm1620, %v2346, 0
    %v2749 = vsel %vm1620, %v2347, 0
    %v2752 = vsel %vm1620, %v2348, 0
    %2754 = vmatprep.subr.bf16.mxu0 0
    %2755 = vmatpush1.bf16.msra.mxu0 %v788
    %2756 = vmatprep.subr.bf16.mxu0 0
    %2757 = vmatpush1.bf16.msra.mxu0 %v790
    %2758 = vmatprep.subr.bf16.mxu0 0
    %2759 = vmatpush1.bf16.msra.mxu0 %v792
    %2760 = vmatprep.subr.bf16.mxu0 0
    %2761 = vmatpush1.bf16.msra.mxu0 %v794
    %2762 = vmatprep.subr.bf16.mxu0 0
    %2763 = vmatpush1.bf16.msra.mxu0 0
    %2764 = vmatprep.subr.bf16.mxu0 0
    %2765 = vmatpush1.bf16.msra.mxu0 0
    %2766 = vmatprep.subr.bf16.mxu0 0
    %2767 = vmatpush1.bf16.msra.mxu0 0
    %2768 = vmatprep.subr.bf16.mxu0 0
    %2769 = vmatpush1.bf16.msra.mxu0 0
    %2770 = vmatprep.subr.bf16.mxu0 0
    %2771 = vmatpush1.bf16.msra.mxu0 0
    %2772 = vmatprep.subr.bf16.mxu0 0
    %2773 = vmatpush1.bf16.msra.mxu0 0
    %2774 = vmatprep.subr.bf16.mxu0 0
    %2775 = vmatpush1.bf16.msra.mxu0 0
    %2776 = vmatprep.subr.bf16.mxu0 0
    %2777 = vmatpush1.bf16.msra.mxu0 0
    %2778 = vmatprep.subr.bf16.mxu0 0
    %2779 = vmatpush1.bf16.msra.mxu0 0
    %2780 = vmatprep.subr.bf16.mxu0 0
    %2781 = vmatpush1.bf16.msra.mxu0 0
    %2782 = vmatprep.subr.bf16.mxu0 0
    %2783 = vmatpush1.bf16.msra.mxu0 0
    %2784 = vmatprep.subr.bf16.mxu0 0
    %2785 = vmatpush1.bf16.msra.mxu0 0
    %2786 = vmatprep.mubr.bf16.mxu0 0
    %2787 = vmatmul.mubr.bf16.gmra.mrb[0].mxu0 %v2743
    %v2788 = vpop.f32.mrb[0].mxu0
    %v2789 = vadd.f32 0.0, %v2788
    %v2790 = vpop.f32.mrb[0].mxu0
    %v2791 = vpop.f32.mrb[0].mxu0
    %v2792 = vadd.f32 0.0, %v2791
    %v2793 = vpop.f32.mrb[0].mxu0
    %2794 = vmatprep.mubr.bf16.mxu0 0
    %2795 = vmatmul.mubr.bf16.gmra.mrb[0].mxu0 %v2746
    %v2796 = vpop.f32.mrb[0].mxu0
    %v2797 = vadd.f32 0.0, %v2796
    %v2798 = vpop.f32.mrb[0].mxu0
    %v2799 = vpop.f32.mrb[0].mxu0
    %v2800 = vadd.f32 0.0, %v2799
    %v2801 = vpop.f32.mrb[0].mxu0
    %2802 = vmatprep.mubr.bf16.mxu0 0
    %2803 = vmatmul.mubr.bf16.gmra.mrb[0].mxu0 %v2749
    %v2804 = vpop.f32.mrb[0].mxu0
    %v2805 = vadd.f32 0.0, %v2804
    %v2806 = vpop.f32.mrb[0].mxu0
    %v2807 = vpop.f32.mrb[0].mxu0
    %v2808 = vadd.f32 0.0, %v2807
    %v2809 = vpop.f32.mrb[0].mxu0
    %2810 = vmatprep.mubr.bf16.mxu0 0
    %2811 = vmatmul.mubr.bf16.gmra.mrb[0].mxu0 %v2752
    %v2812 = vpop.f32.mrb[0].mxu0
    %v2813 = vadd.f32 0.0, %v2812
    %v2814 = vpop.f32.mrb[0].mxu0
    %v2815 = vpop.f32.mrb[0].mxu0
    %v2816 = vadd.f32 0.0, %v2815
    %v2817 = vpop.f32.mrb[0].mxu0
    %2818 = vdwg.mxu0
    %v2820 = vsel %vm1620, %v2349, 0
    %v2823 = vsel %vm1620, %v2350, 0
    %v2826 = vsel %vm1620, %v2351, 0
    %v2829 = vsel %vm1620, %v2352, 0
    %2831 = vmatprep.subr.bf16.mxu0 0
    %2832 = vmatpush1.bf16.msra.mxu0 %v804
    %2833 = vmatprep.subr.bf16.mxu0 0
    %2834 = vmatpush1.bf16.msra.mxu0 %v806
    %2835 = vmatprep.subr.bf16.mxu0 0
    %2836 = vmatpush1.bf16.msra.mxu0 %v808
    %2837 = vmatprep.subr.bf16.mxu0 0
    %2838 = vmatpush1.bf16.msra.mxu0 %v810
    %2839 = vmatprep.subr.bf16.mxu0 0
    %2840 = vmatpush1.bf16.msra.mxu0 0
    %2841 = vmatprep.subr.bf16.mxu0 0
    %2842 = vmatpush1.bf16.msra.mxu0 0
    %2843 = vmatprep.subr.bf16.mxu0 0
    %2844 = vmatpush1.bf16.msra.mxu0 0
    %2845 = vmatprep.subr.bf16.mxu0 0
    %2846 = vmatpush1.bf16.msra.mxu0 0
    %2847 = vmatprep.subr.bf16.mxu0 0
    %2848 = vmatpush1.bf16.msra.mxu0 0
    %2849 = vmatprep.subr.bf16.mxu0 0
    %2850 = vmatpush1.bf16.msra.mxu0 0
    %2851 = vmatprep.subr.bf16.mxu0 0
    %2852 = vmatpush1.bf16.msra.mxu0 0
    %2853 = vmatprep.subr.bf16.mxu0 0
    %2854 = vmatpush1.bf16.msra.mxu0 0
    %2855 = vmatprep.subr.bf16.mxu0 0
    %2856 = vmatpush1.bf16.msra.mxu0 0
    %2857 = vmatprep.subr.bf16.mxu0 0
    %2858 = vmatpush1.bf16.msra.mxu0 0
    %2859 = vmatprep.subr.bf16.mxu0 0
    %2860 = vmatpush1.bf16.msra.mxu0 0
    %2861 = vmatprep.subr.bf16.mxu0 0
    %2862 = vmatpush1.bf16.msra.mxu0 0
    %2863 = vmatprep.mubr.bf16.mxu0 0
    %2864 = vmatmul.mubr.bf16.gmra.mrb[0].mxu0 %v2820
    %v2865 = vpop.f32.mrb[0].mxu0
    %v2866 = vadd.f32 0.0, %v2865
    %v2867 = vpop.f32.mrb[0].mxu0
    %v2868 = vpop.f32.mrb[0].mxu0
    %v2869 = vadd.f32 0.0, %v2868
    %v2870 = vpop.f32.mrb[0].mxu0
    %2871 = vmatprep.mubr.bf16.mxu0 0
    %2872 = vmatmul.mubr.bf16.gmra.mrb[0].mxu0 %v2823
    %v2873 = vpop.f32.mrb[0].mxu0
    %v2874 = vadd.f32 0.0, %v2873
    %v2875 = vpop.f32.mrb[0].mxu0
    %v2876 = vpop.f32.mrb[0].mxu0
    %v2877 = vadd.f32 0.0, %v2876
    %v2878 = vpop.f32.mrb[0].mxu0
    %2879 = vmatprep.mubr.bf16.mxu0 0
    %2880 = vmatmul.mubr.bf16.gmra.mrb[0].mxu0 %v2826
    %v2881 = vpop.f32.mrb[0].mxu0
    %v2882 = vadd.f32 0.0, %v2881
    %v2883 = vpop.f32.mrb[0].mxu0
    %v2884 = vpop.f32.mrb[0].mxu0
    %v2885 = vadd.f32 0.0, %v2884
    %v2886 = vpop.f32.mrb[0].mxu0
    %2887 = vmatprep.mubr.bf16.mxu0 0
    %2888 = vmatmul.mubr.bf16.gmra.mrb[0].mxu0 %v2829
    %v2889 = vpop.f32.mrb[0].mxu0
    %v2890 = vadd.f32 0.0, %v2889
    %v2891 = vpop.f32.mrb[0].mxu0
    %v2892 = vpop.f32.mrb[0].mxu0
    %v2893 = vadd.f32 0.0, %v2892
    %v2894 = vpop.f32.mrb[0].mxu0
    %2895 = vdwg.mxu0
    %v2897 = vsel %vm1620, %v2353, 0
    %v2900 = vsel %vm1620, %v2354, 0
    %v2903 = vsel %vm1620, %v2355, 0
    %v2906 = vsel %vm1620, %v2356, 0
    %2908 = vmatprep.subr.bf16.mxu0 0
    %2909 = vmatpush1.bf16.msra.mxu0 %v812
    %2910 = vmatprep.subr.bf16.mxu0 0
    %2911 = vmatpush1.bf16.msra.mxu0 %v814
    %2912 = vmatprep.subr.bf16.mxu0 0
    %2913 = vmatpush1.bf16.msra.mxu0 %v816
    %2914 = vmatprep.subr.bf16.mxu0 0
    %2915 = vmatpush1.bf16.msra.mxu0 %v818
    %2916 = vmatprep.subr.bf16.mxu0 0
    %2917 = vmatpush1.bf16.msra.mxu0 0
    %2918 = vmatprep.subr.bf16.mxu0 0
    %2919 = vmatpush1.bf16.msra.mxu0 0
    %2920 = vmatprep.subr.bf16.mxu0 0
    %2921 = vmatpush1.bf16.msra.mxu0 0
    %2922 = vmatprep.subr.bf16.mxu0 0
    %2923 = vmatpush1.bf16.msra.mxu0 0
    %2924 = vmatprep.subr.bf16.mxu0 0
    %2925 = vmatpush1.bf16.msra.mxu0 0
    %2926 = vmatprep.subr.bf16.mxu0 0
    %2927 = vmatpush1.bf16.msra.mxu0 0
    %2928 = vmatprep.subr.bf16.mxu0 0
    %2929 = vmatpush1.bf16.msra.mxu0 0
    %2930 = vmatprep.subr.bf16.mxu0 0
    %2931 = vmatpush1.bf16.msra.mxu0 0
    %2932 = vmatprep.subr.bf16.mxu0 0
    %2933 = vmatpush1.bf16.msra.mxu0 0
    %2934 = vmatprep.subr.bf16.mxu0 0
    %2935 = vmatpush1.bf16.msra.mxu0 0
    %2936 = vmatprep.subr.bf16.mxu0 0
    %2937 = vmatpush1.bf16.msra.mxu0 0
    %2938 = vmatprep.subr.bf16.mxu0 0
    %2939 = vmatpush1.bf16.msra.mxu0 0
    %2940 = vmatprep.mubr.bf16.mxu0 0
    %2941 = vmatmul.mubr.bf16.gmra.mrb[0].mxu0 %v2897
    %v2942 = vpop.f32.mrb[0].mxu0
    %v2943 = vadd.f32 0.0, %v2942
    %v2944 = vpop.f32.mrb[0].mxu0
    %v2945 = vpop.f32.mrb[0].mxu0
    %v2946 = vadd.f32 0.0, %v2945
    %v2947 = vpop.f32.mrb[0].mxu0
    %2948 = vmatprep.mubr.bf16.mxu0 0
    %2949 = vmatmul.mubr.bf16.gmra.mrb[0].mxu0 %v2900
    %v2950 = vpop.f32.mrb[0].mxu0
    %v2951 = vadd.f32 0.0, %v2950
    %v2952 = vpop.f32.mrb[0].mxu0
    %v2953 = vpop.f32.mrb[0].mxu0
    %v2954 = vadd.f32 0.0, %v2953
    %v2955 = vpop.f32.mrb[0].mxu0
    %2956 = vmatprep.mubr.bf16.mxu0 0
    %2957 = vmatmul.mubr.bf16.gmra.mrb[0].mxu0 %v2903
    %v2958 = vpop.f32.mrb[0].mxu0
    %v2959 = vadd.f32 0.0, %v2958
    %v2960 = vpop.f32.mrb[0].mxu0
    %v2961 = vpop.f32.mrb[0].mxu0
    %v2962 = vadd.f32 0.0, %v2961
    %v2963 = vpop.f32.mrb[0].mxu0
    %2964 = vmatprep.mubr.bf16.mxu0 0
    %2965 = vmatmul.mubr.bf16.gmra.mrb[0].mxu0 %v2906
    %v2966 = vpop.f32.mrb[0].mxu0
    %v2967 = vadd.f32 0.0, %v2966
    %v2968 = vpop.f32.mrb[0].mxu0
    %v2969 = vpop.f32.mrb[0].mxu0
    %v2970 = vadd.f32 0.0, %v2969
    %v2971 = vpop.f32.mrb[0].mxu0
    %2972 = vdwg.mxu0
    %v2973 = vpack.c.bf16 %v2407, %v2404
    %v2974 = vpack.c.bf16 %v2415, %v2412
    %v2975 = vpack.c.bf16 %v2423, %v2420
    %v2976 = vpack.c.bf16 %v2431, %v2428
    %v2977 = vpack.c.bf16 %v2484, %v2481
    %v2978 = vpack.c.bf16 %v2492, %v2489
    %v2979 = vpack.c.bf16 %v2500, %v2497
    %v2980 = vpack.c.bf16 %v2508, %v2505
    %v2981 = vpack.c.bf16 %v2561, %v2558
    %v2982 = vpack.c.bf16 %v2569, %v2566
    %v2983 = vpack.c.bf16 %v2577, %v2574
    %v2984 = vpack.c.bf16 %v2585, %v2582
    %v2985 = vpack.c.bf16 %v2638, %v2635
    %v2986 = vpack.c.bf16 %v2646, %v2643
    %v2987 = vpack.c.bf16 %v2654, %v2651
    %v2988 = vpack.c.bf16 %v2662, %v2659
    %v2989 = vpack.c.bf16 %v2715, %v2712
    %v2990 = vpack.c.bf16 %v2723, %v2720
    %v2991 = vpack.c.bf16 %v2731, %v2728
    %v2992 = vpack.c.bf16 %v2739, %v2736
    %v2993 = vpack.c.bf16 %v2792, %v2789
    %v2994 = vpack.c.bf16 %v2800, %v2797
    %v2995 = vpack.c.bf16 %v2808, %v2805
    %v2996 = vpack.c.bf16 %v2816, %v2813
    %v2997 = vpack.c.bf16 %v2869, %v2866
    %v2998 = vpack.c.bf16 %v2877, %v2874
    %v2999 = vpack.c.bf16 %v2885, %v2882
    %v3000 = vpack.c.bf16 %v2893, %v2890
    %v3001 = vpack.c.bf16 %v2946, %v2943
    %v3002 = vpack.c.bf16 %v2954, %v2951
    %v3003 = vpack.c.bf16 %v2962, %v2959
    %v3004 = vpack.c.bf16 %v2970, %v2967
    %3013 = vrot.lane.b32.xlu0 %v2981, 32
    %v3014 = vpop.permute.xlu0 %3013
    %3015 = vrot.lane.b32.xlu0 %v2982, 32
    %v3016 = vpop.permute.xlu0 %3015
    %3017 = vrot.lane.b32.xlu0 %v2983, 32
    %v3018 = vpop.permute.xlu0 %3017
    %3019 = vrot.lane.b32.xlu0 %v2984, 32
    %v3020 = vpop.permute.xlu0 %3019
    %3021 = vrot.lane.b32.xlu0 %v2985, 32
    %v3022 = vpop.permute.xlu0 %3021
    %3023 = vrot.lane.b32.xlu0 %v2986, 32
    %v3024 = vpop.permute.xlu0 %3023
    %3025 = vrot.lane.b32.xlu0 %v2987, 32
    %v3026 = vpop.permute.xlu0 %3025
    %3027 = vrot.lane.b32.xlu0 %v2988, 32
    %v3028 = vpop.permute.xlu0 %3027
    %3037 = vrot.lane.b32.xlu0 %v2989, 64
    %v3038 = vpop.permute.xlu0 %3037
    %3039 = vrot.lane.b32.xlu0 %v2990, 64
    %v3040 = vpop.permute.xlu0 %3039
    %3041 = vrot.lane.b32.xlu0 %v2991, 64
    %v3042 = vpop.permute.xlu0 %3041
    %3043 = vrot.lane.b32.xlu0 %v2992, 64
    %v3044 = vpop.permute.xlu0 %3043
    %3045 = vrot.lane.b32.xlu0 %v2993, 64
    %v3046 = vpop.permute.xlu0 %3045
    %3047 = vrot.lane.b32.xlu0 %v2994, 64
    %v3048 = vpop.permute.xlu0 %3047
    %3049 = vrot.lane.b32.xlu0 %v2995, 64
    %v3050 = vpop.permute.xlu0 %3049
    %3051 = vrot.lane.b32.xlu0 %v2996, 64
    %v3052 = vpop.permute.xlu0 %3051
    %3061 = vrot.lane.b32.xlu0 %v2997, 96
    %v3062 = vpop.permute.xlu0 %3061
    %3063 = vrot.lane.b32.xlu0 %v2998, 96
    %v3064 = vpop.permute.xlu0 %3063
    %3065 = vrot.lane.b32.xlu0 %v2999, 96
    %v3066 = vpop.permute.xlu0 %3065
    %3067 = vrot.lane.b32.xlu0 %v3000, 96
    %v3068 = vpop.permute.xlu0 %3067
    %3069 = vrot.lane.b32.xlu0 %v3001, 96
    %v3070 = vpop.permute.xlu0 %3069
    %3071 = vrot.lane.b32.xlu0 %v3002, 96
    %v3072 = vpop.permute.xlu0 %3071
    %3073 = vrot.lane.b32.xlu0 %v3003, 96
    %v3074 = vpop.permute.xlu0 %3073
    %3075 = vrot.lane.b32.xlu0 %v3004, 96
    %v3076 = vpop.permute.xlu0 %3075
    %v3079 = vsel %vm827, %v2973, %v3014
    %v3082 = vsel %vm827, %v2974, %v3016
    %v3085 = vsel %vm827, %v2975, %v3018
    %v3088 = vsel %vm827, %v2976, %v3020
    %v3091 = vsel %vm827, %v2977, %v3022
    %v3094 = vsel %vm827, %v2978, %v3024
    %v3097 = vsel %vm827, %v2979, %v3026
    %v3100 = vsel %vm827, %v2980, %v3028
    %v3102 = vsel %vm1620, %v3079, %v3038
    %v3104 = vsel %vm1620, %v3082, %v3040
    %v3106 = vsel %vm1620, %v3085, %v3042
    %v3108 = vsel %vm1620, %v3088, %v3044
    %v3110 = vsel %vm1620, %v3091, %v3046
    %v3112 = vsel %vm1620, %v3094, %v3048
    %v3114 = vsel %vm1620, %v3097, %v3050
    %v3116 = vsel %vm1620, %v3100, %v3052
    %vm3117 = vcmask 785408
    %v3119 = vsel %vm3117, %v3102, %v3062
    %v3122 = vsel %vm3117, %v3104, %v3064
    %v3125 = vsel %vm3117, %v3106, %v3066
    %v3128 = vsel %vm3117, %v3108, %v3068
    %v3131 = vsel %vm3117, %v3110, %v3070
    %v3134 = vsel %vm3117, %v3112, %v3072
    %v3137 = vsel %vm3117, %v3114, %v3074
    %v3140 = vsel %vm3117, %v3116, %v3076
    %v3142 = vld [vmem:[%s2] sm:$0xf]
    %v3143 = vld [vmem:[%s2 + $0x4] sm:$0xf]
    %v3144 = vld [vmem:[%s2 + $0x8] sm:$0xf]
    %v3145 = vld [vmem:[%s2 + $0xc] sm:$0xf]
    %v3146 = vld [vmem:[%s2 + $0x10] sm:$0xf]
    %v3147 = vld [vmem:[%s2 + $0x14] sm:$0xf]
    %v3148 = vld [vmem:[%s2 + $0x18] sm:$0xf]
    %v3149 = vld [vmem:[%s2 + $0x1c] sm:$0xf]
    %v3150 = vld [vmem:[%s2 + $0x20] sm:$0xf]
    %v3151 = vld [vmem:[%s2 + $0x24] sm:$0xf]
    %v3152 = vld [vmem:[%s2 + $0x28] sm:$0xf]
    %v3153 = vld [vmem:[%s2 + $0x2c] sm:$0xf]
    %v3154 = vld [vmem:[%s2 + $0x30] sm:$0xf]
    %v3155 = vld [vmem:[%s2 + $0x34] sm:$0xf]
    %v3156 = vld [vmem:[%s2 + $0x38] sm:$0xf]
    %v3157 = vld [vmem:[%s2 + $0x3c] sm:$0xf]
    %v3158 = vld [vmem:[#allocation2] sm:$0x1]
    %v3160 = vlaneseq
    %v3161 = vshrl.u32 %v3160, 7
    %v3162 = vsub.s32 0, %v3161
    %v3163 = vrot.slane %v3158, %v3162
    %v3181 = vunpack.c.l.b16 %v3142
    %v3182 = vunpack.c.l.b16 %v3143
    %v3183 = vunpack.c.l.b16 %v3144
    %v3184 = vunpack.c.l.b16 %v3145
    %v3185 = vunpack.c.l.b16 %v3146
    %v3186 = vunpack.c.l.b16 %v3147
    %v3187 = vunpack.c.l.b16 %v3148
    %v3188 = vunpack.c.l.b16 %v3149
    %v3189 = vunpack.c.l.b16 %v3150
    %v3190 = vunpack.c.l.b16 %v3151
    %v3191 = vunpack.c.l.b16 %v3152
    %v3192 = vunpack.c.l.b16 %v3153
    %v3193 = vunpack.c.l.b16 %v3154
    %v3194 = vunpack.c.l.b16 %v3155
    %v3195 = vunpack.c.l.b16 %v3156
    %v3196 = vunpack.c.l.b16 %v3157
    %v3197 = vpack.c.b16 %v3182, %v3181
    %v3198 = vpack.c.b16 %v3184, %v3183
    %v3199 = vpack.c.b16 %v3186, %v3185
    %v3200 = vpack.c.b16 %v3188, %v3187
    %v3201 = vpack.c.b16 %v3190, %v3189
    %v3202 = vpack.c.b16 %v3192, %v3191
    %v3203 = vpack.c.b16 %v3194, %v3193
    %v3204 = vpack.c.b16 %v3196, %v3195
    %3213 = vmatprep.subr.bf16.mxu0 0
    %3214 = vmatpush1.bf16.msra.mxu0 %v3197
    %3215 = vmatprep.subr.bf16.mxu0 0
    %3216 = vmatpush1.bf16.msra.mxu0 %v3198
    %3217 = vmatprep.subr.bf16.mxu0 0
    %3218 = vmatpush1.bf16.msra.mxu0 %v3199
    %3219 = vmatprep.subr.bf16.mxu0 0
    %3220 = vmatpush1.bf16.msra.mxu0 %v3200
    %3221 = vmatprep.subr.bf16.mxu0 0
    %3222 = vmatpush1.bf16.msra.mxu0 %v3201
    %3223 = vmatprep.subr.bf16.mxu0 0
    %3224 = vmatpush1.bf16.msra.mxu0 %v3202
    %3225 = vmatprep.subr.bf16.mxu0 0
    %3226 = vmatpush1.bf16.msra.mxu0 %v3203
    %3227 = vmatprep.subr.bf16.mxu0 0
    %3228 = vmatpush1.bf16.msra.mxu0 %v3204
    %3229 = vmatprep.subr.bf16.mxu0 0
    %3230 = vmatpush1.bf16.msra.mxu0 0
    %3231 = vmatprep.subr.bf16.mxu0 0
    %3232 = vmatpush1.bf16.msra.mxu0 0
    %3233 = vmatprep.subr.bf16.mxu0 0
    %3234 = vmatpush1.bf16.msra.mxu0 0
    %3235 = vmatprep.subr.bf16.mxu0 0
    %3236 = vmatpush1.bf16.msra.mxu0 0
    %3237 = vmatprep.subr.bf16.mxu0 0
    %3238 = vmatpush1.bf16.msra.mxu0 0
    %3239 = vmatprep.subr.bf16.mxu0 0
    %3240 = vmatpush1.bf16.msra.mxu0 0
    %3241 = vmatprep.subr.bf16.mxu0 0
    %3242 = vmatpush1.bf16.msra.mxu0 0
    %3243 = vmatprep.subr.bf16.mxu0 0
    %3244 = vmatpush1.bf16.msra.mxu0 0
    %3245 = vmatprep.mubr.bf16.mxu0 0
    %3246 = vmatmul.mubr.bf16.gmra.mrb[0].mxu0 %v3119
    %v3247 = vpop.f32.mrb[0].mxu0
    %v3248 = vadd.f32 %v3163, %v3247
    %v3249 = vpop.f32.mrb[0].mxu0
    %v3250 = vpop.f32.mrb[0].mxu0
    %v3251 = vadd.f32 %v3163, %v3250
    %v3252 = vpop.f32.mrb[0].mxu0
    %3253 = vmatprep.mubr.bf16.mxu0 0
    %3254 = vmatmul.mubr.bf16.gmra.mrb[0].mxu0 %v3122
    %v3255 = vpop.f32.mrb[0].mxu0
    %v3256 = vadd.f32 %v3163, %v3255
    %v3257 = vpop.f32.mrb[0].mxu0
    %v3258 = vpop.f32.mrb[0].mxu0
    %v3259 = vadd.f32 %v3163, %v3258
    %v3260 = vpop.f32.mrb[0].mxu0
    %3261 = vmatprep.mubr.bf16.mxu0 0
    %3262 = vmatmul.mubr.bf16.gmra.mrb[0].mxu0 %v3125
    %v3263 = vpop.f32.mrb[0].mxu0
    %v3264 = vadd.f32 %v3163, %v3263
    %v3265 = vpop.f32.mrb[0].mxu0
    %v3266 = vpop.f32.mrb[0].mxu0
    %v3267 = vadd.f32 %v3163, %v3266
    %v3268 = vpop.f32.mrb[0].mxu0
    %3269 = vmatprep.mubr.bf16.mxu0 0
    %3270 = vmatmul.mubr.bf16.gmra.mrb[0].mxu0 %v3128
    %v3271 = vpop.f32.mrb[0].mxu0
    %v3272 = vadd.f32 %v3163, %v3271
    %v3273 = vpop.f32.mrb[0].mxu0
    %v3274 = vpop.f32.mrb[0].mxu0
    %v3275 = vadd.f32 %v3163, %v3274
    %v3276 = vpop.f32.mrb[0].mxu0
    %3277 = vmatprep.mubr.bf16.mxu0 0
    %3278 = vmatmul.mubr.bf16.gmra.mrb[0].mxu0 %v3131
    %v3279 = vpop.f32.mrb[0].mxu0
    %v3280 = vadd.f32 %v3163, %v3279
    %v3281 = vpop.f32.mrb[0].mxu0
    %v3282 = vpop.f32.mrb[0].mxu0
    %v3283 = vadd.f32 %v3163, %v3282
    %v3284 = vpop.f32.mrb[0].mxu0
    %3285 = vmatprep.mubr.bf16.mxu0 0
    %3286 = vmatmul.mubr.bf16.gmra.mrb[0].mxu0 %v3134
    %v3287 = vpop.f32.mrb[0].mxu0
    %v3288 = vadd.f32 %v3163, %v3287
    %v3289 = vpop.f32.mrb[0].mxu0
    %v3290 = vpop.f32.mrb[0].mxu0
    %v3291 = vadd.f32 %v3163, %v3290
    %v3292 = vpop.f32.mrb[0].mxu0
    %3293 = vmatprep.mubr.bf16.mxu0 0
    %3294 = vmatmul.mubr.bf16.gmra.mrb[0].mxu0 %v3137
    %v3295 = vpop.f32.mrb[0].mxu0
    %v3296 = vadd.f32 %v3163, %v3295
    %v3297 = vpop.f32.mrb[0].mxu0
    %v3298 = vpop.f32.mrb[0].mxu0
    %v3299 = vadd.f32 %v3163, %v3298
    %v3300 = vpop.f32.mrb[0].mxu0
    %3301 = vmatprep.mubr.bf16.mxu0 0
    %3302 = vmatmul.mubr.bf16.gmra.mrb[0].mxu0 %v3140
    %v3303 = vpop.f32.mrb[0].mxu0
    %v3304 = vadd.f32 %v3163, %v3303
    %v3305 = vpop.f32.mrb[0].mxu0
    %v3306 = vpop.f32.mrb[0].mxu0
    %v3307 = vadd.f32 %v3163, %v3306
    %v3308 = vpop.f32.mrb[0].mxu0
    %3309 = vdwg.mxu0
    %v3310 = vadd.f32 %v198, %v3248
    %v3311 = vadd.f32 %v199, %v3251
    %v3312 = vadd.f32 %v200, %v3256
    %v3313 = vadd.f32 %v201, %v3259
    %v3314 = vadd.f32 %v202, %v3264
    %v3315 = vadd.f32 %v203, %v3267
    %v3316 = vadd.f32 %v204, %v3272
    %v3317 = vadd.f32 %v205, %v3275
    %v3318 = vadd.f32 %v206, %v3280
    %v3319 = vadd.f32 %v207, %v3283
    %v3320 = vadd.f32 %v208, %v3288
    %v3321 = vadd.f32 %v209, %v3291
    %v3322 = vadd.f32 %v210, %v3296
    %v3323 = vadd.f32 %v211, %v3299
    %v3324 = vadd.f32 %v212, %v3304
    %v3325 = vadd.f32 %v213, %v3307
    %v3326 = vld [vmem:[#allocation8] sm:$0x1]
    %v3327 = vld [vmem:[#allocation10] sm:$0x1]
    %3328 = vadd.xlane.f32.xlu0 %v3310
    %v3329 = vpop.xlane.xlu0 %3328
    %3330 = vadd.xlane.f32.xlu0 %v3311
    %v3331 = vpop.xlane.xlu0 %3330
    %3332 = vadd.xlane.f32.xlu0 %v3312
    %v3333 = vpop.xlane.xlu0 %3332
    %3334 = vadd.xlane.f32.xlu0 %v3313
    %v3335 = vpop.xlane.xlu0 %3334
    %3336 = vadd.xlane.f32.xlu0 %v3314
    %v3337 = vpop.xlane.xlu0 %3336
    %3338 = vadd.xlane.f32.xlu0 %v3315
    %v3339 = vpop.xlane.xlu0 %3338
    %3340 = vadd.xlane.f32.xlu0 %v3316
    %v3341 = vpop.xlane.xlu0 %3340
    %3342 = vadd.xlane.f32.xlu0 %v3317
    %v3343 = vpop.xlane.xlu0 %3342
    %3344 = vadd.xlane.f32.xlu0 %v3318
    %v3345 = vpop.xlane.xlu0 %3344
    %3346 = vadd.xlane.f32.xlu0 %v3319
    %v3347 = vpop.xlane.xlu0 %3346
    %3348 = vadd.xlane.f32.xlu0 %v3320
    %v3349 = vpop.xlane.xlu0 %3348
    %3350 = vadd.xlane.f32.xlu0 %v3321
    %v3351 = vpop.xlane.xlu0 %3350
    %3352 = vadd.xlane.f32.xlu0 %v3322
    %v3353 = vpop.xlane.xlu0 %3352
    %3354 = vadd.xlane.f32.xlu0 %v3323
    %v3355 = vpop.xlane.xlu0 %3354
    %3356 = vadd.xlane.f32.xlu0 %v3324
    %v3357 = vpop.xlane.xlu0 %3356
    %3358 = vadd.xlane.f32.xlu0 %v3325
    %v3359 = vpop.xlane.xlu0 %3358
    %v3360 = vrcp.pop 128.0
    %v3361 = vmul.f32 %v3329, %v3360
    %v3362 = vmul.f32 %v3331, %v3360
    %v3363 = vmul.f32 %v3333, %v3360
    %v3364 = vmul.f32 %v3335, %v3360
    %v3365 = vmul.f32 %v3337, %v3360
    %v3366 = vmul.f32 %v3339, %v3360
    %v3367 = vmul.f32 %v3341, %v3360
    %v3368 = vmul.f32 %v3343, %v3360
    %v3369 = vmul.f32 %v3345, %v3360
    %v3370 = vmul.f32 %v3347, %v3360
    %v3371 = vmul.f32 %v3349, %v3360
    %v3372 = vmul.f32 %v3351, %v3360
    %v3373 = vmul.f32 %v3353, %v3360
    %v3374 = vmul.f32 %v3355, %v3360
    %v3375 = vmul.f32 %v3357, %v3360
    %v3376 = vmul.f32 %v3359, %v3360
    %v3377 = vsub.f32 %v3310, %v3361
    %v3378 = vsub.f32 %v3311, %v3362
    %v3379 = vsub.f32 %v3312, %v3363
    %v3380 = vsub.f32 %v3313, %v3364
    %v3381 = vsub.f32 %v3314, %v3365
    %v3382 = vsub.f32 %v3315, %v3366
    %v3383 = vsub.f32 %v3316, %v3367
    %v3384 = vsub.f32 %v3317, %v3368
    %v3385 = vsub.f32 %v3318, %v3369
    %v3386 = vsub.f32 %v3319, %v3370
    %v3387 = vsub.f32 %v3320, %v3371
    %v3388 = vsub.f32 %v3321, %v3372
    %v3389 = vsub.f32 %v3322, %v3373
    %v3390 = vsub.f32 %v3323, %v3374
    %v3391 = vsub.f32 %v3324, %v3375
    %v3392 = vsub.f32 %v3325, %v3376
    %v3393 = vmul.f32 %v3377, %v3377
    %v3394 = vmul.f32 %v3378, %v3378
    %v3395 = vmul.f32 %v3379, %v3379
    %v3396 = vmul.f32 %v3380, %v3380
    %v3397 = vmul.f32 %v3381, %v3381
    %v3398 = vmul.f32 %v3382, %v3382
    %v3399 = vmul.f32 %v3383, %v3383
    %v3400 = vmul.f32 %v3384, %v3384
    %v3401 = vmul.f32 %v3385, %v3385
    %v3402 = vmul.f32 %v3386, %v3386
    %v3403 = vmul.f32 %v3387, %v3387
    %v3404 = vmul.f32 %v3388, %v3388
    %v3405 = vmul.f32 %v3389, %v3389
    %v3406 = vmul.f32 %v3390, %v3390
    %v3407 = vmul.f32 %v3391, %v3391
    %v3408 = vmul.f32 %v3392, %v3392
    %3409 = vadd.xlane.f32.xlu0 %v3393
    %v3410 = vpop.xlane.xlu0 %3409
    %3411 = vadd.xlane.f32.xlu0 %v3394
    %v3412 = vpop.xlane.xlu0 %3411
    %3413 = vadd.xlane.f32.xlu0 %v3395
    %v3414 = vpop.xlane.xlu0 %3413
    %3415 = vadd.xlane.f32.xlu0 %v3396
    %v3416 = vpop.xlane.xlu0 %3415
    %3417 = vadd.xlane.f32.xlu0 %v3397
    %v3418 = vpop.xlane.xlu0 %3417
    %3419 = vadd.xlane.f32.xlu0 %v3398
    %v3420 = vpop.xlane.xlu0 %3419
    %3421 = vadd.xlane.f32.xlu0 %v3399
    %v3422 = vpop.xlane.xlu0 %3421
    %3423 = vadd.xlane.f32.xlu0 %v3400
    %v3424 = vpop.xlane.xlu0 %3423
    %3425 = vadd.xlane.f32.xlu0 %v3401
    %v3426 = vpop.xlane.xlu0 %3425
    %3427 = vadd.xlane.f32.xlu0 %v3402
    %v3428 = vpop.xlane.xlu0 %3427
    %3429 = vadd.xlane.f32.xlu0 %v3403
    %v3430 = vpop.xlane.xlu0 %3429
    %3431 = vadd.xlane.f32.xlu0 %v3404
    %v3432 = vpop.xlane.xlu0 %3431
    %3433 = vadd.xlane.f32.xlu0 %v3405
    %v3434 = vpop.xlane.xlu0 %3433
    %3435 = vadd.xlane.f32.xlu0 %v3406
    %v3436 = vpop.xlane.xlu0 %3435
    %3437 = vadd.xlane.f32.xlu0 %v3407
    %v3438 = vpop.xlane.xlu0 %3437
    %3439 = vadd.xlane.f32.xlu0 %v3408
    %v3440 = vpop.xlane.xlu0 %3439
    %v3441 = vmul.f32 %v3410, %v3360
    %v3442 = vmul.f32 %v3412, %v3360
    %v3443 = vmul.f32 %v3414, %v3360
    %v3444 = vmul.f32 %v3416, %v3360
    %v3445 = vmul.f32 %v3418, %v3360
    %v3446 = vmul.f32 %v3420, %v3360
    %v3447 = vmul.f32 %v3422, %v3360
    %v3448 = vmul.f32 %v3424, %v3360
    %v3449 = vmul.f32 %v3426, %v3360
    %v3450 = vmul.f32 %v3428, %v3360
    %v3451 = vmul.f32 %v3430, %v3360
    %v3452 = vmul.f32 %v3432, %v3360
    %v3453 = vmul.f32 %v3434, %v3360
    %v3454 = vmul.f32 %v3436, %v3360
    %v3455 = vmul.f32 %v3438, %v3360
    %v3456 = vmul.f32 %v3440, %v3360
    %v3457 = vadd.f32 %v3441, 1e-05
    %v3458 = vadd.f32 %v3442, 1e-05
    %v3459 = vadd.f32 %v3443, 1e-05
    %v3460 = vadd.f32 %v3444, 1e-05
    %v3461 = vadd.f32 %v3445, 1e-05
    %v3462 = vadd.f32 %v3446, 1e-05
    %v3463 = vadd.f32 %v3447, 1e-05
    %v3464 = vadd.f32 %v3448, 1e-05
    %v3465 = vadd.f32 %v3449, 1e-05
    %v3466 = vadd.f32 %v3450, 1e-05
    %v3467 = vadd.f32 %v3451, 1e-05
    %v3468 = vadd.f32 %v3452, 1e-05
    %v3469 = vadd.f32 %v3453, 1e-05
    %v3470 = vadd.f32 %v3454, 1e-05
    %v3471 = vadd.f32 %v3455, 1e-05
    %v3472 = vadd.f32 %v3456, 1e-05
    %v3473 = vrsqrt.pop %v3457
    %v3474 = vrsqrt.pop %v3458
    %v3475 = vrsqrt.pop %v3459
    %v3476 = vrsqrt.pop %v3460
    %v3477 = vrsqrt.pop %v3461
    %v3478 = vrsqrt.pop %v3462
    %v3479 = vrsqrt.pop %v3463
    %v3480 = vrsqrt.pop %v3464
    %v3481 = vrsqrt.pop %v3465
    %v3482 = vrsqrt.pop %v3466
    %v3483 = vrsqrt.pop %v3467
    %v3484 = vrsqrt.pop %v3468
    %v3485 = vrsqrt.pop %v3469
    %v3486 = vrsqrt.pop %v3470
    %v3487 = vrsqrt.pop %v3471
    %v3488 = vrsqrt.pop %v3472
    %v3489 = vmul.f32 %v3377, %v3473
    %v3490 = vmul.f32 %v3378, %v3474
    %v3491 = vmul.f32 %v3379, %v3475
    %v3492 = vmul.f32 %v3380, %v3476
    %v3493 = vmul.f32 %v3381, %v3477
    %v3494 = vmul.f32 %v3382, %v3478
    %v3495 = vmul.f32 %v3383, %v3479
    %v3496 = vmul.f32 %v3384, %v3480
    %v3497 = vmul.f32 %v3385, %v3481
    %v3498 = vmul.f32 %v3386, %v3482
    %v3499 = vmul.f32 %v3387, %v3483
    %v3500 = vmul.f32 %v3388, %v3484
    %v3501 = vmul.f32 %v3389, %v3485
    %v3502 = vmul.f32 %v3390, %v3486
    %v3503 = vmul.f32 %v3391, %v3487
    %v3504 = vmul.f32 %v3392, %v3488
    %v3506 = vlaneseq
    %v3507 = vshrl.u32 %v3506, 7
    %v3508 = vsub.s32 0, %v3507
    %v3509 = vrot.slane %v3326, %v3508
    %v3511 = vmul.f32 %v3489, %v3509
    %v3512 = vmul.f32 %v3490, %v3509
    %v3513 = vmul.f32 %v3491, %v3509
    %v3514 = vmul.f32 %v3492, %v3509
    %v3515 = vmul.f32 %v3493, %v3509
    %v3516 = vmul.f32 %v3494, %v3509
    %v3517 = vmul.f32 %v3495, %v3509
    %v3518 = vmul.f32 %v3496, %v3509
    %v3519 = vmul.f32 %v3497, %v3509
    %v3520 = vmul.f32 %v3498, %v3509
    %v3521 = vmul.f32 %v3499, %v3509
    %v3522 = vmul.f32 %v3500, %v3509
    %v3523 = vmul.f32 %v3501, %v3509
    %v3524 = vmul.f32 %v3502, %v3509
    %v3525 = vmul.f32 %v3503, %v3509
    %v3526 = vmul.f32 %v3504, %v3509
    %v3528 = vlaneseq
    %v3529 = vshrl.u32 %v3528, 7
    %v3530 = vsub.s32 0, %v3529
    %v3531 = vrot.slane %v3327, %v3530
    %v3533 = vadd.f32 %v3511, %v3531
    %v3534 = vadd.f32 %v3512, %v3531
    %v3535 = vadd.f32 %v3513, %v3531
    %v3536 = vadd.f32 %v3514, %v3531
    %v3537 = vadd.f32 %v3515, %v3531
    %v3538 = vadd.f32 %v3516, %v3531
    %v3539 = vadd.f32 %v3517, %v3531
    %v3540 = vadd.f32 %v3518, %v3531
    %v3541 = vadd.f32 %v3519, %v3531
    %v3542 = vadd.f32 %v3520, %v3531
    %v3543 = vadd.f32 %v3521, %v3531
    %v3544 = vadd.f32 %v3522, %v3531
    %v3545 = vadd.f32 %v3523, %v3531
    %v3546 = vadd.f32 %v3524, %v3531
    %v3547 = vadd.f32 %v3525, %v3531
    %v3548 = vadd.f32 %v3526, %v3531
    %v3549 = vpack.c.bf16 %v3534, %v3533
    %v3550 = vpack.c.bf16 %v3536, %v3535
    %v3551 = vpack.c.bf16 %v3538, %v3537
    %v3552 = vpack.c.bf16 %v3540, %v3539
    %v3553 = vpack.c.bf16 %v3542, %v3541
    %v3554 = vpack.c.bf16 %v3544, %v3543
    %v3555 = vpack.c.bf16 %v3546, %v3545
    %v3556 = vpack.c.bf16 %v3548, %v3547
    %v3557 = vld [vmem:[%s4] sm:$0xff]
    %v3558 = vld [vmem:[%s4 + $0x8] sm:$0xff]
    %v3559 = vld [vmem:[%s4 + $0x10] sm:$0xff]
    %v3560 = vld [vmem:[%s4 + $0x18] sm:$0xff]
    %v3561 = vld [vmem:[%s4 + $0x20] sm:$0xff]
    %v3562 = vld [vmem:[%s4 + $0x28] sm:$0xff]
    %v3563 = vld [vmem:[%s4 + $0x30] sm:$0xff]
    %v3564 = vld [vmem:[%s4 + $0x38] sm:$0xff]
    %v3565 = vld [vmem:[%s4 + $0x40] sm:$0xff]
    %v3566 = vld [vmem:[%s4 + $0x48] sm:$0xff]
    %v3567 = vld [vmem:[%s4 + $0x50] sm:$0xff]
    %v3568 = vld [vmem:[%s4 + $0x58] sm:$0xff]
    %v3569 = vld [vmem:[%s4 + $0x60] sm:$0xff]
    %v3570 = vld [vmem:[%s4 + $0x68] sm:$0xff]
    %v3571 = vld [vmem:[%s4 + $0x70] sm:$0xff]
    %v3572 = vld [vmem:[%s4 + $0x78] sm:$0xff]
    %v3573 = vld [vmem:[%s4 + $0x80] sm:$0xff]
    %v3574 = vld [vmem:[%s4 + $0x88] sm:$0xff]
    %v3575 = vld [vmem:[%s4 + $0x90] sm:$0xff]
    %v3576 = vld [vmem:[%s4 + $0x98] sm:$0xff]
    %v3577 = vld [vmem:[%s4 + $0xa0] sm:$0xff]
    %v3578 = vld [vmem:[%s4 + $0xa8] sm:$0xff]
    %v3579 = vld [vmem:[%s4 + $0xb0] sm:$0xff]
    %v3580 = vld [vmem:[%s4 + $0xb8] sm:$0xff]
    %v3581 = vld [vmem:[%s4 + $0xc0] sm:$0xff]
    %v3582 = vld [vmem:[%s4 + $0xc8] sm:$0xff]
    %v3583 = vld [vmem:[%s4 + $0xd0] sm:$0xff]
    %v3584 = vld [vmem:[%s4 + $0xd8] sm:$0xff]
    %v3585 = vld [vmem:[%s4 + $0xe0] sm:$0xff]
    %v3586 = vld [vmem:[%s4 + $0xe8] sm:$0xff]
    %v3587 = vld [vmem:[%s4 + $0xf0] sm:$0xff]
    %v3588 = vld [vmem:[%s4 + $0xf8] sm:$0xff]
    %v3589 = vld [vmem:[#allocation5] sm:$0xf]
    %v3591 = vlaneseq
    %v3592 = vshrl.u32 %v3591, 7
    %v3593 = vsub.s32 0, %v3592
    %v3594 = vrot.slane %v3589, %v3593
    %v3595 = vlaneseq
    %v3596 = vshrl.u32 %v3595, 7
    %v3597 = vsub.s32 1, %v3596
    %v3598 = vrot.slane %v3589, %v3597
    %v3599 = vlaneseq
    %v3600 = vshrl.u32 %v3599, 7
    %v3601 = vsub.s32 2, %v3600
    %v3602 = vrot.slane %v3589, %v3601
    %v3603 = vlaneseq
    %v3604 = vshrl.u32 %v3603, 7
    %v3605 = vsub.s32 3, %v3604
    %v3606 = vrot.slane %v3589, %v3605
    %v3643 = vunpack.c.l.b16 %v3557
    %v3644 = vunpack.c.h.b16 %v3557
    %v3645 = vunpack.c.l.b16 %v3558
    %v3646 = vunpack.c.h.b16 %v3558
    %v3647 = vunpack.c.l.b16 %v3559
    %v3648 = vunpack.c.h.b16 %v3559
    %v3649 = vunpack.c.l.b16 %v3560
    %v3650 = vunpack.c.h.b16 %v3560
    %v3651 = vunpack.c.l.b16 %v3561
    %v3652 = vunpack.c.h.b16 %v3561
    %v3653 = vunpack.c.l.b16 %v3562
    %v3654 = vunpack.c.h.b16 %v3562
    %v3655 = vunpack.c.l.b16 %v3563
    %v3656 = vunpack.c.h.b16 %v3563
    %v3657 = vunpack.c.l.b16 %v3564
    %v3658 = vunpack.c.h.b16 %v3564
    %v3659 = vunpack.c.l.b16 %v3565
    %v3660 = vunpack.c.h.b16 %v3565
    %v3661 = vunpack.c.l.b16 %v3566
    %v3662 = vunpack.c.h.b16 %v3566
    %v3663 = vunpack.c.l.b16 %v3567
    %v3664 = vunpack.c.h.b16 %v3567
    %v3665 = vunpack.c.l.b16 %v3568
    %v3666 = vunpack.c.h.b16 %v3568
    %v3667 = vunpack.c.l.b16 %v3569
    %v3668 = vunpack.c.h.b16 %v3569
    %v3669 = vunpack.c.l.b16 %v3570
    %v3670 = vunpack.c.h.b16 %v3570
    %v3671 = vunpack.c.l.b16 %v3571
    %v3672 = vunpack.c.h.b16 %v3571
    %v3673 = vunpack.c.l.b16 %v3572
    %v3674 = vunpack.c.h.b16 %v3572
    %v3675 = vunpack.c.l.b16 %v3573
    %v3676 = vunpack.c.h.b16 %v3573
    %v3677 = vunpack.c.l.b16 %v3574
    %v3678 = vunpack.c.h.b16 %v3574
    %v3679 = vunpack.c.l.b16 %v3575
    %v3680 = vunpack.c.h.b16 %v3575
    %v3681 = vunpack.c.l.b16 %v3576
    %v3682 = vunpack.c.h.b16 %v3576
    %v3683 = vunpack.c.l.b16 %v3577
    %v3684 = vunpack.c.h.b16 %v3577
    %v3685 = vunpack.c.l.b16 %v3578
    %v3686 = vunpack.c.h.b16 %v3578
    %v3687 = vunpack.c.l.b16 %v3579
    %v3688 = vunpack.c.h.b16 %v3579
    %v3689 = vunpack.c.l.b16 %v3580
    %v3690 = vunpack.c.h.b16 %v3580
    %v3691 = vunpack.c.l.b16 %v3581
    %v3692 = vunpack.c.h.b16 %v3581
    %v3693 = vunpack.c.l.b16 %v3582
    %v3694 = vunpack.c.h.b16 %v3582
    %v3695 = vunpack.c.l.b16 %v3583
    %v3696 = vunpack.c.h.b16 %v3583
    %v3697 = vunpack.c.l.b16 %v3584
    %v3698 = vunpack.c.h.b16 %v3584
    %v3699 = vunpack.c.l.b16 %v3585
    %v3700 = vunpack.c.h.b16 %v3585
    %v3701 = vunpack.c.l.b16 %v3586
    %v3702 = vunpack.c.h.b16 %v3586
    %v3703 = vunpack.c.l.b16 %v3587
    %v3704 = vunpack.c.h.b16 %v3587
    %v3705 = vunpack.c.l.b16 %v3588
    %v3706 = vunpack.c.h.b16 %v3588
    %v3707 = vpack.c.b16 %v3647, %v3643
    %v3708 = vpack.c.b16 %v3648, %v3644
    %v3709 = vpack.c.b16 %v3649, %v3645
    %v3710 = vpack.c.b16 %v3650, %v3646
    %v3711 = vpack.c.b16 %v3655, %v3651
    %v3712 = vpack.c.b16 %v3656, %v3652
    %v3713 = vpack.c.b16 %v3657, %v3653
    %v3714 = vpack.c.b16 %v3658, %v3654
    %v3715 = vpack.c.b16 %v3663, %v3659
    %v3716 = vpack.c.b16 %v3664, %v3660
    %v3717 = vpack.c.b16 %v3665, %v3661
    %v3718 = vpack.c.b16 %v3666, %v3662
    %v3719 = vpack.c.b16 %v3671, %v3667
    %v3720 = vpack.c.b16 %v3672, %v3668
    %v3721 = vpack.c.b16 %v3673, %v3669
    %v3722 = vpack.c.b16 %v3674, %v3670
    %v3723 = vpack.c.b16 %v3679, %v3675
    %v3724 = vpack.c.b16 %v3680, %v3676
    %v3725 = vpack.c.b16 %v3681, %v3677
    %v3726 = vpack.c.b16 %v3682, %v3678
    %v3727 = vpack.c.b16 %v3687, %v3683
    %v3728 = vpack.c.b16 %v3688, %v3684
    %v3729 = vpack.c.b16 %v3689, %v3685
    %v3730 = vpack.c.b16 %v3690, %v3686
    %v3731 = vpack.c.b16 %v3695, %v3691
    %v3732 = vpack.c.b16 %v3696, %v3692
    %v3733 = vpack.c.b16 %v3697, %v3693
    %v3734 = vpack.c.b16 %v3698, %v3694
    %v3735 = vpack.c.b16 %v3703, %v3699
    %v3736 = vpack.c.b16 %v3704, %v3700
    %v3737 = vpack.c.b16 %v3705, %v3701
    %v3738 = vpack.c.b16 %v3706, %v3702
    %3771 = vmatprep.subr.bf16.mxu0 %v3708
    %3772 = vmatpush1.bf16.msra.mxu0 %v3707
    %3773 = vmatprep.subr.bf16.mxu0 %v3712
    %3774 = vmatpush1.bf16.msra.mxu0 %v3711
    %3775 = vmatprep.subr.bf16.mxu0 %v3716
    %3776 = vmatpush1.bf16.msra.mxu0 %v3715
    %3777 = vmatprep.subr.bf16.mxu0 %v3720
    %3778 = vmatpush1.bf16.msra.mxu0 %v3719
    %3779 = vmatprep.subr.bf16.mxu0 %v3724
    %3780 = vmatpush1.bf16.msra.mxu0 %v3723
    %3781 = vmatprep.subr.bf16.mxu0 %v3728
    %3782 = vmatpush1.bf16.msra.mxu0 %v3727
    %3783 = vmatprep.subr.bf16.mxu0 %v3732
    %3784 = vmatpush1.bf16.msra.mxu0 %v3731
    %3785 = vmatprep.subr.bf16.mxu0 %v3736
    %3786 = vmatpush1.bf16.msra.mxu0 %v3735
    %3787 = vmatprep.subr.bf16.mxu0 0
    %3788 = vmatpush1.bf16.msra.mxu0 0
    %3789 = vmatprep.subr.bf16.mxu0 0
    %3790 = vmatpush1.bf16.msra.mxu0 0
    %3791 = vmatprep.subr.bf16.mxu0 0
    %3792 = vmatpush1.bf16.msra.mxu0 0
    %3793 = vmatprep.subr.bf16.mxu0 0
    %3794 = vmatpush1.bf16.msra.mxu0 0
    %3795 = vmatprep.subr.bf16.mxu0 0
    %3796 = vmatpush1.bf16.msra.mxu0 0
    %3797 = vmatprep.subr.bf16.mxu0 0
    %3798 = vmatpush1.bf16.msra.mxu0 0
    %3799 = vmatprep.subr.bf16.mxu0 0
    %3800 = vmatpush1.bf16.msra.mxu0 0
    %3801 = vmatprep.subr.bf16.mxu0 0
    %3802 = vmatpush1.bf16.msra.mxu0 0
    %3803 = vmatprep.mubr.bf16.mxu0 0
    %3804 = vmatmul.mubr.bf16.gmra.mrb[0].mxu0 %v3549
    %v3805 = vpop.f32.mrb[0].mxu0
    %v3806 = vadd.f32 %v3594, %v3805
    %v3807 = vpop.f32.mrb[0].mxu0
    %v3808 = vadd.f32 %v3598, %v3807
    %v3809 = vpop.f32.mrb[0].mxu0
    %v3810 = vadd.f32 %v3594, %v3809
    %v3811 = vpop.f32.mrb[0].mxu0
    %v3812 = vadd.f32 %v3598, %v3811
    %3813 = vmatprep.mubr.bf16.mxu0 0
    %3814 = vmatmul.mubr.bf16.gmra.mrb[0].mxu0 %v3550
    %v3815 = vpop.f32.mrb[0].mxu0
    %v3816 = vadd.f32 %v3594, %v3815
    %v3817 = vpop.f32.mrb[0].mxu0
    %v3818 = vadd.f32 %v3598, %v3817
    %v3819 = vpop.f32.mrb[0].mxu0
    %v3820 = vadd.f32 %v3594, %v3819
    %v3821 = vpop.f32.mrb[0].mxu0
    %v3822 = vadd.f32 %v3598, %v3821
    %3823 = vmatprep.mubr.bf16.mxu0 0
    %3824 = vmatmul.mubr.bf16.gmra.mrb[0].mxu0 %v3551
    %v3825 = vpop.f32.mrb[0].mxu0
    %v3826 = vadd.f32 %v3594, %v3825
    %v3827 = vpop.f32.mrb[0].mxu0
    %v3828 = vadd.f32 %v3598, %v3827
    %v3829 = vpop.f32.mrb[0].mxu0
    %v3830 = vadd.f32 %v3594, %v3829
    %v3831 = vpop.f32.mrb[0].mxu0
    %v3832 = vadd.f32 %v3598, %v3831
    %3833 = vmatprep.mubr.bf16.mxu0 0
    %3834 = vmatmul.mubr.bf16.gmra.mrb[0].mxu0 %v3552
    %v3835 = vpop.f32.mrb[0].mxu0
    %v3836 = vadd.f32 %v3594, %v3835
    %v3837 = vpop.f32.mrb[0].mxu0
    %v3838 = vadd.f32 %v3598, %v3837
    %v3839 = vpop.f32.mrb[0].mxu0
    %v3840 = vadd.f32 %v3594, %v3839
    %v3841 = vpop.f32.mrb[0].mxu0
    %v3842 = vadd.f32 %v3598, %v3841
    %3843 = vmatprep.mubr.bf16.mxu0 0
    %3844 = vmatmul.mubr.bf16.gmra.mrb[0].mxu0 %v3553
    %v3845 = vpop.f32.mrb[0].mxu0
    %v3846 = vadd.f32 %v3594, %v3845
    %v3847 = vpop.f32.mrb[0].mxu0
    %v3848 = vadd.f32 %v3598, %v3847
    %v3849 = vpop.f32.mrb[0].mxu0
    %v3850 = vadd.f32 %v3594, %v3849
    %v3851 = vpop.f32.mrb[0].mxu0
    %v3852 = vadd.f32 %v3598, %v3851
    %3853 = vmatprep.mubr.bf16.mxu0 0
    %3854 = vmatmul.mubr.bf16.gmra.mrb[0].mxu0 %v3554
    %v3855 = vpop.f32.mrb[0].mxu0
    %v3856 = vadd.f32 %v3594, %v3855
    %v3857 = vpop.f32.mrb[0].mxu0
    %v3858 = vadd.f32 %v3598, %v3857
    %v3859 = vpop.f32.mrb[0].mxu0
    %v3860 = vadd.f32 %v3594, %v3859
    %v3861 = vpop.f32.mrb[0].mxu0
    %v3862 = vadd.f32 %v3598, %v3861
    %3863 = vmatprep.mubr.bf16.mxu0 0
    %3864 = vmatmul.mubr.bf16.gmra.mrb[0].mxu0 %v3555
    %v3865 = vpop.f32.mrb[0].mxu0
    %v3866 = vadd.f32 %v3594, %v3865
    %v3867 = vpop.f32.mrb[0].mxu0
    %v3868 = vadd.f32 %v3598, %v3867
    %v3869 = vpop.f32.mrb[0].mxu0
    %v3870 = vadd.f32 %v3594, %v3869
    %v3871 = vpop.f32.mrb[0].mxu0
    %v3872 = vadd.f32 %v3598, %v3871
    %3873 = vmatprep.mubr.bf16.mxu0 0
    %3874 = vmatmul.mubr.bf16.gmra.mrb[0].mxu0 %v3556
    %v3875 = vpop.f32.mrb[0].mxu0
    %v3876 = vadd.f32 %v3594, %v3875
    %v3877 = vpop.f32.mrb[0].mxu0
    %v3878 = vadd.f32 %v3598, %v3877
    %v3879 = vpop.f32.mrb[0].mxu0
    %v3880 = vadd.f32 %v3594, %v3879
    %v3881 = vpop.f32.mrb[0].mxu0
    %v3882 = vadd.f32 %v3598, %v3881
    %3883 = vdwg.mxu0
    %3884 = vmatprep.subr.bf16.mxu0 %v3710
    %3885 = vmatpush1.bf16.msra.mxu0 %v3709
    %3886 = vmatprep.subr.bf16.mxu0 %v3714
    %3887 = vmatpush1.bf16.msra.mxu0 %v3713
    %3888 = vmatprep.subr.bf16.mxu0 %v3718
    %3889 = vmatpush1.bf16.msra.mxu0 %v3717
    %3890 = vmatprep.subr.bf16.mxu0 %v3722
    %3891 = vmatpush1.bf16.msra.mxu0 %v3721
    %3892 = vmatprep.subr.bf16.mxu0 %v3726
    %3893 = vmatpush1.bf16.msra.mxu0 %v3725
    %3894 = vmatprep.subr.bf16.mxu0 %v3730
    %3895 = vmatpush1.bf16.msra.mxu0 %v3729
    %3896 = vmatprep.subr.bf16.mxu0 %v3734
    %3897 = vmatpush1.bf16.msra.mxu0 %v3733
    %3898 = vmatprep.subr.bf16.mxu0 %v3738
    %3899 = vmatpush1.bf16.msra.mxu0 %v3737
    %3900 = vmatprep.subr.bf16.mxu0 0
    %3901 = vmatpush1.bf16.msra.mxu0 0
    %3902 = vmatprep.subr.bf16.mxu0 0
    %3903 = vmatpush1.bf16.msra.mxu0 0
    %3904 = vmatprep.subr.bf16.mxu0 0
    %3905 = vmatpush1.bf16.msra.mxu0 0
    %3906 = vmatprep.subr.bf16.mxu0 0
    %3907 = vmatpush1.bf16.msra.mxu0 0
    %3908 = vmatprep.subr.bf16.mxu0 0
    %3909 = vmatpush1.bf16.msra.mxu0 0
    %3910 = vmatprep.subr.bf16.mxu0 0
    %3911 = vmatpush1.bf16.msra.mxu0 0
    %3912 = vmatprep.subr.bf16.mxu0 0
    %3913 = vmatpush1.bf16.msra.mxu0 0
    %3914 = vmatprep.subr.bf16.mxu0 0
    %3915 = vmatpush1.bf16.msra.mxu0 0
    %3916 = vmatprep.mubr.bf16.mxu0 0
    %3917 = vmatmul.mubr.bf16.gmra.mrb[0].mxu0 %v3549
    %v3918 = vpop.f32.mrb[0].mxu0
    %v3919 = vadd.f32 %v3602, %v3918
    %v3920 = vpop.f32.mrb[0].mxu0
    %v3921 = vadd.f32 %v3606, %v3920
    %v3922 = vpop.f32.mrb[0].mxu0
    %v3923 = vadd.f32 %v3602, %v3922
    %v3924 = vpop.f32.mrb[0].mxu0
    %v3925 = vadd.f32 %v3606, %v3924
    %3926 = vmatprep.mubr.bf16.mxu0 0
    %3927 = vmatmul.mubr.bf16.gmra.mrb[0].mxu0 %v3550
    %v3928 = vpop.f32.mrb[0].mxu0
    %v3929 = vadd.f32 %v3602, %v3928
    %v3930 = vpop.f32.mrb[0].mxu0
    %v3931 = vadd.f32 %v3606, %v3930
    %v3932 = vpop.f32.mrb[0].mxu0
    %v3933 = vadd.f32 %v3602, %v3932
    %v3934 = vpop.f32.mrb[0].mxu0
    %v3935 = vadd.f32 %v3606, %v3934
    %3936 = vmatprep.mubr.bf16.mxu0 0
    %3937 = vmatmul.mubr.bf16.gmra.mrb[0].mxu0 %v3551
    %v3938 = vpop.f32.mrb[0].mxu0
    %v3939 = vadd.f32 %v3602, %v3938
    %v3940 = vpop.f32.mrb[0].mxu0
    %v3941 = vadd.f32 %v3606, %v3940
    %v3942 = vpop.f32.mrb[0].mxu0
    %v3943 = vadd.f32 %v3602, %v3942
    %v3944 = vpop.f32.mrb[0].mxu0
    %v3945 = vadd.f32 %v3606, %v3944
    %3946 = vmatprep.mubr.bf16.mxu0 0
    %3947 = vmatmul.mubr.bf16.gmra.mrb[0].mxu0 %v3552
    %v3948 = vpop.f32.mrb[0].mxu0
    %v3949 = vadd.f32 %v3602, %v3948
    %v3950 = vpop.f32.mrb[0].mxu0
    %v3951 = vadd.f32 %v3606, %v3950
    %v3952 = vpop.f32.mrb[0].mxu0
    %v3953 = vadd.f32 %v3602, %v3952
    %v3954 = vpop.f32.mrb[0].mxu0
    %v3955 = vadd.f32 %v3606, %v3954
    %3956 = vmatprep.mubr.bf16.mxu0 0
    %3957 = vmatmul.mubr.bf16.gmra.mrb[0].mxu0 %v3553
    %v3958 = vpop.f32.mrb[0].mxu0
    %v3959 = vadd.f32 %v3602, %v3958
    %v3960 = vpop.f32.mrb[0].mxu0
    %v3961 = vadd.f32 %v3606, %v3960
    %v3962 = vpop.f32.mrb[0].mxu0
    %v3963 = vadd.f32 %v3602, %v3962
    %v3964 = vpop.f32.mrb[0].mxu0
    %v3965 = vadd.f32 %v3606, %v3964
    %3966 = vmatprep.mubr.bf16.mxu0 0
    %3967 = vmatmul.mubr.bf16.gmra.mrb[0].mxu0 %v3554
    %v3968 = vpop.f32.mrb[0].mxu0
    %v3969 = vadd.f32 %v3602, %v3968
    %v3970 = vpop.f32.mrb[0].mxu0
    %v3971 = vadd.f32 %v3606, %v3970
    %v3972 = vpop.f32.mrb[0].mxu0
    %v3973 = vadd.f32 %v3602, %v3972
    %v3974 = vpop.f32.mrb[0].mxu0
    %v3975 = vadd.f32 %v3606, %v3974
    %3976 = vmatprep.mubr.bf16.mxu0 0
    %3977 = vmatmul.mubr.bf16.gmra.mrb[0].mxu0 %v3555
    %v3978 = vpop.f32.mrb[0].mxu0
    %v3979 = vadd.f32 %v3602, %v3978
    %v3980 = vpop.f32.mrb[0].mxu0
    %v3981 = vadd.f32 %v3606, %v3980
    %v3982 = vpop.f32.mrb[0].mxu0
    %v3983 = vadd.f32 %v3602, %v3982
    %v3984 = vpop.f32.mrb[0].mxu0
    %v3985 = vadd.f32 %v3606, %v3984
    %3986 = vmatprep.mubr.bf16.mxu0 0
    %3987 = vmatmul.mubr.bf16.gmra.mrb[0].mxu0 %v3556
    %v3988 = vpop.f32.mrb[0].mxu0
    %v3989 = vadd.f32 %v3602, %v3988
    %v3990 = vpop.f32.mrb[0].mxu0
    %v3991 = vadd.f32 %v3606, %v3990
    %v3992 = vpop.f32.mrb[0].mxu0
    %v3993 = vadd.f32 %v3602, %v3992
    %v3994 = vpop.f32.mrb[0].mxu0
    %v3995 = vadd.f32 %v3606, %v3994
    %3996 = vdwg.mxu0
    %v3997 = vmax.f32 %v3806, 0.0
    %v3998 = vmax.f32 %v3808, 0.0
    %v3999 = vmax.f32 %v3919, 0.0
    %v4000 = vmax.f32 %v3921, 0.0
    %v4001 = vmax.f32 %v3810, 0.0
    %v4002 = vmax.f32 %v3812, 0.0
    %v4003 = vmax.f32 %v3923, 0.0
    %v4004 = vmax.f32 %v3925, 0.0
    %v4005 = vmax.f32 %v3816, 0.0
    %v4006 = vmax.f32 %v3818, 0.0
    %v4007 = vmax.f32 %v3929, 0.0
    %v4008 = vmax.f32 %v3931, 0.0
    %v4009 = vmax.f32 %v3820, 0.0
    %v4010 = vmax.f32 %v3822, 0.0
    %v4011 = vmax.f32 %v3933, 0.0
    %v4012 = vmax.f32 %v3935, 0.0
    %v4013 = vmax.f32 %v3826, 0.0
    %v4014 = vmax.f32 %v3828, 0.0
    %v4015 = vmax.f32 %v3939, 0.0
    %v4016 = vmax.f32 %v3941, 0.0
    %v4017 = vmax.f32 %v3830, 0.0
    %v4018 = vmax.f32 %v3832, 0.0
    %v4019 = vmax.f32 %v3943, 0.0
    %v4020 = vmax.f32 %v3945, 0.0
    %v4021 = vmax.f32 %v3836, 0.0
    %v4022 = vmax.f32 %v3838, 0.0
    %v4023 = vmax.f32 %v3949, 0.0
    %v4024 = vmax.f32 %v3951, 0.0
    %v4025 = vmax.f32 %v3840, 0.0
    %v4026 = vmax.f32 %v3842, 0.0
    %v4027 = vmax.f32 %v3953, 0.0
    %v4028 = vmax.f32 %v3955, 0.0
    %v4029 = vmax.f32 %v3846, 0.0
    %v4030 = vmax.f32 %v3848, 0.0
    %v4031 = vmax.f32 %v3959, 0.0
    %v4032 = vmax.f32 %v3961, 0.0
    %v4033 = vmax.f32 %v3850, 0.0
    %v4034 = vmax.f32 %v3852, 0.0
    %v4035 = vmax.f32 %v3963, 0.0
    %v4036 = vmax.f32 %v3965, 0.0
    %v4037 = vmax.f32 %v3856, 0.0
    %v4038 = vmax.f32 %v3858, 0.0
    %v4039 = vmax.f32 %v3969, 0.0
    %v4040 = vmax.f32 %v3971, 0.0
    %v4041 = vmax.f32 %v3860, 0.0
    %v4042 = vmax.f32 %v3862, 0.0
    %v4043 = vmax.f32 %v3973, 0.0
    %v4044 = vmax.f32 %v3975, 0.0
    %v4045 = vmax.f32 %v3866, 0.0
    %v4046 = vmax.f32 %v3868, 0.0
    %v4047 = vmax.f32 %v3979, 0.0
    %v4048 = vmax.f32 %v3981, 0.0
    %v4049 = vmax.f32 %v3870, 0.0
    %v4050 = vmax.f32 %v3872, 0.0
    %v4051 = vmax.f32 %v3983, 0.0
    %v4052 = vmax.f32 %v3985, 0.0
    %v4053 = vmax.f32 %v3876, 0.0
    %v4054 = vmax.f32 %v3878, 0.0
    %v4055 = vmax.f32 %v3989, 0.0
    %v4056 = vmax.f32 %v3991, 0.0
    %v4057 = vmax.f32 %v3880, 0.0
    %v4058 = vmax.f32 %v3882, 0.0
    %v4059 = vmax.f32 %v3993, 0.0
    %v4060 = vmax.f32 %v3995, 0.0
    %v4061 = vpack.c.bf16 %v4001, %v3997
    %v4062 = vpack.c.bf16 %v4002, %v3998
    %v4063 = vpack.c.bf16 %v4003, %v3999
    %v4064 = vpack.c.bf16 %v4004, %v4000
    %v4065 = vpack.c.bf16 %v4009, %v4005
    %v4066 = vpack.c.bf16 %v4010, %v4006
    %v4067 = vpack.c.bf16 %v4011, %v4007
    %v4068 = vpack.c.bf16 %v4012, %v4008
    %v4069 = vpack.c.bf16 %v4017, %v4013
    %v4070 = vpack.c.bf16 %v4018, %v4014
    %v4071 = vpack.c.bf16 %v4019, %v4015
    %v4072 = vpack.c.bf16 %v4020, %v4016
    %v4073 = vpack.c.bf16 %v4025, %v4021
    %v4074 = vpack.c.bf16 %v4026, %v4022
    %v4075 = vpack.c.bf16 %v4027, %v4023
    %v4076 = vpack.c.bf16 %v4028, %v4024
    %v4077 = vpack.c.bf16 %v4033, %v4029
    %v4078 = vpack.c.bf16 %v4034, %v4030
    %v4079 = vpack.c.bf16 %v4035, %v4031
    %v4080 = vpack.c.bf16 %v4036, %v4032
    %v4081 = vpack.c.bf16 %v4041, %v4037
    %v4082 = vpack.c.bf16 %v4042, %v4038
    %v4083 = vpack.c.bf16 %v4043, %v4039
    %v4084 = vpack.c.bf16 %v4044, %v4040
    %v4085 = vpack.c.bf16 %v4049, %v4045
    %v4086 = vpack.c.bf16 %v4050, %v4046
    %v4087 = vpack.c.bf16 %v4051, %v4047
    %v4088 = vpack.c.bf16 %v4052, %v4048
    %v4089 = vpack.c.bf16 %v4057, %v4053
    %v4090 = vpack.c.bf16 %v4058, %v4054
    %v4091 = vpack.c.bf16 %v4059, %v4055
    %v4092 = vpack.c.bf16 %v4060, %v4056
    %v4093 = vld [vmem:[%s6] sm:$0xf]
    %v4094 = vld [vmem:[%s6 + $0x4] sm:$0xf]
    %v4095 = vld [vmem:[%s6 + $0x8] sm:$0xf]
    %v4096 = vld [vmem:[%s6 + $0xc] sm:$0xf]
    %v4097 = vld [vmem:[%s6 + $0x10] sm:$0xf]
    %v4098 = vld [vmem:[%s6 + $0x14] sm:$0xf]
    %v4099 = vld [vmem:[%s6 + $0x18] sm:$0xf]
    %v4100 = vld [vmem:[%s6 + $0x1c] sm:$0xf]
    %v4101 = vld [vmem:[%s6 + $0x20] sm:$0xf]
    %v4102 = vld [vmem:[%s6 + $0x24] sm:$0xf]
    %v4103 = vld [vmem:[%s6 + $0x28] sm:$0xf]
    %v4104 = vld [vmem:[%s6 + $0x2c] sm:$0xf]
    %v4105 = vld [vmem:[%s6 + $0x30] sm:$0xf]
    %v4106 = vld [vmem:[%s6 + $0x34] sm:$0xf]
    %v4107 = vld [vmem:[%s6 + $0x38] sm:$0xf]
    %v4108 = vld [vmem:[%s6 + $0x3c] sm:$0xf]
    %v4109 = vld [vmem:[%s6 + $0x40] sm:$0xf]
    %v4110 = vld [vmem:[%s6 + $0x44] sm:$0xf]
    %v4111 = vld [vmem:[%s6 + $0x48] sm:$0xf]
    %v4112 = vld [vmem:[%s6 + $0x4c] sm:$0xf]
    %v4113 = vld [vmem:[%s6 + $0x50] sm:$0xf]
    %v4114 = vld [vmem:[%s6 + $0x54] sm:$0xf]
    %v4115 = vld [vmem:[%s6 + $0x58] sm:$0xf]
    %v4116 = vld [vmem:[%s6 + $0x5c] sm:$0xf]
    %v4117 = vld [vmem:[%s6 + $0x60] sm:$0xf]
    %v4118 = vld [vmem:[%s6 + $0x64] sm:$0xf]
    %v4119 = vld [vmem:[%s6 + $0x68] sm:$0xf]
    %v4120 = vld [vmem:[%s6 + $0x6c] sm:$0xf]
    %v4121 = vld [vmem:[%s6 + $0x70] sm:$0xf]
    %v4122 = vld [vmem:[%s6 + $0x74] sm:$0xf]
    %v4123 = vld [vmem:[%s6 + $0x78] sm:$0xf]
    %v4124 = vld [vmem:[%s6 + $0x7c] sm:$0xf]
    %v4125 = vld [vmem:[%s6 + $0x80] sm:$0xf]
    %v4126 = vld [vmem:[%s6 + $0x84] sm:$0xf]
    %v4127 = vld [vmem:[%s6 + $0x88] sm:$0xf]
    %v4128 = vld [vmem:[%s6 + $0x8c] sm:$0xf]
    %v4129 = vld [vmem:[%s6 + $0x90] sm:$0xf]
    %v4130 = vld [vmem:[%s6 + $0x94] sm:$0xf]
    %v4131 = vld [vmem:[%s6 + $0x98] sm:$0xf]
    %v4132 = vld [vmem:[%s6 + $0x9c] sm:$0xf]
    %v4133 = vld [vmem:[%s6 + $0xa0] sm:$0xf]
    %v4134 = vld [vmem:[%s6 + $0xa4] sm:$0xf]
    %v4135 = vld [vmem:[%s6 + $0xa8] sm:$0xf]
    %v4136 = vld [vmem:[%s6 + $0xac] sm:$0xf]
    %v4137 = vld [vmem:[%s6 + $0xb0] sm:$0xf]
    %v4138 = vld [vmem:[%s6 + $0xb4] sm:$0xf]
    %v4139 = vld [vmem:[%s6 + $0xb8] sm:$0xf]
    %v4140 = vld [vmem:[%s6 + $0xbc] sm:$0xf]
    %v4141 = vld [vmem:[%s6 + $0xc0] sm:$0xf]
    %v4142 = vld [vmem:[%s6 + $0xc4] sm:$0xf]
    %v4143 = vld [vmem:[%s6 + $0xc8] sm:$0xf]
    %v4144 = vld [vmem:[%s6 + $0xcc] sm:$0xf]
    %v4145 = vld [vmem:[%s6 + $0xd0] sm:$0xf]
    %v4146 = vld [vmem:[%s6 + $0xd4] sm:$0xf]
    %v4147 = vld [vmem:[%s6 + $0xd8] sm:$0xf]
    %v4148 = vld [vmem:[%s6 + $0xdc] sm:$0xf]
    %v4149 = vld [vmem:[%s6 + $0xe0] sm:$0xf]
    %v4150 = vld [vmem:[%s6 + $0xe4] sm:$0xf]
    %v4151 = vld [vmem:[%s6 + $0xe8] sm:$0xf]
    %v4152 = vld [vmem:[%s6 + $0xec] sm:$0xf]
    %v4153 = vld [vmem:[%s6 + $0xf0] sm:$0xf]
    %v4154 = vld [vmem:[%s6 + $0xf4] sm:$0xf]
    %v4155 = vld [vmem:[%s6 + $0xf8] sm:$0xf]
    %v4156 = vld [vmem:[%s6 + $0xfc] sm:$0xf]
    %v4157 = vld [vmem:[#allocation7] sm:$0x1]
    %v4159 = vlaneseq
    %v4160 = vshrl.u32 %v4159, 7
    %v4161 = vsub.s32 0, %v4160
    %v4162 = vrot.slane %v4157, %v4161
    %v4228 = vunpack.c.l.b16 %v4093
    %v4229 = vunpack.c.l.b16 %v4094
    %v4230 = vunpack.c.l.b16 %v4095
    %v4231 = vunpack.c.l.b16 %v4096
    %v4232 = vunpack.c.l.b16 %v4097
    %v4233 = vunpack.c.l.b16 %v4098
    %v4234 = vunpack.c.l.b16 %v4099
    %v4235 = vunpack.c.l.b16 %v4100
    %v4236 = vunpack.c.l.b16 %v4101
    %v4237 = vunpack.c.l.b16 %v4102
    %v4238 = vunpack.c.l.b16 %v4103
    %v4239 = vunpack.c.l.b16 %v4104
    %v4240 = vunpack.c.l.b16 %v4105
    %v4241 = vunpack.c.l.b16 %v4106
    %v4242 = vunpack.c.l.b16 %v4107
    %v4243 = vunpack.c.l.b16 %v4108
    %v4244 = vunpack.c.l.b16 %v4109
    %v4245 = vunpack.c.l.b16 %v4110
    %v4246 = vunpack.c.l.b16 %v4111
    %v4247 = vunpack.c.l.b16 %v4112
    %v4248 = vunpack.c.l.b16 %v4113
    %v4249 = vunpack.c.l.b16 %v4114
    %v4250 = vunpack.c.l.b16 %v4115
    %v4251 = vunpack.c.l.b16 %v4116
    %v4252 = vunpack.c.l.b16 %v4117
    %v4253 = vunpack.c.l.b16 %v4118
    %v4254 = vunpack.c.l.b16 %v4119
    %v4255 = vunpack.c.l.b16 %v4120
    %v4256 = vunpack.c.l.b16 %v4121
    %v4257 = vunpack.c.l.b16 %v4122
    %v4258 = vunpack.c.l.b16 %v4123
    %v4259 = vunpack.c.l.b16 %v4124
    %v4260 = vunpack.c.l.b16 %v4125
    %v4261 = vunpack.c.l.b16 %v4126
    %v4262 = vunpack.c.l.b16 %v4127
    %v4263 = vunpack.c.l.b16 %v4128
    %v4264 = vunpack.c.l.b16 %v4129
    %v4265 = vunpack.c.l.b16 %v4130
    %v4266 = vunpack.c.l.b16 %v4131
    %v4267 = vunpack.c.l.b16 %v4132
    %v4268 = vunpack.c.l.b16 %v4133
    %v4269 = vunpack.c.l.b16 %v4134
    %v4270 = vunpack.c.l.b16 %v4135
    %v4271 = vunpack.c.l.b16 %v4136
    %v4272 = vunpack.c.l.b16 %v4137
    %v4273 = vunpack.c.l.b16 %v4138
    %v4274 = vunpack.c.l.b16 %v4139
    %v4275 = vunpack.c.l.b16 %v4140
    %v4276 = vunpack.c.l.b16 %v4141
    %v4277 = vunpack.c.l.b16 %v4142
    %v4278 = vunpack.c.l.b16 %v4143
    %v4279 = vunpack.c.l.b16 %v4144
    %v4280 = vunpack.c.l.b16 %v4145
    %v4281 = vunpack.c.l.b16 %v4146
    %v4282 = vunpack.c.l.b16 %v4147
    %v4283 = vunpack.c.l.b16 %v4148
    %v4284 = vunpack.c.l.b16 %v4149
    %v4285 = vunpack.c.l.b16 %v4150
    %v4286 = vunpack.c.l.b16 %v4151
    %v4287 = vunpack.c.l.b16 %v4152
    %v4288 = vunpack.c.l.b16 %v4153
    %v4289 = vunpack.c.l.b16 %v4154
    %v4290 = vunpack.c.l.b16 %v4155
    %v4291 = vunpack.c.l.b16 %v4156
    %v4292 = vpack.c.b16 %v4229, %v4228
    %v4293 = vpack.c.b16 %v4231, %v4230
    %v4294 = vpack.c.b16 %v4233, %v4232
    %v4295 = vpack.c.b16 %v4235, %v4234
    %v4296 = vpack.c.b16 %v4237, %v4236
    %v4297 = vpack.c.b16 %v4239, %v4238
    %v4298 = vpack.c.b16 %v4241, %v4240
    %v4299 = vpack.c.b16 %v4243, %v4242
    %v4300 = vpack.c.b16 %v4245, %v4244
    %v4301 = vpack.c.b16 %v4247, %v4246
    %v4302 = vpack.c.b16 %v4249, %v4248
    %v4303 = vpack.c.b16 %v4251, %v4250
    %v4304 = vpack.c.b16 %v4253, %v4252
    %v4305 = vpack.c.b16 %v4255, %v4254
    %v4306 = vpack.c.b16 %v4257, %v4256
    %v4307 = vpack.c.b16 %v4259, %v4258
    %v4308 = vpack.c.b16 %v4261, %v4260
    %v4309 = vpack.c.b16 %v4263, %v4262
    %v4310 = vpack.c.b16 %v4265, %v4264
    %v4311 = vpack.c.b16 %v4267, %v4266
    %v4312 = vpack.c.b16 %v4269, %v4268
    %v4313 = vpack.c.b16 %v4271, %v4270
    %v4314 = vpack.c.b16 %v4273, %v4272
    %v4315 = vpack.c.b16 %v4275, %v4274
    %v4316 = vpack.c.b16 %v4277, %v4276
    %v4317 = vpack.c.b16 %v4279, %v4278
    %v4318 = vpack.c.b16 %v4281, %v4280
    %v4319 = vpack.c.b16 %v4283, %v4282
    %v4320 = vpack.c.b16 %v4285, %v4284
    %v4321 = vpack.c.b16 %v4287, %v4286
    %v4322 = vpack.c.b16 %v4289, %v4288
    %v4323 = vpack.c.b16 %v4291, %v4290
    %4356 = vmatprep.subr.bf16.mxu0 0
    %4357 = vmatpush1.bf16.msra.mxu0 %v4292
    %4358 = vmatprep.subr.bf16.mxu0 0
    %4359 = vmatpush1.bf16.msra.mxu0 %v4293
    %4360 = vmatprep.subr.bf16.mxu0 0
    %4361 = vmatpush1.bf16.msra.mxu0 %v4294
    %4362 = vmatprep.subr.bf16.mxu0 0
    %4363 = vmatpush1.bf16.msra.mxu0 %v4295
    %4364 = vmatprep.subr.bf16.mxu0 0
    %4365 = vmatpush1.bf16.msra.mxu0 %v4296
    %4366 = vmatprep.subr.bf16.mxu0 0
    %4367 = vmatpush1.bf16.msra.mxu0 %v4297
    %4368 = vmatprep.subr.bf16.mxu0 0
    %4369 = vmatpush1.bf16.msra.mxu0 %v4298
    %4370 = vmatprep.subr.bf16.mxu0 0
    %4371 = vmatpush1.bf16.msra.mxu0 %v4299
    %4372 = vmatprep.subr.bf16.mxu0 0
    %4373 = vmatpush1.bf16.msra.mxu0 %v4300
    %4374 = vmatprep.subr.bf16.mxu0 0
    %4375 = vmatpush1.bf16.msra.mxu0 %v4301
    %4376 = vmatprep.subr.bf16.mxu0 0
    %4377 = vmatpush1.bf16.msra.mxu0 %v4302
    %4378 = vmatprep.subr.bf16.mxu0 0
    %4379 = vmatpush1.bf16.msra.mxu0 %v4303
    %4380 = vmatprep.subr.bf16.mxu0 0
    %4381 = vmatpush1.bf16.msra.mxu0 %v4304
    %4382 = vmatprep.subr.bf16.mxu0 0
    %4383 = vmatpush1.bf16.msra.mxu0 %v4305
    %4384 = vmatprep.subr.bf16.mxu0 0
    %4385 = vmatpush1.bf16.msra.mxu0 %v4306
    %4386 = vmatprep.subr.bf16.mxu0 0
    %4387 = vmatpush1.bf16.msra.mxu0 %v4307
    %4388 = vmatprep.mubr.bf16.mxu0 %v4062
    %4389 = vmatmul.mubr.bf16.gmra.mrb[0].mxu0 %v4061
    %v4390 = vpop.f32.mrb[0].mxu0
    %v4391 = vadd.f32 %v4162, %v4390
    %v4392 = vpop.f32.mrb[0].mxu0
    %v4393 = vpop.f32.mrb[0].mxu0
    %v4394 = vadd.f32 %v4162, %v4393
    %v4395 = vpop.f32.mrb[0].mxu0
    %4396 = vmatprep.mubr.bf16.mxu0 %v4066
    %4397 = vmatmul.mubr.bf16.gmra.mrb[0].mxu0 %v4065
    %v4398 = vpop.f32.mrb[0].mxu0
    %v4399 = vadd.f32 %v4162, %v4398
    %v4400 = vpop.f32.mrb[0].mxu0
    %v4401 = vpop.f32.mrb[0].mxu0
    %v4402 = vadd.f32 %v4162, %v4401
    %v4403 = vpop.f32.mrb[0].mxu0
    %4404 = vmatprep.mubr.bf16.mxu0 %v4070
    %4405 = vmatmul.mubr.bf16.gmra.mrb[0].mxu0 %v4069
    %v4406 = vpop.f32.mrb[0].mxu0
    %v4407 = vadd.f32 %v4162, %v4406
    %v4408 = vpop.f32.mrb[0].mxu0
    %v4409 = vpop.f32.mrb[0].mxu0
    %v4410 = vadd.f32 %v4162, %v4409
    %v4411 = vpop.f32.mrb[0].mxu0
    %4412 = vmatprep.mubr.bf16.mxu0 %v4074
    %4413 = vmatmul.mubr.bf16.gmra.mrb[0].mxu0 %v4073
    %v4414 = vpop.f32.mrb[0].mxu0
    %v4415 = vadd.f32 %v4162, %v4414
    %v4416 = vpop.f32.mrb[0].mxu0
    %v4417 = vpop.f32.mrb[0].mxu0
    %v4418 = vadd.f32 %v4162, %v4417
    %v4419 = vpop.f32.mrb[0].mxu0
    %4420 = vmatprep.mubr.bf16.mxu0 %v4078
    %4421 = vmatmul.mubr.bf16.gmra.mrb[0].mxu0 %v4077
    %v4422 = vpop.f32.mrb[0].mxu0
    %v4423 = vadd.f32 %v4162, %v4422
    %v4424 = vpop.f32.mrb[0].mxu0
    %v4425 = vpop.f32.mrb[0].mxu0
    %v4426 = vadd.f32 %v4162, %v4425
    %v4427 = vpop.f32.mrb[0].mxu0
    %4428 = vmatprep.mubr.bf16.mxu0 %v4082
    %4429 = vmatmul.mubr.bf16.gmra.mrb[0].mxu0 %v4081
    %v4430 = vpop.f32.mrb[0].mxu0
    %v4431 = vadd.f32 %v4162, %v4430
    %v4432 = vpop.f32.mrb[0].mxu0
    %v4433 = vpop.f32.mrb[0].mxu0
    %v4434 = vadd.f32 %v4162, %v4433
    %v4435 = vpop.f32.mrb[0].mxu0
    %4436 = vmatprep.mubr.bf16.mxu0 %v4086
    %4437 = vmatmul.mubr.bf16.gmra.mrb[0].mxu0 %v4085
    %v4438 = vpop.f32.mrb[0].mxu0
    %v4439 = vadd.f32 %v4162, %v4438
    %v4440 = vpop.f32.mrb[0].mxu0
    %v4441 = vpop.f32.mrb[0].mxu0
    %v4442 = vadd.f32 %v4162, %v4441
    %v4443 = vpop.f32.mrb[0].mxu0
    %4444 = vmatprep.mubr.bf16.mxu0 %v4090
    %4445 = vmatmul.mubr.bf16.gmra.mrb[0].mxu0 %v4089
    %v4446 = vpop.f32.mrb[0].mxu0
    %v4447 = vadd.f32 %v4162, %v4446
    %v4448 = vpop.f32.mrb[0].mxu0
    %v4449 = vpop.f32.mrb[0].mxu0
    %v4450 = vadd.f32 %v4162, %v4449
    %v4451 = vpop.f32.mrb[0].mxu0
    %4452 = vdwg.mxu0
    %4453 = vmatprep.subr.bf16.mxu0 0
    %4454 = vmatpush1.bf16.msra.mxu0 %v4308
    %4455 = vmatprep.subr.bf16.mxu0 0
    %4456 = vmatpush1.bf16.msra.mxu0 %v4309
    %4457 = vmatprep.subr.bf16.mxu0 0
    %4458 = vmatpush1.bf16.msra.mxu0 %v4310
    %4459 = vmatprep.subr.bf16.mxu0 0
    %4460 = vmatpush1.bf16.msra.mxu0 %v4311
    %4461 = vmatprep.subr.bf16.mxu0 0
    %4462 = vmatpush1.bf16.msra.mxu0 %v4312
    %4463 = vmatprep.subr.bf16.mxu0 0
    %4464 = vmatpush1.bf16.msra.mxu0 %v4313
    %4465 = vmatprep.subr.bf16.mxu0 0
    %4466 = vmatpush1.bf16.msra.mxu0 %v4314
    %4467 = vmatprep.subr.bf16.mxu0 0
    %4468 = vmatpush1.bf16.msra.mxu0 %v4315
    %4469 = vmatprep.subr.bf16.mxu0 0
    %4470 = vmatpush1.bf16.msra.mxu0 %v4316
    %4471 = vmatprep.subr.bf16.mxu0 0
    %4472 = vmatpush1.bf16.msra.mxu0 %v4317
    %4473 = vmatprep.subr.bf16.mxu0 0
    %4474 = vmatpush1.bf16.msra.mxu0 %v4318
    %4475 = vmatprep.subr.bf16.mxu0 0
    %4476 = vmatpush1.bf16.msra.mxu0 %v4319
    %4477 = vmatprep.subr.bf16.mxu0 0
    %4478 = vmatpush1.bf16.msra.mxu0 %v4320
    %4479 = vmatprep.subr.bf16.mxu0 0
    %4480 = vmatpush1.bf16.msra.mxu0 %v4321
    %4481 = vmatprep.subr.bf16.mxu0 0
    %4482 = vmatpush1.bf16.msra.mxu0 %v4322
    %4483 = vmatprep.subr.bf16.mxu0 0
    %4484 = vmatpush1.bf16.msra.mxu0 %v4323
    %4485 = vmatprep.mubr.bf16.mxu0 %v4064
    %4486 = vmatmul.mubr.bf16.gmra.mrb[0].mxu0 %v4063
    %v4487 = vpop.f32.mrb[0].mxu0
    %v4488 = vadd.f32 %v4391, %v4487
    %v4489 = vpop.f32.mrb[0].mxu0
    %v4490 = vpop.f32.mrb[0].mxu0
    %v4491 = vadd.f32 %v4394, %v4490
    %v4492 = vpop.f32.mrb[0].mxu0
    %4493 = vmatprep.mubr.bf16.mxu0 %v4068
    %4494 = vmatmul.mubr.bf16.gmra.mrb[0].mxu0 %v4067
    %v4495 = vpop.f32.mrb[0].mxu0
    %v4496 = vadd.f32 %v4399, %v4495
    %v4497 = vpop.f32.mrb[0].mxu0
    %v4498 = vpop.f32.mrb[0].mxu0
    %v4499 = vadd.f32 %v4402, %v4498
    %v4500 = vpop.f32.mrb[0].mxu0
    %4501 = vmatprep.mubr.bf16.mxu0 %v4072
    %4502 = vmatmul.mubr.bf16.gmra.mrb[0].mxu0 %v4071
    %v4503 = vpop.f32.mrb[0].mxu0
    %v4504 = vadd.f32 %v4407, %v4503
    %v4505 = vpop.f32.mrb[0].mxu0
    %v4506 = vpop.f32.mrb[0].mxu0
    %v4507 = vadd.f32 %v4410, %v4506
    %v4508 = vpop.f32.mrb[0].mxu0
    %4509 = vmatprep.mubr.bf16.mxu0 %v4076
    %4510 = vmatmul.mubr.bf16.gmra.mrb[0].mxu0 %v4075
    %v4511 = vpop.f32.mrb[0].mxu0
    %v4512 = vadd.f32 %v4415, %v4511
    %v4513 = vpop.f32.mrb[0].mxu0
    %v4514 = vpop.f32.mrb[0].mxu0
    %v4515 = vadd.f32 %v4418, %v4514
    %v4516 = vpop.f32.mrb[0].mxu0
    %4517 = vmatprep.mubr.bf16.mxu0 %v4080
    %4518 = vmatmul.mubr.bf16.gmra.mrb[0].mxu0 %v4079
    %v4519 = vpop.f32.mrb[0].mxu0
    %v4520 = vadd.f32 %v4423, %v4519
    %v4521 = vpop.f32.mrb[0].mxu0
    %v4522 = vpop.f32.mrb[0].mxu0
    %v4523 = vadd.f32 %v4426, %v4522
    %v4524 = vpop.f32.mrb[0].mxu0
    %4525 = vmatprep.mubr.bf16.mxu0 %v4084
    %4526 = vmatmul.mubr.bf16.gmra.mrb[0].mxu0 %v4083
    %v4527 = vpop.f32.mrb[0].mxu0
    %v4528 = vadd.f32 %v4431, %v4527
    %v4529 = vpop.f32.mrb[0].mxu0
    %v4530 = vpop.f32.mrb[0].mxu0
    %v4531 = vadd.f32 %v4434, %v4530
    %v4532 = vpop.f32.mrb[0].mxu0
    %4533 = vmatprep.mubr.bf16.mxu0 %v4088
    %4534 = vmatmul.mubr.bf16.gmra.mrb[0].mxu0 %v4087
    %v4535 = vpop.f32.mrb[0].mxu0
    %v4536 = vadd.f32 %v4439, %v4535
    %v4537 = vpop.f32.mrb[0].mxu0
    %v4538 = vpop.f32.mrb[0].mxu0
    %v4539 = vadd.f32 %v4442, %v4538
    %v4540 = vpop.f32.mrb[0].mxu0
    %4541 = vmatprep.mubr.bf16.mxu0 %v4092
    %4542 = vmatmul.mubr.bf16.gmra.mrb[0].mxu0 %v4091
    %v4543 = vpop.f32.mrb[0].mxu0
    %v4544 = vadd.f32 %v4447, %v4543
    %v4545 = vpop.f32.mrb[0].mxu0
    %v4546 = vpop.f32.mrb[0].mxu0
    %v4547 = vadd.f32 %v4450, %v4546
    %v4548 = vpop.f32.mrb[0].mxu0
    %4549 = vdwg.mxu0
    %v4550 = vadd.f32 %v3533, %v4488
    %v4551 = vadd.f32 %v3534, %v4491
    %v4552 = vadd.f32 %v3535, %v4496
    %v4553 = vadd.f32 %v3536, %v4499
    %v4554 = vadd.f32 %v3537, %v4504
    %v4555 = vadd.f32 %v3538, %v4507
    %v4556 = vadd.f32 %v3539, %v4512
    %v4557 = vadd.f32 %v3540, %v4515
    %v4558 = vadd.f32 %v3541, %v4520
    %v4559 = vadd.f32 %v3542, %v4523
    %v4560 = vadd.f32 %v3543, %v4528
    %v4561 = vadd.f32 %v3544, %v4531
    %v4562 = vadd.f32 %v3545, %v4536
    %v4563 = vadd.f32 %v3546, %v4539
    %v4564 = vadd.f32 %v3547, %v4544
    %v4565 = vadd.f32 %v3548, %v4547
    %v4566 = vld [vmem:[#allocation11] sm:$0x1]
    %v4567 = vld [vmem:[#allocation13] sm:$0x1]
    %4568 = vadd.xlane.f32.xlu0 %v4550
    %v4569 = vpop.xlane.xlu0 %4568
    %4570 = vadd.xlane.f32.xlu0 %v4551
    %v4571 = vpop.xlane.xlu0 %4570
    %4572 = vadd.xlane.f32.xlu0 %v4552
    %v4573 = vpop.xlane.xlu0 %4572
    %4574 = vadd.xlane.f32.xlu0 %v4553
    %v4575 = vpop.xlane.xlu0 %4574
    %4576 = vadd.xlane.f32.xlu0 %v4554
    %v4577 = vpop.xlane.xlu0 %4576
    %4578 = vadd.xlane.f32.xlu0 %v4555
    %v4579 = vpop.xlane.xlu0 %4578
    %4580 = vadd.xlane.f32.xlu0 %v4556
    %v4581 = vpop.xlane.xlu0 %4580
    %4582 = vadd.xlane.f32.xlu0 %v4557
    %v4583 = vpop.xlane.xlu0 %4582
    %4584 = vadd.xlane.f32.xlu0 %v4558
    %v4585 = vpop.xlane.xlu0 %4584
    %4586 = vadd.xlane.f32.xlu0 %v4559
    %v4587 = vpop.xlane.xlu0 %4586
    %4588 = vadd.xlane.f32.xlu0 %v4560
    %v4589 = vpop.xlane.xlu0 %4588
    %4590 = vadd.xlane.f32.xlu0 %v4561
    %v4591 = vpop.xlane.xlu0 %4590
    %4592 = vadd.xlane.f32.xlu0 %v4562
    %v4593 = vpop.xlane.xlu0 %4592
    %4594 = vadd.xlane.f32.xlu0 %v4563
    %v4595 = vpop.xlane.xlu0 %4594
    %4596 = vadd.xlane.f32.xlu0 %v4564
    %v4597 = vpop.xlane.xlu0 %4596
    %4598 = vadd.xlane.f32.xlu0 %v4565
    %v4599 = vpop.xlane.xlu0 %4598
    %v4600 = vmul.f32 %v4569, %v3360
    %v4601 = vmul.f32 %v4571, %v3360
    %v4602 = vmul.f32 %v4573, %v3360
    %v4603 = vmul.f32 %v4575, %v3360
    %v4604 = vmul.f32 %v4577, %v3360
    %v4605 = vmul.f32 %v4579, %v3360
    %v4606 = vmul.f32 %v4581, %v3360
    %v4607 = vmul.f32 %v4583, %v3360
    %v4608 = vmul.f32 %v4585, %v3360
    %v4609 = vmul.f32 %v4587, %v3360
    %v4610 = vmul.f32 %v4589, %v3360
    %v4611 = vmul.f32 %v4591, %v3360
    %v4612 = vmul.f32 %v4593, %v3360
    %v4613 = vmul.f32 %v4595, %v3360
    %v4614 = vmul.f32 %v4597, %v3360
    %v4615 = vmul.f32 %v4599, %v3360
    %v4616 = vsub.f32 %v4550, %v4600
    %v4617 = vsub.f32 %v4551, %v4601
    %v4618 = vsub.f32 %v4552, %v4602
    %v4619 = vsub.f32 %v4553, %v4603
    %v4620 = vsub.f32 %v4554, %v4604
    %v4621 = vsub.f32 %v4555, %v4605
    %v4622 = vsub.f32 %v4556, %v4606
    %v4623 = vsub.f32 %v4557, %v4607
    %v4624 = vsub.f32 %v4558, %v4608
    %v4625 = vsub.f32 %v4559, %v4609
    %v4626 = vsub.f32 %v4560, %v4610
    %v4627 = vsub.f32 %v4561, %v4611
    %v4628 = vsub.f32 %v4562, %v4612
    %v4629 = vsub.f32 %v4563, %v4613
    %v4630 = vsub.f32 %v4564, %v4614
    %v4631 = vsub.f32 %v4565, %v4615
    %v4632 = vmul.f32 %v4616, %v4616
    %v4633 = vmul.f32 %v4617, %v4617
    %v4634 = vmul.f32 %v4618, %v4618
    %v4635 = vmul.f32 %v4619, %v4619
    %v4636 = vmul.f32 %v4620, %v4620
    %v4637 = vmul.f32 %v4621, %v4621
    %v4638 = vmul.f32 %v4622, %v4622
    %v4639 = vmul.f32 %v4623, %v4623
    %v4640 = vmul.f32 %v4624, %v4624
    %v4641 = vmul.f32 %v4625, %v4625
    %v4642 = vmul.f32 %v4626, %v4626
    %v4643 = vmul.f32 %v4627, %v4627
    %v4644 = vmul.f32 %v4628, %v4628
    %v4645 = vmul.f32 %v4629, %v4629
    %v4646 = vmul.f32 %v4630, %v4630
    %v4647 = vmul.f32 %v4631, %v4631
    %4648 = vadd.xlane.f32.xlu0 %v4632
    %v4649 = vpop.xlane.xlu0 %4648
    %4650 = vadd.xlane.f32.xlu0 %v4633
    %v4651 = vpop.xlane.xlu0 %4650
    %4652 = vadd.xlane.f32.xlu0 %v4634
    %v4653 = vpop.xlane.xlu0 %4652
    %4654 = vadd.xlane.f32.xlu0 %v4635
    %v4655 = vpop.xlane.xlu0 %4654
    %4656 = vadd.xlane.f32.xlu0 %v4636
    %v4657 = vpop.xlane.xlu0 %4656
    %4658 = vadd.xlane.f32.xlu0 %v4637
    %v4659 = vpop.xlane.xlu0 %4658
    %4660 = vadd.xlane.f32.xlu0 %v4638
    %v4661 = vpop.xlane.xlu0 %4660
    %4662 = vadd.xlane.f32.xlu0 %v4639
    %v4663 = vpop.xlane.xlu0 %4662
    %4664 = vadd.xlane.f32.xlu0 %v4640
    %v4665 = vpop.xlane.xlu0 %4664
    %4666 = vadd.xlane.f32.xlu0 %v4641
    %v4667 = vpop.xlane.xlu0 %4666
    %4668 = vadd.xlane.f32.xlu0 %v4642
    %v4669 = vpop.xlane.xlu0 %4668
    %4670 = vadd.xlane.f32.xlu0 %v4643
    %v4671 = vpop.xlane.xlu0 %4670
    %4672 = vadd.xlane.f32.xlu0 %v4644
    %v4673 = vpop.xlane.xlu0 %4672
    %4674 = vadd.xlane.f32.xlu0 %v4645
    %v4675 = vpop.xlane.xlu0 %4674
    %4676 = vadd.xlane.f32.xlu0 %v4646
    %v4677 = vpop.xlane.xlu0 %4676
    %4678 = vadd.xlane.f32.xlu0 %v4647
    %v4679 = vpop.xlane.xlu0 %4678
    %v4680 = vmul.f32 %v4649, %v3360
    %v4681 = vmul.f32 %v4651, %v3360
    %v4682 = vmul.f32 %v4653, %v3360
    %v4683 = vmul.f32 %v4655, %v3360
    %v4684 = vmul.f32 %v4657, %v3360
    %v4685 = vmul.f32 %v4659, %v3360
    %v4686 = vmul.f32 %v4661, %v3360
    %v4687 = vmul.f32 %v4663, %v3360
    %v4688 = vmul.f32 %v4665, %v3360
    %v4689 = vmul.f32 %v4667, %v3360
    %v4690 = vmul.f32 %v4669, %v3360
    %v4691 = vmul.f32 %v4671, %v3360
    %v4692 = vmul.f32 %v4673, %v3360
    %v4693 = vmul.f32 %v4675, %v3360
    %v4694 = vmul.f32 %v4677, %v3360
    %v4695 = vmul.f32 %v4679, %v3360
    %v4696 = vadd.f32 %v4680, 1e-05
    %v4697 = vadd.f32 %v4681, 1e-05
    %v4698 = vadd.f32 %v4682, 1e-05
    %v4699 = vadd.f32 %v4683, 1e-05
    %v4700 = vadd.f32 %v4684, 1e-05
    %v4701 = vadd.f32 %v4685, 1e-05
    %v4702 = vadd.f32 %v4686, 1e-05
    %v4703 = vadd.f32 %v4687, 1e-05
    %v4704 = vadd.f32 %v4688, 1e-05
    %v4705 = vadd.f32 %v4689, 1e-05
    %v4706 = vadd.f32 %v4690, 1e-05
    %v4707 = vadd.f32 %v4691, 1e-05
    %v4708 = vadd.f32 %v4692, 1e-05
    %v4709 = vadd.f32 %v4693, 1e-05
    %v4710 = vadd.f32 %v4694, 1e-05
    %v4711 = vadd.f32 %v4695, 1e-05
    %v4712 = vrsqrt.pop %v4696
    %v4713 = vrsqrt.pop %v4697
    %v4714 = vrsqrt.pop %v4698
    %v4715 = vrsqrt.pop %v4699
    %v4716 = vrsqrt.pop %v4700
    %v4717 = vrsqrt.pop %v4701
    %v4718 = vrsqrt.pop %v4702
    %v4719 = vrsqrt.pop %v4703
    %v4720 = vrsqrt.pop %v4704
    %v4721 = vrsqrt.pop %v4705
    %v4722 = vrsqrt.pop %v4706
    %v4723 = vrsqrt.pop %v4707
    %v4724 = vrsqrt.pop %v4708
    %v4725 = vrsqrt.pop %v4709
    %v4726 = vrsqrt.pop %v4710
    %v4727 = vrsqrt.pop %v4711
    %v4728 = vmul.f32 %v4616, %v4712
    %v4729 = vmul.f32 %v4617, %v4713
    %v4730 = vmul.f32 %v4618, %v4714
    %v4731 = vmul.f32 %v4619, %v4715
    %v4732 = vmul.f32 %v4620, %v4716
    %v4733 = vmul.f32 %v4621, %v4717
    %v4734 = vmul.f32 %v4622, %v4718
    %v4735 = vmul.f32 %v4623, %v4719
    %v4736 = vmul.f32 %v4624, %v4720
    %v4737 = vmul.f32 %v4625, %v4721
    %v4738 = vmul.f32 %v4626, %v4722
    %v4739 = vmul.f32 %v4627, %v4723
    %v4740 = vmul.f32 %v4628, %v4724
    %v4741 = vmul.f32 %v4629, %v4725
    %v4742 = vmul.f32 %v4630, %v4726
    %v4743 = vmul.f32 %v4631, %v4727
    %v4745 = vlaneseq
    %v4746 = vshrl.u32 %v4745, 7
    %v4747 = vsub.s32 0, %v4746
    %v4748 = vrot.slane %v4566, %v4747
    %v4750 = vmul.f32 %v4728, %v4748
    %v4751 = vmul.f32 %v4729, %v4748
    %v4752 = vmul.f32 %v4730, %v4748
    %v4753 = vmul.f32 %v4731, %v4748
    %v4754 = vmul.f32 %v4732, %v4748
    %v4755 = vmul.f32 %v4733, %v4748
    %v4756 = vmul.f32 %v4734, %v4748
    %v4757 = vmul.f32 %v4735, %v4748
    %v4758 = vmul.f32 %v4736, %v4748
    %v4759 = vmul.f32 %v4737, %v4748
    %v4760 = vmul.f32 %v4738, %v4748
    %v4761 = vmul.f32 %v4739, %v4748
    %v4762 = vmul.f32 %v4740, %v4748
    %v4763 = vmul.f32 %v4741, %v4748
    %v4764 = vmul.f32 %v4742, %v4748
    %v4765 = vmul.f32 %v4743, %v4748
    %v4767 = vlaneseq
    %v4768 = vshrl.u32 %v4767, 7
    %v4769 = vsub.s32 0, %v4768
    %v4770 = vrot.slane %v4567, %v4769
    %v4772 = vadd.f32 %v4750, %v4770
    %v4773 = vadd.f32 %v4751, %v4770
    %v4774 = vadd.f32 %v4752, %v4770
    %v4775 = vadd.f32 %v4753, %v4770
    %v4776 = vadd.f32 %v4754, %v4770
    %v4777 = vadd.f32 %v4755, %v4770
    %v4778 = vadd.f32 %v4756, %v4770
    %v4779 = vadd.f32 %v4757, %v4770
    %v4780 = vadd.f32 %v4758, %v4770
    %v4781 = vadd.f32 %v4759, %v4770
    %v4782 = vadd.f32 %v4760, %v4770
    %v4783 = vadd.f32 %v4761, %v4770
    %v4784 = vadd.f32 %v4762, %v4770
    %v4785 = vadd.f32 %v4763, %v4770
    %v4786 = vadd.f32 %v4764, %v4770
    %v4787 = vadd.f32 %v4765, %v4770
    %v4788 = vpack.c.bf16 %v4773, %v4772
    %v4789 = vpack.c.bf16 %v4775, %v4774
    %v4790 = vpack.c.bf16 %v4777, %v4776
    %v4791 = vpack.c.bf16 %v4779, %v4778
    %v4792 = vpack.c.bf16 %v4781, %v4780
    %v4793 = vpack.c.bf16 %v4783, %v4782
    %v4794 = vpack.c.bf16 %v4785, %v4784
    %v4795 = vpack.c.bf16 %v4787, %v4786
    %s4796 = scalar_lea.vmem %s1, 192
    %v4797 = vld [vmem:[%s4796] sm:$0xff]
    %v4798 = vld [vmem:[%s4796 + $0x8] sm:$0xf]
    %v4799 = vld [vmem:[%s4796 + $0xc] sm:$0xff]
    %v4800 = vld [vmem:[%s4796 + $0x14] sm:$0xf]
    %v4801 = vld [vmem:[%s4796 + $0x18] sm:$0xff]
    %v4802 = vld [vmem:[%s4796 + $0x20] sm:$0xf]
    %v4803 = vld [vmem:[%s4796 + $0x24] sm:$0xff]
    %v4804 = vld [vmem:[%s4796 + $0x2c] sm:$0xf]
    %v4805 = vld [vmem:[%s4796 + $0x30] sm:$0xff]
    %v4806 = vld [vmem:[%s4796 + $0x38] sm:$0xf]
    %v4807 = vld [vmem:[%s4796 + $0x3c] sm:$0xff]
    %v4808 = vld [vmem:[%s4796 + $0x44] sm:$0xf]
    %v4809 = vld [vmem:[%s4796 + $0x48] sm:$0xff]
    %v4810 = vld [vmem:[%s4796 + $0x50] sm:$0xf]
    %v4811 = vld [vmem:[%s4796 + $0x54] sm:$0xff]
    %v4812 = vld [vmem:[%s4796 + $0x5c] sm:$0xf]
    %v4813 = vld [vmem:[%s4796 + $0x60] sm:$0xff]
    %v4814 = vld [vmem:[%s4796 + $0x68] sm:$0xf]
    %v4815 = vld [vmem:[%s4796 + $0x6c] sm:$0xff]
    %v4816 = vld [vmem:[%s4796 + $0x74] sm:$0xf]
    %v4817 = vld [vmem:[%s4796 + $0x78] sm:$0xff]
    %v4818 = vld [vmem:[%s4796 + $0x80] sm:$0xf]
    %v4819 = vld [vmem:[%s4796 + $0x84] sm:$0xff]
    %v4820 = vld [vmem:[%s4796 + $0x8c] sm:$0xf]
    %v4821 = vld [vmem:[%s4796 + $0x90] sm:$0xff]
    %v4822 = vld [vmem:[%s4796 + $0x98] sm:$0xf]
    %v4823 = vld [vmem:[%s4796 + $0x9c] sm:$0xff]
    %v4824 = vld [vmem:[%s4796 + $0xa4] sm:$0xf]
    %v4825 = vld [vmem:[%s4796 + $0xa8] sm:$0xff]
    %v4826 = vld [vmem:[%s4796 + $0xb0] sm:$0xf]
    %v4827 = vld [vmem:[%s4796 + $0xb4] sm:$0xff]
    %v4828 = vld [vmem:[%s4796 + $0xbc] sm:$0xf]
    %v4861 = vunpack.c.l.b16 %v4797
    %v4862 = vunpack.c.h.b16 %v4797
    %v4863 = vunpack.c.l.b16 %v4798
    %v4864 = vunpack.c.l.b16 %v4799
    %v4865 = vunpack.c.h.b16 %v4799
    %v4866 = vunpack.c.l.b16 %v4800
    %v4867 = vunpack.c.l.b16 %v4801
    %v4868 = vunpack.c.h.b16 %v4801
    %v4869 = vunpack.c.l.b16 %v4802
    %v4870 = vunpack.c.l.b16 %v4803
    %v4871 = vunpack.c.h.b16 %v4803
    %v4872 = vunpack.c.l.b16 %v4804
    %v4873 = vunpack.c.l.b16 %v4805
    %v4874 = vunpack.c.h.b16 %v4805
    %v4875 = vunpack.c.l.b16 %v4806
    %v4876 = vunpack.c.l.b16 %v4807
    %v4877 = vunpack.c.h.b16 %v4807
    %v4878 = vunpack.c.l.b16 %v4808
    %v4879 = vunpack.c.l.b16 %v4809
    %v4880 = vunpack.c.h.b16 %v4809
    %v4881 = vunpack.c.l.b16 %v4810
    %v4882 = vunpack.c.l.b16 %v4811
    %v4883 = vunpack.c.h.b16 %v4811
    %v4884 = vunpack.c.l.b16 %v4812
    %v4885 = vunpack.c.l.b16 %v4813
    %v4886 = vunpack.c.h.b16 %v4813
    %v4887 = vunpack.c.l.b16 %v4814
    %v4888 = vunpack.c.l.b16 %v4815
    %v4889 = vunpack.c.h.b16 %v4815
    %v4890 = vunpack.c.l.b16 %v4816
    %v4891 = vunpack.c.l.b16 %v4817
    %v4892 = vunpack.c.h.b16 %v4817
    %v4893 = vunpack.c.l.b16 %v4818
    %v4894 = vunpack.c.l.b16 %v4819
    %v4895 = vunpack.c.h.b16 %v4819
    %v4896 = vunpack.c.l.b16 %v4820
    %v4897 = vunpack.c.l.b16 %v4821
    %v4898 = vunpack.c.h.b16 %v4821
    %v4899 = vunpack.c.l.b16 %v4822
    %v4900 = vunpack.c.l.b16 %v4823
    %v4901 = vunpack.c.h.b16 %v4823
    %v4902 = vunpack.c.l.b16 %v4824
    %v4903 = vunpack.c.l.b16 %v4825
    %v4904 = vunpack.c.h.b16 %v4825
    %v4905 = vunpack.c.l.b16 %v4826
    %v4906 = vunpack.c.l.b16 %v4827
    %v4907 = vunpack.c.h.b16 %v4827
    %v4908 = vunpack.c.l.b16 %v4828
    %v4909 = vpack.c.b16 %v4864, %v4861
    %v4910 = vpack.c.b16 %v4865, %v4862
    %v4911 = vpack.c.b16 %v4866, %v4863
    %v4912 = vpack.c.b16 %v4870, %v4867
    %v4913 = vpack.c.b16 %v4871, %v4868
    %v4914 = vpack.c.b16 %v4872, %v4869
    %v4915 = vpack.c.b16 %v4876, %v4873
    %v4916 = vpack.c.b16 %v4877, %v4874
    %v4917 = vpack.c.b16 %v4878, %v4875
    %v4918 = vpack.c.b16 %v4882, %v4879
    %v4919 = vpack.c.b16 %v4883, %v4880
    %v4920 = vpack.c.b16 %v4884, %v4881
    %v4921 = vpack.c.b16 %v4888, %v4885
    %v4922 = vpack.c.b16 %v4889, %v4886
    %v4923 = vpack.c.b16 %v4890, %v4887
    %v4924 = vpack.c.b16 %v4894, %v4891
    %v4925 = vpack.c.b16 %v4895, %v4892
    %v4926 = vpack.c.b16 %v4896, %v4893
    %v4927 = vpack.c.b16 %v4900, %v4897
    %v4928 = vpack.c.b16 %v4901, %v4898
    %v4929 = vpack.c.b16 %v4902, %v4899
    %v4930 = vpack.c.b16 %v4906, %v4903
    %v4931 = vpack.c.b16 %v4907, %v4904
    %v4932 = vpack.c.b16 %v4908, %v4905
    %4957 = vmatprep.subr.bf16.mxu0 %v4910
    %4958 = vmatpush1.bf16.msra.mxu0 %v4909
    %4959 = vmatprep.subr.bf16.mxu0 %v4913
    %4960 = vmatpush1.bf16.msra.mxu0 %v4912
    %4961 = vmatprep.subr.bf16.mxu0 %v4916
    %4962 = vmatpush1.bf16.msra.mxu0 %v4915
    %4963 = vmatprep.subr.bf16.mxu0 %v4919
    %4964 = vmatpush1.bf16.msra.mxu0 %v4918
    %4965 = vmatprep.subr.bf16.mxu0 %v4922
    %4966 = vmatpush1.bf16.msra.mxu0 %v4921
    %4967 = vmatprep.subr.bf16.mxu0 %v4925
    %4968 = vmatpush1.bf16.msra.mxu0 %v4924
    %4969 = vmatprep.subr.bf16.mxu0 %v4928
    %4970 = vmatpush1.bf16.msra.mxu0 %v4927
    %4971 = vmatprep.subr.bf16.mxu0 %v4931
    %4972 = vmatpush1.bf16.msra.mxu0 %v4930
    %4973 = vmatprep.subr.bf16.mxu0 0
    %4974 = vmatpush1.bf16.msra.mxu0 0
    %4975 = vmatprep.subr.bf16.mxu0 0
    %4976 = vmatpush1.bf16.msra.mxu0 0
    %4977 = vmatprep.subr.bf16.mxu0 0
    %4978 = vmatpush1.bf16.msra.mxu0 0
    %4979 = vmatprep.subr.bf16.mxu0 0
    %4980 = vmatpush1.bf16.msra.mxu0 0
    %4981 = vmatprep.subr.bf16.mxu0 0
    %4982 = vmatpush1.bf16.msra.mxu0 0
    %4983 = vmatprep.subr.bf16.mxu0 0
    %4984 = vmatpush1.bf16.msra.mxu0 0
    %4985 = vmatprep.subr.bf16.mxu0 0
    %4986 = vmatpush1.bf16.msra.mxu0 0
    %4987 = vmatprep.subr.bf16.mxu0 0
    %4988 = vmatpush1.bf16.msra.mxu0 0
    %4989 = vmatprep.mubr.bf16.mxu0 0
    %4990 = vmatmul.mubr.bf16.gmra.mrb[0].mxu0 %v4788
    %v4991 = vpop.f32.mrb[0].mxu0
    %v4992 = vadd.f32 0.0, %v4991
    %v4993 = vpop.f32.mrb[0].mxu0
    %v4994 = vadd.f32 0.0, %v4993
    %v4995 = vpop.f32.mrb[0].mxu0
    %v4996 = vadd.f32 0.0, %v4995
    %v4997 = vpop.f32.mrb[0].mxu0
    %v4998 = vadd.f32 0.0, %v4997
    %4999 = vmatprep.mubr.bf16.mxu0 0
    %5000 = vmatmul.mubr.bf16.gmra.mrb[0].mxu0 %v4789
    %v5001 = vpop.f32.mrb[0].mxu0
    %v5002 = vadd.f32 0.0, %v5001
    %v5003 = vpop.f32.mrb[0].mxu0
    %v5004 = vadd.f32 0.0, %v5003
    %v5005 = vpop.f32.mrb[0].mxu0
    %v5006 = vadd.f32 0.0, %v5005
    %v5007 = vpop.f32.mrb[0].mxu0
    %v5008 = vadd.f32 0.0, %v5007
    %5009 = vmatprep.mubr.bf16.mxu0 0
    %5010 = vmatmul.mubr.bf16.gmra.mrb[0].mxu0 %v4790
    %v5011 = vpop.f32.mrb[0].mxu0
    %v5012 = vadd.f32 0.0, %v5011
    %v5013 = vpop.f32.mrb[0].mxu0
    %v5014 = vadd.f32 0.0, %v5013
    %v5015 = vpop.f32.mrb[0].mxu0
    %v5016 = vadd.f32 0.0, %v5015
    %v5017 = vpop.f32.mrb[0].mxu0
    %v5018 = vadd.f32 0.0, %v5017
    %5019 = vmatprep.mubr.bf16.mxu0 0
    %5020 = vmatmul.mubr.bf16.gmra.mrb[0].mxu0 %v4791
    %v5021 = vpop.f32.mrb[0].mxu0
    %v5022 = vadd.f32 0.0, %v5021
    %v5023 = vpop.f32.mrb[0].mxu0
    %v5024 = vadd.f32 0.0, %v5023
    %v5025 = vpop.f32.mrb[0].mxu0
    %v5026 = vadd.f32 0.0, %v5025
    %v5027 = vpop.f32.mrb[0].mxu0
    %v5028 = vadd.f32 0.0, %v5027
    %5029 = vmatprep.mubr.bf16.mxu0 0
    %5030 = vmatmul.mubr.bf16.gmra.mrb[0].mxu0 %v4792
    %v5031 = vpop.f32.mrb[0].mxu0
    %v5032 = vadd.f32 0.0, %v5031
    %v5033 = vpop.f32.mrb[0].mxu0
    %v5034 = vadd.f32 0.0, %v5033
    %v5035 = vpop.f32.mrb[0].mxu0
    %v5036 = vadd.f32 0.0, %v5035
    %v5037 = vpop.f32.mrb[0].mxu0
    %v5038 = vadd.f32 0.0, %v5037
    %5039 = vmatprep.mubr.bf16.mxu0 0
    %5040 = vmatmul.mubr.bf16.gmra.mrb[0].mxu0 %v4793
    %v5041 = vpop.f32.mrb[0].mxu0
    %v5042 = vadd.f32 0.0, %v5041
    %v5043 = vpop.f32.mrb[0].mxu0
    %v5044 = vadd.f32 0.0, %v5043
    %v5045 = vpop.f32.mrb[0].mxu0
    %v5046 = vadd.f32 0.0, %v5045
    %v5047 = vpop.f32.mrb[0].mxu0
    %v5048 = vadd.f32 0.0, %v5047
    %5049 = vmatprep.mubr.bf16.mxu0 0
    %5050 = vmatmul.mubr.bf16.gmra.mrb[0].mxu0 %v4794
    %v5051 = vpop.f32.mrb[0].mxu0
    %v5052 = vadd.f32 0.0, %v5051
    %v5053 = vpop.f32.mrb[0].mxu0
    %v5054 = vadd.f32 0.0, %v5053
    %v5055 = vpop.f32.mrb[0].mxu0
    %v5056 = vadd.f32 0.0, %v5055
    %v5057 = vpop.f32.mrb[0].mxu0
    %v5058 = vadd.f32 0.0, %v5057
    %5059 = vmatprep.mubr.bf16.mxu0 0
    %5060 = vmatmul.mubr.bf16.gmra.mrb[0].mxu0 %v4795
    %v5061 = vpop.f32.mrb[0].mxu0
    %v5062 = vadd.f32 0.0, %v5061
    %v5063 = vpop.f32.mrb[0].mxu0
    %v5064 = vadd.f32 0.0, %v5063
    %v5065 = vpop.f32.mrb[0].mxu0
    %v5066 = vadd.f32 0.0, %v5065
    %v5067 = vpop.f32.mrb[0].mxu0
    %v5068 = vadd.f32 0.0, %v5067
    %5069 = vdwg.mxu0
    %5070 = vmatprep.subr.bf16.mxu0 0
    %5071 = vmatpush1.bf16.msra.mxu0 %v4911
    %5072 = vmatprep.subr.bf16.mxu0 0
    %5073 = vmatpush1.bf16.msra.mxu0 %v4914
    %5074 = vmatprep.subr.bf16.mxu0 0
    %5075 = vmatpush1.bf16.msra.mxu0 %v4917
    %5076 = vmatprep.subr.bf16.mxu0 0
    %5077 = vmatpush1.bf16.msra.mxu0 %v4920
    %5078 = vmatprep.subr.bf16.mxu0 0
    %5079 = vmatpush1.bf16.msra.mxu0 %v4923
    %5080 = vmatprep.subr.bf16.mxu0 0
    %5081 = vmatpush1.bf16.msra.mxu0 %v4926
    %5082 = vmatprep.subr.bf16.mxu0 0
    %5083 = vmatpush1.bf16.msra.mxu0 %v4929
    %5084 = vmatprep.subr.bf16.mxu0 0
    %5085 = vmatpush1.bf16.msra.mxu0 %v4932
    %5086 = vmatprep.subr.bf16.mxu0 0
    %5087 = vmatpush1.bf16.msra.mxu0 0
    %5088 = vmatprep.subr.bf16.mxu0 0
    %5089 = vmatpush1.bf16.msra.mxu0 0
    %5090 = vmatprep.subr.bf16.mxu0 0
    %5091 = vmatpush1.bf16.msra.mxu0 0
    %5092 = vmatprep.subr.bf16.mxu0 0
    %5093 = vmatpush1.bf16.msra.mxu0 0
    %5094 = vmatprep.subr.bf16.mxu0 0
    %5095 = vmatpush1.bf16.msra.mxu0 0
    %5096 = vmatprep.subr.bf16.mxu0 0
    %5097 = vmatpush1.bf16.msra.mxu0 0
    %5098 = vmatprep.subr.bf16.mxu0 0
    %5099 = vmatpush1.bf16.msra.mxu0 0
    %5100 = vmatprep.subr.bf16.mxu0 0
    %5101 = vmatpush1.bf16.msra.mxu0 0
    %5102 = vmatprep.mubr.bf16.mxu0 0
    %5103 = vmatmul.mubr.bf16.gmra.mrb[0].mxu0 %v4788
    %v5104 = vpop.f32.mrb[0].mxu0
    %v5105 = vadd.f32 0.0, %v5104
    %v5106 = vpop.f32.mrb[0].mxu0
    %v5107 = vpop.f32.mrb[0].mxu0
    %v5108 = vadd.f32 0.0, %v5107
    %v5109 = vpop.f32.mrb[0].mxu0
    %5110 = vmatprep.mubr.bf16.mxu0 0
    %5111 = vmatmul.mubr.bf16.gmra.mrb[0].mxu0 %v4789
    %v5112 = vpop.f32.mrb[0].mxu0
    %v5113 = vadd.f32 0.0, %v5112
    %v5114 = vpop.f32.mrb[0].mxu0
    %v5115 = vpop.f32.mrb[0].mxu0
    %v5116 = vadd.f32 0.0, %v5115
    %v5117 = vpop.f32.mrb[0].mxu0
    %5118 = vmatprep.mubr.bf16.mxu0 0
    %5119 = vmatmul.mubr.bf16.gmra.mrb[0].mxu0 %v4790
    %v5120 = vpop.f32.mrb[0].mxu0
    %v5121 = vadd.f32 0.0, %v5120
    %v5122 = vpop.f32.mrb[0].mxu0
    %v5123 = vpop.f32.mrb[0].mxu0
    %v5124 = vadd.f32 0.0, %v5123
    %v5125 = vpop.f32.mrb[0].mxu0
    %5126 = vmatprep.mubr.bf16.mxu0 0
    %5127 = vmatmul.mubr.bf16.gmra.mrb[0].mxu0 %v4791
    %v5128 = vpop.f32.mrb[0].mxu0
    %v5129 = vadd.f32 0.0, %v5128
    %v5130 = vpop.f32.mrb[0].mxu0
    %v5131 = vpop.f32.mrb[0].mxu0
    %v5132 = vadd.f32 0.0, %v5131
    %v5133 = vpop.f32.mrb[0].mxu0
    %5134 = vmatprep.mubr.bf16.mxu0 0
    %5135 = vmatmul.mubr.bf16.gmra.mrb[0].mxu0 %v4792
    %v5136 = vpop.f32.mrb[0].mxu0
    %v5137 = vadd.f32 0.0, %v5136
    %v5138 = vpop.f32.mrb[0].mxu0
    %v5139 = vpop.f32.mrb[0].mxu0
    %v5140 = vadd.f32 0.0, %v5139
    %v5141 = vpop.f32.mrb[0].mxu0
    %5142 = vmatprep.mubr.bf16.mxu0 0
    %5143 = vmatmul.mubr.bf16.gmra.mrb[0].mxu0 %v4793
    %v5144 = vpop.f32.mrb[0].mxu0
    %v5145 = vadd.f32 0.0, %v5144
    %v5146 = vpop.f32.mrb[0].mxu0
    %v5147 = vpop.f32.mrb[0].mxu0
    %v5148 = vadd.f32 0.0, %v5147
    %v5149 = vpop.f32.mrb[0].mxu0
    %5150 = vmatprep.mubr.bf16.mxu0 0
    %5151 = vmatmul.mubr.bf16.gmra.mrb[0].mxu0 %v4794
    %v5152 = vpop.f32.mrb[0].mxu0
    %v5153 = vadd.f32 0.0, %v5152
    %v5154 = vpop.f32.mrb[0].mxu0
    %v5155 = vpop.f32.mrb[0].mxu0
    %v5156 = vadd.f32 0.0, %v5155
    %v5157 = vpop.f32.mrb[0].mxu0
    %5158 = vmatprep.mubr.bf16.mxu0 0
    %5159 = vmatmul.mubr.bf16.gmra.mrb[0].mxu0 %v4795
    %v5160 = vpop.f32.mrb[0].mxu0
    %v5161 = vadd.f32 0.0, %v5160
    %v5162 = vpop.f32.mrb[0].mxu0
    %v5163 = vpop.f32.mrb[0].mxu0
    %v5164 = vadd.f32 0.0, %v5163
    %v5165 = vpop.f32.mrb[0].mxu0
    %5166 = vdwg.mxu0
    %v5167 = vpack.c.bf16 %v4996, %v4992
    %v5168 = vpack.c.bf16 %v4998, %v4994
    %v5169 = vpack.c.bf16 %v5108, %v5105
    %v5170 = vpack.c.bf16 %v5006, %v5002
    %v5171 = vpack.c.bf16 %v5008, %v5004
    %v5172 = vpack.c.bf16 %v5116, %v5113
    %v5173 = vpack.c.bf16 %v5016, %v5012
    %v5174 = vpack.c.bf16 %v5018, %v5014
    %v5175 = vpack.c.bf16 %v5124, %v5121
    %v5176 = vpack.c.bf16 %v5026, %v5022
    %v5177 = vpack.c.bf16 %v5028, %v5024
    %v5178 = vpack.c.bf16 %v5132, %v5129
    %v5179 = vpack.c.bf16 %v5036, %v5032
    %v5180 = vpack.c.bf16 %v5038, %v5034
    %v5181 = vpack.c.bf16 %v5140, %v5137
    %v5182 = vpack.c.bf16 %v5046, %v5042
    %v5183 = vpack.c.bf16 %v5048, %v5044
    %v5184 = vpack.c.bf16 %v5148, %v5145
    %v5185 = vpack.c.bf16 %v5056, %v5052
    %v5186 = vpack.c.bf16 %v5058, %v5054
    %v5187 = vpack.c.bf16 %v5156, %v5153
    %v5188 = vpack.c.bf16 %v5066, %v5062
    %v5189 = vpack.c.bf16 %v5068, %v5064
    %v5190 = vpack.c.bf16 %v5164, %v5161
    %5199 = vrot.lane.b32.xlu0 %v5167, 96
    %v5200 = vpop.permute.xlu0 %5199
    %5201 = vrot.lane.b32.xlu0 %v5170, 96
    %v5202 = vpop.permute.xlu0 %5201
    %5203 = vrot.lane.b32.xlu0 %v5173, 96
    %v5204 = vpop.permute.xlu0 %5203
    %5205 = vrot.lane.b32.xlu0 %v5176, 96
    %v5206 = vpop.permute.xlu0 %5205
    %5207 = vrot.lane.b32.xlu0 %v5179, 96
    %v5208 = vpop.permute.xlu0 %5207
    %5209 = vrot.lane.b32.xlu0 %v5182, 96
    %v5210 = vpop.permute.xlu0 %5209
    %5211 = vrot.lane.b32.xlu0 %v5185, 96
    %v5212 = vpop.permute.xlu0 %5211
    %5213 = vrot.lane.b32.xlu0 %v5188, 96
    %v5214 = vpop.permute.xlu0 %5213
    %5215 = vrot.lane.b32.xlu0 %v5167, 64
    %v5216 = vpop.permute.xlu0 %5215
    %5217 = vrot.lane.b32.xlu0 %v5170, 64
    %v5218 = vpop.permute.xlu0 %5217
    %5219 = vrot.lane.b32.xlu0 %v5173, 64
    %v5220 = vpop.permute.xlu0 %5219
    %5221 = vrot.lane.b32.xlu0 %v5176, 64
    %v5222 = vpop.permute.xlu0 %5221
    %5223 = vrot.lane.b32.xlu0 %v5179, 64
    %v5224 = vpop.permute.xlu0 %5223
    %5225 = vrot.lane.b32.xlu0 %v5182, 64
    %v5226 = vpop.permute.xlu0 %5225
    %5227 = vrot.lane.b32.xlu0 %v5185, 64
    %v5228 = vpop.permute.xlu0 %5227
    %5229 = vrot.lane.b32.xlu0 %v5188, 64
    %v5230 = vpop.permute.xlu0 %5229
    %5231 = vrot.lane.b32.xlu0 %v5167, 32
    %v5232 = vpop.permute.xlu0 %5231
    %5233 = vrot.lane.b32.xlu0 %v5170, 32
    %v5234 = vpop.permute.xlu0 %5233
    %5235 = vrot.lane.b32.xlu0 %v5173, 32
    %v5236 = vpop.permute.xlu0 %5235
    %5237 = vrot.lane.b32.xlu0 %v5176, 32
    %v5238 = vpop.permute.xlu0 %5237
    %5239 = vrot.lane.b32.xlu0 %v5179, 32
    %v5240 = vpop.permute.xlu0 %5239
    %5241 = vrot.lane.b32.xlu0 %v5182, 32
    %v5242 = vpop.permute.xlu0 %5241
    %5243 = vrot.lane.b32.xlu0 %v5185, 32
    %v5244 = vpop.permute.xlu0 %5243
    %5245 = vrot.lane.b32.xlu0 %v5188, 32
    %v5246 = vpop.permute.xlu0 %5245
    %5255 = vrot.lane.b32.xlu0 %v5168, 96
    %v5256 = vpop.permute.xlu0 %5255
    %5257 = vrot.lane.b32.xlu0 %v5171, 96
    %v5258 = vpop.permute.xlu0 %5257
    %5259 = vrot.lane.b32.xlu0 %v5174, 96
    %v5260 = vpop.permute.xlu0 %5259
    %5261 = vrot.lane.b32.xlu0 %v5177, 96
    %v5262 = vpop.permute.xlu0 %5261
    %5263 = vrot.lane.b32.xlu0 %v5180, 96
    %v5264 = vpop.permute.xlu0 %5263
    %5265 = vrot.lane.b32.xlu0 %v5183, 96
    %v5266 = vpop.permute.xlu0 %5265
    %5267 = vrot.lane.b32.xlu0 %v5186, 96
    %v5268 = vpop.permute.xlu0 %5267
    %5269 = vrot.lane.b32.xlu0 %v5189, 96
    %v5270 = vpop.permute.xlu0 %5269
    %5271 = vrot.lane.b32.xlu0 %v5168, 64
    %v5272 = vpop.permute.xlu0 %5271
    %5273 = vrot.lane.b32.xlu0 %v5171, 64
    %v5274 = vpop.permute.xlu0 %5273
    %5275 = vrot.lane.b32.xlu0 %v5174, 64
    %v5276 = vpop.permute.xlu0 %5275
    %5277 = vrot.lane.b32.xlu0 %v5177, 64
    %v5278 = vpop.permute.xlu0 %5277
    %5279 = vrot.lane.b32.xlu0 %v5180, 64
    %v5280 = vpop.permute.xlu0 %5279
    %5281 = vrot.lane.b32.xlu0 %v5183, 64
    %v5282 = vpop.permute.xlu0 %5281
    %5283 = vrot.lane.b32.xlu0 %v5186, 64
    %v5284 = vpop.permute.xlu0 %5283
    %5285 = vrot.lane.b32.xlu0 %v5189, 64
    %v5286 = vpop.permute.xlu0 %5285
    %5287 = vrot.lane.b32.xlu0 %v5168, 32
    %v5288 = vpop.permute.xlu0 %5287
    %5289 = vrot.lane.b32.xlu0 %v5171, 32
    %v5290 = vpop.permute.xlu0 %5289
    %5291 = vrot.lane.b32.xlu0 %v5174, 32
    %v5292 = vpop.permute.xlu0 %5291
    %5293 = vrot.lane.b32.xlu0 %v5177, 32
    %v5294 = vpop.permute.xlu0 %5293
    %5295 = vrot.lane.b32.xlu0 %v5180, 32
    %v5296 = vpop.permute.xlu0 %5295
    %5297 = vrot.lane.b32.xlu0 %v5183, 32
    %v5298 = vpop.permute.xlu0 %5297
    %5299 = vrot.lane.b32.xlu0 %v5186, 32
    %v5300 = vpop.permute.xlu0 %5299
    %5301 = vrot.lane.b32.xlu0 %v5189, 32
    %v5302 = vpop.permute.xlu0 %5301
    %5311 = vrot.lane.b32.xlu0 %v5169, 96
    %v5312 = vpop.permute.xlu0 %5311
    %5313 = vrot.lane.b32.xlu0 %v5172, 96
    %v5314 = vpop.permute.xlu0 %5313
    %5315 = vrot.lane.b32.xlu0 %v5175, 96
    %v5316 = vpop.permute.xlu0 %5315
    %5317 = vrot.lane.b32.xlu0 %v5178, 96
    %v5318 = vpop.permute.xlu0 %5317
    %5319 = vrot.lane.b32.xlu0 %v5181, 96
    %v5320 = vpop.permute.xlu0 %5319
    %5321 = vrot.lane.b32.xlu0 %v5184, 96
    %v5322 = vpop.permute.xlu0 %5321
    %5323 = vrot.lane.b32.xlu0 %v5187, 96
    %v5324 = vpop.permute.xlu0 %5323
    %5325 = vrot.lane.b32.xlu0 %v5190, 96
    %v5326 = vpop.permute.xlu0 %5325
    %5335 = vrot.lane.b32.xlu0 %v5169, 64
    %v5336 = vpop.permute.xlu0 %5335
    %5337 = vrot.lane.b32.xlu0 %v5172, 64
    %v5338 = vpop.permute.xlu0 %5337
    %5339 = vrot.lane.b32.xlu0 %v5175, 64
    %v5340 = vpop.permute.xlu0 %5339
    %5341 = vrot.lane.b32.xlu0 %v5178, 64
    %v5342 = vpop.permute.xlu0 %5341
    %5343 = vrot.lane.b32.xlu0 %v5181, 64
    %v5344 = vpop.permute.xlu0 %5343
    %5345 = vrot.lane.b32.xlu0 %v5184, 64
    %v5346 = vpop.permute.xlu0 %5345
    %5347 = vrot.lane.b32.xlu0 %v5187, 64
    %v5348 = vpop.permute.xlu0 %5347
    %5349 = vrot.lane.b32.xlu0 %v5190, 64
    %v5350 = vpop.permute.xlu0 %5349
    %5359 = vrot.lane.b32.xlu0 %v5169, 32
    %v5360 = vpop.permute.xlu0 %5359
    %5361 = vrot.lane.b32.xlu0 %v5172, 32
    %v5362 = vpop.permute.xlu0 %5361
    %5363 = vrot.lane.b32.xlu0 %v5175, 32
    %v5364 = vpop.permute.xlu0 %5363
    %5365 = vrot.lane.b32.xlu0 %v5178, 32
    %v5366 = vpop.permute.xlu0 %5365
    %5367 = vrot.lane.b32.xlu0 %v5181, 32
    %v5368 = vpop.permute.xlu0 %5367
    %5369 = vrot.lane.b32.xlu0 %v5184, 32
    %v5370 = vpop.permute.xlu0 %5369
    %5371 = vrot.lane.b32.xlu0 %v5187, 32
    %v5372 = vpop.permute.xlu0 %5371
    %5373 = vrot.lane.b32.xlu0 %v5190, 32
    %v5374 = vpop.permute.xlu0 %5373
    %v5384 = vsel %vm827, %v5167, 0
    %v5387 = vsel %vm827, %v5170, 0
    %v5390 = vsel %vm827, %v5173, 0
    %v5393 = vsel %vm827, %v5176, 0
    %v5396 = vsel %vm827, %v5168, 0
    %v5399 = vsel %vm827, %v5171, 0
    %v5402 = vsel %vm827, %v5174, 0
    %v5405 = vsel %vm827, %v5177, 0
    %5407 = vmatprep.subr.bf16.mxu0 0
    %5408 = vmatpush1.bf16.xpose.msra.mxu0 %v5396
    %5409 = vmatprep.subr.bf16.mxu0 0
    %5410 = vmatpush1.bf16.xpose.msra.mxu0 %v5399
    %5411 = vmatprep.subr.bf16.mxu0 0
    %5412 = vmatpush1.bf16.xpose.msra.mxu0 %v5402
    %5413 = vmatprep.subr.bf16.mxu0 0
    %5414 = vmatpush1.bf16.xpose.msra.mxu0 %v5405
    %5415 = vmatprep.subr.bf16.mxu0 0
    %5416 = vmatpush1.bf16.xpose.msra.mxu0 0
    %5417 = vmatprep.subr.bf16.mxu0 0
    %5418 = vmatpush1.bf16.xpose.msra.mxu0 0
    %5419 = vmatprep.subr.bf16.mxu0 0
    %5420 = vmatpush1.bf16.xpose.msra.mxu0 0
    %5421 = vmatprep.subr.bf16.mxu0 0
    %5422 = vmatpush1.bf16.xpose.msra.mxu0 0
    %5423 = vmatprep.subr.bf16.mxu0 0
    %5424 = vmatpush1.bf16.xpose.msra.mxu0 0
    %5425 = vmatprep.subr.bf16.mxu0 0
    %5426 = vmatpush1.bf16.xpose.msra.mxu0 0
    %5427 = vmatprep.subr.bf16.mxu0 0
    %5428 = vmatpush1.bf16.xpose.msra.mxu0 0
    %5429 = vmatprep.subr.bf16.mxu0 0
    %5430 = vmatpush1.bf16.xpose.msra.mxu0 0
    %5431 = vmatprep.subr.bf16.mxu0 0
    %5432 = vmatpush1.bf16.xpose.msra.mxu0 0
    %5433 = vmatprep.subr.bf16.mxu0 0
    %5434 = vmatpush1.bf16.xpose.msra.mxu0 0
    %5435 = vmatprep.subr.bf16.mxu0 0
    %5436 = vmatpush1.bf16.xpose.msra.mxu0 0
    %5437 = vmatprep.subr.bf16.mxu0 0
    %5438 = vmatpush1.bf16.xpose.msra.mxu0 0
    %5439 = vmatprep.mubr.bf16.mxu0 0
    %5440 = vmatmul.mubr.bf16.gmra.mrb[0].mxu0 %v5384
    %v5441 = vpop.f32.mrb[0].mxu0
    %v5442 = vadd.f32 0.0, %v5441
    %v5443 = vpop.f32.mrb[0].mxu0
    %v5444 = vpop.f32.mrb[0].mxu0
    %v5445 = vadd.f32 0.0, %v5444
    %v5446 = vpop.f32.mrb[0].mxu0
    %5447 = vmatprep.mubr.bf16.mxu0 0
    %5448 = vmatmul.mubr.bf16.gmra.mrb[0].mxu0 %v5387
    %v5449 = vpop.f32.mrb[0].mxu0
    %v5450 = vadd.f32 0.0, %v5449
    %v5451 = vpop.f32.mrb[0].mxu0
    %v5452 = vpop.f32.mrb[0].mxu0
    %v5453 = vadd.f32 0.0, %v5452
    %v5454 = vpop.f32.mrb[0].mxu0
    %5455 = vmatprep.mubr.bf16.mxu0 0
    %5456 = vmatmul.mubr.bf16.gmra.mrb[0].mxu0 %v5390
    %v5457 = vpop.f32.mrb[0].mxu0
    %v5458 = vadd.f32 0.0, %v5457
    %v5459 = vpop.f32.mrb[0].mxu0
    %v5460 = vpop.f32.mrb[0].mxu0
    %v5461 = vadd.f32 0.0, %v5460
    %v5462 = vpop.f32.mrb[0].mxu0
    %5463 = vmatprep.mubr.bf16.mxu0 0
    %5464 = vmatmul.mubr.bf16.gmra.mrb[0].mxu0 %v5393
    %v5465 = vpop.f32.mrb[0].mxu0
    %v5466 = vadd.f32 0.0, %v5465
    %v5467 = vpop.f32.mrb[0].mxu0
    %v5468 = vpop.f32.mrb[0].mxu0
    %v5469 = vadd.f32 0.0, %v5468
    %v5470 = vpop.f32.mrb[0].mxu0
    %5471 = vdwg.mxu0
    %v5473 = vsel %vm827, %v5179, 0
    %v5476 = vsel %vm827, %v5182, 0
    %v5479 = vsel %vm827, %v5185, 0
    %v5482 = vsel %vm827, %v5188, 0
    %v5485 = vsel %vm827, %v5180, 0
    %v5488 = vsel %vm827, %v5183, 0
    %v5491 = vsel %vm827, %v5186, 0
    %v5494 = vsel %vm827, %v5189, 0
    %5496 = vmatprep.subr.bf16.mxu0 0
    %5497 = vmatpush1.bf16.xpose.msra.mxu0 %v5485
    %5498 = vmatprep.subr.bf16.mxu0 0
    %5499 = vmatpush1.bf16.xpose.msra.mxu0 %v5488
    %5500 = vmatprep.subr.bf16.mxu0 0
    %5501 = vmatpush1.bf16.xpose.msra.mxu0 %v5491
    %5502 = vmatprep.subr.bf16.mxu0 0
    %5503 = vmatpush1.bf16.xpose.msra.mxu0 %v5494
    %5504 = vmatprep.subr.bf16.mxu0 0
    %5505 = vmatpush1.bf16.xpose.msra.mxu0 0
    %5506 = vmatprep.subr.bf16.mxu0 0
    %5507 = vmatpush1.bf16.xpose.msra.mxu0 0
    %5508 = vmatprep.subr.bf16.mxu0 0
    %5509 = vmatpush1.bf16.xpose.msra.mxu0 0
    %5510 = vmatprep.subr.bf16.mxu0 0
    %5511 = vmatpush1.bf16.xpose.msra.mxu0 0
    %5512 = vmatprep.subr.bf16.mxu0 0
    %5513 = vmatpush1.bf16.xpose.msra.mxu0 0
    %5514 = vmatprep.subr.bf16.mxu0 0
    %5515 = vmatpush1.bf16.xpose.msra.mxu0 0
    %5516 = vmatprep.subr.bf16.mxu0 0
    %5517 = vmatpush1.bf16.xpose.msra.mxu0 0
    %5518 = vmatprep.subr.bf16.mxu0 0
    %5519 = vmatpush1.bf16.xpose.msra.mxu0 0
    %5520 = vmatprep.subr.bf16.mxu0 0
    %5521 = vmatpush1.bf16.xpose.msra.mxu0 0
    %5522 = vmatprep.subr.bf16.mxu0 0
    %5523 = vmatpush1.bf16.xpose.msra.mxu0 0
    %5524 = vmatprep.subr.bf16.mxu0 0
    %5525 = vmatpush1.bf16.xpose.msra.mxu0 0
    %5526 = vmatprep.subr.bf16.mxu0 0
    %5527 = vmatpush1.bf16.xpose.msra.mxu0 0
    %5528 = vmatprep.mubr.bf16.mxu0 0
    %5529 = vmatmul.mubr.bf16.gmra.mrb[0].mxu0 %v5473
    %v5530 = vpop.f32.mrb[0].mxu0
    %v5531 = vadd.f32 0.0, %v5530
    %v5532 = vpop.f32.mrb[0].mxu0
    %v5533 = vpop.f32.mrb[0].mxu0
    %v5534 = vadd.f32 0.0, %v5533
    %v5535 = vpop.f32.mrb[0].mxu0
    %5536 = vmatprep.mubr.bf16.mxu0 0
    %5537 = vmatmul.mubr.bf16.gmra.mrb[0].mxu0 %v5476
    %v5538 = vpop.f32.mrb[0].mxu0
    %v5539 = vadd.f32 0.0, %v5538
    %v5540 = vpop.f32.mrb[0].mxu0
    %v5541 = vpop.f32.mrb[0].mxu0
    %v5542 = vadd.f32 0.0, %v5541
    %v5543 = vpop.f32.mrb[0].mxu0
    %5544 = vmatprep.mubr.bf16.mxu0 0
    %5545 = vmatmul.mubr.bf16.gmra.mrb[0].mxu0 %v5479
    %v5546 = vpop.f32.mrb[0].mxu0
    %v5547 = vadd.f32 0.0, %v5546
    %v5548 = vpop.f32.mrb[0].mxu0
    %v5549 = vpop.f32.mrb[0].mxu0
    %v5550 = vadd.f32 0.0, %v5549
    %v5551 = vpop.f32.mrb[0].mxu0
    %5552 = vmatprep.mubr.bf16.mxu0 0
    %5553 = vmatmul.mubr.bf16.gmra.mrb[0].mxu0 %v5482
    %v5554 = vpop.f32.mrb[0].mxu0
    %v5555 = vadd.f32 0.0, %v5554
    %v5556 = vpop.f32.mrb[0].mxu0
    %v5557 = vpop.f32.mrb[0].mxu0
    %v5558 = vadd.f32 0.0, %v5557
    %v5559 = vpop.f32.mrb[0].mxu0
    %5560 = vdwg.mxu0
    %v5562 = vsel %vm827, %v5200, 0
    %v5565 = vsel %vm827, %v5202, 0
    %v5568 = vsel %vm827, %v5204, 0
    %v5571 = vsel %vm827, %v5206, 0
    %v5574 = vsel %vm827, %v5256, 0
    %v5577 = vsel %vm827, %v5258, 0
    %v5580 = vsel %vm827, %v5260, 0
    %v5583 = vsel %vm827, %v5262, 0
    %5585 = vmatprep.subr.bf16.mxu0 0
    %5586 = vmatpush1.bf16.xpose.msra.mxu0 %v5574
    %5587 = vmatprep.subr.bf16.mxu0 0
    %5588 = vmatpush1.bf16.xpose.msra.mxu0 %v5577
    %5589 = vmatprep.subr.bf16.mxu0 0
    %5590 = vmatpush1.bf16.xpose.msra.mxu0 %v5580
    %5591 = vmatprep.subr.bf16.mxu0 0
    %5592 = vmatpush1.bf16.xpose.msra.mxu0 %v5583
    %5593 = vmatprep.subr.bf16.mxu0 0
    %5594 = vmatpush1.bf16.xpose.msra.mxu0 0
    %5595 = vmatprep.subr.bf16.mxu0 0
    %5596 = vmatpush1.bf16.xpose.msra.mxu0 0
    %5597 = vmatprep.subr.bf16.mxu0 0
    %5598 = vmatpush1.bf16.xpose.msra.mxu0 0
    %5599 = vmatprep.subr.bf16.mxu0 0
    %5600 = vmatpush1.bf16.xpose.msra.mxu0 0
    %5601 = vmatprep.subr.bf16.mxu0 0
    %5602 = vmatpush1.bf16.xpose.msra.mxu0 0
    %5603 = vmatprep.subr.bf16.mxu0 0
    %5604 = vmatpush1.bf16.xpose.msra.mxu0 0
    %5605 = vmatprep.subr.bf16.mxu0 0
    %5606 = vmatpush1.bf16.xpose.msra.mxu0 0
    %5607 = vmatprep.subr.bf16.mxu0 0
    %5608 = vmatpush1.bf16.xpose.msra.mxu0 0
    %5609 = vmatprep.subr.bf16.mxu0 0
    %5610 = vmatpush1.bf16.xpose.msra.mxu0 0
    %5611 = vmatprep.subr.bf16.mxu0 0
    %5612 = vmatpush1.bf16.xpose.msra.mxu0 0
    %5613 = vmatprep.subr.bf16.mxu0 0
    %5614 = vmatpush1.bf16.xpose.msra.mxu0 0
    %5615 = vmatprep.subr.bf16.mxu0 0
    %5616 = vmatpush1.bf16.xpose.msra.mxu0 0
    %5617 = vmatprep.mubr.bf16.mxu0 0
    %5618 = vmatmul.mubr.bf16.gmra.mrb[0].mxu0 %v5562
    %v5619 = vpop.f32.mrb[0].mxu0
    %v5620 = vadd.f32 0.0, %v5619
    %v5621 = vpop.f32.mrb[0].mxu0
    %v5622 = vpop.f32.mrb[0].mxu0
    %v5623 = vadd.f32 0.0, %v5622
    %v5624 = vpop.f32.mrb[0].mxu0
    %5625 = vmatprep.mubr.bf16.mxu0 0
    %5626 = vmatmul.mubr.bf16.gmra.mrb[0].mxu0 %v5565
    %v5627 = vpop.f32.mrb[0].mxu0
    %v5628 = vadd.f32 0.0, %v5627
    %v5629 = vpop.f32.mrb[0].mxu0
    %v5630 = vpop.f32.mrb[0].mxu0
    %v5631 = vadd.f32 0.0, %v5630
    %v5632 = vpop.f32.mrb[0].mxu0
    %5633 = vmatprep.mubr.bf16.mxu0 0
    %5634 = vmatmul.mubr.bf16.gmra.mrb[0].mxu0 %v5568
    %v5635 = vpop.f32.mrb[0].mxu0
    %v5636 = vadd.f32 0.0, %v5635
    %v5637 = vpop.f32.mrb[0].mxu0
    %v5638 = vpop.f32.mrb[0].mxu0
    %v5639 = vadd.f32 0.0, %v5638
    %v5640 = vpop.f32.mrb[0].mxu0
    %5641 = vmatprep.mubr.bf16.mxu0 0
    %5642 = vmatmul.mubr.bf16.gmra.mrb[0].mxu0 %v5571
    %v5643 = vpop.f32.mrb[0].mxu0
    %v5644 = vadd.f32 0.0, %v5643
    %v5645 = vpop.f32.mrb[0].mxu0
    %v5646 = vpop.f32.mrb[0].mxu0
    %v5647 = vadd.f32 0.0, %v5646
    %v5648 = vpop.f32.mrb[0].mxu0
    %5649 = vdwg.mxu0
    %v5651 = vsel %vm827, %v5208, 0
    %v5654 = vsel %vm827, %v5210, 0
    %v5657 = vsel %vm827, %v5212, 0
    %v5660 = vsel %vm827, %v5214, 0
    %v5663 = vsel %vm827, %v5264, 0
    %v5666 = vsel %vm827, %v5266, 0
    %v5669 = vsel %vm827, %v5268, 0
    %v5672 = vsel %vm827, %v5270, 0
    %5674 = vmatprep.subr.bf16.mxu0 0
    %5675 = vmatpush1.bf16.xpose.msra.mxu0 %v5663
    %5676 = vmatprep.subr.bf16.mxu0 0
    %5677 = vmatpush1.bf16.xpose.msra.mxu0 %v5666
    %5678 = vmatprep.subr.bf16.mxu0 0
    %5679 = vmatpush1.bf16.xpose.msra.mxu0 %v5669
    %5680 = vmatprep.subr.bf16.mxu0 0
    %5681 = vmatpush1.bf16.xpose.msra.mxu0 %v5672
    %5682 = vmatprep.subr.bf16.mxu0 0
    %5683 = vmatpush1.bf16.xpose.msra.mxu0 0
    %5684 = vmatprep.subr.bf16.mxu0 0
    %5685 = vmatpush1.bf16.xpose.msra.mxu0 0
    %5686 = vmatprep.subr.bf16.mxu0 0
    %5687 = vmatpush1.bf16.xpose.msra.mxu0 0
    %5688 = vmatprep.subr.bf16.mxu0 0
    %5689 = vmatpush1.bf16.xpose.msra.mxu0 0
    %5690 = vmatprep.subr.bf16.mxu0 0
    %5691 = vmatpush1.bf16.xpose.msra.mxu0 0
    %5692 = vmatprep.subr.bf16.mxu0 0
    %5693 = vmatpush1.bf16.xpose.msra.mxu0 0
    %5694 = vmatprep.subr.bf16.mxu0 0
    %5695 = vmatpush1.bf16.xpose.msra.mxu0 0
    %5696 = vmatprep.subr.bf16.mxu0 0
    %5697 = vmatpush1.bf16.xpose.msra.mxu0 0
    %5698 = vmatprep.subr.bf16.mxu0 0
    %5699 = vmatpush1.bf16.xpose.msra.mxu0 0
    %5700 = vmatprep.subr.bf16.mxu0 0
    %5701 = vmatpush1.bf16.xpose.msra.mxu0 0
    %5702 = vmatprep.subr.bf16.mxu0 0
    %5703 = vmatpush1.bf16.xpose.msra.mxu0 0
    %5704 = vmatprep.subr.bf16.mxu0 0
    %5705 = vmatpush1.bf16.xpose.msra.mxu0 0
    %5706 = vmatprep.mubr.bf16.mxu0 0
    %5707 = vmatmul.mubr.bf16.gmra.mrb[0].mxu0 %v5651
    %v5708 = vpop.f32.mrb[0].mxu0
    %v5709 = vadd.f32 0.0, %v5708
    %v5710 = vpop.f32.mrb[0].mxu0
    %v5711 = vpop.f32.mrb[0].mxu0
    %v5712 = vadd.f32 0.0, %v5711
    %v5713 = vpop.f32.mrb[0].mxu0
    %5714 = vmatprep.mubr.bf16.mxu0 0
    %5715 = vmatmul.mubr.bf16.gmra.mrb[0].mxu0 %v5654
    %v5716 = vpop.f32.mrb[0].mxu0
    %v5717 = vadd.f32 0.0, %v5716
    %v5718 = vpop.f32.mrb[0].mxu0
    %v5719 = vpop.f32.mrb[0].mxu0
    %v5720 = vadd.f32 0.0, %v5719
    %v5721 = vpop.f32.mrb[0].mxu0
    %5722 = vmatprep.mubr.bf16.mxu0 0
    %5723 = vmatmul.mubr.bf16.gmra.mrb[0].mxu0 %v5657
    %v5724 = vpop.f32.mrb[0].mxu0
    %v5725 = vadd.f32 0.0, %v5724
    %v5726 = vpop.f32.mrb[0].mxu0
    %v5727 = vpop.f32.mrb[0].mxu0
    %v5728 = vadd.f32 0.0, %v5727
    %v5729 = vpop.f32.mrb[0].mxu0
    %5730 = vmatprep.mubr.bf16.mxu0 0
    %5731 = vmatmul.mubr.bf16.gmra.mrb[0].mxu0 %v5660
    %v5732 = vpop.f32.mrb[0].mxu0
    %v5733 = vadd.f32 0.0, %v5732
    %v5734 = vpop.f32.mrb[0].mxu0
    %v5735 = vpop.f32.mrb[0].mxu0
    %v5736 = vadd.f32 0.0, %v5735
    %v5737 = vpop.f32.mrb[0].mxu0
    %5738 = vdwg.mxu0
    %v5740 = vsel %vm827, %v5216, 0
    %v5743 = vsel %vm827, %v5218, 0
    %v5746 = vsel %vm827, %v5220, 0
    %v5749 = vsel %vm827, %v5222, 0
    %v5752 = vsel %vm827, %v5272, 0
    %v5755 = vsel %vm827, %v5274, 0
    %v5758 = vsel %vm827, %v5276, 0
    %v5761 = vsel %vm827, %v5278, 0
    %5763 = vmatprep.subr.bf16.mxu0 0
    %5764 = vmatpush1.bf16.xpose.msra.mxu0 %v5752
    %5765 = vmatprep.subr.bf16.mxu0 0
    %5766 = vmatpush1.bf16.xpose.msra.mxu0 %v5755
    %5767 = vmatprep.subr.bf16.mxu0 0
    %5768 = vmatpush1.bf16.xpose.msra.mxu0 %v5758
    %5769 = vmatprep.subr.bf16.mxu0 0
    %5770 = vmatpush1.bf16.xpose.msra.mxu0 %v5761
    %5771 = vmatprep.subr.bf16.mxu0 0
    %5772 = vmatpush1.bf16.xpose.msra.mxu0 0
    %5773 = vmatprep.subr.bf16.mxu0 0
    %5774 = vmatpush1.bf16.xpose.msra.mxu0 0
    %5775 = vmatprep.subr.bf16.mxu0 0
    %5776 = vmatpush1.bf16.xpose.msra.mxu0 0
    %5777 = vmatprep.subr.bf16.mxu0 0
    %5778 = vmatpush1.bf16.xpose.msra.mxu0 0
    %5779 = vmatprep.subr.bf16.mxu0 0
    %5780 = vmatpush1.bf16.xpose.msra.mxu0 0
    %5781 = vmatprep.subr.bf16.mxu0 0
    %5782 = vmatpush1.bf16.xpose.msra.mxu0 0
    %5783 = vmatprep.subr.bf16.mxu0 0
    %5784 = vmatpush1.bf16.xpose.msra.mxu0 0
    %5785 = vmatprep.subr.bf16.mxu0 0
    %5786 = vmatpush1.bf16.xpose.msra.mxu0 0
    %5787 = vmatprep.subr.bf16.mxu0 0
    %5788 = vmatpush1.bf16.xpose.msra.mxu0 0
    %5789 = vmatprep.subr.bf16.mxu0 0
    %5790 = vmatpush1.bf16.xpose.msra.mxu0 0
    %5791 = vmatprep.subr.bf16.mxu0 0
    %5792 = vmatpush1.bf16.xpose.msra.mxu0 0
    %5793 = vmatprep.subr.bf16.mxu0 0
    %5794 = vmatpush1.bf16.xpose.msra.mxu0 0
    %5795 = vmatprep.mubr.bf16.mxu0 0
    %5796 = vmatmul.mubr.bf16.gmra.mrb[0].mxu0 %v5740
    %v5797 = vpop.f32.mrb[0].mxu0
    %v5798 = vadd.f32 0.0, %v5797
    %v5799 = vpop.f32.mrb[0].mxu0
    %v5800 = vpop.f32.mrb[0].mxu0
    %v5801 = vadd.f32 0.0, %v5800
    %v5802 = vpop.f32.mrb[0].mxu0
    %5803 = vmatprep.mubr.bf16.mxu0 0
    %5804 = vmatmul.mubr.bf16.gmra.mrb[0].mxu0 %v5743
    %v5805 = vpop.f32.mrb[0].mxu0
    %v5806 = vadd.f32 0.0, %v5805
    %v5807 = vpop.f32.mrb[0].mxu0
    %v5808 = vpop.f32.mrb[0].mxu0
    %v5809 = vadd.f32 0.0, %v5808
    %v5810 = vpop.f32.mrb[0].mxu0
    %5811 = vmatprep.mubr.bf16.mxu0 0
    %5812 = vmatmul.mubr.bf16.gmra.mrb[0].mxu0 %v5746
    %v5813 = vpop.f32.mrb[0].mxu0
    %v5814 = vadd.f32 0.0, %v5813
    %v5815 = vpop.f32.mrb[0].mxu0
    %v5816 = vpop.f32.mrb[0].mxu0
    %v5817 = vadd.f32 0.0, %v5816
    %v5818 = vpop.f32.mrb[0].mxu0
    %5819 = vmatprep.mubr.bf16.mxu0 0
    %5820 = vmatmul.mubr.bf16.gmra.mrb[0].mxu0 %v5749
    %v5821 = vpop.f32.mrb[0].mxu0
    %v5822 = vadd.f32 0.0, %v5821
    %v5823 = vpop.f32.mrb[0].mxu0
    %v5824 = vpop.f32.mrb[0].mxu0
    %v5825 = vadd.f32 0.0, %v5824
    %v5826 = vpop.f32.mrb[0].mxu0
    %5827 = vdwg.mxu0
    %v5829 = vsel %vm827, %v5224, 0
    %v5832 = vsel %vm827, %v5226, 0
    %v5835 = vsel %vm827, %v5228, 0
    %v5838 = vsel %vm827, %v5230, 0
    %v5841 = vsel %vm827, %v5280, 0
    %v5844 = vsel %vm827, %v5282, 0
    %v5847 = vsel %vm827, %v5284, 0
    %v5850 = vsel %vm827, %v5286, 0
    %5852 = vmatprep.subr.bf16.mxu0 0
    %5853 = vmatpush1.bf16.xpose.msra.mxu0 %v5841
    %5854 = vmatprep.subr.bf16.mxu0 0
    %5855 = vmatpush1.bf16.xpose.msra.mxu0 %v5844
    %5856 = vmatprep.subr.bf16.mxu0 0
    %5857 = vmatpush1.bf16.xpose.msra.mxu0 %v5847
    %5858 = vmatprep.subr.bf16.mxu0 0
    %5859 = vmatpush1.bf16.xpose.msra.mxu0 %v5850
    %5860 = vmatprep.subr.bf16.mxu0 0
    %5861 = vmatpush1.bf16.xpose.msra.mxu0 0
    %5862 = vmatprep.subr.bf16.mxu0 0
    %5863 = vmatpush1.bf16.xpose.msra.mxu0 0
    %5864 = vmatprep.subr.bf16.mxu0 0
    %5865 = vmatpush1.bf16.xpose.msra.mxu0 0
    %5866 = vmatprep.subr.bf16.mxu0 0
    %5867 = vmatpush1.bf16.xpose.msra.mxu0 0
    %5868 = vmatprep.subr.bf16.mxu0 0
    %5869 = vmatpush1.bf16.xpose.msra.mxu0 0
    %5870 = vmatprep.subr.bf16.mxu0 0
    %5871 = vmatpush1.bf16.xpose.msra.mxu0 0
    %5872 = vmatprep.subr.bf16.mxu0 0
    %5873 = vmatpush1.bf16.xpose.msra.mxu0 0
    %5874 = vmatprep.subr.bf16.mxu0 0
    %5875 = vmatpush1.bf16.xpose.msra.mxu0 0
    %5876 = vmatprep.subr.bf16.mxu0 0
    %5877 = vmatpush1.bf16.xpose.msra.mxu0 0
    %5878 = vmatprep.subr.bf16.mxu0 0
    %5879 = vmatpush1.bf16.xpose.msra.mxu0 0
    %5880 = vmatprep.subr.bf16.mxu0 0
    %5881 = vmatpush1.bf16.xpose.msra.mxu0 0
    %5882 = vmatprep.subr.bf16.mxu0 0
    %5883 = vmatpush1.bf16.xpose.msra.mxu0 0
    %5884 = vmatprep.mubr.bf16.mxu0 0
    %5885 = vmatmul.mubr.bf16.gmra.mrb[0].mxu0 %v5829
    %v5886 = vpop.f32.mrb[0].mxu0
    %v5887 = vadd.f32 0.0, %v5886
    %v5888 = vpop.f32.mrb[0].mxu0
    %v5889 = vpop.f32.mrb[0].mxu0
    %v5890 = vadd.f32 0.0, %v5889
    %v5891 = vpop.f32.mrb[0].mxu0
    %5892 = vmatprep.mubr.bf16.mxu0 0
    %5893 = vmatmul.mubr.bf16.gmra.mrb[0].mxu0 %v5832
    %v5894 = vpop.f32.mrb[0].mxu0
    %v5895 = vadd.f32 0.0, %v5894
    %v5896 = vpop.f32.mrb[0].mxu0
    %v5897 = vpop.f32.mrb[0].mxu0
    %v5898 = vadd.f32 0.0, %v5897
    %v5899 = vpop.f32.mrb[0].mxu0
    %5900 = vmatprep.mubr.bf16.mxu0 0
    %5901 = vmatmul.mubr.bf16.gmra.mrb[0].mxu0 %v5835
    %v5902 = vpop.f32.mrb[0].mxu0
    %v5903 = vadd.f32 0.0, %v5902
    %v5904 = vpop.f32.mrb[0].mxu0
    %v5905 = vpop.f32.mrb[0].mxu0
    %v5906 = vadd.f32 0.0, %v5905
    %v5907 = vpop.f32.mrb[0].mxu0
    %5908 = vmatprep.mubr.bf16.mxu0 0
    %5909 = vmatmul.mubr.bf16.gmra.mrb[0].mxu0 %v5838
    %v5910 = vpop.f32.mrb[0].mxu0
    %v5911 = vadd.f32 0.0, %v5910
    %v5912 = vpop.f32.mrb[0].mxu0
    %v5913 = vpop.f32.mrb[0].mxu0
    %v5914 = vadd.f32 0.0, %v5913
    %v5915 = vpop.f32.mrb[0].mxu0
    %5916 = vdwg.mxu0
    %v5918 = vsel %vm827, %v5232, 0
    %v5921 = vsel %vm827, %v5234, 0
    %v5924 = vsel %vm827, %v5236, 0
    %v5927 = vsel %vm827, %v5238, 0
    %v5930 = vsel %vm827, %v5288, 0
    %v5933 = vsel %vm827, %v5290, 0
    %v5936 = vsel %vm827, %v5292, 0
    %v5939 = vsel %vm827, %v5294, 0
    %5941 = vmatprep.subr.bf16.mxu0 0
    %5942 = vmatpush1.bf16.xpose.msra.mxu0 %v5930
    %5943 = vmatprep.subr.bf16.mxu0 0
    %5944 = vmatpush1.bf16.xpose.msra.mxu0 %v5933
    %5945 = vmatprep.subr.bf16.mxu0 0
    %5946 = vmatpush1.bf16.xpose.msra.mxu0 %v5936
    %5947 = vmatprep.subr.bf16.mxu0 0
    %5948 = vmatpush1.bf16.xpose.msra.mxu0 %v5939
    %5949 = vmatprep.subr.bf16.mxu0 0
    %5950 = vmatpush1.bf16.xpose.msra.mxu0 0
    %5951 = vmatprep.subr.bf16.mxu0 0
    %5952 = vmatpush1.bf16.xpose.msra.mxu0 0
    %5953 = vmatprep.subr.bf16.mxu0 0
    %5954 = vmatpush1.bf16.xpose.msra.mxu0 0
    %5955 = vmatprep.subr.bf16.mxu0 0
    %5956 = vmatpush1.bf16.xpose.msra.mxu0 0
    %5957 = vmatprep.subr.bf16.mxu0 0
    %5958 = vmatpush1.bf16.xpose.msra.mxu0 0
    %5959 = vmatprep.subr.bf16.mxu0 0
    %5960 = vmatpush1.bf16.xpose.msra.mxu0 0
    %5961 = vmatprep.subr.bf16.mxu0 0
    %5962 = vmatpush1.bf16.xpose.msra.mxu0 0
    %5963 = vmatprep.subr.bf16.mxu0 0
    %5964 = vmatpush1.bf16.xpose.msra.mxu0 0
    %5965 = vmatprep.subr.bf16.mxu0 0
    %5966 = vmatpush1.bf16.xpose.msra.mxu0 0
    %5967 = vmatprep.subr.bf16.mxu0 0
    %5968 = vmatpush1.bf16.xpose.msra.mxu0 0
    %5969 = vmatprep.subr.bf16.mxu0 0
    %5970 = vmatpush1.bf16.xpose.msra.mxu0 0
    %5971 = vmatprep.subr.bf16.mxu0 0
    %5972 = vmatpush1.bf16.xpose.msra.mxu0 0
    %5973 = vmatprep.mubr.bf16.mxu0 0
    %5974 = vmatmul.mubr.bf16.gmra.mrb[0].mxu0 %v5918
    %v5975 = vpop.f32.mrb[0].mxu0
    %v5976 = vadd.f32 0.0, %v5975
    %v5977 = vpop.f32.mrb[0].mxu0
    %v5978 = vpop.f32.mrb[0].mxu0
    %v5979 = vadd.f32 0.0, %v5978
    %v5980 = vpop.f32.mrb[0].mxu0
    %5981 = vmatprep.mubr.bf16.mxu0 0
    %5982 = vmatmul.mubr.bf16.gmra.mrb[0].mxu0 %v5921
    %v5983 = vpop.f32.mrb[0].mxu0
    %v5984 = vadd.f32 0.0, %v5983
    %v5985 = vpop.f32.mrb[0].mxu0
    %v5986 = vpop.f32.mrb[0].mxu0
    %v5987 = vadd.f32 0.0, %v5986
    %v5988 = vpop.f32.mrb[0].mxu0
    %5989 = vmatprep.mubr.bf16.mxu0 0
    %5990 = vmatmul.mubr.bf16.gmra.mrb[0].mxu0 %v5924
    %v5991 = vpop.f32.mrb[0].mxu0
    %v5992 = vadd.f32 0.0, %v5991
    %v5993 = vpop.f32.mrb[0].mxu0
    %v5994 = vpop.f32.mrb[0].mxu0
    %v5995 = vadd.f32 0.0, %v5994
    %v5996 = vpop.f32.mrb[0].mxu0
    %5997 = vmatprep.mubr.bf16.mxu0 0
    %5998 = vmatmul.mubr.bf16.gmra.mrb[0].mxu0 %v5927
    %v5999 = vpop.f32.mrb[0].mxu0
    %v6000 = vadd.f32 0.0, %v5999
    %v6001 = vpop.f32.mrb[0].mxu0
    %v6002 = vpop.f32.mrb[0].mxu0
    %v6003 = vadd.f32 0.0, %v6002
    %v6004 = vpop.f32.mrb[0].mxu0
    %6005 = vdwg.mxu0
    %v6007 = vsel %vm827, %v5240, 0
    %v6010 = vsel %vm827, %v5242, 0
    %v6013 = vsel %vm827, %v5244, 0
    %v6016 = vsel %vm827, %v5246, 0
    %v6019 = vsel %vm827, %v5296, 0
    %v6022 = vsel %vm827, %v5298, 0
    %v6025 = vsel %vm827, %v5300, 0
    %v6028 = vsel %vm827, %v5302, 0
    %6030 = vmatprep.subr.bf16.mxu0 0
    %6031 = vmatpush1.bf16.xpose.msra.mxu0 %v6019
    %6032 = vmatprep.subr.bf16.mxu0 0
    %6033 = vmatpush1.bf16.xpose.msra.mxu0 %v6022
    %6034 = vmatprep.subr.bf16.mxu0 0
    %6035 = vmatpush1.bf16.xpose.msra.mxu0 %v6025
    %6036 = vmatprep.subr.bf16.mxu0 0
    %6037 = vmatpush1.bf16.xpose.msra.mxu0 %v6028
    %6038 = vmatprep.subr.bf16.mxu0 0
    %6039 = vmatpush1.bf16.xpose.msra.mxu0 0
    %6040 = vmatprep.subr.bf16.mxu0 0
    %6041 = vmatpush1.bf16.xpose.msra.mxu0 0
    %6042 = vmatprep.subr.bf16.mxu0 0
    %6043 = vmatpush1.bf16.xpose.msra.mxu0 0
    %6044 = vmatprep.subr.bf16.mxu0 0
    %6045 = vmatpush1.bf16.xpose.msra.mxu0 0
    %6046 = vmatprep.subr.bf16.mxu0 0
    %6047 = vmatpush1.bf16.xpose.msra.mxu0 0
    %6048 = vmatprep.subr.bf16.mxu0 0
    %6049 = vmatpush1.bf16.xpose.msra.mxu0 0
    %6050 = vmatprep.subr.bf16.mxu0 0
    %6051 = vmatpush1.bf16.xpose.msra.mxu0 0
    %6052 = vmatprep.subr.bf16.mxu0 0
    %6053 = vmatpush1.bf16.xpose.msra.mxu0 0
    %6054 = vmatprep.subr.bf16.mxu0 0
    %6055 = vmatpush1.bf16.xpose.msra.mxu0 0
    %6056 = vmatprep.subr.bf16.mxu0 0
    %6057 = vmatpush1.bf16.xpose.msra.mxu0 0
    %6058 = vmatprep.subr.bf16.mxu0 0
    %6059 = vmatpush1.bf16.xpose.msra.mxu0 0
    %6060 = vmatprep.subr.bf16.mxu0 0
    %6061 = vmatpush1.bf16.xpose.msra.mxu0 0
    %6062 = vmatprep.mubr.bf16.mxu0 0
    %6063 = vmatmul.mubr.bf16.gmra.mrb[0].mxu0 %v6007
    %v6064 = vpop.f32.mrb[0].mxu0
    %v6065 = vadd.f32 0.0, %v6064
    %v6066 = vpop.f32.mrb[0].mxu0
    %v6067 = vpop.f32.mrb[0].mxu0
    %v6068 = vadd.f32 0.0, %v6067
    %v6069 = vpop.f32.mrb[0].mxu0
    %6070 = vmatprep.mubr.bf16.mxu0 0
    %6071 = vmatmul.mubr.bf16.gmra.mrb[0].mxu0 %v6010
    %v6072 = vpop.f32.mrb[0].mxu0
    %v6073 = vadd.f32 0.0, %v6072
    %v6074 = vpop.f32.mrb[0].mxu0
    %v6075 = vpop.f32.mrb[0].mxu0
    %v6076 = vadd.f32 0.0, %v6075
    %v6077 = vpop.f32.mrb[0].mxu0
    %6078 = vmatprep.mubr.bf16.mxu0 0
    %6079 = vmatmul.mubr.bf16.gmra.mrb[0].mxu0 %v6013
    %v6080 = vpop.f32.mrb[0].mxu0
    %v6081 = vadd.f32 0.0, %v6080
    %v6082 = vpop.f32.mrb[0].mxu0
    %v6083 = vpop.f32.mrb[0].mxu0
    %v6084 = vadd.f32 0.0, %v6083
    %v6085 = vpop.f32.mrb[0].mxu0
    %6086 = vmatprep.mubr.bf16.mxu0 0
    %6087 = vmatmul.mubr.bf16.gmra.mrb[0].mxu0 %v6016
    %v6088 = vpop.f32.mrb[0].mxu0
    %v6089 = vadd.f32 0.0, %v6088
    %v6090 = vpop.f32.mrb[0].mxu0
    %v6091 = vpop.f32.mrb[0].mxu0
    %v6092 = vadd.f32 0.0, %v6091
    %v6093 = vpop.f32.mrb[0].mxu0
    %6094 = vdwg.mxu0
    %v6095 = vsel %vm1548, %v5442, -1e+30
    %v6096 = vsel %vm1549, %v5445, -1e+30
    %v6097 = vsel %vm1550, %v5450, -1e+30
    %v6098 = vsel %vm1551, %v5453, -1e+30
    %v6099 = vsel %vm1552, %v5458, -1e+30
    %v6100 = vsel %vm1553, %v5461, -1e+30
    %v6101 = vsel %vm1554, %v5466, -1e+30
    %v6102 = vsel %vm1555, %v5469, -1e+30
    %v6103 = vsel %vm1548, %v5531, -1e+30
    %v6104 = vsel %vm1549, %v5534, -1e+30
    %v6105 = vsel %vm1550, %v5539, -1e+30
    %v6106 = vsel %vm1551, %v5542, -1e+30
    %v6107 = vsel %vm1552, %v5547, -1e+30
    %v6108 = vsel %vm1553, %v5550, -1e+30
    %v6109 = vsel %vm1554, %v5555, -1e+30
    %v6110 = vsel %vm1555, %v5558, -1e+30
    %v6111 = vsel %vm1548, %v5620, -1e+30
    %v6112 = vsel %vm1549, %v5623, -1e+30
    %v6113 = vsel %vm1550, %v5628, -1e+30
    %v6114 = vsel %vm1551, %v5631, -1e+30
    %v6115 = vsel %vm1552, %v5636, -1e+30
    %v6116 = vsel %vm1553, %v5639, -1e+30
    %v6117 = vsel %vm1554, %v5644, -1e+30
    %v6118 = vsel %vm1555, %v5647, -1e+30
    %v6119 = vsel %vm1548, %v5709, -1e+30
    %v6120 = vsel %vm1549, %v5712, -1e+30
    %v6121 = vsel %vm1550, %v5717, -1e+30
    %v6122 = vsel %vm1551, %v5720, -1e+30
    %v6123 = vsel %vm1552, %v5725, -1e+30
    %v6124 = vsel %vm1553, %v5728, -1e+30
    %v6125 = vsel %vm1554, %v5733, -1e+30
    %v6126 = vsel %vm1555, %v5736, -1e+30
    %v6127 = vsel %vm1548, %v5798, -1e+30
    %v6128 = vsel %vm1549, %v5801, -1e+30
    %v6129 = vsel %vm1550, %v5806, -1e+30
    %v6130 = vsel %vm1551, %v5809, -1e+30
    %v6131 = vsel %vm1552, %v5814, -1e+30
    %v6132 = vsel %vm1553, %v5817, -1e+30
    %v6133 = vsel %vm1554, %v5822, -1e+30
    %v6134 = vsel %vm1555, %v5825, -1e+30
    %v6135 = vsel %vm1548, %v5887, -1e+30
    %v6136 = vsel %vm1549, %v5890, -1e+30
    %v6137 = vsel %vm1550, %v5895, -1e+30
    %v6138 = vsel %vm1551, %v5898, -1e+30
    %v6139 = vsel %vm1552, %v5903, -1e+30
    %v6140 = vsel %vm1553, %v5906, -1e+30
    %v6141 = vsel %vm1554, %v5911, -1e+30
    %v6142 = vsel %vm1555, %v5914, -1e+30
    %v6143 = vsel %vm1548, %v5976, -1e+30
    %v6144 = vsel %vm1549, %v5979, -1e+30
    %v6145 = vsel %vm1550, %v5984, -1e+30
    %v6146 = vsel %vm1551, %v5987, -1e+30
    %v6147 = vsel %vm1552, %v5992, -1e+30
    %v6148 = vsel %vm1553, %v5995, -1e+30
    %v6149 = vsel %vm1554, %v6000, -1e+30
    %v6150 = vsel %vm1555, %v6003, -1e+30
    %v6151 = vsel %vm1548, %v6065, -1e+30
    %v6152 = vsel %vm1549, %v6068, -1e+30
    %v6153 = vsel %vm1550, %v6073, -1e+30
    %v6154 = vsel %vm1551, %v6076, -1e+30
    %v6155 = vsel %vm1552, %v6081, -1e+30
    %v6156 = vsel %vm1553, %v6084, -1e+30
    %v6157 = vsel %vm1554, %v6089, -1e+30
    %v6158 = vsel %vm1555, %v6092, -1e+30
    %v6159 = vsel %vm1620, %v6095, -inf
    %6160 = vmax.xlane.f32.xlu0 %v6159
    %v6161 = vpop.xlane.xlu0 %6160
    %v6162 = vsel %vm1620, %v6096, -inf
    %6163 = vmax.xlane.f32.xlu0 %v6162
    %v6164 = vpop.xlane.xlu0 %6163
    %v6165 = vsel %vm1620, %v6097, -inf
    %6166 = vmax.xlane.f32.xlu0 %v6165
    %v6167 = vpop.xlane.xlu0 %6166
    %v6168 = vsel %vm1620, %v6098, -inf
    %6169 = vmax.xlane.f32.xlu0 %v6168
    %v6170 = vpop.xlane.xlu0 %6169
    %v6171 = vsel %vm1620, %v6099, -inf
    %6172 = vmax.xlane.f32.xlu0 %v6171
    %v6173 = vpop.xlane.xlu0 %6172
    %v6174 = vsel %vm1620, %v6100, -inf
    %6175 = vmax.xlane.f32.xlu0 %v6174
    %v6176 = vpop.xlane.xlu0 %6175
    %v6177 = vsel %vm1620, %v6101, -inf
    %6178 = vmax.xlane.f32.xlu0 %v6177
    %v6179 = vpop.xlane.xlu0 %6178
    %v6180 = vsel %vm1620, %v6102, -inf
    %6181 = vmax.xlane.f32.xlu0 %v6180
    %v6182 = vpop.xlane.xlu0 %6181
    %v6183 = vsel %vm1620, %v6103, -inf
    %6184 = vmax.xlane.f32.xlu0 %v6183
    %v6185 = vpop.xlane.xlu0 %6184
    %v6186 = vsel %vm1620, %v6104, -inf
    %6187 = vmax.xlane.f32.xlu0 %v6186
    %v6188 = vpop.xlane.xlu0 %6187
    %v6189 = vsel %vm1620, %v6105, -inf
    %6190 = vmax.xlane.f32.xlu0 %v6189
    %v6191 = vpop.xlane.xlu0 %6190
    %v6192 = vsel %vm1620, %v6106, -inf
    %6193 = vmax.xlane.f32.xlu0 %v6192
    %v6194 = vpop.xlane.xlu0 %6193
    %v6195 = vsel %vm1620, %v6107, -inf
    %6196 = vmax.xlane.f32.xlu0 %v6195
    %v6197 = vpop.xlane.xlu0 %6196
    %v6198 = vsel %vm1620, %v6108, -inf
    %6199 = vmax.xlane.f32.xlu0 %v6198
    %v6200 = vpop.xlane.xlu0 %6199
    %v6201 = vsel %vm1620, %v6109, -inf
    %6202 = vmax.xlane.f32.xlu0 %v6201
    %v6203 = vpop.xlane.xlu0 %6202
    %v6204 = vsel %vm1620, %v6110, -inf
    %6205 = vmax.xlane.f32.xlu0 %v6204
    %v6206 = vpop.xlane.xlu0 %6205
    %v6207 = vsel %vm1620, %v6111, -inf
    %6208 = vmax.xlane.f32.xlu0 %v6207
    %v6209 = vpop.xlane.xlu0 %6208
    %v6210 = vsel %vm1620, %v6112, -inf
    %6211 = vmax.xlane.f32.xlu0 %v6210
    %v6212 = vpop.xlane.xlu0 %6211
    %v6213 = vsel %vm1620, %v6113, -inf
    %6214 = vmax.xlane.f32.xlu0 %v6213
    %v6215 = vpop.xlane.xlu0 %6214
    %v6216 = vsel %vm1620, %v6114, -inf
    %6217 = vmax.xlane.f32.xlu0 %v6216
    %v6218 = vpop.xlane.xlu0 %6217
    %v6219 = vsel %vm1620, %v6115, -inf
    %6220 = vmax.xlane.f32.xlu0 %v6219
    %v6221 = vpop.xlane.xlu0 %6220
    %v6222 = vsel %vm1620, %v6116, -inf
    %6223 = vmax.xlane.f32.xlu0 %v6222
    %v6224 = vpop.xlane.xlu0 %6223
    %v6225 = vsel %vm1620, %v6117, -inf
    %6226 = vmax.xlane.f32.xlu0 %v6225
    %v6227 = vpop.xlane.xlu0 %6226
    %v6228 = vsel %vm1620, %v6118, -inf
    %6229 = vmax.xlane.f32.xlu0 %v6228
    %v6230 = vpop.xlane.xlu0 %6229
    %v6231 = vsel %vm1620, %v6119, -inf
    %6232 = vmax.xlane.f32.xlu0 %v6231
    %v6233 = vpop.xlane.xlu0 %6232
    %v6234 = vsel %vm1620, %v6120, -inf
    %6235 = vmax.xlane.f32.xlu0 %v6234
    %v6236 = vpop.xlane.xlu0 %6235
    %v6237 = vsel %vm1620, %v6121, -inf
    %6238 = vmax.xlane.f32.xlu0 %v6237
    %v6239 = vpop.xlane.xlu0 %6238
    %v6240 = vsel %vm1620, %v6122, -inf
    %6241 = vmax.xlane.f32.xlu0 %v6240
    %v6242 = vpop.xlane.xlu0 %6241
    %v6243 = vsel %vm1620, %v6123, -inf
    %6244 = vmax.xlane.f32.xlu0 %v6243
    %v6245 = vpop.xlane.xlu0 %6244
    %v6246 = vsel %vm1620, %v6124, -inf
    %6247 = vmax.xlane.f32.xlu0 %v6246
    %v6248 = vpop.xlane.xlu0 %6247
    %v6249 = vsel %vm1620, %v6125, -inf
    %6250 = vmax.xlane.f32.xlu0 %v6249
    %v6251 = vpop.xlane.xlu0 %6250
    %v6252 = vsel %vm1620, %v6126, -inf
    %6253 = vmax.xlane.f32.xlu0 %v6252
    %v6254 = vpop.xlane.xlu0 %6253
    %v6255 = vsel %vm1620, %v6127, -inf
    %6256 = vmax.xlane.f32.xlu0 %v6255
    %v6257 = vpop.xlane.xlu0 %6256
    %v6258 = vsel %vm1620, %v6128, -inf
    %6259 = vmax.xlane.f32.xlu0 %v6258
    %v6260 = vpop.xlane.xlu0 %6259
    %v6261 = vsel %vm1620, %v6129, -inf
    %6262 = vmax.xlane.f32.xlu0 %v6261
    %v6263 = vpop.xlane.xlu0 %6262
    %v6264 = vsel %vm1620, %v6130, -inf
    %6265 = vmax.xlane.f32.xlu0 %v6264
    %v6266 = vpop.xlane.xlu0 %6265
    %v6267 = vsel %vm1620, %v6131, -inf
    %6268 = vmax.xlane.f32.xlu0 %v6267
    %v6269 = vpop.xlane.xlu0 %6268
    %v6270 = vsel %vm1620, %v6132, -inf
    %6271 = vmax.xlane.f32.xlu0 %v6270
    %v6272 = vpop.xlane.xlu0 %6271
    %v6273 = vsel %vm1620, %v6133, -inf
    %6274 = vmax.xlane.f32.xlu0 %v6273
    %v6275 = vpop.xlane.xlu0 %6274
    %v6276 = vsel %vm1620, %v6134, -inf
    %6277 = vmax.xlane.f32.xlu0 %v6276
    %v6278 = vpop.xlane.xlu0 %6277
    %v6279 = vsel %vm1620, %v6135, -inf
    %6280 = vmax.xlane.f32.xlu0 %v6279
    %v6281 = vpop.xlane.xlu0 %6280
    %v6282 = vsel %vm1620, %v6136, -inf
    %6283 = vmax.xlane.f32.xlu0 %v6282
    %v6284 = vpop.xlane.xlu0 %6283
    %v6285 = vsel %vm1620, %v6137, -inf
    %6286 = vmax.xlane.f32.xlu0 %v6285
    %v6287 = vpop.xlane.xlu0 %6286
    %v6288 = vsel %vm1620, %v6138, -inf
    %6289 = vmax.xlane.f32.xlu0 %v6288
    %v6290 = vpop.xlane.xlu0 %6289
    %v6291 = vsel %vm1620, %v6139, -inf
    %6292 = vmax.xlane.f32.xlu0 %v6291
    %v6293 = vpop.xlane.xlu0 %6292
    %v6294 = vsel %vm1620, %v6140, -inf
    %6295 = vmax.xlane.f32.xlu0 %v6294
    %v6296 = vpop.xlane.xlu0 %6295
    %v6297 = vsel %vm1620, %v6141, -inf
    %6298 = vmax.xlane.f32.xlu0 %v6297
    %v6299 = vpop.xlane.xlu0 %6298
    %v6300 = vsel %vm1620, %v6142, -inf
    %6301 = vmax.xlane.f32.xlu0 %v6300
    %v6302 = vpop.xlane.xlu0 %6301
    %v6303 = vsel %vm1620, %v6143, -inf
    %6304 = vmax.xlane.f32.xlu0 %v6303
    %v6305 = vpop.xlane.xlu0 %6304
    %v6306 = vsel %vm1620, %v6144, -inf
    %6307 = vmax.xlane.f32.xlu0 %v6306
    %v6308 = vpop.xlane.xlu0 %6307
    %v6309 = vsel %vm1620, %v6145, -inf
    %6310 = vmax.xlane.f32.xlu0 %v6309
    %v6311 = vpop.xlane.xlu0 %6310
    %v6312 = vsel %vm1620, %v6146, -inf
    %6313 = vmax.xlane.f32.xlu0 %v6312
    %v6314 = vpop.xlane.xlu0 %6313
    %v6315 = vsel %vm1620, %v6147, -inf
    %6316 = vmax.xlane.f32.xlu0 %v6315
    %v6317 = vpop.xlane.xlu0 %6316
    %v6318 = vsel %vm1620, %v6148, -inf
    %6319 = vmax.xlane.f32.xlu0 %v6318
    %v6320 = vpop.xlane.xlu0 %6319
    %v6321 = vsel %vm1620, %v6149, -inf
    %6322 = vmax.xlane.f32.xlu0 %v6321
    %v6323 = vpop.xlane.xlu0 %6322
    %v6324 = vsel %vm1620, %v6150, -inf
    %6325 = vmax.xlane.f32.xlu0 %v6324
    %v6326 = vpop.xlane.xlu0 %6325
    %v6327 = vsel %vm1620, %v6151, -inf
    %6328 = vmax.xlane.f32.xlu0 %v6327
    %v6329 = vpop.xlane.xlu0 %6328
    %v6330 = vsel %vm1620, %v6152, -inf
    %6331 = vmax.xlane.f32.xlu0 %v6330
    %v6332 = vpop.xlane.xlu0 %6331
    %v6333 = vsel %vm1620, %v6153, -inf
    %6334 = vmax.xlane.f32.xlu0 %v6333
    %v6335 = vpop.xlane.xlu0 %6334
    %v6336 = vsel %vm1620, %v6154, -inf
    %6337 = vmax.xlane.f32.xlu0 %v6336
    %v6338 = vpop.xlane.xlu0 %6337
    %v6339 = vsel %vm1620, %v6155, -inf
    %6340 = vmax.xlane.f32.xlu0 %v6339
    %v6341 = vpop.xlane.xlu0 %6340
    %v6342 = vsel %vm1620, %v6156, -inf
    %6343 = vmax.xlane.f32.xlu0 %v6342
    %v6344 = vpop.xlane.xlu0 %6343
    %v6345 = vsel %vm1620, %v6157, -inf
    %6346 = vmax.xlane.f32.xlu0 %v6345
    %v6347 = vpop.xlane.xlu0 %6346
    %v6348 = vsel %vm1620, %v6158, -inf
    %6349 = vmax.xlane.f32.xlu0 %v6348
    %v6350 = vpop.xlane.xlu0 %6349
    %v6351 = vsub.f32 %v6095, %v6161
    %v6352 = vsub.f32 %v6096, %v6164
    %v6353 = vsub.f32 %v6097, %v6167
    %v6354 = vsub.f32 %v6098, %v6170
    %v6355 = vsub.f32 %v6099, %v6173
    %v6356 = vsub.f32 %v6100, %v6176
    %v6357 = vsub.f32 %v6101, %v6179
    %v6358 = vsub.f32 %v6102, %v6182
    %v6359 = vsub.f32 %v6103, %v6185
    %v6360 = vsub.f32 %v6104, %v6188
    %v6361 = vsub.f32 %v6105, %v6191
    %v6362 = vsub.f32 %v6106, %v6194
    %v6363 = vsub.f32 %v6107, %v6197
    %v6364 = vsub.f32 %v6108, %v6200
    %v6365 = vsub.f32 %v6109, %v6203
    %v6366 = vsub.f32 %v6110, %v6206
    %v6367 = vsub.f32 %v6111, %v6209
    %v6368 = vsub.f32 %v6112, %v6212
    %v6369 = vsub.f32 %v6113, %v6215
    %v6370 = vsub.f32 %v6114, %v6218
    %v6371 = vsub.f32 %v6115, %v6221
    %v6372 = vsub.f32 %v6116, %v6224
    %v6373 = vsub.f32 %v6117, %v6227
    %v6374 = vsub.f32 %v6118, %v6230
    %v6375 = vsub.f32 %v6119, %v6233
    %v6376 = vsub.f32 %v6120, %v6236
    %v6377 = vsub.f32 %v6121, %v6239
    %v6378 = vsub.f32 %v6122, %v6242
    %v6379 = vsub.f32 %v6123, %v6245
    %v6380 = vsub.f32 %v6124, %v6248
    %v6381 = vsub.f32 %v6125, %v6251
    %v6382 = vsub.f32 %v6126, %v6254
    %v6383 = vsub.f32 %v6127, %v6257
    %v6384 = vsub.f32 %v6128, %v6260
    %v6385 = vsub.f32 %v6129, %v6263
    %v6386 = vsub.f32 %v6130, %v6266
    %v6387 = vsub.f32 %v6131, %v6269
    %v6388 = vsub.f32 %v6132, %v6272
    %v6389 = vsub.f32 %v6133, %v6275
    %v6390 = vsub.f32 %v6134, %v6278
    %v6391 = vsub.f32 %v6135, %v6281
    %v6392 = vsub.f32 %v6136, %v6284
    %v6393 = vsub.f32 %v6137, %v6287
    %v6394 = vsub.f32 %v6138, %v6290
    %v6395 = vsub.f32 %v6139, %v6293
    %v6396 = vsub.f32 %v6140, %v6296
    %v6397 = vsub.f32 %v6141, %v6299
    %v6398 = vsub.f32 %v6142, %v6302
    %v6399 = vsub.f32 %v6143, %v6305
    %v6400 = vsub.f32 %v6144, %v6308
    %v6401 = vsub.f32 %v6145, %v6311
    %v6402 = vsub.f32 %v6146, %v6314
    %v6403 = vsub.f32 %v6147, %v6317
    %v6404 = vsub.f32 %v6148, %v6320
    %v6405 = vsub.f32 %v6149, %v6323
    %v6406 = vsub.f32 %v6150, %v6326
    %v6407 = vsub.f32 %v6151, %v6329
    %v6408 = vsub.f32 %v6152, %v6332
    %v6409 = vsub.f32 %v6153, %v6335
    %v6410 = vsub.f32 %v6154, %v6338
    %v6411 = vsub.f32 %v6155, %v6341
    %v6412 = vsub.f32 %v6156, %v6344
    %v6413 = vsub.f32 %v6157, %v6347
    %v6414 = vsub.f32 %v6158, %v6350
    %v6415 = vmul.f32 %v6351, 1.442695
    %v6416 = vpow.pop %v6415
    %v6417 = vmul.f32 %v6352, 1.442695
    %v6418 = vpow.pop %v6417
    %v6419 = vmul.f32 %v6353, 1.442695
    %v6420 = vpow.pop %v6419
    %v6421 = vmul.f32 %v6354, 1.442695
    %v6422 = vpow.pop %v6421
    %v6423 = vmul.f32 %v6355, 1.442695
    %v6424 = vpow.pop %v6423
    %v6425 = vmul.f32 %v6356, 1.442695
    %v6426 = vpow.pop %v6425
    %v6427 = vmul.f32 %v6357, 1.442695
    %v6428 = vpow.pop %v6427
    %v6429 = vmul.f32 %v6358, 1.442695
    %v6430 = vpow.pop %v6429
    %v6431 = vmul.f32 %v6359, 1.442695
    %v6432 = vpow.pop %v6431
    %v6433 = vmul.f32 %v6360, 1.442695
    %v6434 = vpow.pop %v6433
    %v6435 = vmul.f32 %v6361, 1.442695
    %v6436 = vpow.pop %v6435
    %v6437 = vmul.f32 %v6362, 1.442695
    %v6438 = vpow.pop %v6437
    %v6439 = vmul.f32 %v6363, 1.442695
    %v6440 = vpow.pop %v6439
    %v6441 = vmul.f32 %v6364, 1.442695
    %v6442 = vpow.pop %v6441
    %v6443 = vmul.f32 %v6365, 1.442695
    %v6444 = vpow.pop %v6443
    %v6445 = vmul.f32 %v6366, 1.442695
    %v6446 = vpow.pop %v6445
    %v6447 = vmul.f32 %v6367, 1.442695
    %v6448 = vpow.pop %v6447
    %v6449 = vmul.f32 %v6368, 1.442695
    %v6450 = vpow.pop %v6449
    %v6451 = vmul.f32 %v6369, 1.442695
    %v6452 = vpow.pop %v6451
    %v6453 = vmul.f32 %v6370, 1.442695
    %v6454 = vpow.pop %v6453
    %v6455 = vmul.f32 %v6371, 1.442695
    %v6456 = vpow.pop %v6455
    %v6457 = vmul.f32 %v6372, 1.442695
    %v6458 = vpow.pop %v6457
    %v6459 = vmul.f32 %v6373, 1.442695
    %v6460 = vpow.pop %v6459
    %v6461 = vmul.f32 %v6374, 1.442695
    %v6462 = vpow.pop %v6461
    %v6463 = vmul.f32 %v6375, 1.442695
    %v6464 = vpow.pop %v6463
    %v6465 = vmul.f32 %v6376, 1.442695
    %v6466 = vpow.pop %v6465
    %v6467 = vmul.f32 %v6377, 1.442695
    %v6468 = vpow.pop %v6467
    %v6469 = vmul.f32 %v6378, 1.442695
    %v6470 = vpow.pop %v6469
    %v6471 = vmul.f32 %v6379, 1.442695
    %v6472 = vpow.pop %v6471
    %v6473 = vmul.f32 %v6380, 1.442695
    %v6474 = vpow.pop %v6473
    %v6475 = vmul.f32 %v6381, 1.442695
    %v6476 = vpow.pop %v6475
    %v6477 = vmul.f32 %v6382, 1.442695
    %v6478 = vpow.pop %v6477
    %v6479 = vmul.f32 %v6383, 1.442695
    %v6480 = vpow.pop %v6479
    %v6481 = vmul.f32 %v6384, 1.442695
    %v6482 = vpow.pop %v6481
    %v6483 = vmul.f32 %v6385, 1.442695
    %v6484 = vpow.pop %v6483
    %v6485 = vmul.f32 %v6386, 1.442695
    %v6486 = vpow.pop %v6485
    %v6487 = vmul.f32 %v6387, 1.442695
    %v6488 = vpow.pop %v6487
    %v6489 = vmul.f32 %v6388, 1.442695
    %v6490 = vpow.pop %v6489
    %v6491 = vmul.f32 %v6389, 1.442695
    %v6492 = vpow.pop %v6491
    %v6493 = vmul.f32 %v6390, 1.442695
    %v6494 = vpow.pop %v6493
    %v6495 = vmul.f32 %v6391, 1.442695
    %v6496 = vpow.pop %v6495
    %v6497 = vmul.f32 %v6392, 1.442695
    %v6498 = vpow.pop %v6497
    %v6499 = vmul.f32 %v6393, 1.442695
    %v6500 = vpow.pop %v6499
    %v6501 = vmul.f32 %v6394, 1.442695
    %v6502 = vpow.pop %v6501
    %v6503 = vmul.f32 %v6395, 1.442695
    %v6504 = vpow.pop %v6503
    %v6505 = vmul.f32 %v6396, 1.442695
    %v6506 = vpow.pop %v6505
    %v6507 = vmul.f32 %v6397, 1.442695
    %v6508 = vpow.pop %v6507
    %v6509 = vmul.f32 %v6398, 1.442695
    %v6510 = vpow.pop %v6509
    %v6511 = vmul.f32 %v6399, 1.442695
    %v6512 = vpow.pop %v6511
    %v6513 = vmul.f32 %v6400, 1.442695
    %v6514 = vpow.pop %v6513
    %v6515 = vmul.f32 %v6401, 1.442695
    %v6516 = vpow.pop %v6515
    %v6517 = vmul.f32 %v6402, 1.442695
    %v6518 = vpow.pop %v6517
    %v6519 = vmul.f32 %v6403, 1.442695
    %v6520 = vpow.pop %v6519
    %v6521 = vmul.f32 %v6404, 1.442695
    %v6522 = vpow.pop %v6521
    %v6523 = vmul.f32 %v6405, 1.442695
    %v6524 = vpow.pop %v6523
    %v6525 = vmul.f32 %v6406, 1.442695
    %v6526 = vpow.pop %v6525
    %v6527 = vmul.f32 %v6407, 1.442695
    %v6528 = vpow.pop %v6527
    %v6529 = vmul.f32 %v6408, 1.442695
    %v6530 = vpow.pop %v6529
    %v6531 = vmul.f32 %v6409, 1.442695
    %v6532 = vpow.pop %v6531
    %v6533 = vmul.f32 %v6410, 1.442695
    %v6534 = vpow.pop %v6533
    %v6535 = vmul.f32 %v6411, 1.442695
    %v6536 = vpow.pop %v6535
    %v6537 = vmul.f32 %v6412, 1.442695
    %v6538 = vpow.pop %v6537
    %v6539 = vmul.f32 %v6413, 1.442695
    %v6540 = vpow.pop %v6539
    %v6541 = vmul.f32 %v6414, 1.442695
    %v6542 = vpow.pop %v6541
    %v6543 = vsel %vm1620, %v6416, 0.0
    %6544 = vadd.xlane.f32.xlu0 %v6543
    %v6545 = vpop.xlane.xlu0 %6544
    %v6546 = vsel %vm1620, %v6418, 0.0
    %6547 = vadd.xlane.f32.xlu0 %v6546
    %v6548 = vpop.xlane.xlu0 %6547
    %v6549 = vsel %vm1620, %v6420, 0.0
    %6550 = vadd.xlane.f32.xlu0 %v6549
    %v6551 = vpop.xlane.xlu0 %6550
    %v6552 = vsel %vm1620, %v6422, 0.0
    %6553 = vadd.xlane.f32.xlu0 %v6552
    %v6554 = vpop.xlane.xlu0 %6553
    %v6555 = vsel %vm1620, %v6424, 0.0
    %6556 = vadd.xlane.f32.xlu0 %v6555
    %v6557 = vpop.xlane.xlu0 %6556
    %v6558 = vsel %vm1620, %v6426, 0.0
    %6559 = vadd.xlane.f32.xlu0 %v6558
    %v6560 = vpop.xlane.xlu0 %6559
    %v6561 = vsel %vm1620, %v6428, 0.0
    %6562 = vadd.xlane.f32.xlu0 %v6561
    %v6563 = vpop.xlane.xlu0 %6562
    %v6564 = vsel %vm1620, %v6430, 0.0
    %6565 = vadd.xlane.f32.xlu0 %v6564
    %v6566 = vpop.xlane.xlu0 %6565
    %v6567 = vsel %vm1620, %v6432, 0.0
    %6568 = vadd.xlane.f32.xlu0 %v6567
    %v6569 = vpop.xlane.xlu0 %6568
    %v6570 = vsel %vm1620, %v6434, 0.0
    %6571 = vadd.xlane.f32.xlu0 %v6570
    %v6572 = vpop.xlane.xlu0 %6571
    %v6573 = vsel %vm1620, %v6436, 0.0
    %6574 = vadd.xlane.f32.xlu0 %v6573
    %v6575 = vpop.xlane.xlu0 %6574
    %v6576 = vsel %vm1620, %v6438, 0.0
    %6577 = vadd.xlane.f32.xlu0 %v6576
    %v6578 = vpop.xlane.xlu0 %6577
    %v6579 = vsel %vm1620, %v6440, 0.0
    %6580 = vadd.xlane.f32.xlu0 %v6579
    %v6581 = vpop.xlane.xlu0 %6580
    %v6582 = vsel %vm1620, %v6442, 0.0
    %6583 = vadd.xlane.f32.xlu0 %v6582
    %v6584 = vpop.xlane.xlu0 %6583
    %v6585 = vsel %vm1620, %v6444, 0.0
    %6586 = vadd.xlane.f32.xlu0 %v6585
    %v6587 = vpop.xlane.xlu0 %6586
    %v6588 = vsel %vm1620, %v6446, 0.0
    %6589 = vadd.xlane.f32.xlu0 %v6588
    %v6590 = vpop.xlane.xlu0 %6589
    %v6591 = vsel %vm1620, %v6448, 0.0
    %6592 = vadd.xlane.f32.xlu0 %v6591
    %v6593 = vpop.xlane.xlu0 %6592
    %v6594 = vsel %vm1620, %v6450, 0.0
    %6595 = vadd.xlane.f32.xlu0 %v6594
    %v6596 = vpop.xlane.xlu0 %6595
    %v6597 = vsel %vm1620, %v6452, 0.0
    %6598 = vadd.xlane.f32.xlu0 %v6597
    %v6599 = vpop.xlane.xlu0 %6598
    %v6600 = vsel %vm1620, %v6454, 0.0
    %6601 = vadd.xlane.f32.xlu0 %v6600
    %v6602 = vpop.xlane.xlu0 %6601
    %v6603 = vsel %vm1620, %v6456, 0.0
    %6604 = vadd.xlane.f32.xlu0 %v6603
    %v6605 = vpop.xlane.xlu0 %6604
    %v6606 = vsel %vm1620, %v6458, 0.0
    %6607 = vadd.xlane.f32.xlu0 %v6606
    %v6608 = vpop.xlane.xlu0 %6607
    %v6609 = vsel %vm1620, %v6460, 0.0
    %6610 = vadd.xlane.f32.xlu0 %v6609
    %v6611 = vpop.xlane.xlu0 %6610
    %v6612 = vsel %vm1620, %v6462, 0.0
    %6613 = vadd.xlane.f32.xlu0 %v6612
    %v6614 = vpop.xlane.xlu0 %6613
    %v6615 = vsel %vm1620, %v6464, 0.0
    %6616 = vadd.xlane.f32.xlu0 %v6615
    %v6617 = vpop.xlane.xlu0 %6616
    %v6618 = vsel %vm1620, %v6466, 0.0
    %6619 = vadd.xlane.f32.xlu0 %v6618
    %v6620 = vpop.xlane.xlu0 %6619
    %v6621 = vsel %vm1620, %v6468, 0.0
    %6622 = vadd.xlane.f32.xlu0 %v6621
    %v6623 = vpop.xlane.xlu0 %6622
    %v6624 = vsel %vm1620, %v6470, 0.0
    %6625 = vadd.xlane.f32.xlu0 %v6624
    %v6626 = vpop.xlane.xlu0 %6625
    %v6627 = vsel %vm1620, %v6472, 0.0
    %6628 = vadd.xlane.f32.xlu0 %v6627
    %v6629 = vpop.xlane.xlu0 %6628
    %v6630 = vsel %vm1620, %v6474, 0.0
    %6631 = vadd.xlane.f32.xlu0 %v6630
    %v6632 = vpop.xlane.xlu0 %6631
    %v6633 = vsel %vm1620, %v6476, 0.0
    %6634 = vadd.xlane.f32.xlu0 %v6633
    %v6635 = vpop.xlane.xlu0 %6634
    %v6636 = vsel %vm1620, %v6478, 0.0
    %6637 = vadd.xlane.f32.xlu0 %v6636
    %v6638 = vpop.xlane.xlu0 %6637
    %v6639 = vsel %vm1620, %v6480, 0.0
    %6640 = vadd.xlane.f32.xlu0 %v6639
    %v6641 = vpop.xlane.xlu0 %6640
    %v6642 = vsel %vm1620, %v6482, 0.0
    %6643 = vadd.xlane.f32.xlu0 %v6642
    %v6644 = vpop.xlane.xlu0 %6643
    %v6645 = vsel %vm1620, %v6484, 0.0
    %6646 = vadd.xlane.f32.xlu0 %v6645
    %v6647 = vpop.xlane.xlu0 %6646
    %v6648 = vsel %vm1620, %v6486, 0.0
    %6649 = vadd.xlane.f32.xlu0 %v6648
    %v6650 = vpop.xlane.xlu0 %6649
    %v6651 = vsel %vm1620, %v6488, 0.0
    %6652 = vadd.xlane.f32.xlu0 %v6651
    %v6653 = vpop.xlane.xlu0 %6652
    %v6654 = vsel %vm1620, %v6490, 0.0
    %6655 = vadd.xlane.f32.xlu0 %v6654
    %v6656 = vpop.xlane.xlu0 %6655
    %v6657 = vsel %vm1620, %v6492, 0.0
    %6658 = vadd.xlane.f32.xlu0 %v6657
    %v6659 = vpop.xlane.xlu0 %6658
    %v6660 = vsel %vm1620, %v6494, 0.0
    %6661 = vadd.xlane.f32.xlu0 %v6660
    %v6662 = vpop.xlane.xlu0 %6661
    %v6663 = vsel %vm1620, %v6496, 0.0
    %6664 = vadd.xlane.f32.xlu0 %v6663
    %v6665 = vpop.xlane.xlu0 %6664
    %v6666 = vsel %vm1620, %v6498, 0.0
    %6667 = vadd.xlane.f32.xlu0 %v6666
    %v6668 = vpop.xlane.xlu0 %6667
    %v6669 = vsel %vm1620, %v6500, 0.0
    %6670 = vadd.xlane.f32.xlu0 %v6669
    %v6671 = vpop.xlane.xlu0 %6670
    %v6672 = vsel %vm1620, %v6502, 0.0
    %6673 = vadd.xlane.f32.xlu0 %v6672
    %v6674 = vpop.xlane.xlu0 %6673
    %v6675 = vsel %vm1620, %v6504, 0.0
    %6676 = vadd.xlane.f32.xlu0 %v6675
    %v6677 = vpop.xlane.xlu0 %6676
    %v6678 = vsel %vm1620, %v6506, 0.0
    %6679 = vadd.xlane.f32.xlu0 %v6678
    %v6680 = vpop.xlane.xlu0 %6679
    %v6681 = vsel %vm1620, %v6508, 0.0
    %6682 = vadd.xlane.f32.xlu0 %v6681
    %v6683 = vpop.xlane.xlu0 %6682
    %v6684 = vsel %vm1620, %v6510, 0.0
    %6685 = vadd.xlane.f32.xlu0 %v6684
    %v6686 = vpop.xlane.xlu0 %6685
    %v6687 = vsel %vm1620, %v6512, 0.0
    %6688 = vadd.xlane.f32.xlu0 %v6687
    %v6689 = vpop.xlane.xlu0 %6688
    %v6690 = vsel %vm1620, %v6514, 0.0
    %6691 = vadd.xlane.f32.xlu0 %v6690
    %v6692 = vpop.xlane.xlu0 %6691
    %v6693 = vsel %vm1620, %v6516, 0.0
    %6694 = vadd.xlane.f32.xlu0 %v6693
    %v6695 = vpop.xlane.xlu0 %6694
    %v6696 = vsel %vm1620, %v6518, 0.0
    %6697 = vadd.xlane.f32.xlu0 %v6696
    %v6698 = vpop.xlane.xlu0 %6697
    %v6699 = vsel %vm1620, %v6520, 0.0
    %6700 = vadd.xlane.f32.xlu0 %v6699
    %v6701 = vpop.xlane.xlu0 %6700
    %v6702 = vsel %vm1620, %v6522, 0.0
    %6703 = vadd.xlane.f32.xlu0 %v6702
    %v6704 = vpop.xlane.xlu0 %6703
    %v6705 = vsel %vm1620, %v6524, 0.0
    %6706 = vadd.xlane.f32.xlu0 %v6705
    %v6707 = vpop.xlane.xlu0 %6706
    %v6708 = vsel %vm1620, %v6526, 0.0
    %6709 = vadd.xlane.f32.xlu0 %v6708
    %v6710 = vpop.xlane.xlu0 %6709
    %v6711 = vsel %vm1620, %v6528, 0.0
    %6712 = vadd.xlane.f32.xlu0 %v6711
    %v6713 = vpop.xlane.xlu0 %6712
    %v6714 = vsel %vm1620, %v6530, 0.0
    %6715 = vadd.xlane.f32.xlu0 %v6714
    %v6716 = vpop.xlane.xlu0 %6715
    %v6717 = vsel %vm1620, %v6532, 0.0
    %6718 = vadd.xlane.f32.xlu0 %v6717
    %v6719 = vpop.xlane.xlu0 %6718
    %v6720 = vsel %vm1620, %v6534, 0.0
    %6721 = vadd.xlane.f32.xlu0 %v6720
    %v6722 = vpop.xlane.xlu0 %6721
    %v6723 = vsel %vm1620, %v6536, 0.0
    %6724 = vadd.xlane.f32.xlu0 %v6723
    %v6725 = vpop.xlane.xlu0 %6724
    %v6726 = vsel %vm1620, %v6538, 0.0
    %6727 = vadd.xlane.f32.xlu0 %v6726
    %v6728 = vpop.xlane.xlu0 %6727
    %v6729 = vsel %vm1620, %v6540, 0.0
    %6730 = vadd.xlane.f32.xlu0 %v6729
    %v6731 = vpop.xlane.xlu0 %6730
    %v6732 = vsel %vm1620, %v6542, 0.0
    %6733 = vadd.xlane.f32.xlu0 %v6732
    %v6734 = vpop.xlane.xlu0 %6733
    %v6735 = vrcp.pop %v6545
    %v6736 = vrcp.pop %v6548
    %v6737 = vrcp.pop %v6551
    %v6738 = vrcp.pop %v6554
    %v6739 = vrcp.pop %v6557
    %v6740 = vrcp.pop %v6560
    %v6741 = vrcp.pop %v6563
    %v6742 = vrcp.pop %v6566
    %v6743 = vrcp.pop %v6569
    %v6744 = vrcp.pop %v6572
    %v6745 = vrcp.pop %v6575
    %v6746 = vrcp.pop %v6578
    %v6747 = vrcp.pop %v6581
    %v6748 = vrcp.pop %v6584
    %v6749 = vrcp.pop %v6587
    %v6750 = vrcp.pop %v6590
    %v6751 = vrcp.pop %v6593
    %v6752 = vrcp.pop %v6596
    %v6753 = vrcp.pop %v6599
    %v6754 = vrcp.pop %v6602
    %v6755 = vrcp.pop %v6605
    %v6756 = vrcp.pop %v6608
    %v6757 = vrcp.pop %v6611
    %v6758 = vrcp.pop %v6614
    %v6759 = vrcp.pop %v6617
    %v6760 = vrcp.pop %v6620
    %v6761 = vrcp.pop %v6623
    %v6762 = vrcp.pop %v6626
    %v6763 = vrcp.pop %v6629
    %v6764 = vrcp.pop %v6632
    %v6765 = vrcp.pop %v6635
    %v6766 = vrcp.pop %v6638
    %v6767 = vrcp.pop %v6641
    %v6768 = vrcp.pop %v6644
    %v6769 = vrcp.pop %v6647
    %v6770 = vrcp.pop %v6650
    %v6771 = vrcp.pop %v6653
    %v6772 = vrcp.pop %v6656
    %v6773 = vrcp.pop %v6659
    %v6774 = vrcp.pop %v6662
    %v6775 = vrcp.pop %v6665
    %v6776 = vrcp.pop %v6668
    %v6777 = vrcp.pop %v6671
    %v6778 = vrcp.pop %v6674
    %v6779 = vrcp.pop %v6677
    %v6780 = vrcp.pop %v6680
    %v6781 = vrcp.pop %v6683
    %v6782 = vrcp.pop %v6686
    %v6783 = vrcp.pop %v6689
    %v6784 = vrcp.pop %v6692
    %v6785 = vrcp.pop %v6695
    %v6786 = vrcp.pop %v6698
    %v6787 = vrcp.pop %v6701
    %v6788 = vrcp.pop %v6704
    %v6789 = vrcp.pop %v6707
    %v6790 = vrcp.pop %v6710
    %v6791 = vrcp.pop %v6713
    %v6792 = vrcp.pop %v6716
    %v6793 = vrcp.pop %v6719
    %v6794 = vrcp.pop %v6722
    %v6795 = vrcp.pop %v6725
    %v6796 = vrcp.pop %v6728
    %v6797 = vrcp.pop %v6731
    %v6798 = vrcp.pop %v6734
    %v6799 = vmul.f32 %v6416, %v6735
    %v6800 = vmul.f32 %v6418, %v6736
    %v6801 = vmul.f32 %v6420, %v6737
    %v6802 = vmul.f32 %v6422, %v6738
    %v6803 = vmul.f32 %v6424, %v6739
    %v6804 = vmul.f32 %v6426, %v6740
    %v6805 = vmul.f32 %v6428, %v6741
    %v6806 = vmul.f32 %v6430, %v6742
    %v6807 = vmul.f32 %v6432, %v6743
    %v6808 = vmul.f32 %v6434, %v6744
    %v6809 = vmul.f32 %v6436, %v6745
    %v6810 = vmul.f32 %v6438, %v6746
    %v6811 = vmul.f32 %v6440, %v6747
    %v6812 = vmul.f32 %v6442, %v6748
    %v6813 = vmul.f32 %v6444, %v6749
    %v6814 = vmul.f32 %v6446, %v6750
    %v6815 = vmul.f32 %v6448, %v6751
    %v6816 = vmul.f32 %v6450, %v6752
    %v6817 = vmul.f32 %v6452, %v6753
    %v6818 = vmul.f32 %v6454, %v6754
    %v6819 = vmul.f32 %v6456, %v6755
    %v6820 = vmul.f32 %v6458, %v6756
    %v6821 = vmul.f32 %v6460, %v6757
    %v6822 = vmul.f32 %v6462, %v6758
    %v6823 = vmul.f32 %v6464, %v6759
    %v6824 = vmul.f32 %v6466, %v6760
    %v6825 = vmul.f32 %v6468, %v6761
    %v6826 = vmul.f32 %v6470, %v6762
    %v6827 = vmul.f32 %v6472, %v6763
    %v6828 = vmul.f32 %v6474, %v6764
    %v6829 = vmul.f32 %v6476, %v6765
    %v6830 = vmul.f32 %v6478, %v6766
    %v6831 = vmul.f32 %v6480, %v6767
    %v6832 = vmul.f32 %v6482, %v6768
    %v6833 = vmul.f32 %v6484, %v6769
    %v6834 = vmul.f32 %v6486, %v6770
    %v6835 = vmul.f32 %v6488, %v6771
    %v6836 = vmul.f32 %v6490, %v6772
    %v6837 = vmul.f32 %v6492, %v6773
    %v6838 = vmul.f32 %v6494, %v6774
    %v6839 = vmul.f32 %v6496, %v6775
    %v6840 = vmul.f32 %v6498, %v6776
    %v6841 = vmul.f32 %v6500, %v6777
    %v6842 = vmul.f32 %v6502, %v6778
    %v6843 = vmul.f32 %v6504, %v6779
    %v6844 = vmul.f32 %v6506, %v6780
    %v6845 = vmul.f32 %v6508, %v6781
    %v6846 = vmul.f32 %v6510, %v6782
    %v6847 = vmul.f32 %v6512, %v6783
    %v6848 = vmul.f32 %v6514, %v6784
    %v6849 = vmul.f32 %v6516, %v6785
    %v6850 = vmul.f32 %v6518, %v6786
    %v6851 = vmul.f32 %v6520, %v6787
    %v6852 = vmul.f32 %v6522, %v6788
    %v6853 = vmul.f32 %v6524, %v6789
    %v6854 = vmul.f32 %v6526, %v6790
    %v6855 = vmul.f32 %v6528, %v6791
    %v6856 = vmul.f32 %v6530, %v6792
    %v6857 = vmul.f32 %v6532, %v6793
    %v6858 = vmul.f32 %v6534, %v6794
    %v6859 = vmul.f32 %v6536, %v6795
    %v6860 = vmul.f32 %v6538, %v6796
    %v6861 = vmul.f32 %v6540, %v6797
    %v6862 = vmul.f32 %v6542, %v6798
    %v6863 = vpack.c.bf16 %v6800, %v6799
    %v6864 = vpack.c.bf16 %v6802, %v6801
    %v6865 = vpack.c.bf16 %v6804, %v6803
    %v6866 = vpack.c.bf16 %v6806, %v6805
    %v6867 = vpack.c.bf16 %v6808, %v6807
    %v6868 = vpack.c.bf16 %v6810, %v6809
    %v6869 = vpack.c.bf16 %v6812, %v6811
    %v6870 = vpack.c.bf16 %v6814, %v6813
    %v6871 = vpack.c.bf16 %v6816, %v6815
    %v6872 = vpack.c.bf16 %v6818, %v6817
    %v6873 = vpack.c.bf16 %v6820, %v6819
    %v6874 = vpack.c.bf16 %v6822, %v6821
    %v6875 = vpack.c.bf16 %v6824, %v6823
    %v6876 = vpack.c.bf16 %v6826, %v6825
    %v6877 = vpack.c.bf16 %v6828, %v6827
    %v6878 = vpack.c.bf16 %v6830, %v6829
    %v6879 = vpack.c.bf16 %v6832, %v6831
    %v6880 = vpack.c.bf16 %v6834, %v6833
    %v6881 = vpack.c.bf16 %v6836, %v6835
    %v6882 = vpack.c.bf16 %v6838, %v6837
    %v6883 = vpack.c.bf16 %v6840, %v6839
    %v6884 = vpack.c.bf16 %v6842, %v6841
    %v6885 = vpack.c.bf16 %v6844, %v6843
    %v6886 = vpack.c.bf16 %v6846, %v6845
    %v6887 = vpack.c.bf16 %v6848, %v6847
    %v6888 = vpack.c.bf16 %v6850, %v6849
    %v6889 = vpack.c.bf16 %v6852, %v6851
    %v6890 = vpack.c.bf16 %v6854, %v6853
    %v6891 = vpack.c.bf16 %v6856, %v6855
    %v6892 = vpack.c.bf16 %v6858, %v6857
    %v6893 = vpack.c.bf16 %v6860, %v6859
    %v6894 = vpack.c.bf16 %v6862, %v6861
    %v6896 = vsel %vm1620, %v6863, 0
    %v6899 = vsel %vm1620, %v6864, 0
    %v6902 = vsel %vm1620, %v6865, 0
    %v6905 = vsel %vm1620, %v6866, 0
    %6907 = vmatprep.subr.bf16.mxu0 0
    %6908 = vmatpush1.bf16.msra.mxu0 %v5169
    %6909 = vmatprep.subr.bf16.mxu0 0
    %6910 = vmatpush1.bf16.msra.mxu0 %v5172
    %6911 = vmatprep.subr.bf16.mxu0 0
    %6912 = vmatpush1.bf16.msra.mxu0 %v5175
    %6913 = vmatprep.subr.bf16.mxu0 0
    %6914 = vmatpush1.bf16.msra.mxu0 %v5178
    %6915 = vmatprep.subr.bf16.mxu0 0
    %6916 = vmatpush1.bf16.msra.mxu0 0
    %6917 = vmatprep.subr.bf16.mxu0 0
    %6918 = vmatpush1.bf16.msra.mxu0 0
    %6919 = vmatprep.subr.bf16.mxu0 0
    %6920 = vmatpush1.bf16.msra.mxu0 0
    %6921 = vmatprep.subr.bf16.mxu0 0
    %6922 = vmatpush1.bf16.msra.mxu0 0
    %6923 = vmatprep.subr.bf16.mxu0 0
    %6924 = vmatpush1.bf16.msra.mxu0 0
    %6925 = vmatprep.subr.bf16.mxu0 0
    %6926 = vmatpush1.bf16.msra.mxu0 0
    %6927 = vmatprep.subr.bf16.mxu0 0
    %6928 = vmatpush1.bf16.msra.mxu0 0
    %6929 = vmatprep.subr.bf16.mxu0 0
    %6930 = vmatpush1.bf16.msra.mxu0 0
    %6931 = vmatprep.subr.bf16.mxu0 0
    %6932 = vmatpush1.bf16.msra.mxu0 0
    %6933 = vmatprep.subr.bf16.mxu0 0
    %6934 = vmatpush1.bf16.msra.mxu0 0
    %6935 = vmatprep.subr.bf16.mxu0 0
    %6936 = vmatpush1.bf16.msra.mxu0 0
    %6937 = vmatprep.subr.bf16.mxu0 0
    %6938 = vmatpush1.bf16.msra.mxu0 0
    %6939 = vmatprep.mubr.bf16.mxu0 0
    %6940 = vmatmul.mubr.bf16.gmra.mrb[0].mxu0 %v6896
    %v6941 = vpop.f32.mrb[0].mxu0
    %v6942 = vadd.f32 0.0, %v6941
    %v6943 = vpop.f32.mrb[0].mxu0
    %v6944 = vpop.f32.mrb[0].mxu0
    %v6945 = vadd.f32 0.0, %v6944
    %v6946 = vpop.f32.mrb[0].mxu0
    %6947 = vmatprep.mubr.bf16.mxu0 0
    %6948 = vmatmul.mubr.bf16.gmra.mrb[0].mxu0 %v6899
    %v6949 = vpop.f32.mrb[0].mxu0
    %v6950 = vadd.f32 0.0, %v6949
    %v6951 = vpop.f32.mrb[0].mxu0
    %v6952 = vpop.f32.mrb[0].mxu0
    %v6953 = vadd.f32 0.0, %v6952
    %v6954 = vpop.f32.mrb[0].mxu0
    %6955 = vmatprep.mubr.bf16.mxu0 0
    %6956 = vmatmul.mubr.bf16.gmra.mrb[0].mxu0 %v6902
    %v6957 = vpop.f32.mrb[0].mxu0
    %v6958 = vadd.f32 0.0, %v6957
    %v6959 = vpop.f32.mrb[0].mxu0
    %v6960 = vpop.f32.mrb[0].mxu0
    %v6961 = vadd.f32 0.0, %v6960
    %v6962 = vpop.f32.mrb[0].mxu0
    %6963 = vmatprep.mubr.bf16.mxu0 0
    %6964 = vmatmul.mubr.bf16.gmra.mrb[0].mxu0 %v6905
    %v6965 = vpop.f32.mrb[0].mxu0
    %v6966 = vadd.f32 0.0, %v6965
    %v6967 = vpop.f32.mrb[0].mxu0
    %v6968 = vpop.f32.mrb[0].mxu0
    %v6969 = vadd.f32 0.0, %v6968
    %v6970 = vpop.f32.mrb[0].mxu0
    %6971 = vdwg.mxu0
    %v6973 = vsel %vm1620, %v6867, 0
    %v6976 = vsel %vm1620, %v6868, 0
    %v6979 = vsel %vm1620, %v6869, 0
    %v6982 = vsel %vm1620, %v6870, 0
    %6984 = vmatprep.subr.bf16.mxu0 0
    %6985 = vmatpush1.bf16.msra.mxu0 %v5181
    %6986 = vmatprep.subr.bf16.mxu0 0
    %6987 = vmatpush1.bf16.msra.mxu0 %v5184
    %6988 = vmatprep.subr.bf16.mxu0 0
    %6989 = vmatpush1.bf16.msra.mxu0 %v5187
    %6990 = vmatprep.subr.bf16.mxu0 0
    %6991 = vmatpush1.bf16.msra.mxu0 %v5190
    %6992 = vmatprep.subr.bf16.mxu0 0
    %6993 = vmatpush1.bf16.msra.mxu0 0
    %6994 = vmatprep.subr.bf16.mxu0 0
    %6995 = vmatpush1.bf16.msra.mxu0 0
    %6996 = vmatprep.subr.bf16.mxu0 0
    %6997 = vmatpush1.bf16.msra.mxu0 0
    %6998 = vmatprep.subr.bf16.mxu0 0
    %6999 = vmatpush1.bf16.msra.mxu0 0
    %7000 = vmatprep.subr.bf16.mxu0 0
    %7001 = vmatpush1.bf16.msra.mxu0 0
    %7002 = vmatprep.subr.bf16.mxu0 0
    %7003 = vmatpush1.bf16.msra.mxu0 0
    %7004 = vmatprep.subr.bf16.mxu0 0
    %7005 = vmatpush1.bf16.msra.mxu0 0
    %7006 = vmatprep.subr.bf16.mxu0 0
    %7007 = vmatpush1.bf16.msra.mxu0 0
    %7008 = vmatprep.subr.bf16.mxu0 0
    %7009 = vmatpush1.bf16.msra.mxu0 0
    %7010 = vmatprep.subr.bf16.mxu0 0
    %7011 = vmatpush1.bf16.msra.mxu0 0
    %7012 = vmatprep.subr.bf16.mxu0 0
    %7013 = vmatpush1.bf16.msra.mxu0 0
    %7014 = vmatprep.subr.bf16.mxu0 0
    %7015 = vmatpush1.bf16.msra.mxu0 0
    %7016 = vmatprep.mubr.bf16.mxu0 0
    %7017 = vmatmul.mubr.bf16.gmra.mrb[0].mxu0 %v6973
    %v7018 = vpop.f32.mrb[0].mxu0
    %v7019 = vadd.f32 0.0, %v7018
    %v7020 = vpop.f32.mrb[0].mxu0
    %v7021 = vpop.f32.mrb[0].mxu0
    %v7022 = vadd.f32 0.0, %v7021
    %v7023 = vpop.f32.mrb[0].mxu0
    %7024 = vmatprep.mubr.bf16.mxu0 0
    %7025 = vmatmul.mubr.bf16.gmra.mrb[0].mxu0 %v6976
    %v7026 = vpop.f32.mrb[0].mxu0
    %v7027 = vadd.f32 0.0, %v7026
    %v7028 = vpop.f32.mrb[0].mxu0
    %v7029 = vpop.f32.mrb[0].mxu0
    %v7030 = vadd.f32 0.0, %v7029
    %v7031 = vpop.f32.mrb[0].mxu0
    %7032 = vmatprep.mubr.bf16.mxu0 0
    %7033 = vmatmul.mubr.bf16.gmra.mrb[0].mxu0 %v6979
    %v7034 = vpop.f32.mrb[0].mxu0
    %v7035 = vadd.f32 0.0, %v7034
    %v7036 = vpop.f32.mrb[0].mxu0
    %v7037 = vpop.f32.mrb[0].mxu0
    %v7038 = vadd.f32 0.0, %v7037
    %v7039 = vpop.f32.mrb[0].mxu0
    %7040 = vmatprep.mubr.bf16.mxu0 0
    %7041 = vmatmul.mubr.bf16.gmra.mrb[0].mxu0 %v6982
    %v7042 = vpop.f32.mrb[0].mxu0
    %v7043 = vadd.f32 0.0, %v7042
    %v7044 = vpop.f32.mrb[0].mxu0
    %v7045 = vpop.f32.mrb[0].mxu0
    %v7046 = vadd.f32 0.0, %v7045
    %v7047 = vpop.f32.mrb[0].mxu0
    %7048 = vdwg.mxu0
    %v7050 = vsel %vm1620, %v6871, 0
    %v7053 = vsel %vm1620, %v6872, 0
    %v7056 = vsel %vm1620, %v6873, 0
    %v7059 = vsel %vm1620, %v6874, 0
    %7061 = vmatprep.subr.bf16.mxu0 0
    %7062 = vmatpush1.bf16.msra.mxu0 %v5312
    %7063 = vmatprep.subr.bf16.mxu0 0
    %7064 = vmatpush1.bf16.msra.mxu0 %v5314
    %7065 = vmatprep.subr.bf16.mxu0 0
    %7066 = vmatpush1.bf16.msra.mxu0 %v5316
    %7067 = vmatprep.subr.bf16.mxu0 0
    %7068 = vmatpush1.bf16.msra.mxu0 %v5318
    %7069 = vmatprep.subr.bf16.mxu0 0
    %7070 = vmatpush1.bf16.msra.mxu0 0
    %7071 = vmatprep.subr.bf16.mxu0 0
    %7072 = vmatpush1.bf16.msra.mxu0 0
    %7073 = vmatprep.subr.bf16.mxu0 0
    %7074 = vmatpush1.bf16.msra.mxu0 0
    %7075 = vmatprep.subr.bf16.mxu0 0
    %7076 = vmatpush1.bf16.msra.mxu0 0
    %7077 = vmatprep.subr.bf16.mxu0 0
    %7078 = vmatpush1.bf16.msra.mxu0 0
    %7079 = vmatprep.subr.bf16.mxu0 0
    %7080 = vmatpush1.bf16.msra.mxu0 0
    %7081 = vmatprep.subr.bf16.mxu0 0
    %7082 = vmatpush1.bf16.msra.mxu0 0
    %7083 = vmatprep.subr.bf16.mxu0 0
    %7084 = vmatpush1.bf16.msra.mxu0 0
    %7085 = vmatprep.subr.bf16.mxu0 0
    %7086 = vmatpush1.bf16.msra.mxu0 0
    %7087 = vmatprep.subr.bf16.mxu0 0
    %7088 = vmatpush1.bf16.msra.mxu0 0
    %7089 = vmatprep.subr.bf16.mxu0 0
    %7090 = vmatpush1.bf16.msra.mxu0 0
    %7091 = vmatprep.subr.bf16.mxu0 0
    %7092 = vmatpush1.bf16.msra.mxu0 0
    %7093 = vmatprep.mubr.bf16.mxu0 0
    %7094 = vmatmul.mubr.bf16.gmra.mrb[0].mxu0 %v7050
    %v7095 = vpop.f32.mrb[0].mxu0
    %v7096 = vadd.f32 0.0, %v7095
    %v7097 = vpop.f32.mrb[0].mxu0
    %v7098 = vpop.f32.mrb[0].mxu0
    %v7099 = vadd.f32 0.0, %v7098
    %v7100 = vpop.f32.mrb[0].mxu0
    %7101 = vmatprep.mubr.bf16.mxu0 0
    %7102 = vmatmul.mubr.bf16.gmra.mrb[0].mxu0 %v7053
    %v7103 = vpop.f32.mrb[0].mxu0
    %v7104 = vadd.f32 0.0, %v7103
    %v7105 = vpop.f32.mrb[0].mxu0
    %v7106 = vpop.f32.mrb[0].mxu0
    %v7107 = vadd.f32 0.0, %v7106
    %v7108 = vpop.f32.mrb[0].mxu0
    %7109 = vmatprep.mubr.bf16.mxu0 0
    %7110 = vmatmul.mubr.bf16.gmra.mrb[0].mxu0 %v7056
    %v7111 = vpop.f32.mrb[0].mxu0
    %v7112 = vadd.f32 0.0, %v7111
    %v7113 = vpop.f32.mrb[0].mxu0
    %v7114 = vpop.f32.mrb[0].mxu0
    %v7115 = vadd.f32 0.0, %v7114
    %v7116 = vpop.f32.mrb[0].mxu0
    %7117 = vmatprep.mubr.bf16.mxu0 0
    %7118 = vmatmul.mubr.bf16.gmra.mrb[0].mxu0 %v7059
    %v7119 = vpop.f32.mrb[0].mxu0
    %v7120 = vadd.f32 0.0, %v7119
    %v7121 = vpop.f32.mrb[0].mxu0
    %v7122 = vpop.f32.mrb[0].mxu0
    %v7123 = vadd.f32 0.0, %v7122
    %v7124 = vpop.f32.mrb[0].mxu0
    %7125 = vdwg.mxu0
    %v7127 = vsel %vm1620, %v6875, 0
    %v7130 = vsel %vm1620, %v6876, 0
    %v7133 = vsel %vm1620, %v6877, 0
    %v7136 = vsel %vm1620, %v6878, 0
    %7138 = vmatprep.subr.bf16.mxu0 0
    %7139 = vmatpush1.bf16.msra.mxu0 %v5320
    %7140 = vmatprep.subr.bf16.mxu0 0
    %7141 = vmatpush1.bf16.msra.mxu0 %v5322
    %7142 = vmatprep.subr.bf16.mxu0 0
    %7143 = vmatpush1.bf16.msra.mxu0 %v5324
    %7144 = vmatprep.subr.bf16.mxu0 0
    %7145 = vmatpush1.bf16.msra.mxu0 %v5326
    %7146 = vmatprep.subr.bf16.mxu0 0
    %7147 = vmatpush1.bf16.msra.mxu0 0
    %7148 = vmatprep.subr.bf16.mxu0 0
    %7149 = vmatpush1.bf16.msra.mxu0 0
    %7150 = vmatprep.subr.bf16.mxu0 0
    %7151 = vmatpush1.bf16.msra.mxu0 0
    %7152 = vmatprep.subr.bf16.mxu0 0
    %7153 = vmatpush1.bf16.msra.mxu0 0
    %7154 = vmatprep.subr.bf16.mxu0 0
    %7155 = vmatpush1.bf16.msra.mxu0 0
    %7156 = vmatprep.subr.bf16.mxu0 0
    %7157 = vmatpush1.bf16.msra.mxu0 0
    %7158 = vmatprep.subr.bf16.mxu0 0
    %7159 = vmatpush1.bf16.msra.mxu0 0
    %7160 = vmatprep.subr.bf16.mxu0 0
    %7161 = vmatpush1.bf16.msra.mxu0 0
    %7162 = vmatprep.subr.bf16.mxu0 0
    %7163 = vmatpush1.bf16.msra.mxu0 0
    %7164 = vmatprep.subr.bf16.mxu0 0
    %7165 = vmatpush1.bf16.msra.mxu0 0
    %7166 = vmatprep.subr.bf16.mxu0 0
    %7167 = vmatpush1.bf16.msra.mxu0 0
    %7168 = vmatprep.subr.bf16.mxu0 0
    %7169 = vmatpush1.bf16.msra.mxu0 0
    %7170 = vmatprep.mubr.bf16.mxu0 0
    %7171 = vmatmul.mubr.bf16.gmra.mrb[0].mxu0 %v7127
    %v7172 = vpop.f32.mrb[0].mxu0
    %v7173 = vadd.f32 0.0, %v7172
    %v7174 = vpop.f32.mrb[0].mxu0
    %v7175 = vpop.f32.mrb[0].mxu0
    %v7176 = vadd.f32 0.0, %v7175
    %v7177 = vpop.f32.mrb[0].mxu0
    %7178 = vmatprep.mubr.bf16.mxu0 0
    %7179 = vmatmul.mubr.bf16.gmra.mrb[0].mxu0 %v7130
    %v7180 = vpop.f32.mrb[0].mxu0
    %v7181 = vadd.f32 0.0, %v7180
    %v7182 = vpop.f32.mrb[0].mxu0
    %v7183 = vpop.f32.mrb[0].mxu0
    %v7184 = vadd.f32 0.0, %v7183
    %v7185 = vpop.f32.mrb[0].mxu0
    %7186 = vmatprep.mubr.bf16.mxu0 0
    %7187 = vmatmul.mubr.bf16.gmra.mrb[0].mxu0 %v7133
    %v7188 = vpop.f32.mrb[0].mxu0
    %v7189 = vadd.f32 0.0, %v7188
    %v7190 = vpop.f32.mrb[0].mxu0
    %v7191 = vpop.f32.mrb[0].mxu0
    %v7192 = vadd.f32 0.0, %v7191
    %v7193 = vpop.f32.mrb[0].mxu0
    %7194 = vmatprep.mubr.bf16.mxu0 0
    %7195 = vmatmul.mubr.bf16.gmra.mrb[0].mxu0 %v7136
    %v7196 = vpop.f32.mrb[0].mxu0
    %v7197 = vadd.f32 0.0, %v7196
    %v7198 = vpop.f32.mrb[0].mxu0
    %v7199 = vpop.f32.mrb[0].mxu0
    %v7200 = vadd.f32 0.0, %v7199
    %v7201 = vpop.f32.mrb[0].mxu0
    %7202 = vdwg.mxu0
    %v7204 = vsel %vm1620, %v6879, 0
    %v7207 = vsel %vm1620, %v6880, 0
    %v7210 = vsel %vm1620, %v6881, 0
    %v7213 = vsel %vm1620, %v6882, 0
    %7215 = vmatprep.subr.bf16.mxu0 0
    %7216 = vmatpush1.bf16.msra.mxu0 %v5336
    %7217 = vmatprep.subr.bf16.mxu0 0
    %7218 = vmatpush1.bf16.msra.mxu0 %v5338
    %7219 = vmatprep.subr.bf16.mxu0 0
    %7220 = vmatpush1.bf16.msra.mxu0 %v5340
    %7221 = vmatprep.subr.bf16.mxu0 0
    %7222 = vmatpush1.bf16.msra.mxu0 %v5342
    %7223 = vmatprep.subr.bf16.mxu0 0
    %7224 = vmatpush1.bf16.msra.mxu0 0
    %7225 = vmatprep.subr.bf16.mxu0 0
    %7226 = vmatpush1.bf16.msra.mxu0 0
    %7227 = vmatprep.subr.bf16.mxu0 0
    %7228 = vmatpush1.bf16.msra.mxu0 0
    %7229 = vmatprep.subr.bf16.mxu0 0
    %7230 = vmatpush1.bf16.msra.mxu0 0
    %7231 = vmatprep.subr.bf16.mxu0 0
    %7232 = vmatpush1.bf16.msra.mxu0 0
    %7233 = vmatprep.subr.bf16.mxu0 0
    %7234 = vmatpush1.bf16.msra.mxu0 0
    %7235 = vmatprep.subr.bf16.mxu0 0
    %7236 = vmatpush1.bf16.msra.mxu0 0
    %7237 = vmatprep.subr.bf16.mxu0 0
    %7238 = vmatpush1.bf16.msra.mxu0 0
    %7239 = vmatprep.subr.bf16.mxu0 0
    %7240 = vmatpush1.bf16.msra.mxu0 0
    %7241 = vmatprep.subr.bf16.mxu0 0
    %7242 = vmatpush1.bf16.msra.mxu0 0
    %7243 = vmatprep.subr.bf16.mxu0 0
    %7244 = vmatpush1.bf16.msra.mxu0 0
    %7245 = vmatprep.subr.bf16.mxu0 0
    %7246 = vmatpush1.bf16.msra.mxu0 0
    %7247 = vmatprep.mubr.bf16.mxu0 0
    %7248 = vmatmul.mubr.bf16.gmra.mrb[0].mxu0 %v7204
    %v7249 = vpop.f32.mrb[0].mxu0
    %v7250 = vadd.f32 0.0, %v7249
    %v7251 = vpop.f32.mrb[0].mxu0
    %v7252 = vpop.f32.mrb[0].mxu0
    %v7253 = vadd.f32 0.0, %v7252
    %v7254 = vpop.f32.mrb[0].mxu0
    %7255 = vmatprep.mubr.bf16.mxu0 0
    %7256 = vmatmul.mubr.bf16.gmra.mrb[0].mxu0 %v7207
    %v7257 = vpop.f32.mrb[0].mxu0
    %v7258 = vadd.f32 0.0, %v7257
    %v7259 = vpop.f32.mrb[0].mxu0
    %v7260 = vpop.f32.mrb[0].mxu0
    %v7261 = vadd.f32 0.0, %v7260
    %v7262 = vpop.f32.mrb[0].mxu0
    %7263 = vmatprep.mubr.bf16.mxu0 0
    %7264 = vmatmul.mubr.bf16.gmra.mrb[0].mxu0 %v7210
    %v7265 = vpop.f32.mrb[0].mxu0
    %v7266 = vadd.f32 0.0, %v7265
    %v7267 = vpop.f32.mrb[0].mxu0
    %v7268 = vpop.f32.mrb[0].mxu0
    %v7269 = vadd.f32 0.0, %v7268
    %v7270 = vpop.f32.mrb[0].mxu0
    %7271 = vmatprep.mubr.bf16.mxu0 0
    %7272 = vmatmul.mubr.bf16.gmra.mrb[0].mxu0 %v7213
    %v7273 = vpop.f32.mrb[0].mxu0
    %v7274 = vadd.f32 0.0, %v7273
    %v7275 = vpop.f32.mrb[0].mxu0
    %v7276 = vpop.f32.mrb[0].mxu0
    %v7277 = vadd.f32 0.0, %v7276
    %v7278 = vpop.f32.mrb[0].mxu0
    %7279 = vdwg.mxu0
    %v7281 = vsel %vm1620, %v6883, 0
    %v7284 = vsel %vm1620, %v6884, 0
    %v7287 = vsel %vm1620, %v6885, 0
    %v7290 = vsel %vm1620, %v6886, 0
    %7292 = vmatprep.subr.bf16.mxu0 0
    %7293 = vmatpush1.bf16.msra.mxu0 %v5344
    %7294 = vmatprep.subr.bf16.mxu0 0
    %7295 = vmatpush1.bf16.msra.mxu0 %v5346
    %7296 = vmatprep.subr.bf16.mxu0 0
    %7297 = vmatpush1.bf16.msra.mxu0 %v5348
    %7298 = vmatprep.subr.bf16.mxu0 0
    %7299 = vmatpush1.bf16.msra.mxu0 %v5350
    %7300 = vmatprep.subr.bf16.mxu0 0
    %7301 = vmatpush1.bf16.msra.mxu0 0
    %7302 = vmatprep.subr.bf16.mxu0 0
    %7303 = vmatpush1.bf16.msra.mxu0 0
    %7304 = vmatprep.subr.bf16.mxu0 0
    %7305 = vmatpush1.bf16.msra.mxu0 0
    %7306 = vmatprep.subr.bf16.mxu0 0
    %7307 = vmatpush1.bf16.msra.mxu0 0
    %7308 = vmatprep.subr.bf16.mxu0 0
    %7309 = vmatpush1.bf16.msra.mxu0 0
    %7310 = vmatprep.subr.bf16.mxu0 0
    %7311 = vmatpush1.bf16.msra.mxu0 0
    %7312 = vmatprep.subr.bf16.mxu0 0
    %7313 = vmatpush1.bf16.msra.mxu0 0
    %7314 = vmatprep.subr.bf16.mxu0 0
    %7315 = vmatpush1.bf16.msra.mxu0 0
    %7316 = vmatprep.subr.bf16.mxu0 0
    %7317 = vmatpush1.bf16.msra.mxu0 0
    %7318 = vmatprep.subr.bf16.mxu0 0
    %7319 = vmatpush1.bf16.msra.mxu0 0
    %7320 = vmatprep.subr.bf16.mxu0 0
    %7321 = vmatpush1.bf16.msra.mxu0 0
    %7322 = vmatprep.subr.bf16.mxu0 0
    %7323 = vmatpush1.bf16.msra.mxu0 0
    %7324 = vmatprep.mubr.bf16.mxu0 0
    %7325 = vmatmul.mubr.bf16.gmra.mrb[0].mxu0 %v7281
    %v7326 = vpop.f32.mrb[0].mxu0
    %v7327 = vadd.f32 0.0, %v7326
    %v7328 = vpop.f32.mrb[0].mxu0
    %v7329 = vpop.f32.mrb[0].mxu0
    %v7330 = vadd.f32 0.0, %v7329
    %v7331 = vpop.f32.mrb[0].mxu0
    %7332 = vmatprep.mubr.bf16.mxu0 0
    %7333 = vmatmul.mubr.bf16.gmra.mrb[0].mxu0 %v7284
    %v7334 = vpop.f32.mrb[0].mxu0
    %v7335 = vadd.f32 0.0, %v7334
    %v7336 = vpop.f32.mrb[0].mxu0
    %v7337 = vpop.f32.mrb[0].mxu0
    %v7338 = vadd.f32 0.0, %v7337
    %v7339 = vpop.f32.mrb[0].mxu0
    %7340 = vmatprep.mubr.bf16.mxu0 0
    %7341 = vmatmul.mubr.bf16.gmra.mrb[0].mxu0 %v7287
    %v7342 = vpop.f32.mrb[0].mxu0
    %v7343 = vadd.f32 0.0, %v7342
    %v7344 = vpop.f32.mrb[0].mxu0
    %v7345 = vpop.f32.mrb[0].mxu0
    %v7346 = vadd.f32 0.0, %v7345
    %v7347 = vpop.f32.mrb[0].mxu0
    %7348 = vmatprep.mubr.bf16.mxu0 0
    %7349 = vmatmul.mubr.bf16.gmra.mrb[0].mxu0 %v7290
    %v7350 = vpop.f32.mrb[0].mxu0
    %v7351 = vadd.f32 0.0, %v7350
    %v7352 = vpop.f32.mrb[0].mxu0
    %v7353 = vpop.f32.mrb[0].mxu0
    %v7354 = vadd.f32 0.0, %v7353
    %v7355 = vpop.f32.mrb[0].mxu0
    %7356 = vdwg.mxu0
    %v7358 = vsel %vm1620, %v6887, 0
    %v7361 = vsel %vm1620, %v6888, 0
    %v7364 = vsel %vm1620, %v6889, 0
    %v7367 = vsel %vm1620, %v6890, 0
    %7369 = vmatprep.subr.bf16.mxu0 0
    %7370 = vmatpush1.bf16.msra.mxu0 %v5360
    %7371 = vmatprep.subr.bf16.mxu0 0
    %7372 = vmatpush1.bf16.msra.mxu0 %v5362
    %7373 = vmatprep.subr.bf16.mxu0 0
    %7374 = vmatpush1.bf16.msra.mxu0 %v5364
    %7375 = vmatprep.subr.bf16.mxu0 0
    %7376 = vmatpush1.bf16.msra.mxu0 %v5366
    %7377 = vmatprep.subr.bf16.mxu0 0
    %7378 = vmatpush1.bf16.msra.mxu0 0
    %7379 = vmatprep.subr.bf16.mxu0 0
    %7380 = vmatpush1.bf16.msra.mxu0 0
    %7381 = vmatprep.subr.bf16.mxu0 0
    %7382 = vmatpush1.bf16.msra.mxu0 0
    %7383 = vmatprep.subr.bf16.mxu0 0
    %7384 = vmatpush1.bf16.msra.mxu0 0
    %7385 = vmatprep.subr.bf16.mxu0 0
    %7386 = vmatpush1.bf16.msra.mxu0 0
    %7387 = vmatprep.subr.bf16.mxu0 0
    %7388 = vmatpush1.bf16.msra.mxu0 0
    %7389 = vmatprep.subr.bf16.mxu0 0
    %7390 = vmatpush1.bf16.msra.mxu0 0
    %7391 = vmatprep.subr.bf16.mxu0 0
    %7392 = vmatpush1.bf16.msra.mxu0 0
    %7393 = vmatprep.subr.bf16.mxu0 0
    %7394 = vmatpush1.bf16.msra.mxu0 0
    %7395 = vmatprep.subr.bf16.mxu0 0
    %7396 = vmatpush1.bf16.msra.mxu0 0
    %7397 = vmatprep.subr.bf16.mxu0 0
    %7398 = vmatpush1.bf16.msra.mxu0 0
    %7399 = vmatprep.subr.bf16.mxu0 0
    %7400 = vmatpush1.bf16.msra.mxu0 0
    %7401 = vmatprep.mubr.bf16.mxu0 0
    %7402 = vmatmul.mubr.bf16.gmra.mrb[0].mxu0 %v7358
    %v7403 = vpop.f32.mrb[0].mxu0
    %v7404 = vadd.f32 0.0, %v7403
    %v7405 = vpop.f32.mrb[0].mxu0
    %v7406 = vpop.f32.mrb[0].mxu0
    %v7407 = vadd.f32 0.0, %v7406
    %v7408 = vpop.f32.mrb[0].mxu0
    %7409 = vmatprep.mubr.bf16.mxu0 0
    %7410 = vmatmul.mubr.bf16.gmra.mrb[0].mxu0 %v7361
    %v7411 = vpop.f32.mrb[0].mxu0
    %v7412 = vadd.f32 0.0, %v7411
    %v7413 = vpop.f32.mrb[0].mxu0
    %v7414 = vpop.f32.mrb[0].mxu0
    %v7415 = vadd.f32 0.0, %v7414
    %v7416 = vpop.f32.mrb[0].mxu0
    %7417 = vmatprep.mubr.bf16.mxu0 0
    %7418 = vmatmul.mubr.bf16.gmra.mrb[0].mxu0 %v7364
    %v7419 = vpop.f32.mrb[0].mxu0
    %v7420 = vadd.f32 0.0, %v7419
    %v7421 = vpop.f32.mrb[0].mxu0
    %v7422 = vpop.f32.mrb[0].mxu0
    %v7423 = vadd.f32 0.0, %v7422
    %v7424 = vpop.f32.mrb[0].mxu0
    %7425 = vmatprep.mubr.bf16.mxu0 0
    %7426 = vmatmul.mubr.bf16.gmra.mrb[0].mxu0 %v7367
    %v7427 = vpop.f32.mrb[0].mxu0
    %v7428 = vadd.f32 0.0, %v7427
    %v7429 = vpop.f32.mrb[0].mxu0
    %v7430 = vpop.f32.mrb[0].mxu0
    %v7431 = vadd.f32 0.0, %v7430
    %v7432 = vpop.f32.mrb[0].mxu0
    %7433 = vdwg.mxu0
    %v7435 = vsel %vm1620, %v6891, 0
    %v7438 = vsel %vm1620, %v6892, 0
    %v7441 = vsel %vm1620, %v6893, 0
    %v7444 = vsel %vm1620, %v6894, 0
    %7446 = vmatprep.subr.bf16.mxu0 0
    %7447 = vmatpush1.bf16.msra.mxu0 %v5368
    %7448 = vmatprep.subr.bf16.mxu0 0
    %7449 = vmatpush1.bf16.msra.mxu0 %v5370
    %7450 = vmatprep.subr.bf16.mxu0 0
    %7451 = vmatpush1.bf16.msra.mxu0 %v5372
    %7452 = vmatprep.subr.bf16.mxu0 0
    %7453 = vmatpush1.bf16.msra.mxu0 %v5374
    %7454 = vmatprep.subr.bf16.mxu0 0
    %7455 = vmatpush1.bf16.msra.mxu0 0
    %7456 = vmatprep.subr.bf16.mxu0 0
    %7457 = vmatpush1.bf16.msra.mxu0 0
    %7458 = vmatprep.subr.bf16.mxu0 0
    %7459 = vmatpush1.bf16.msra.mxu0 0
    %7460 = vmatprep.subr.bf16.mxu0 0
    %7461 = vmatpush1.bf16.msra.mxu0 0
    %7462 = vmatprep.subr.bf16.mxu0 0
    %7463 = vmatpush1.bf16.msra.mxu0 0
    %7464 = vmatprep.subr.bf16.mxu0 0
    %7465 = vmatpush1.bf16.msra.mxu0 0
    %7466 = vmatprep.subr.bf16.mxu0 0
    %7467 = vmatpush1.bf16.msra.mxu0 0
    %7468 = vmatprep.subr.bf16.mxu0 0
    %7469 = vmatpush1.bf16.msra.mxu0 0
    %7470 = vmatprep.subr.bf16.mxu0 0
    %7471 = vmatpush1.bf16.msra.mxu0 0
    %7472 = vmatprep.subr.bf16.mxu0 0
    %7473 = vmatpush1.bf16.msra.mxu0 0
    %7474 = vmatprep.subr.bf16.mxu0 0
    %7475 = vmatpush1.bf16.msra.mxu0 0
    %7476 = vmatprep.subr.bf16.mxu0 0
    %7477 = vmatpush1.bf16.msra.mxu0 0
    %7478 = vmatprep.mubr.bf16.mxu0 0
    %7479 = vmatmul.mubr.bf16.gmra.mrb[0].mxu0 %v7435
    %v7480 = vpop.f32.mrb[0].mxu0
    %v7481 = vadd.f32 0.0, %v7480
    %v7482 = vpop.f32.mrb[0].mxu0
    %v7483 = vpop.f32.mrb[0].mxu0
    %v7484 = vadd.f32 0.0, %v7483
    %v7485 = vpop.f32.mrb[0].mxu0
    %7486 = vmatprep.mubr.bf16.mxu0 0
    %7487 = vmatmul.mubr.bf16.gmra.mrb[0].mxu0 %v7438
    %v7488 = vpop.f32.mrb[0].mxu0
    %v7489 = vadd.f32 0.0, %v7488
    %v7490 = vpop.f32.mrb[0].mxu0
    %v7491 = vpop.f32.mrb[0].mxu0
    %v7492 = vadd.f32 0.0, %v7491
    %v7493 = vpop.f32.mrb[0].mxu0
    %7494 = vmatprep.mubr.bf16.mxu0 0
    %7495 = vmatmul.mubr.bf16.gmra.mrb[0].mxu0 %v7441
    %v7496 = vpop.f32.mrb[0].mxu0
    %v7497 = vadd.f32 0.0, %v7496
    %v7498 = vpop.f32.mrb[0].mxu0
    %v7499 = vpop.f32.mrb[0].mxu0
    %v7500 = vadd.f32 0.0, %v7499
    %v7501 = vpop.f32.mrb[0].mxu0
    %7502 = vmatprep.mubr.bf16.mxu0 0
    %7503 = vmatmul.mubr.bf16.gmra.mrb[0].mxu0 %v7444
    %v7504 = vpop.f32.mrb[0].mxu0
    %v7505 = vadd.f32 0.0, %v7504
    %v7506 = vpop.f32.mrb[0].mxu0
    %v7507 = vpop.f32.mrb[0].mxu0
    %v7508 = vadd.f32 0.0, %v7507
    %v7509 = vpop.f32.mrb[0].mxu0
    %7510 = vdwg.mxu0
    %v7511 = vpack.c.bf16 %v6945, %v6942
    %v7512 = vpack.c.bf16 %v6953, %v6950
    %v7513 = vpack.c.bf16 %v6961, %v6958
    %v7514 = vpack.c.bf16 %v6969, %v6966
    %v7515 = vpack.c.bf16 %v7022, %v7019
    %v7516 = vpack.c.bf16 %v7030, %v7027
    %v7517 = vpack.c.bf16 %v7038, %v7035
    %v7518 = vpack.c.bf16 %v7046, %v7043
    %v7519 = vpack.c.bf16 %v7099, %v7096
    %v7520 = vpack.c.bf16 %v7107, %v7104
    %v7521 = vpack.c.bf16 %v7115, %v7112
    %v7522 = vpack.c.bf16 %v7123, %v7120
    %v7523 = vpack.c.bf16 %v7176, %v7173
    %v7524 = vpack.c.bf16 %v7184, %v7181
    %v7525 = vpack.c.bf16 %v7192, %v7189
    %v7526 = vpack.c.bf16 %v7200, %v7197
    %v7527 = vpack.c.bf16 %v7253, %v7250
    %v7528 = vpack.c.bf16 %v7261, %v7258
    %v7529 = vpack.c.bf16 %v7269, %v7266
    %v7530 = vpack.c.bf16 %v7277, %v7274
    %v7531 = vpack.c.bf16 %v7330, %v7327
    %v7532 = vpack.c.bf16 %v7338, %v7335
    %v7533 = vpack.c.bf16 %v7346, %v7343
    %v7534 = vpack.c.bf16 %v7354, %v7351
    %v7535 = vpack.c.bf16 %v7407, %v7404
    %v7536 = vpack.c.bf16 %v7415, %v7412
    %v7537 = vpack.c.bf16 %v7423, %v7420
    %v7538 = vpack.c.bf16 %v7431, %v7428
    %v7539 = vpack.c.bf16 %v7484, %v7481
    %v7540 = vpack.c.bf16 %v7492, %v7489
    %v7541 = vpack.c.bf16 %v7500, %v7497
    %v7542 = vpack.c.bf16 %v7508, %v7505
    %7551 = vrot.lane.b32.xlu0 %v7519, 32
    %v7552 = vpop.permute.xlu0 %7551
    %7553 = vrot.lane.b32.xlu0 %v7520, 32
    %v7554 = vpop.permute.xlu0 %7553
    %7555 = vrot.lane.b32.xlu0 %v7521, 32
    %v7556 = vpop.permute.xlu0 %7555
    %7557 = vrot.lane.b32.xlu0 %v7522, 32
    %v7558 = vpop.permute.xlu0 %7557
    %7559 = vrot.lane.b32.xlu0 %v7523, 32
    %v7560 = vpop.permute.xlu0 %7559
    %7561 = vrot.lane.b32.xlu0 %v7524, 32
    %v7562 = vpop.permute.xlu0 %7561
    %7563 = vrot.lane.b32.xlu0 %v7525, 32
    %v7564 = vpop.permute.xlu0 %7563
    %7565 = vrot.lane.b32.xlu0 %v7526, 32
    %v7566 = vpop.permute.xlu0 %7565
    %7575 = vrot.lane.b32.xlu0 %v7527, 64
    %v7576 = vpop.permute.xlu0 %7575
    %7577 = vrot.lane.b32.xlu0 %v7528, 64
    %v7578 = vpop.permute.xlu0 %7577
    %7579 = vrot.lane.b32.xlu0 %v7529, 64
    %v7580 = vpop.permute.xlu0 %7579
    %7581 = vrot.lane.b32.xlu0 %v7530, 64
    %v7582 = vpop.permute.xlu0 %7581
    %7583 = vrot.lane.b32.xlu0 %v7531, 64
    %v7584 = vpop.permute.xlu0 %7583
    %7585 = vrot.lane.b32.xlu0 %v7532, 64
    %v7586 = vpop.permute.xlu0 %7585
    %7587 = vrot.lane.b32.xlu0 %v7533, 64
    %v7588 = vpop.permute.xlu0 %7587
    %7589 = vrot.lane.b32.xlu0 %v7534, 64
    %v7590 = vpop.permute.xlu0 %7589
    %7599 = vrot.lane.b32.xlu0 %v7535, 96
    %v7600 = vpop.permute.xlu0 %7599
    %7601 = vrot.lane.b32.xlu0 %v7536, 96
    %v7602 = vpop.permute.xlu0 %7601
    %7603 = vrot.lane.b32.xlu0 %v7537, 96
    %v7604 = vpop.permute.xlu0 %7603
    %7605 = vrot.lane.b32.xlu0 %v7538, 96
    %v7606 = vpop.permute.xlu0 %7605
    %7607 = vrot.lane.b32.xlu0 %v7539, 96
    %v7608 = vpop.permute.xlu0 %7607
    %7609 = vrot.lane.b32.xlu0 %v7540, 96
    %v7610 = vpop.permute.xlu0 %7609
    %7611 = vrot.lane.b32.xlu0 %v7541, 96
    %v7612 = vpop.permute.xlu0 %7611
    %7613 = vrot.lane.b32.xlu0 %v7542, 96
    %v7614 = vpop.permute.xlu0 %7613
    %v7617 = vsel %vm827, %v7511, %v7552
    %v7620 = vsel %vm827, %v7512, %v7554
    %v7623 = vsel %vm827, %v7513, %v7556
    %v7626 = vsel %vm827, %v7514, %v7558
    %v7629 = vsel %vm827, %v7515, %v7560
    %v7632 = vsel %vm827, %v7516, %v7562
    %v7635 = vsel %vm827, %v7517, %v7564
    %v7638 = vsel %vm827, %v7518, %v7566
    %v7640 = vsel %vm1620, %v7617, %v7576
    %v7642 = vsel %vm1620, %v7620, %v7578
    %v7644 = vsel %vm1620, %v7623, %v7580
    %v7646 = vsel %vm1620, %v7626, %v7582
    %v7648 = vsel %vm1620, %v7629, %v7584
    %v7650 = vsel %vm1620, %v7632, %v7586
    %v7652 = vsel %vm1620, %v7635, %v7588
    %v7654 = vsel %vm1620, %v7638, %v7590
    %v7656 = vsel %vm3117, %v7640, %v7600
    %v7659 = vsel %vm3117, %v7642, %v7602
    %v7662 = vsel %vm3117, %v7644, %v7604
    %v7665 = vsel %vm3117, %v7646, %v7606
    %v7668 = vsel %vm3117, %v7648, %v7608
    %v7671 = vsel %vm3117, %v7650, %v7610
    %v7674 = vsel %vm3117, %v7652, %v7612
    %v7677 = vsel %vm3117, %v7654, %v7614
    %s7679 = scalar_lea.vmem %s2, 64
    %v7680 = vld [vmem:[%s7679] sm:$0xf]
    %v7681 = vld [vmem:[%s7679 + $0x4] sm:$0xf]
    %v7682 = vld [vmem:[%s7679 + $0x8] sm:$0xf]
    %v7683 = vld [vmem:[%s7679 + $0xc] sm:$0xf]
    %v7684 = vld [vmem:[%s7679 + $0x10] sm:$0xf]
    %v7685 = vld [vmem:[%s7679 + $0x14] sm:$0xf]
    %v7686 = vld [vmem:[%s7679 + $0x18] sm:$0xf]
    %v7687 = vld [vmem:[%s7679 + $0x1c] sm:$0xf]
    %v7688 = vld [vmem:[%s7679 + $0x20] sm:$0xf]
    %v7689 = vld [vmem:[%s7679 + $0x24] sm:$0xf]
    %v7690 = vld [vmem:[%s7679 + $0x28] sm:$0xf]
    %v7691 = vld [vmem:[%s7679 + $0x2c] sm:$0xf]
    %v7692 = vld [vmem:[%s7679 + $0x30] sm:$0xf]
    %v7693 = vld [vmem:[%s7679 + $0x34] sm:$0xf]
    %v7694 = vld [vmem:[%s7679 + $0x38] sm:$0xf]
    %v7695 = vld [vmem:[%s7679 + $0x3c] sm:$0xf]
    %s7696 = scalar_lea.vmem [#allocation2], 1
    %v7697 = vld [vmem:[%s7696] sm:$0x1]
    %v7699 = vlaneseq
    %v7700 = vshrl.u32 %v7699, 7
    %v7701 = vsub.s32 0, %v7700
    %v7702 = vrot.slane %v7697, %v7701
    %v7720 = vunpack.c.l.b16 %v7680
    %v7721 = vunpack.c.l.b16 %v7681
    %v7722 = vunpack.c.l.b16 %v7682
    %v7723 = vunpack.c.l.b16 %v7683
    %v7724 = vunpack.c.l.b16 %v7684
    %v7725 = vunpack.c.l.b16 %v7685
    %v7726 = vunpack.c.l.b16 %v7686
    %v7727 = vunpack.c.l.b16 %v7687
    %v7728 = vunpack.c.l.b16 %v7688
    %v7729 = vunpack.c.l.b16 %v7689
    %v7730 = vunpack.c.l.b16 %v7690
    %v7731 = vunpack.c.l.b16 %v7691
    %v7732 = vunpack.c.l.b16 %v7692
    %v7733 = vunpack.c.l.b16 %v7693
    %v7734 = vunpack.c.l.b16 %v7694
    %v7735 = vunpack.c.l.b16 %v7695
    %v7736 = vpack.c.b16 %v7721, %v7720
    %v7737 = vpack.c.b16 %v7723, %v7722
    %v7738 = vpack.c.b16 %v7725, %v7724
    %v7739 = vpack.c.b16 %v7727, %v7726
    %v7740 = vpack.c.b16 %v7729, %v7728
    %v7741 = vpack.c.b16 %v7731, %v7730
    %v7742 = vpack.c.b16 %v7733, %v7732
    %v7743 = vpack.c.b16 %v7735, %v7734
    %7752 = vmatprep.subr.bf16.mxu0 0
    %7753 = vmatpush1.bf16.msra.mxu0 %v7736
    %7754 = vmatprep.subr.bf16.mxu0 0
    %7755 = vmatpush1.bf16.msra.mxu0 %v7737
    %7756 = vmatprep.subr.bf16.mxu0 0
    %7757 = vmatpush1.bf16.msra.mxu0 %v7738
    %7758 = vmatprep.subr.bf16.mxu0 0
    %7759 = vmatpush1.bf16.msra.mxu0 %v7739
    %7760 = vmatprep.subr.bf16.mxu0 0
    %7761 = vmatpush1.bf16.msra.mxu0 %v7740
    %7762 = vmatprep.subr.bf16.mxu0 0
    %7763 = vmatpush1.bf16.msra.mxu0 %v7741
    %7764 = vmatprep.subr.bf16.mxu0 0
    %7765 = vmatpush1.bf16.msra.mxu0 %v7742
    %7766 = vmatprep.subr.bf16.mxu0 0
    %7767 = vmatpush1.bf16.msra.mxu0 %v7743
    %7768 = vmatprep.subr.bf16.mxu0 0
    %7769 = vmatpush1.bf16.msra.mxu0 0
    %7770 = vmatprep.subr.bf16.mxu0 0
    %7771 = vmatpush1.bf16.msra.mxu0 0
    %7772 = vmatprep.subr.bf16.mxu0 0
    %7773 = vmatpush1.bf16.msra.mxu0 0
    %7774 = vmatprep.subr.bf16.mxu0 0
    %7775 = vmatpush1.bf16.msra.mxu0 0
    %7776 = vmatprep.subr.bf16.mxu0 0
    %7777 = vmatpush1.bf16.msra.mxu0 0
    %7778 = vmatprep.subr.bf16.mxu0 0
    %7779 = vmatpush1.bf16.msra.mxu0 0
    %7780 = vmatprep.subr.bf16.mxu0 0
    %7781 = vmatpush1.bf16.msra.mxu0 0
    %7782 = vmatprep.subr.bf16.mxu0 0
    %7783 = vmatpush1.bf16.msra.mxu0 0
    %7784 = vmatprep.mubr.bf16.mxu0 0
    %7785 = vmatmul.mubr.bf16.gmra.mrb[0].mxu0 %v7656
    %v7786 = vpop.f32.mrb[0].mxu0
    %v7787 = vadd.f32 %v7702, %v7786
    %v7788 = vpop.f32.mrb[0].mxu0
    %v7789 = vpop.f32.mrb[0].mxu0
    %v7790 = vadd.f32 %v7702, %v7789
    %v7791 = vpop.f32.mrb[0].mxu0
    %7792 = vmatprep.mubr.bf16.mxu0 0
    %7793 = vmatmul.mubr.bf16.gmra.mrb[0].mxu0 %v7659
    %v7794 = vpop.f32.mrb[0].mxu0
    %v7795 = vadd.f32 %v7702, %v7794
    %v7796 = vpop.f32.mrb[0].mxu0
    %v7797 = vpop.f32.mrb[0].mxu0
    %v7798 = vadd.f32 %v7702, %v7797
    %v7799 = vpop.f32.mrb[0].mxu0
    %7800 = vmatprep.mubr.bf16.mxu0 0
    %7801 = vmatmul.mubr.bf16.gmra.mrb[0].mxu0 %v7662
    %v7802 = vpop.f32.mrb[0].mxu0
    %v7803 = vadd.f32 %v7702, %v7802
    %v7804 = vpop.f32.mrb[0].mxu0
    %v7805 = vpop.f32.mrb[0].mxu0
    %v7806 = vadd.f32 %v7702, %v7805
    %v7807 = vpop.f32.mrb[0].mxu0
    %7808 = vmatprep.mubr.bf16.mxu0 0
    %7809 = vmatmul.mubr.bf16.gmra.mrb[0].mxu0 %v7665
    %v7810 = vpop.f32.mrb[0].mxu0
    %v7811 = vadd.f32 %v7702, %v7810
    %v7812 = vpop.f32.mrb[0].mxu0
    %v7813 = vpop.f32.mrb[0].mxu0
    %v7814 = vadd.f32 %v7702, %v7813
    %v7815 = vpop.f32.mrb[0].mxu0
    %7816 = vmatprep.mubr.bf16.mxu0 0
    %7817 = vmatmul.mubr.bf16.gmra.mrb[0].mxu0 %v7668
    %v7818 = vpop.f32.mrb[0].mxu0
    %v7819 = vadd.f32 %v7702, %v7818
    %v7820 = vpop.f32.mrb[0].mxu0
    %v7821 = vpop.f32.mrb[0].mxu0
    %v7822 = vadd.f32 %v7702, %v7821
    %v7823 = vpop.f32.mrb[0].mxu0
    %7824 = vmatprep.mubr.bf16.mxu0 0
    %7825 = vmatmul.mubr.bf16.gmra.mrb[0].mxu0 %v7671
    %v7826 = vpop.f32.mrb[0].mxu0
    %v7827 = vadd.f32 %v7702, %v7826
    %v7828 = vpop.f32.mrb[0].mxu0
    %v7829 = vpop.f32.mrb[0].mxu0
    %v7830 = vadd.f32 %v7702, %v7829
    %v7831 = vpop.f32.mrb[0].mxu0
    %7832 = vmatprep.mubr.bf16.mxu0 0
    %7833 = vmatmul.mubr.bf16.gmra.mrb[0].mxu0 %v7674
    %v7834 = vpop.f32.mrb[0].mxu0
    %v7835 = vadd.f32 %v7702, %v7834
    %v7836 = vpop.f32.mrb[0].mxu0
    %v7837 = vpop.f32.mrb[0].mxu0
    %v7838 = vadd.f32 %v7702, %v7837
    %v7839 = vpop.f32.mrb[0].mxu0
    %7840 = vmatprep.mubr.bf16.mxu0 0
    %7841 = vmatmul.mubr.bf16.gmra.mrb[0].mxu0 %v7677
    %v7842 = vpop.f32.mrb[0].mxu0
    %v7843 = vadd.f32 %v7702, %v7842
    %v7844 = vpop.f32.mrb[0].mxu0
    %v7845 = vpop.f32.mrb[0].mxu0
    %v7846 = vadd.f32 %v7702, %v7845
    %v7847 = vpop.f32.mrb[0].mxu0
    %7848 = vdwg.mxu0
    %v7849 = vadd.f32 %v4772, %v7787
    %v7850 = vadd.f32 %v4773, %v7790
    %v7851 = vadd.f32 %v4774, %v7795
    %v7852 = vadd.f32 %v4775, %v7798
    %v7853 = vadd.f32 %v4776, %v7803
    %v7854 = vadd.f32 %v4777, %v7806
    %v7855 = vadd.f32 %v4778, %v7811
    %v7856 = vadd.f32 %v4779, %v7814
    %v7857 = vadd.f32 %v4780, %v7819
    %v7858 = vadd.f32 %v4781, %v7822
    %v7859 = vadd.f32 %v4782, %v7827
    %v7860 = vadd.f32 %v4783, %v7830
    %v7861 = vadd.f32 %v4784, %v7835
    %v7862 = vadd.f32 %v4785, %v7838
    %v7863 = vadd.f32 %v4786, %v7843
    %v7864 = vadd.f32 %v4787, %v7846
    %s7865 = scalar_lea.vmem [#allocation8], 1
    %v7866 = vld [vmem:[%s7865] sm:$0x1]
    %s7867 = scalar_lea.vmem [#allocation10], 1
    %v7868 = vld [vmem:[%s7867] sm:$0x1]
    %7869 = vadd.xlane.f32.xlu0 %v7849
    %v7870 = vpop.xlane.xlu0 %7869
    %7871 = vadd.xlane.f32.xlu0 %v7850
    %v7872 = vpop.xlane.xlu0 %7871
    %7873 = vadd.xlane.f32.xlu0 %v7851
    %v7874 = vpop.xlane.xlu0 %7873
    %7875 = vadd.xlane.f32.xlu0 %v7852
    %v7876 = vpop.xlane.xlu0 %7875
    %7877 = vadd.xlane.f32.xlu0 %v7853
    %v7878 = vpop.xlane.xlu0 %7877
    %7879 = vadd.xlane.f32.xlu0 %v7854
    %v7880 = vpop.xlane.xlu0 %7879
    %7881 = vadd.xlane.f32.xlu0 %v7855
    %v7882 = vpop.xlane.xlu0 %7881
    %7883 = vadd.xlane.f32.xlu0 %v7856
    %v7884 = vpop.xlane.xlu0 %7883
    %7885 = vadd.xlane.f32.xlu0 %v7857
    %v7886 = vpop.xlane.xlu0 %7885
    %7887 = vadd.xlane.f32.xlu0 %v7858
    %v7888 = vpop.xlane.xlu0 %7887
    %7889 = vadd.xlane.f32.xlu0 %v7859
    %v7890 = vpop.xlane.xlu0 %7889
    %7891 = vadd.xlane.f32.xlu0 %v7860
    %v7892 = vpop.xlane.xlu0 %7891
    %7893 = vadd.xlane.f32.xlu0 %v7861
    %v7894 = vpop.xlane.xlu0 %7893
    %7895 = vadd.xlane.f32.xlu0 %v7862
    %v7896 = vpop.xlane.xlu0 %7895
    %7897 = vadd.xlane.f32.xlu0 %v7863
    %v7898 = vpop.xlane.xlu0 %7897
    %7899 = vadd.xlane.f32.xlu0 %v7864
    %v7900 = vpop.xlane.xlu0 %7899
    %v7901 = vmul.f32 %v7870, %v3360
    %v7902 = vmul.f32 %v7872, %v3360
    %v7903 = vmul.f32 %v7874, %v3360
    %v7904 = vmul.f32 %v7876, %v3360
    %v7905 = vmul.f32 %v7878, %v3360
    %v7906 = vmul.f32 %v7880, %v3360
    %v7907 = vmul.f32 %v7882, %v3360
    %v7908 = vmul.f32 %v7884, %v3360
    %v7909 = vmul.f32 %v7886, %v3360
    %v7910 = vmul.f32 %v7888, %v3360
    %v7911 = vmul.f32 %v7890, %v3360
    %v7912 = vmul.f32 %v7892, %v3360
    %v7913 = vmul.f32 %v7894, %v3360
    %v7914 = vmul.f32 %v7896, %v3360
    %v7915 = vmul.f32 %v7898, %v3360
    %v7916 = vmul.f32 %v7900, %v3360
    %v7917 = vsub.f32 %v7849, %v7901
    %v7918 = vsub.f32 %v7850, %v7902
    %v7919 = vsub.f32 %v7851, %v7903
    %v7920 = vsub.f32 %v7852, %v7904
    %v7921 = vsub.f32 %v7853, %v7905
    %v7922 = vsub.f32 %v7854, %v7906
    %v7923 = vsub.f32 %v7855, %v7907
    %v7924 = vsub.f32 %v7856, %v7908
    %v7925 = vsub.f32 %v7857, %v7909
    %v7926 = vsub.f32 %v7858, %v7910
    %v7927 = vsub.f32 %v7859, %v7911
    %v7928 = vsub.f32 %v7860, %v7912
    %v7929 = vsub.f32 %v7861, %v7913
    %v7930 = vsub.f32 %v7862, %v7914
    %v7931 = vsub.f32 %v7863, %v7915
    %v7932 = vsub.f32 %v7864, %v7916
    %v7933 = vmul.f32 %v7917, %v7917
    %v7934 = vmul.f32 %v7918, %v7918
    %v7935 = vmul.f32 %v7919, %v7919
    %v7936 = vmul.f32 %v7920, %v7920
    %v7937 = vmul.f32 %v7921, %v7921
    %v7938 = vmul.f32 %v7922, %v7922
    %v7939 = vmul.f32 %v7923, %v7923
    %v7940 = vmul.f32 %v7924, %v7924
    %v7941 = vmul.f32 %v7925, %v7925
    %v7942 = vmul.f32 %v7926, %v7926
    %v7943 = vmul.f32 %v7927, %v7927
    %v7944 = vmul.f32 %v7928, %v7928
    %v7945 = vmul.f32 %v7929, %v7929
    %v7946 = vmul.f32 %v7930, %v7930
    %v7947 = vmul.f32 %v7931, %v7931
    %v7948 = vmul.f32 %v7932, %v7932
    %7949 = vadd.xlane.f32.xlu0 %v7933
    %v7950 = vpop.xlane.xlu0 %7949
    %7951 = vadd.xlane.f32.xlu0 %v7934
    %v7952 = vpop.xlane.xlu0 %7951
    %7953 = vadd.xlane.f32.xlu0 %v7935
    %v7954 = vpop.xlane.xlu0 %7953
    %7955 = vadd.xlane.f32.xlu0 %v7936
    %v7956 = vpop.xlane.xlu0 %7955
    %7957 = vadd.xlane.f32.xlu0 %v7937
    %v7958 = vpop.xlane.xlu0 %7957
    %7959 = vadd.xlane.f32.xlu0 %v7938
    %v7960 = vpop.xlane.xlu0 %7959
    %7961 = vadd.xlane.f32.xlu0 %v7939
    %v7962 = vpop.xlane.xlu0 %7961
    %7963 = vadd.xlane.f32.xlu0 %v7940
    %v7964 = vpop.xlane.xlu0 %7963
    %7965 = vadd.xlane.f32.xlu0 %v7941
    %v7966 = vpop.xlane.xlu0 %7965
    %7967 = vadd.xlane.f32.xlu0 %v7942
    %v7968 = vpop.xlane.xlu0 %7967
    %7969 = vadd.xlane.f32.xlu0 %v7943
    %v7970 = vpop.xlane.xlu0 %7969
    %7971 = vadd.xlane.f32.xlu0 %v7944
    %v7972 = vpop.xlane.xlu0 %7971
    %7973 = vadd.xlane.f32.xlu0 %v7945
    %v7974 = vpop.xlane.xlu0 %7973
    %7975 = vadd.xlane.f32.xlu0 %v7946
    %v7976 = vpop.xlane.xlu0 %7975
    %7977 = vadd.xlane.f32.xlu0 %v7947
    %v7978 = vpop.xlane.xlu0 %7977
    %7979 = vadd.xlane.f32.xlu0 %v7948
    %v7980 = vpop.xlane.xlu0 %7979
    %v7981 = vmul.f32 %v7950, %v3360
    %v7982 = vmul.f32 %v7952, %v3360
    %v7983 = vmul.f32 %v7954, %v3360
    %v7984 = vmul.f32 %v7956, %v3360
    %v7985 = vmul.f32 %v7958, %v3360
    %v7986 = vmul.f32 %v7960, %v3360
    %v7987 = vmul.f32 %v7962, %v3360
    %v7988 = vmul.f32 %v7964, %v3360
    %v7989 = vmul.f32 %v7966, %v3360
    %v7990 = vmul.f32 %v7968, %v3360
    %v7991 = vmul.f32 %v7970, %v3360
    %v7992 = vmul.f32 %v7972, %v3360
    %v7993 = vmul.f32 %v7974, %v3360
    %v7994 = vmul.f32 %v7976, %v3360
    %v7995 = vmul.f32 %v7978, %v3360
    %v7996 = vmul.f32 %v7980, %v3360
    %v7997 = vadd.f32 %v7981, 1e-05
    %v7998 = vadd.f32 %v7982, 1e-05
    %v7999 = vadd.f32 %v7983, 1e-05
    %v8000 = vadd.f32 %v7984, 1e-05
    %v8001 = vadd.f32 %v7985, 1e-05
    %v8002 = vadd.f32 %v7986, 1e-05
    %v8003 = vadd.f32 %v7987, 1e-05
    %v8004 = vadd.f32 %v7988, 1e-05
    %v8005 = vadd.f32 %v7989, 1e-05
    %v8006 = vadd.f32 %v7990, 1e-05
    %v8007 = vadd.f32 %v7991, 1e-05
    %v8008 = vadd.f32 %v7992, 1e-05
    %v8009 = vadd.f32 %v7993, 1e-05
    %v8010 = vadd.f32 %v7994, 1e-05
    %v8011 = vadd.f32 %v7995, 1e-05
    %v8012 = vadd.f32 %v7996, 1e-05
    %v8013 = vrsqrt.pop %v7997
    %v8014 = vrsqrt.pop %v7998
    %v8015 = vrsqrt.pop %v7999
    %v8016 = vrsqrt.pop %v8000
    %v8017 = vrsqrt.pop %v8001
    %v8018 = vrsqrt.pop %v8002
    %v8019 = vrsqrt.pop %v8003
    %v8020 = vrsqrt.pop %v8004
    %v8021 = vrsqrt.pop %v8005
    %v8022 = vrsqrt.pop %v8006
    %v8023 = vrsqrt.pop %v8007
    %v8024 = vrsqrt.pop %v8008
    %v8025 = vrsqrt.pop %v8009
    %v8026 = vrsqrt.pop %v8010
    %v8027 = vrsqrt.pop %v8011
    %v8028 = vrsqrt.pop %v8012
    %v8029 = vmul.f32 %v7917, %v8013
    %v8030 = vmul.f32 %v7918, %v8014
    %v8031 = vmul.f32 %v7919, %v8015
    %v8032 = vmul.f32 %v7920, %v8016
    %v8033 = vmul.f32 %v7921, %v8017
    %v8034 = vmul.f32 %v7922, %v8018
    %v8035 = vmul.f32 %v7923, %v8019
    %v8036 = vmul.f32 %v7924, %v8020
    %v8037 = vmul.f32 %v7925, %v8021
    %v8038 = vmul.f32 %v7926, %v8022
    %v8039 = vmul.f32 %v7927, %v8023
    %v8040 = vmul.f32 %v7928, %v8024
    %v8041 = vmul.f32 %v7929, %v8025
    %v8042 = vmul.f32 %v7930, %v8026
    %v8043 = vmul.f32 %v7931, %v8027
    %v8044 = vmul.f32 %v7932, %v8028
    %v8046 = vlaneseq
    %v8047 = vshrl.u32 %v8046, 7
    %v8048 = vsub.s32 0, %v8047
    %v8049 = vrot.slane %v7866, %v8048
    %v8051 = vmul.f32 %v8029, %v8049
    %v8052 = vmul.f32 %v8030, %v8049
    %v8053 = vmul.f32 %v8031, %v8049
    %v8054 = vmul.f32 %v8032, %v8049
    %v8055 = vmul.f32 %v8033, %v8049
    %v8056 = vmul.f32 %v8034, %v8049
    %v8057 = vmul.f32 %v8035, %v8049
    %v8058 = vmul.f32 %v8036, %v8049
    %v8059 = vmul.f32 %v8037, %v8049
    %v8060 = vmul.f32 %v8038, %v8049
    %v8061 = vmul.f32 %v8039, %v8049
    %v8062 = vmul.f32 %v8040, %v8049
    %v8063 = vmul.f32 %v8041, %v8049
    %v8064 = vmul.f32 %v8042, %v8049
    %v8065 = vmul.f32 %v8043, %v8049
    %v8066 = vmul.f32 %v8044, %v8049
    %v8068 = vlaneseq
    %v8069 = vshrl.u32 %v8068, 7
    %v8070 = vsub.s32 0, %v8069
    %v8071 = vrot.slane %v7868, %v8070
    %v8073 = vadd.f32 %v8051, %v8071
    %v8074 = vadd.f32 %v8052, %v8071
    %v8075 = vadd.f32 %v8053, %v8071
    %v8076 = vadd.f32 %v8054, %v8071
    %v8077 = vadd.f32 %v8055, %v8071
    %v8078 = vadd.f32 %v8056, %v8071
    %v8079 = vadd.f32 %v8057, %v8071
    %v8080 = vadd.f32 %v8058, %v8071
    %v8081 = vadd.f32 %v8059, %v8071
    %v8082 = vadd.f32 %v8060, %v8071
    %v8083 = vadd.f32 %v8061, %v8071
    %v8084 = vadd.f32 %v8062, %v8071
    %v8085 = vadd.f32 %v8063, %v8071
    %v8086 = vadd.f32 %v8064, %v8071
    %v8087 = vadd.f32 %v8065, %v8071
    %v8088 = vadd.f32 %v8066, %v8071
    %v8089 = vpack.c.bf16 %v8074, %v8073
    %v8090 = vpack.c.bf16 %v8076, %v8075
    %v8091 = vpack.c.bf16 %v8078, %v8077
    %v8092 = vpack.c.bf16 %v8080, %v8079
    %v8093 = vpack.c.bf16 %v8082, %v8081
    %v8094 = vpack.c.bf16 %v8084, %v8083
    %v8095 = vpack.c.bf16 %v8086, %v8085
    %v8096 = vpack.c.bf16 %v8088, %v8087
    %s8097 = scalar_lea.vmem %s4, 256
    %v8098 = vld [vmem:[%s8097] sm:$0xff]
    %v8099 = vld [vmem:[%s8097 + $0x8] sm:$0xff]
    %v8100 = vld [vmem:[%s8097 + $0x10] sm:$0xff]
    %v8101 = vld [vmem:[%s8097 + $0x18] sm:$0xff]
    %v8102 = vld [vmem:[%s8097 + $0x20] sm:$0xff]
    %v8103 = vld [vmem:[%s8097 + $0x28] sm:$0xff]
    %v8104 = vld [vmem:[%s8097 + $0x30] sm:$0xff]
    %v8105 = vld [vmem:[%s8097 + $0x38] sm:$0xff]
    %v8106 = vld [vmem:[%s8097 + $0x40] sm:$0xff]
    %v8107 = vld [vmem:[%s8097 + $0x48] sm:$0xff]
    %v8108 = vld [vmem:[%s8097 + $0x50] sm:$0xff]
    %v8109 = vld [vmem:[%s8097 + $0x58] sm:$0xff]
    %v8110 = vld [vmem:[%s8097 + $0x60] sm:$0xff]
    %v8111 = vld [vmem:[%s8097 + $0x68] sm:$0xff]
    %v8112 = vld [vmem:[%s8097 + $0x70] sm:$0xff]
    %v8113 = vld [vmem:[%s8097 + $0x78] sm:$0xff]
    %v8114 = vld [vmem:[%s8097 + $0x80] sm:$0xff]
    %v8115 = vld [vmem:[%s8097 + $0x88] sm:$0xff]
    %v8116 = vld [vmem:[%s8097 + $0x90] sm:$0xff]
    %v8117 = vld [vmem:[%s8097 + $0x98] sm:$0xff]
    %v8118 = vld [vmem:[%s8097 + $0xa0] sm:$0xff]
    %v8119 = vld [vmem:[%s8097 + $0xa8] sm:$0xff]
    %v8120 = vld [vmem:[%s8097 + $0xb0] sm:$0xff]
    %v8121 = vld [vmem:[%s8097 + $0xb8] sm:$0xff]
    %v8122 = vld [vmem:[%s8097 + $0xc0] sm:$0xff]
    %v8123 = vld [vmem:[%s8097 + $0xc8] sm:$0xff]
    %v8124 = vld [vmem:[%s8097 + $0xd0] sm:$0xff]
    %v8125 = vld [vmem:[%s8097 + $0xd8] sm:$0xff]
    %v8126 = vld [vmem:[%s8097 + $0xe0] sm:$0xff]
    %v8127 = vld [vmem:[%s8097 + $0xe8] sm:$0xff]
    %v8128 = vld [vmem:[%s8097 + $0xf0] sm:$0xff]
    %v8129 = vld [vmem:[%s8097 + $0xf8] sm:$0xff]
    %s8130 = scalar_lea.vmem [#allocation5], 4
    %v8131 = vld [vmem:[%s8130] sm:$0xf]
    %v8133 = vlaneseq
    %v8134 = vshrl.u32 %v8133, 7
    %v8135 = vsub.s32 0, %v8134
    %v8136 = vrot.slane %v8131, %v8135
    %v8137 = vlaneseq
    %v8138 = vshrl.u32 %v8137, 7
    %v8139 = vsub.s32 1, %v8138
    %v8140 = vrot.slane %v8131, %v8139
    %v8141 = vlaneseq
    %v8142 = vshrl.u32 %v8141, 7
    %v8143 = vsub.s32 2, %v8142
    %v8144 = vrot.slane %v8131, %v8143
    %v8145 = vlaneseq
    %v8146 = vshrl.u32 %v8145, 7
    %v8147 = vsub.s32 3, %v8146
    %v8148 = vrot.slane %v8131, %v8147
    %v8185 = vunpack.c.l.b16 %v8098
    %v8186 = vunpack.c.h.b16 %v8098
    %v8187 = vunpack.c.l.b16 %v8099
    %v8188 = vunpack.c.h.b16 %v8099
    %v8189 = vunpack.c.l.b16 %v8100
    %v8190 = vunpack.c.h.b16 %v8100
    %v8191 = vunpack.c.l.b16 %v8101
    %v8192 = vunpack.c.h.b16 %v8101
    %v8193 = vunpack.c.l.b16 %v8102
    %v8194 = vunpack.c.h.b16 %v8102
    %v8195 = vunpack.c.l.b16 %v8103
    %v8196 = vunpack.c.h.b16 %v8103
    %v8197 = vunpack.c.l.b16 %v8104
    %v8198 = vunpack.c.h.b16 %v8104
    %v8199 = vunpack.c.l.b16 %v8105
    %v8200 = vunpack.c.h.b16 %v8105
    %v8201 = vunpack.c.l.b16 %v8106
    %v8202 = vunpack.c.h.b16 %v8106
    %v8203 = vunpack.c.l.b16 %v8107
    %v8204 = vunpack.c.h.b16 %v8107
    %v8205 = vunpack.c.l.b16 %v8108
    %v8206 = vunpack.c.h.b16 %v8108
    %v8207 = vunpack.c.l.b16 %v8109
    %v8208 = vunpack.c.h.b16 %v8109
    %v8209 = vunpack.c.l.b16 %v8110
    %v8210 = vunpack.c.h.b16 %v8110
    %v8211 = vunpack.c.l.b16 %v8111
    %v8212 = vunpack.c.h.b16 %v8111
    %v8213 = vunpack.c.l.b16 %v8112
    %v8214 = vunpack.c.h.b16 %v8112
    %v8215 = vunpack.c.l.b16 %v8113
    %v8216 = vunpack.c.h.b16 %v8113
    %v8217 = vunpack.c.l.b16 %v8114
    %v8218 = vunpack.c.h.b16 %v8114
    %v8219 = vunpack.c.l.b16 %v8115
    %v8220 = vunpack.c.h.b16 %v8115
    %v8221 = vunpack.c.l.b16 %v8116
    %v8222 = vunpack.c.h.b16 %v8116
    %v8223 = vunpack.c.l.b16 %v8117
    %v8224 = vunpack.c.h.b16 %v8117
    %v8225 = vunpack.c.l.b16 %v8118
    %v8226 = vunpack.c.h.b16 %v8118
    %v8227 = vunpack.c.l.b16 %v8119
    %v8228 = vunpack.c.h.b16 %v8119
    %v8229 = vunpack.c.l.b16 %v8120
    %v8230 = vunpack.c.h.b16 %v8120
    %v8231 = vunpack.c.l.b16 %v8121
    %v8232 = vunpack.c.h.b16 %v8121
    %v8233 = vunpack.c.l.b16 %v8122
    %v8234 = vunpack.c.h.b16 %v8122
    %v8235 = vunpack.c.l.b16 %v8123
    %v8236 = vunpack.c.h.b16 %v8123
    %v8237 = vunpack.c.l.b16 %v8124
    %v8238 = vunpack.c.h.b16 %v8124
    %v8239 = vunpack.c.l.b16 %v8125
    %v8240 = vunpack.c.h.b16 %v8125
    %v8241 = vunpack.c.l.b16 %v8126
    %v8242 = vunpack.c.h.b16 %v8126
    %v8243 = vunpack.c.l.b16 %v8127
    %v8244 = vunpack.c.h.b16 %v8127
    %v8245 = vunpack.c.l.b16 %v8128
    %v8246 = vunpack.c.h.b16 %v8128
    %v8247 = vunpack.c.l.b16 %v8129
    %v8248 = vunpack.c.h.b16 %v8129
    %v8249 = vpack.c.b16 %v8189, %v8185
    %v8250 = vpack.c.b16 %v8190, %v8186
    %v8251 = vpack.c.b16 %v8191, %v8187
    %v8252 = vpack.c.b16 %v8192, %v8188
    %v8253 = vpack.c.b16 %v8197, %v8193
    %v8254 = vpack.c.b16 %v8198, %v8194
    %v8255 = vpack.c.b16 %v8199, %v8195
    %v8256 = vpack.c.b16 %v8200, %v8196
    %v8257 = vpack.c.b16 %v8205, %v8201
    %v8258 = vpack.c.b16 %v8206, %v8202
    %v8259 = vpack.c.b16 %v8207, %v8203
    %v8260 = vpack.c.b16 %v8208, %v8204
    %v8261 = vpack.c.b16 %v8213, %v8209
    %v8262 = vpack.c.b16 %v8214, %v8210
    %v8263 = vpack.c.b16 %v8215, %v8211
    %v8264 = vpack.c.b16 %v8216, %v8212
    %v8265 = vpack.c.b16 %v8221, %v8217
    %v8266 = vpack.c.b16 %v8222, %v8218
    %v8267 = vpack.c.b16 %v8223, %v8219
    %v8268 = vpack.c.b16 %v8224, %v8220
    %v8269 = vpack.c.b16 %v8229, %v8225
    %v8270 = vpack.c.b16 %v8230, %v8226
    %v8271 = vpack.c.b16 %v8231, %v8227
    %v8272 = vpack.c.b16 %v8232, %v8228
    %v8273 = vpack.c.b16 %v8237, %v8233
    %v8274 = vpack.c.b16 %v8238, %v8234
    %v8275 = vpack.c.b16 %v8239, %v8235
    %v8276 = vpack.c.b16 %v8240, %v8236
    %v8277 = vpack.c.b16 %v8245, %v8241
    %v8278 = vpack.c.b16 %v8246, %v8242
    %v8279 = vpack.c.b16 %v8247, %v8243
    %v8280 = vpack.c.b16 %v8248, %v8244
    %8313 = vmatprep.subr.bf16.mxu0 %v8250
    %8314 = vmatpush1.bf16.msra.mxu0 %v8249
    %8315 = vmatprep.subr.bf16.mxu0 %v8254
    %8316 = vmatpush1.bf16.msra.mxu0 %v8253
    %8317 = vmatprep.subr.bf16.mxu0 %v8258
    %8318 = vmatpush1.bf16.msra.mxu0 %v8257
    %8319 = vmatprep.subr.bf16.mxu0 %v8262
    %8320 = vmatpush1.bf16.msra.mxu0 %v8261
    %8321 = vmatprep.subr.bf16.mxu0 %v8266
    %8322 = vmatpush1.bf16.msra.mxu0 %v8265
    %8323 = vmatprep.subr.bf16.mxu0 %v8270
    %8324 = vmatpush1.bf16.msra.mxu0 %v8269
    %8325 = vmatprep.subr.bf16.mxu0 %v8274
    %8326 = vmatpush1.bf16.msra.mxu0 %v8273
    %8327 = vmatprep.subr.bf16.mxu0 %v8278
    %8328 = vmatpush1.bf16.msra.mxu0 %v8277
    %8329 = vmatprep.subr.bf16.mxu0 0
    %8330 = vmatpush1.bf16.msra.mxu0 0
    %8331 = vmatprep.subr.bf16.mxu0 0
    %8332 = vmatpush1.bf16.msra.mxu0 0
    %8333 = vmatprep.subr.bf16.mxu0 0
    %8334 = vmatpush1.bf16.msra.mxu0 0
    %8335 = vmatprep.subr.bf16.mxu0 0
    %8336 = vmatpush1.bf16.msra.mxu0 0
    %8337 = vmatprep.subr.bf16.mxu0 0
    %8338 = vmatpush1.bf16.msra.mxu0 0
    %8339 = vmatprep.subr.bf16.mxu0 0
    %8340 = vmatpush1.bf16.msra.mxu0 0
    %8341 = vmatprep.subr.bf16.mxu0 0
    %8342 = vmatpush1.bf16.msra.mxu0 0
    %8343 = vmatprep.subr.bf16.mxu0 0
    %8344 = vmatpush1.bf16.msra.mxu0 0
    %8345 = vmatprep.mubr.bf16.mxu0 0
    %8346 = vmatmul.mubr.bf16.gmra.mrb[0].mxu0 %v8089
    %v8347 = vpop.f32.mrb[0].mxu0
    %v8348 = vadd.f32 %v8136, %v8347
    %v8349 = vpop.f32.mrb[0].mxu0
    %v8350 = vadd.f32 %v8140, %v8349
    %v8351 = vpop.f32.mrb[0].mxu0
    %v8352 = vadd.f32 %v8136, %v8351
    %v8353 = vpop.f32.mrb[0].mxu0
    %v8354 = vadd.f32 %v8140, %v8353
    %8355 = vmatprep.mubr.bf16.mxu0 0
    %8356 = vmatmul.mubr.bf16.gmra.mrb[0].mxu0 %v8090
    %v8357 = vpop.f32.mrb[0].mxu0
    %v8358 = vadd.f32 %v8136, %v8357
    %v8359 = vpop.f32.mrb[0].mxu0
    %v8360 = vadd.f32 %v8140, %v8359
    %v8361 = vpop.f32.mrb[0].mxu0
    %v8362 = vadd.f32 %v8136, %v8361
    %v8363 = vpop.f32.mrb[0].mxu0
    %v8364 = vadd.f32 %v8140, %v8363
    %8365 = vmatprep.mubr.bf16.mxu0 0
    %8366 = vmatmul.mubr.bf16.gmra.mrb[0].mxu0 %v8091
    %v8367 = vpop.f32.mrb[0].mxu0
    %v8368 = vadd.f32 %v8136, %v8367
    %v8369 = vpop.f32.mrb[0].mxu0
    %v8370 = vadd.f32 %v8140, %v8369
    %v8371 = vpop.f32.mrb[0].mxu0
    %v8372 = vadd.f32 %v8136, %v8371
    %v8373 = vpop.f32.mrb[0].mxu0
    %v8374 = vadd.f32 %v8140, %v8373
    %8375 = vmatprep.mubr.bf16.mxu0 0
    %8376 = vmatmul.mubr.bf16.gmra.mrb[0].mxu0 %v8092
    %v8377 = vpop.f32.mrb[0].mxu0
    %v8378 = vadd.f32 %v8136, %v8377
    %v8379 = vpop.f32.mrb[0].mxu0
    %v8380 = vadd.f32 %v8140, %v8379
    %v8381 = vpop.f32.mrb[0].mxu0
    %v8382 = vadd.f32 %v8136, %v8381
    %v8383 = vpop.f32.mrb[0].mxu0
    %v8384 = vadd.f32 %v8140, %v8383
    %8385 = vmatprep.mubr.bf16.mxu0 0
    %8386 = vmatmul.mubr.bf16.gmra.mrb[0].mxu0 %v8093
    %v8387 = vpop.f32.mrb[0].mxu0
    %v8388 = vadd.f32 %v8136, %v8387
    %v8389 = vpop.f32.mrb[0].mxu0
    %v8390 = vadd.f32 %v8140, %v8389
    %v8391 = vpop.f32.mrb[0].mxu0
    %v8392 = vadd.f32 %v8136, %v8391
    %v8393 = vpop.f32.mrb[0].mxu0
    %v8394 = vadd.f32 %v8140, %v8393
    %8395 = vmatprep.mubr.bf16.mxu0 0
    %8396 = vmatmul.mubr.bf16.gmra.mrb[0].mxu0 %v8094
    %v8397 = vpop.f32.mrb[0].mxu0
    %v8398 = vadd.f32 %v8136, %v8397
    %v8399 = vpop.f32.mrb[0].mxu0
    %v8400 = vadd.f32 %v8140, %v8399
    %v8401 = vpop.f32.mrb[0].mxu0
    %v8402 = vadd.f32 %v8136, %v8401
    %v8403 = vpop.f32.mrb[0].mxu0
    %v8404 = vadd.f32 %v8140, %v8403
    %8405 = vmatprep.mubr.bf16.mxu0 0
    %8406 = vmatmul.mubr.bf16.gmra.mrb[0].mxu0 %v8095
    %v8407 = vpop.f32.mrb[0].mxu0
    %v8408 = vadd.f32 %v8136, %v8407
    %v8409 = vpop.f32.mrb[0].mxu0
    %v8410 = vadd.f32 %v8140, %v8409
    %v8411 = vpop.f32.mrb[0].mxu0
    %v8412 = vadd.f32 %v8136, %v8411
    %v8413 = vpop.f32.mrb[0].mxu0
    %v8414 = vadd.f32 %v8140, %v8413
    %8415 = vmatprep.mubr.bf16.mxu0 0
    %8416 = vmatmul.mubr.bf16.gmra.mrb[0].mxu0 %v8096
    %v8417 = vpop.f32.mrb[0].mxu0
    %v8418 = vadd.f32 %v8136, %v8417
    %v8419 = vpop.f32.mrb[0].mxu0
    %v8420 = vadd.f32 %v8140, %v8419
    %v8421 = vpop.f32.mrb[0].mxu0
    %v8422 = vadd.f32 %v8136, %v8421
    %v8423 = vpop.f32.mrb[0].mxu0
    %v8424 = vadd.f32 %v8140, %v8423
    %8425 = vdwg.mxu0
    %8426 = vmatprep.subr.bf16.mxu0 %v8252
    %8427 = vmatpush1.bf16.msra.mxu0 %v8251
    %8428 = vmatprep.subr.bf16.mxu0 %v8256
    %8429 = vmatpush1.bf16.msra.mxu0 %v8255
    %8430 = vmatprep.subr.bf16.mxu0 %v8260
    %8431 = vmatpush1.bf16.msra.mxu0 %v8259
    %8432 = vmatprep.subr.bf16.mxu0 %v8264
    %8433 = vmatpush1.bf16.msra.mxu0 %v8263
    %8434 = vmatprep.subr.bf16.mxu0 %v8268
    %8435 = vmatpush1.bf16.msra.mxu0 %v8267
    %8436 = vmatprep.subr.bf16.mxu0 %v8272
    %8437 = vmatpush1.bf16.msra.mxu0 %v8271
    %8438 = vmatprep.subr.bf16.mxu0 %v8276
    %8439 = vmatpush1.bf16.msra.mxu0 %v8275
    %8440 = vmatprep.subr.bf16.mxu0 %v8280
    %8441 = vmatpush1.bf16.msra.mxu0 %v8279
    %8442 = vmatprep.subr.bf16.mxu0 0
    %8443 = vmatpush1.bf16.msra.mxu0 0
    %8444 = vmatprep.subr.bf16.mxu0 0
    %8445 = vmatpush1.bf16.msra.mxu0 0
    %8446 = vmatprep.subr.bf16.mxu0 0
    %8447 = vmatpush1.bf16.msra.mxu0 0
    %8448 = vmatprep.subr.bf16.mxu0 0
    %8449 = vmatpush1.bf16.msra.mxu0 0
    %8450 = vmatprep.subr.bf16.mxu0 0
    %8451 = vmatpush1.bf16.msra.mxu0 0
    %8452 = vmatprep.subr.bf16.mxu0 0
    %8453 = vmatpush1.bf16.msra.mxu0 0
    %8454 = vmatprep.subr.bf16.mxu0 0
    %8455 = vmatpush1.bf16.msra.mxu0 0
    %8456 = vmatprep.subr.bf16.mxu0 0
    %8457 = vmatpush1.bf16.msra.mxu0 0
    %8458 = vmatprep.mubr.bf16.mxu0 0
    %8459 = vmatmul.mubr.bf16.gmra.mrb[0].mxu0 %v8089
    %v8460 = vpop.f32.mrb[0].mxu0
    %v8461 = vadd.f32 %v8144, %v8460
    %v8462 = vpop.f32.mrb[0].mxu0
    %v8463 = vadd.f32 %v8148, %v8462
    %v8464 = vpop.f32.mrb[0].mxu0
    %v8465 = vadd.f32 %v8144, %v8464
    %v8466 = vpop.f32.mrb[0].mxu0
    %v8467 = vadd.f32 %v8148, %v8466
    %8468 = vmatprep.mubr.bf16.mxu0 0
    %8469 = vmatmul.mubr.bf16.gmra.mrb[0].mxu0 %v8090
    %v8470 = vpop.f32.mrb[0].mxu0
    %v8471 = vadd.f32 %v8144, %v8470
    %v8472 = vpop.f32.mrb[0].mxu0
    %v8473 = vadd.f32 %v8148, %v8472
    %v8474 = vpop.f32.mrb[0].mxu0
    %v8475 = vadd.f32 %v8144, %v8474
    %v8476 = vpop.f32.mrb[0].mxu0
    %v8477 = vadd.f32 %v8148, %v8476
    %8478 = vmatprep.mubr.bf16.mxu0 0
    %8479 = vmatmul.mubr.bf16.gmra.mrb[0].mxu0 %v8091
    %v8480 = vpop.f32.mrb[0].mxu0
    %v8481 = vadd.f32 %v8144, %v8480
    %v8482 = vpop.f32.mrb[0].mxu0
    %v8483 = vadd.f32 %v8148, %v8482
    %v8484 = vpop.f32.mrb[0].mxu0
    %v8485 = vadd.f32 %v8144, %v8484
    %v8486 = vpop.f32.mrb[0].mxu0
    %v8487 = vadd.f32 %v8148, %v8486
    %8488 = vmatprep.mubr.bf16.mxu0 0
    %8489 = vmatmul.mubr.bf16.gmra.mrb[0].mxu0 %v8092
    %v8490 = vpop.f32.mrb[0].mxu0
    %v8491 = vadd.f32 %v8144, %v8490
    %v8492 = vpop.f32.mrb[0].mxu0
    %v8493 = vadd.f32 %v8148, %v8492
    %v8494 = vpop.f32.mrb[0].mxu0
    %v8495 = vadd.f32 %v8144, %v8494
    %v8496 = vpop.f32.mrb[0].mxu0
    %v8497 = vadd.f32 %v8148, %v8496
    %8498 = vmatprep.mubr.bf16.mxu0 0
    %8499 = vmatmul.mubr.bf16.gmra.mrb[0].mxu0 %v8093
    %v8500 = vpop.f32.mrb[0].mxu0
    %v8501 = vadd.f32 %v8144, %v8500
    %v8502 = vpop.f32.mrb[0].mxu0
    %v8503 = vadd.f32 %v8148, %v8502
    %v8504 = vpop.f32.mrb[0].mxu0
    %v8505 = vadd.f32 %v8144, %v8504
    %v8506 = vpop.f32.mrb[0].mxu0
    %v8507 = vadd.f32 %v8148, %v8506
    %8508 = vmatprep.mubr.bf16.mxu0 0
    %8509 = vmatmul.mubr.bf16.gmra.mrb[0].mxu0 %v8094
    %v8510 = vpop.f32.mrb[0].mxu0
    %v8511 = vadd.f32 %v8144, %v8510
    %v8512 = vpop.f32.mrb[0].mxu0
    %v8513 = vadd.f32 %v8148, %v8512
    %v8514 = vpop.f32.mrb[0].mxu0
    %v8515 = vadd.f32 %v8144, %v8514
    %v8516 = vpop.f32.mrb[0].mxu0
    %v8517 = vadd.f32 %v8148, %v8516
    %8518 = vmatprep.mubr.bf16.mxu0 0
    %8519 = vmatmul.mubr.bf16.gmra.mrb[0].mxu0 %v8095
    %v8520 = vpop.f32.mrb[0].mxu0
    %v8521 = vadd.f32 %v8144, %v8520
    %v8522 = vpop.f32.mrb[0].mxu0
    %v8523 = vadd.f32 %v8148, %v8522
    %v8524 = vpop.f32.mrb[0].mxu0
    %v8525 = vadd.f32 %v8144, %v8524
    %v8526 = vpop.f32.mrb[0].mxu0
    %v8527 = vadd.f32 %v8148, %v8526
    %8528 = vmatprep.mubr.bf16.mxu0 0
    %8529 = vmatmul.mubr.bf16.gmra.mrb[0].mxu0 %v8096
    %v8530 = vpop.f32.mrb[0].mxu0
    %v8531 = vadd.f32 %v8144, %v8530
    %v8532 = vpop.f32.mrb[0].mxu0
    %v8533 = vadd.f32 %v8148, %v8532
    %v8534 = vpop.f32.mrb[0].mxu0
    %v8535 = vadd.f32 %v8144, %v8534
    %v8536 = vpop.f32.mrb[0].mxu0
    %v8537 = vadd.f32 %v8148, %v8536
    %8538 = vdwg.mxu0
    %v8539 = vmax.f32 %v8348, 0.0
    %v8540 = vmax.f32 %v8350, 0.0
    %v8541 = vmax.f32 %v8461, 0.0
    %v8542 = vmax.f32 %v8463, 0.0
    %v8543 = vmax.f32 %v8352, 0.0
    %v8544 = vmax.f32 %v8354, 0.0
    %v8545 = vmax.f32 %v8465, 0.0
    %v8546 = vmax.f32 %v8467, 0.0
    %v8547 = vmax.f32 %v8358, 0.0
    %v8548 = vmax.f32 %v8360, 0.0
    %v8549 = vmax.f32 %v8471, 0.0
    %v8550 = vmax.f32 %v8473, 0.0
    %v8551 = vmax.f32 %v8362, 0.0
    %v8552 = vmax.f32 %v8364, 0.0
    %v8553 = vmax.f32 %v8475, 0.0
    %v8554 = vmax.f32 %v8477, 0.0
    %v8555 = vmax.f32 %v8368, 0.0
    %v8556 = vmax.f32 %v8370, 0.0
    %v8557 = vmax.f32 %v8481, 0.0
    %v8558 = vmax.f32 %v8483, 0.0
    %v8559 = vmax.f32 %v8372, 0.0
    %v8560 = vmax.f32 %v8374, 0.0
    %v8561 = vmax.f32 %v8485, 0.0
    %v8562 = vmax.f32 %v8487, 0.0
    %v8563 = vmax.f32 %v8378, 0.0
    %v8564 = vmax.f32 %v8380, 0.0
    %v8565 = vmax.f32 %v8491, 0.0
    %v8566 = vmax.f32 %v8493, 0.0
    %v8567 = vmax.f32 %v8382, 0.0
    %v8568 = vmax.f32 %v8384, 0.0
    %v8569 = vmax.f32 %v8495, 0.0
    %v8570 = vmax.f32 %v8497, 0.0
    %v8571 = vmax.f32 %v8388, 0.0
    %v8572 = vmax.f32 %v8390, 0.0
    %v8573 = vmax.f32 %v8501, 0.0
    %v8574 = vmax.f32 %v8503, 0.0
    %v8575 = vmax.f32 %v8392, 0.0
    %v8576 = vmax.f32 %v8394, 0.0
    %v8577 = vmax.f32 %v8505, 0.0
    %v8578 = vmax.f32 %v8507, 0.0
    %v8579 = vmax.f32 %v8398, 0.0
    %v8580 = vmax.f32 %v8400, 0.0
    %v8581 = vmax.f32 %v8511, 0.0
    %v8582 = vmax.f32 %v8513, 0.0
    %v8583 = vmax.f32 %v8402, 0.0
    %v8584 = vmax.f32 %v8404, 0.0
    %v8585 = vmax.f32 %v8515, 0.0
    %v8586 = vmax.f32 %v8517, 0.0
    %v8587 = vmax.f32 %v8408, 0.0
    %v8588 = vmax.f32 %v8410, 0.0
    %v8589 = vmax.f32 %v8521, 0.0
    %v8590 = vmax.f32 %v8523, 0.0
    %v8591 = vmax.f32 %v8412, 0.0
    %v8592 = vmax.f32 %v8414, 0.0
    %v8593 = vmax.f32 %v8525, 0.0
    %v8594 = vmax.f32 %v8527, 0.0
    %v8595 = vmax.f32 %v8418, 0.0
    %v8596 = vmax.f32 %v8420, 0.0
    %v8597 = vmax.f32 %v8531, 0.0
    %v8598 = vmax.f32 %v8533, 0.0
    %v8599 = vmax.f32 %v8422, 0.0
    %v8600 = vmax.f32 %v8424, 0.0
    %v8601 = vmax.f32 %v8535, 0.0
    %v8602 = vmax.f32 %v8537, 0.0
    %v8603 = vpack.c.bf16 %v8543, %v8539
    %v8604 = vpack.c.bf16 %v8544, %v8540
    %v8605 = vpack.c.bf16 %v8545, %v8541
    %v8606 = vpack.c.bf16 %v8546, %v8542
    %v8607 = vpack.c.bf16 %v8551, %v8547
    %v8608 = vpack.c.bf16 %v8552, %v8548
    %v8609 = vpack.c.bf16 %v8553, %v8549
    %v8610 = vpack.c.bf16 %v8554, %v8550
    %v8611 = vpack.c.bf16 %v8559, %v8555
    %v8612 = vpack.c.bf16 %v8560, %v8556
    %v8613 = vpack.c.bf16 %v8561, %v8557
    %v8614 = vpack.c.bf16 %v8562, %v8558
    %v8615 = vpack.c.bf16 %v8567, %v8563
    %v8616 = vpack.c.bf16 %v8568, %v8564
    %v8617 = vpack.c.bf16 %v8569, %v8565
    %v8618 = vpack.c.bf16 %v8570, %v8566
    %v8619 = vpack.c.bf16 %v8575, %v8571
    %v8620 = vpack.c.bf16 %v8576, %v8572
    %v8621 = vpack.c.bf16 %v8577, %v8573
    %v8622 = vpack.c.bf16 %v8578, %v8574
    %v8623 = vpack.c.bf16 %v8583, %v8579
    %v8624 = vpack.c.bf16 %v8584, %v8580
    %v8625 = vpack.c.bf16 %v8585, %v8581
    %v8626 = vpack.c.bf16 %v8586, %v8582
    %v8627 = vpack.c.bf16 %v8591, %v8587
    %v8628 = vpack.c.bf16 %v8592, %v8588
    %v8629 = vpack.c.bf16 %v8593, %v8589
    %v8630 = vpack.c.bf16 %v8594, %v8590
    %v8631 = vpack.c.bf16 %v8599, %v8595
    %v8632 = vpack.c.bf16 %v8600, %v8596
    %v8633 = vpack.c.bf16 %v8601, %v8597
    %v8634 = vpack.c.bf16 %v8602, %v8598
    %s8635 = scalar_lea.vmem %s6, 256
    %v8636 = vld [vmem:[%s8635] sm:$0xf]
    %v8637 = vld [vmem:[%s8635 + $0x4] sm:$0xf]
    %v8638 = vld [vmem:[%s8635 + $0x8] sm:$0xf]
    %v8639 = vld [vmem:[%s8635 + $0xc] sm:$0xf]
    %v8640 = vld [vmem:[%s8635 + $0x10] sm:$0xf]
    %v8641 = vld [vmem:[%s8635 + $0x14] sm:$0xf]
    %v8642 = vld [vmem:[%s8635 + $0x18] sm:$0xf]
    %v8643 = vld [vmem:[%s8635 + $0x1c] sm:$0xf]
    %v8644 = vld [vmem:[%s8635 + $0x20] sm:$0xf]
    %v8645 = vld [vmem:[%s8635 + $0x24] sm:$0xf]
    %v8646 = vld [vmem:[%s8635 + $0x28] sm:$0xf]
    %v8647 = vld [vmem:[%s8635 + $0x2c] sm:$0xf]
    %v8648 = vld [vmem:[%s8635 + $0x30] sm:$0xf]
    %v8649 = vld [vmem:[%s8635 + $0x34] sm:$0xf]
    %v8650 = vld [vmem:[%s8635 + $0x38] sm:$0xf]
    %v8651 = vld [vmem:[%s8635 + $0x3c] sm:$0xf]
    %v8652 = vld [vmem:[%s8635 + $0x40] sm:$0xf]
    %v8653 = vld [vmem:[%s8635 + $0x44] sm:$0xf]
    %v8654 = vld [vmem:[%s8635 + $0x48] sm:$0xf]
    %v8655 = vld [vmem:[%s8635 + $0x4c] sm:$0xf]
    %v8656 = vld [vmem:[%s8635 + $0x50] sm:$0xf]
    %v8657 = vld [vmem:[%s8635 + $0x54] sm:$0xf]
    %v8658 = vld [vmem:[%s8635 + $0x58] sm:$0xf]
    %v8659 = vld [vmem:[%s8635 + $0x5c] sm:$0xf]
    %v8660 = vld [vmem:[%s8635 + $0x60] sm:$0xf]
    %v8661 = vld [vmem:[%s8635 + $0x64] sm:$0xf]
    %v8662 = vld [vmem:[%s8635 + $0x68] sm:$0xf]
    %v8663 = vld [vmem:[%s8635 + $0x6c] sm:$0xf]
    %v8664 = vld [vmem:[%s8635 + $0x70] sm:$0xf]
    %v8665 = vld [vmem:[%s8635 + $0x74] sm:$0xf]
    %v8666 = vld [vmem:[%s8635 + $0x78] sm:$0xf]
    %v8667 = vld [vmem:[%s8635 + $0x7c] sm:$0xf]
    %v8668 = vld [vmem:[%s8635 + $0x80] sm:$0xf]
    %v8669 = vld [vmem:[%s8635 + $0x84] sm:$0xf]
    %v8670 = vld [vmem:[%s8635 + $0x88] sm:$0xf]
    %v8671 = vld [vmem:[%s8635 + $0x8c] sm:$0xf]
    %v8672 = vld [vmem:[%s8635 + $0x90] sm:$0xf]
    %v8673 = vld [vmem:[%s8635 + $0x94] sm:$0xf]
    %v8674 = vld [vmem:[%s8635 + $0x98] sm:$0xf]
    %v8675 = vld [vmem:[%s8635 + $0x9c] sm:$0xf]
    %v8676 = vld [vmem:[%s8635 + $0xa0] sm:$0xf]
    %v8677 = vld [vmem:[%s8635 + $0xa4] sm:$0xf]
    %v8678 = vld [vmem:[%s8635 + $0xa8] sm:$0xf]
    %v8679 = vld [vmem:[%s8635 + $0xac] sm:$0xf]
    %v8680 = vld [vmem:[%s8635 + $0xb0] sm:$0xf]
    %v8681 = vld [vmem:[%s8635 + $0xb4] sm:$0xf]
    %v8682 = vld [vmem:[%s8635 + $0xb8] sm:$0xf]
    %v8683 = vld [vmem:[%s8635 + $0xbc] sm:$0xf]
    %v8684 = vld [vmem:[%s8635 + $0xc0] sm:$0xf]
    %v8685 = vld [vmem:[%s8635 + $0xc4] sm:$0xf]
    %v8686 = vld [vmem:[%s8635 + $0xc8] sm:$0xf]
    %v8687 = vld [vmem:[%s8635 + $0xcc] sm:$0xf]
    %v8688 = vld [vmem:[%s8635 + $0xd0] sm:$0xf]
    %v8689 = vld [vmem:[%s8635 + $0xd4] sm:$0xf]
    %v8690 = vld [vmem:[%s8635 + $0xd8] sm:$0xf]
    %v8691 = vld [vmem:[%s8635 + $0xdc] sm:$0xf]
    %v8692 = vld [vmem:[%s8635 + $0xe0] sm:$0xf]
    %v8693 = vld [vmem:[%s8635 + $0xe4] sm:$0xf]
    %v8694 = vld [vmem:[%s8635 + $0xe8] sm:$0xf]
    %v8695 = vld [vmem:[%s8635 + $0xec] sm:$0xf]
    %v8696 = vld [vmem:[%s8635 + $0xf0] sm:$0xf]
    %v8697 = vld [vmem:[%s8635 + $0xf4] sm:$0xf]
    %v8698 = vld [vmem:[%s8635 + $0xf8] sm:$0xf]
    %v8699 = vld [vmem:[%s8635 + $0xfc] sm:$0xf]
    %s8700 = scalar_lea.vmem [#allocation7], 1
    %v8701 = vld [vmem:[%s8700] sm:$0x1]
    %v8703 = vlaneseq
    %v8704 = vshrl.u32 %v8703, 7
    %v8705 = vsub.s32 0, %v8704
    %v8706 = vrot.slane %v8701, %v8705
    %v8772 = vunpack.c.l.b16 %v8636
    %v8773 = vunpack.c.l.b16 %v8637
    %v8774 = vunpack.c.l.b16 %v8638
    %v8775 = vunpack.c.l.b16 %v8639
    %v8776 = vunpack.c.l.b16 %v8640
    %v8777 = vunpack.c.l.b16 %v8641
    %v8778 = vunpack.c.l.b16 %v8642
    %v8779 = vunpack.c.l.b16 %v8643
    %v8780 = vunpack.c.l.b16 %v8644
    %v8781 = vunpack.c.l.b16 %v8645
    %v8782 = vunpack.c.l.b16 %v8646
    %v8783 = vunpack.c.l.b16 %v8647
    %v8784 = vunpack.c.l.b16 %v8648
    %v8785 = vunpack.c.l.b16 %v8649
    %v8786 = vunpack.c.l.b16 %v8650
    %v8787 = vunpack.c.l.b16 %v8651
    %v8788 = vunpack.c.l.b16 %v8652
    %v8789 = vunpack.c.l.b16 %v8653
    %v8790 = vunpack.c.l.b16 %v8654
    %v8791 = vunpack.c.l.b16 %v8655
    %v8792 = vunpack.c.l.b16 %v8656
    %v8793 = vunpack.c.l.b16 %v8657
    %v8794 = vunpack.c.l.b16 %v8658
    %v8795 = vunpack.c.l.b16 %v8659
    %v8796 = vunpack.c.l.b16 %v8660
    %v8797 = vunpack.c.l.b16 %v8661
    %v8798 = vunpack.c.l.b16 %v8662
    %v8799 = vunpack.c.l.b16 %v8663
    %v8800 = vunpack.c.l.b16 %v8664
    %v8801 = vunpack.c.l.b16 %v8665
    %v8802 = vunpack.c.l.b16 %v8666
    %v8803 = vunpack.c.l.b16 %v8667
    %v8804 = vunpack.c.l.b16 %v8668
    %v8805 = vunpack.c.l.b16 %v8669
    %v8806 = vunpack.c.l.b16 %v8670
    %v8807 = vunpack.c.l.b16 %v8671
    %v8808 = vunpack.c.l.b16 %v8672
    %v8809 = vunpack.c.l.b16 %v8673
    %v8810 = vunpack.c.l.b16 %v8674
    %v8811 = vunpack.c.l.b16 %v8675
    %v8812 = vunpack.c.l.b16 %v8676
    %v8813 = vunpack.c.l.b16 %v8677
    %v8814 = vunpack.c.l.b16 %v8678
    %v8815 = vunpack.c.l.b16 %v8679
    %v8816 = vunpack.c.l.b16 %v8680
    %v8817 = vunpack.c.l.b16 %v8681
    %v8818 = vunpack.c.l.b16 %v8682
    %v8819 = vunpack.c.l.b16 %v8683
    %v8820 = vunpack.c.l.b16 %v8684
    %v8821 = vunpack.c.l.b16 %v8685
    %v8822 = vunpack.c.l.b16 %v8686
    %v8823 = vunpack.c.l.b16 %v8687
    %v8824 = vunpack.c.l.b16 %v8688
    %v8825 = vunpack.c.l.b16 %v8689
    %v8826 = vunpack.c.l.b16 %v8690
    %v8827 = vunpack.c.l.b16 %v8691
    %v8828 = vunpack.c.l.b16 %v8692
    %v8829 = vunpack.c.l.b16 %v8693
    %v8830 = vunpack.c.l.b16 %v8694
    %v8831 = vunpack.c.l.b16 %v8695
    %v8832 = vunpack.c.l.b16 %v8696
    %v8833 = vunpack.c.l.b16 %v8697
    %v8834 = vunpack.c.l.b16 %v8698
    %v8835 = vunpack.c.l.b16 %v8699
    %v8836 = vpack.c.b16 %v8773, %v8772
    %v8837 = vpack.c.b16 %v8775, %v8774
    %v8838 = vpack.c.b16 %v8777, %v8776
    %v8839 = vpack.c.b16 %v8779, %v8778
    %v8840 = vpack.c.b16 %v8781, %v8780
    %v8841 = vpack.c.b16 %v8783, %v8782
    %v8842 = vpack.c.b16 %v8785, %v8784
    %v8843 = vpack.c.b16 %v8787, %v8786
    %v8844 = vpack.c.b16 %v8789, %v8788
    %v8845 = vpack.c.b16 %v8791, %v8790
    %v8846 = vpack.c.b16 %v8793, %v8792
    %v8847 = vpack.c.b16 %v8795, %v8794
    %v8848 = vpack.c.b16 %v8797, %v8796
    %v8849 = vpack.c.b16 %v8799, %v8798
    %v8850 = vpack.c.b16 %v8801, %v8800
    %v8851 = vpack.c.b16 %v8803, %v8802
    %v8852 = vpack.c.b16 %v8805, %v8804
    %v8853 = vpack.c.b16 %v8807, %v8806
    %v8854 = vpack.c.b16 %v8809, %v8808
    %v8855 = vpack.c.b16 %v8811, %v8810
    %v8856 = vpack.c.b16 %v8813, %v8812
    %v8857 = vpack.c.b16 %v8815, %v8814
    %v8858 = vpack.c.b16 %v8817, %v8816
    %v8859 = vpack.c.b16 %v8819, %v8818
    %v8860 = vpack.c.b16 %v8821, %v8820
    %v8861 = vpack.c.b16 %v8823, %v8822
    %v8862 = vpack.c.b16 %v8825, %v8824
    %v8863 = vpack.c.b16 %v8827, %v8826
    %v8864 = vpack.c.b16 %v8829, %v8828
    %v8865 = vpack.c.b16 %v8831, %v8830
    %v8866 = vpack.c.b16 %v8833, %v8832
    %v8867 = vpack.c.b16 %v8835, %v8834
    %8900 = vmatprep.subr.bf16.mxu0 0
    %8901 = vmatpush1.bf16.msra.mxu0 %v8836
    %8902 = vmatprep.subr.bf16.mxu0 0
    %8903 = vmatpush1.bf16.msra.mxu0 %v8837
    %8904 = vmatprep.subr.bf16.mxu0 0
    %8905 = vmatpush1.bf16.msra.mxu0 %v8838
    %8906 = vmatprep.subr.bf16.mxu0 0
    %8907 = vmatpush1.bf16.msra.mxu0 %v8839
    %8908 = vmatprep.subr.bf16.mxu0 0
    %8909 = vmatpush1.bf16.msra.mxu0 %v8840
    %8910 = vmatprep.subr.bf16.mxu0 0
    %8911 = vmatpush1.bf16.msra.mxu0 %v8841
    %8912 = vmatprep.subr.bf16.mxu0 0
    %8913 = vmatpush1.bf16.msra.mxu0 %v8842
    %8914 = vmatprep.subr.bf16.mxu0 0
    %8915 = vmatpush1.bf16.msra.mxu0 %v8843
    %8916 = vmatprep.subr.bf16.mxu0 0
    %8917 = vmatpush1.bf16.msra.mxu0 %v8844
    %8918 = vmatprep.subr.bf16.mxu0 0
    %8919 = vmatpush1.bf16.msra.mxu0 %v8845
    %8920 = vmatprep.subr.bf16.mxu0 0
    %8921 = vmatpush1.bf16.msra.mxu0 %v8846
    %8922 = vmatprep.subr.bf16.mxu0 0
    %8923 = vmatpush1.bf16.msra.mxu0 %v8847
    %8924 = vmatprep.subr.bf16.mxu0 0
    %8925 = vmatpush1.bf16.msra.mxu0 %v8848
    %8926 = vmatprep.subr.bf16.mxu0 0
    %8927 = vmatpush1.bf16.msra.mxu0 %v8849
    %8928 = vmatprep.subr.bf16.mxu0 0
    %8929 = vmatpush1.bf16.msra.mxu0 %v8850
    %8930 = vmatprep.subr.bf16.mxu0 0
    %8931 = vmatpush1.bf16.msra.mxu0 %v8851
    %8932 = vmatprep.mubr.bf16.mxu0 %v8604
    %8933 = vmatmul.mubr.bf16.gmra.mrb[0].mxu0 %v8603
    %v8934 = vpop.f32.mrb[0].mxu0
    %v8935 = vadd.f32 %v8706, %v8934
    %v8936 = vpop.f32.mrb[0].mxu0
    %v8937 = vpop.f32.mrb[0].mxu0
    %v8938 = vadd.f32 %v8706, %v8937
    %v8939 = vpop.f32.mrb[0].mxu0
    %8940 = vmatprep.mubr.bf16.mxu0 %v8608
    %8941 = vmatmul.mubr.bf16.gmra.mrb[0].mxu0 %v8607
    %v8942 = vpop.f32.mrb[0].mxu0
    %v8943 = vadd.f32 %v8706, %v8942
    %v8944 = vpop.f32.mrb[0].mxu0
    %v8945 = vpop.f32.mrb[0].mxu0
    %v8946 = vadd.f32 %v8706, %v8945
    %v8947 = vpop.f32.mrb[0].mxu0
    %8948 = vmatprep.mubr.bf16.mxu0 %v8612
    %8949 = vmatmul.mubr.bf16.gmra.mrb[0].mxu0 %v8611
    %v8950 = vpop.f32.mrb[0].mxu0
    %v8951 = vadd.f32 %v8706, %v8950
    %v8952 = vpop.f32.mrb[0].mxu0
    %v8953 = vpop.f32.mrb[0].mxu0
    %v8954 = vadd.f32 %v8706, %v8953
    %v8955 = vpop.f32.mrb[0].mxu0
    %8956 = vmatprep.mubr.bf16.mxu0 %v8616
    %8957 = vmatmul.mubr.bf16.gmra.mrb[0].mxu0 %v8615
    %v8958 = vpop.f32.mrb[0].mxu0
    %v8959 = vadd.f32 %v8706, %v8958
    %v8960 = vpop.f32.mrb[0].mxu0
    %v8961 = vpop.f32.mrb[0].mxu0
    %v8962 = vadd.f32 %v8706, %v8961
    %v8963 = vpop.f32.mrb[0].mxu0
    %8964 = vmatprep.mubr.bf16.mxu0 %v8620
    %8965 = vmatmul.mubr.bf16.gmra.mrb[0].mxu0 %v8619
    %v8966 = vpop.f32.mrb[0].mxu0
    %v8967 = vadd.f32 %v8706, %v8966
    %v8968 = vpop.f32.mrb[0].mxu0
    %v8969 = vpop.f32.mrb[0].mxu0
    %v8970 = vadd.f32 %v8706, %v8969
    %v8971 = vpop.f32.mrb[0].mxu0
    %8972 = vmatprep.mubr.bf16.mxu0 %v8624
    %8973 = vmatmul.mubr.bf16.gmra.mrb[0].mxu0 %v8623
    %v8974 = vpop.f32.mrb[0].mxu0
    %v8975 = vadd.f32 %v8706, %v8974
    %v8976 = vpop.f32.mrb[0].mxu0
    %v8977 = vpop.f32.mrb[0].mxu0
    %v8978 = vadd.f32 %v8706, %v8977
    %v8979 = vpop.f32.mrb[0].mxu0
    %8980 = vmatprep.mubr.bf16.mxu0 %v8628
    %8981 = vmatmul.mubr.bf16.gmra.mrb[0].mxu0 %v8627
    %v8982 = vpop.f32.mrb[0].mxu0
    %v8983 = vadd.f32 %v8706, %v8982
    %v8984 = vpop.f32.mrb[0].mxu0
    %v8985 = vpop.f32.mrb[0].mxu0
    %v8986 = vadd.f32 %v8706, %v8985
    %v8987 = vpop.f32.mrb[0].mxu0
    %8988 = vmatprep.mubr.bf16.mxu0 %v8632
    %8989 = vmatmul.mubr.bf16.gmra.mrb[0].mxu0 %v8631
    %v8990 = vpop.f32.mrb[0].mxu0
    %v8991 = vadd.f32 %v8706, %v8990
    %v8992 = vpop.f32.mrb[0].mxu0
    %v8993 = vpop.f32.mrb[0].mxu0
    %v8994 = vadd.f32 %v8706, %v8993
    %v8995 = vpop.f32.mrb[0].mxu0
    %8996 = vdwg.mxu0
    %8997 = vmatprep.subr.bf16.mxu0 0
    %8998 = vmatpush1.bf16.msra.mxu0 %v8852
    %8999 = vmatprep.subr.bf16.mxu0 0
    %9000 = vmatpush1.bf16.msra.mxu0 %v8853
    %9001 = vmatprep.subr.bf16.mxu0 0
    %9002 = vmatpush1.bf16.msra.mxu0 %v8854
    %9003 = vmatprep.subr.bf16.mxu0 0
    %9004 = vmatpush1.bf16.msra.mxu0 %v8855
    %9005 = vmatprep.subr.bf16.mxu0 0
    %9006 = vmatpush1.bf16.msra.mxu0 %v8856
    %9007 = vmatprep.subr.bf16.mxu0 0
    %9008 = vmatpush1.bf16.msra.mxu0 %v8857
    %9009 = vmatprep.subr.bf16.mxu0 0
    %9010 = vmatpush1.bf16.msra.mxu0 %v8858
    %9011 = vmatprep.subr.bf16.mxu0 0
    %9012 = vmatpush1.bf16.msra.mxu0 %v8859
    %9013 = vmatprep.subr.bf16.mxu0 0
    %9014 = vmatpush1.bf16.msra.mxu0 %v8860
    %9015 = vmatprep.subr.bf16.mxu0 0
    %9016 = vmatpush1.bf16.msra.mxu0 %v8861
    %9017 = vmatprep.subr.bf16.mxu0 0
    %9018 = vmatpush1.bf16.msra.mxu0 %v8862
    %9019 = vmatprep.subr.bf16.mxu0 0
    %9020 = vmatpush1.bf16.msra.mxu0 %v8863
    %9021 = vmatprep.subr.bf16.mxu0 0
    %9022 = vmatpush1.bf16.msra.mxu0 %v8864
    %9023 = vmatprep.subr.bf16.mxu0 0
    %9024 = vmatpush1.bf16.msra.mxu0 %v8865
    %9025 = vmatprep.subr.bf16.mxu0 0
    %9026 = vmatpush1.bf16.msra.mxu0 %v8866
    %9027 = vmatprep.subr.bf16.mxu0 0
    %9028 = vmatpush1.bf16.msra.mxu0 %v8867
    %9029 = vmatprep.mubr.bf16.mxu0 %v8606
    %9030 = vmatmul.mubr.bf16.gmra.mrb[0].mxu0 %v8605
    %v9031 = vpop.f32.mrb[0].mxu0
    %v9032 = vadd.f32 %v8935, %v9031
    %v9033 = vpop.f32.mrb[0].mxu0
    %v9034 = vpop.f32.mrb[0].mxu0
    %v9035 = vadd.f32 %v8938, %v9034
    %v9036 = vpop.f32.mrb[0].mxu0
    %9037 = vmatprep.mubr.bf16.mxu0 %v8610
    %9038 = vmatmul.mubr.bf16.gmra.mrb[0].mxu0 %v8609
    %v9039 = vpop.f32.mrb[0].mxu0
    %v9040 = vadd.f32 %v8943, %v9039
    %v9041 = vpop.f32.mrb[0].mxu0
    %v9042 = vpop.f32.mrb[0].mxu0
    %v9043 = vadd.f32 %v8946, %v9042
    %v9044 = vpop.f32.mrb[0].mxu0
    %9045 = vmatprep.mubr.bf16.mxu0 %v8614
    %9046 = vmatmul.mubr.bf16.gmra.mrb[0].mxu0 %v8613
    %v9047 = vpop.f32.mrb[0].mxu0
    %v9048 = vadd.f32 %v8951, %v9047
    %v9049 = vpop.f32.mrb[0].mxu0
    %v9050 = vpop.f32.mrb[0].mxu0
    %v9051 = vadd.f32 %v8954, %v9050
    %v9052 = vpop.f32.mrb[0].mxu0
    %9053 = vmatprep.mubr.bf16.mxu0 %v8618
    %9054 = vmatmul.mubr.bf16.gmra.mrb[0].mxu0 %v8617
    %v9055 = vpop.f32.mrb[0].mxu0
    %v9056 = vadd.f32 %v8959, %v9055
    %v9057 = vpop.f32.mrb[0].mxu0
    %v9058 = vpop.f32.mrb[0].mxu0
    %v9059 = vadd.f32 %v8962, %v9058
    %v9060 = vpop.f32.mrb[0].mxu0
    %9061 = vmatprep.mubr.bf16.mxu0 %v8622
    %9062 = vmatmul.mubr.bf16.gmra.mrb[0].mxu0 %v8621
    %v9063 = vpop.f32.mrb[0].mxu0
    %v9064 = vadd.f32 %v8967, %v9063
    %v9065 = vpop.f32.mrb[0].mxu0
    %v9066 = vpop.f32.mrb[0].mxu0
    %v9067 = vadd.f32 %v8970, %v9066
    %v9068 = vpop.f32.mrb[0].mxu0
    %9069 = vmatprep.mubr.bf16.mxu0 %v8626
    %9070 = vmatmul.mubr.bf16.gmra.mrb[0].mxu0 %v8625
    %v9071 = vpop.f32.mrb[0].mxu0
    %v9072 = vadd.f32 %v8975, %v9071
    %v9073 = vpop.f32.mrb[0].mxu0
    %v9074 = vpop.f32.mrb[0].mxu0
    %v9075 = vadd.f32 %v8978, %v9074
    %v9076 = vpop.f32.mrb[0].mxu0
    %9077 = vmatprep.mubr.bf16.mxu0 %v8630
    %9078 = vmatmul.mubr.bf16.gmra.mrb[0].mxu0 %v8629
    %v9079 = vpop.f32.mrb[0].mxu0
    %v9080 = vadd.f32 %v8983, %v9079
    %v9081 = vpop.f32.mrb[0].mxu0
    %v9082 = vpop.f32.mrb[0].mxu0
    %v9083 = vadd.f32 %v8986, %v9082
    %v9084 = vpop.f32.mrb[0].mxu0
    %9085 = vmatprep.mubr.bf16.mxu0 %v8634
    %9086 = vmatmul.mubr.bf16.gmra.mrb[0].mxu0 %v8633
    %v9087 = vpop.f32.mrb[0].mxu0
    %v9088 = vadd.f32 %v8991, %v9087
    %v9089 = vpop.f32.mrb[0].mxu0
    %v9090 = vpop.f32.mrb[0].mxu0
    %v9091 = vadd.f32 %v8994, %v9090
    %v9092 = vpop.f32.mrb[0].mxu0
    %9093 = vdwg.mxu0
    %v9094 = vadd.f32 %v8073, %v9032
    %v9095 = vadd.f32 %v8074, %v9035
    %v9096 = vadd.f32 %v8075, %v9040
    %v9097 = vadd.f32 %v8076, %v9043
    %v9098 = vadd.f32 %v8077, %v9048
    %v9099 = vadd.f32 %v8078, %v9051
    %v9100 = vadd.f32 %v8079, %v9056
    %v9101 = vadd.f32 %v8080, %v9059
    %v9102 = vadd.f32 %v8081, %v9064
    %v9103 = vadd.f32 %v8082, %v9067
    %v9104 = vadd.f32 %v8083, %v9072
    %v9105 = vadd.f32 %v8084, %v9075
    %v9106 = vadd.f32 %v8085, %v9080
    %v9107 = vadd.f32 %v8086, %v9083
    %v9108 = vadd.f32 %v8087, %v9088
    %v9109 = vadd.f32 %v8088, %v9091
    %s9110 = scalar_lea.vmem [#allocation11], 1
    %v9111 = vld [vmem:[%s9110] sm:$0x1]
    %s9112 = scalar_lea.vmem [#allocation13], 1
    %v9113 = vld [vmem:[%s9112] sm:$0x1]
    %9114 = vadd.xlane.f32.xlu0 %v9094
    %v9115 = vpop.xlane.xlu0 %9114
    %9116 = vadd.xlane.f32.xlu0 %v9095
    %v9117 = vpop.xlane.xlu0 %9116
    %9118 = vadd.xlane.f32.xlu0 %v9096
    %v9119 = vpop.xlane.xlu0 %9118
    %9120 = vadd.xlane.f32.xlu0 %v9097
    %v9121 = vpop.xlane.xlu0 %9120
    %9122 = vadd.xlane.f32.xlu0 %v9098
    %v9123 = vpop.xlane.xlu0 %9122
    %9124 = vadd.xlane.f32.xlu0 %v9099
    %v9125 = vpop.xlane.xlu0 %9124
    %9126 = vadd.xlane.f32.xlu0 %v9100
    %v9127 = vpop.xlane.xlu0 %9126
    %9128 = vadd.xlane.f32.xlu0 %v9101
    %v9129 = vpop.xlane.xlu0 %9128
    %9130 = vadd.xlane.f32.xlu0 %v9102
    %v9131 = vpop.xlane.xlu0 %9130
    %9132 = vadd.xlane.f32.xlu0 %v9103
    %v9133 = vpop.xlane.xlu0 %9132
    %9134 = vadd.xlane.f32.xlu0 %v9104
    %v9135 = vpop.xlane.xlu0 %9134
    %9136 = vadd.xlane.f32.xlu0 %v9105
    %v9137 = vpop.xlane.xlu0 %9136
    %9138 = vadd.xlane.f32.xlu0 %v9106
    %v9139 = vpop.xlane.xlu0 %9138
    %9140 = vadd.xlane.f32.xlu0 %v9107
    %v9141 = vpop.xlane.xlu0 %9140
    %9142 = vadd.xlane.f32.xlu0 %v9108
    %v9143 = vpop.xlane.xlu0 %9142
    %9144 = vadd.xlane.f32.xlu0 %v9109
    %v9145 = vpop.xlane.xlu0 %9144
    %v9146 = vmul.f32 %v9115, %v3360
    %v9147 = vmul.f32 %v9117, %v3360
    %v9148 = vmul.f32 %v9119, %v3360
    %v9149 = vmul.f32 %v9121, %v3360
    %v9150 = vmul.f32 %v9123, %v3360
    %v9151 = vmul.f32 %v9125, %v3360
    %v9152 = vmul.f32 %v9127, %v3360
    %v9153 = vmul.f32 %v9129, %v3360
    %v9154 = vmul.f32 %v9131, %v3360
    %v9155 = vmul.f32 %v9133, %v3360
    %v9156 = vmul.f32 %v9135, %v3360
    %v9157 = vmul.f32 %v9137, %v3360
    %v9158 = vmul.f32 %v9139, %v3360
    %v9159 = vmul.f32 %v9141, %v3360
    %v9160 = vmul.f32 %v9143, %v3360
    %v9161 = vmul.f32 %v9145, %v3360
    %v9162 = vsub.f32 %v9094, %v9146
    %v9163 = vsub.f32 %v9095, %v9147
    %v9164 = vsub.f32 %v9096, %v9148
    %v9165 = vsub.f32 %v9097, %v9149
    %v9166 = vsub.f32 %v9098, %v9150
    %v9167 = vsub.f32 %v9099, %v9151
    %v9168 = vsub.f32 %v9100, %v9152
    %v9169 = vsub.f32 %v9101, %v9153
    %v9170 = vsub.f32 %v9102, %v9154
    %v9171 = vsub.f32 %v9103, %v9155
    %v9172 = vsub.f32 %v9104, %v9156
    %v9173 = vsub.f32 %v9105, %v9157
    %v9174 = vsub.f32 %v9106, %v9158
    %v9175 = vsub.f32 %v9107, %v9159
    %v9176 = vsub.f32 %v9108, %v9160
    %v9177 = vsub.f32 %v9109, %v9161
    %v9178 = vmul.f32 %v9162, %v9162
    %v9179 = vmul.f32 %v9163, %v9163
    %v9180 = vmul.f32 %v9164, %v9164
    %v9181 = vmul.f32 %v9165, %v9165
    %v9182 = vmul.f32 %v9166, %v9166
    %v9183 = vmul.f32 %v9167, %v9167
    %v9184 = vmul.f32 %v9168, %v9168
    %v9185 = vmul.f32 %v9169, %v9169
    %v9186 = vmul.f32 %v9170, %v9170
    %v9187 = vmul.f32 %v9171, %v9171
    %v9188 = vmul.f32 %v9172, %v9172
    %v9189 = vmul.f32 %v9173, %v9173
    %v9190 = vmul.f32 %v9174, %v9174
    %v9191 = vmul.f32 %v9175, %v9175
    %v9192 = vmul.f32 %v9176, %v9176
    %v9193 = vmul.f32 %v9177, %v9177
    %9194 = vadd.xlane.f32.xlu0 %v9178
    %v9195 = vpop.xlane.xlu0 %9194
    %9196 = vadd.xlane.f32.xlu0 %v9179
    %v9197 = vpop.xlane.xlu0 %9196
    %9198 = vadd.xlane.f32.xlu0 %v9180
    %v9199 = vpop.xlane.xlu0 %9198
    %9200 = vadd.xlane.f32.xlu0 %v9181
    %v9201 = vpop.xlane.xlu0 %9200
    %9202 = vadd.xlane.f32.xlu0 %v9182
    %v9203 = vpop.xlane.xlu0 %9202
    %9204 = vadd.xlane.f32.xlu0 %v9183
    %v9205 = vpop.xlane.xlu0 %9204
    %9206 = vadd.xlane.f32.xlu0 %v9184
    %v9207 = vpop.xlane.xlu0 %9206
    %9208 = vadd.xlane.f32.xlu0 %v9185
    %v9209 = vpop.xlane.xlu0 %9208
    %9210 = vadd.xlane.f32.xlu0 %v9186
    %v9211 = vpop.xlane.xlu0 %9210
    %9212 = vadd.xlane.f32.xlu0 %v9187
    %v9213 = vpop.xlane.xlu0 %9212
    %9214 = vadd.xlane.f32.xlu0 %v9188
    %v9215 = vpop.xlane.xlu0 %9214
    %9216 = vadd.xlane.f32.xlu0 %v9189
    %v9217 = vpop.xlane.xlu0 %9216
    %9218 = vadd.xlane.f32.xlu0 %v9190
    %v9219 = vpop.xlane.xlu0 %9218
    %9220 = vadd.xlane.f32.xlu0 %v9191
    %v9221 = vpop.xlane.xlu0 %9220
    %9222 = vadd.xlane.f32.xlu0 %v9192
    %v9223 = vpop.xlane.xlu0 %9222
    %9224 = vadd.xlane.f32.xlu0 %v9193
    %v9225 = vpop.xlane.xlu0 %9224
    %v9226 = vmul.f32 %v9195, %v3360
    %v9227 = vmul.f32 %v9197, %v3360
    %v9228 = vmul.f32 %v9199, %v3360
    %v9229 = vmul.f32 %v9201, %v3360
    %v9230 = vmul.f32 %v9203, %v3360
    %v9231 = vmul.f32 %v9205, %v3360
    %v9232 = vmul.f32 %v9207, %v3360
    %v9233 = vmul.f32 %v9209, %v3360
    %v9234 = vmul.f32 %v9211, %v3360
    %v9235 = vmul.f32 %v9213, %v3360
    %v9236 = vmul.f32 %v9215, %v3360
    %v9237 = vmul.f32 %v9217, %v3360
    %v9238 = vmul.f32 %v9219, %v3360
    %v9239 = vmul.f32 %v9221, %v3360
    %v9240 = vmul.f32 %v9223, %v3360
    %v9241 = vmul.f32 %v9225, %v3360
    %v9242 = vadd.f32 %v9226, 1e-05
    %v9243 = vadd.f32 %v9227, 1e-05
    %v9244 = vadd.f32 %v9228, 1e-05
    %v9245 = vadd.f32 %v9229, 1e-05
    %v9246 = vadd.f32 %v9230, 1e-05
    %v9247 = vadd.f32 %v9231, 1e-05
    %v9248 = vadd.f32 %v9232, 1e-05
    %v9249 = vadd.f32 %v9233, 1e-05
    %v9250 = vadd.f32 %v9234, 1e-05
    %v9251 = vadd.f32 %v9235, 1e-05
    %v9252 = vadd.f32 %v9236, 1e-05
    %v9253 = vadd.f32 %v9237, 1e-05
    %v9254 = vadd.f32 %v9238, 1e-05
    %v9255 = vadd.f32 %v9239, 1e-05
    %v9256 = vadd.f32 %v9240, 1e-05
    %v9257 = vadd.f32 %v9241, 1e-05
    %v9258 = vrsqrt.pop %v9242
    %v9259 = vrsqrt.pop %v9243
    %v9260 = vrsqrt.pop %v9244
    %v9261 = vrsqrt.pop %v9245
    %v9262 = vrsqrt.pop %v9246
    %v9263 = vrsqrt.pop %v9247
    %v9264 = vrsqrt.pop %v9248
    %v9265 = vrsqrt.pop %v9249
    %v9266 = vrsqrt.pop %v9250
    %v9267 = vrsqrt.pop %v9251
    %v9268 = vrsqrt.pop %v9252
    %v9269 = vrsqrt.pop %v9253
    %v9270 = vrsqrt.pop %v9254
    %v9271 = vrsqrt.pop %v9255
    %v9272 = vrsqrt.pop %v9256
    %v9273 = vrsqrt.pop %v9257
    %v9274 = vmul.f32 %v9162, %v9258
    %v9275 = vmul.f32 %v9163, %v9259
    %v9276 = vmul.f32 %v9164, %v9260
    %v9277 = vmul.f32 %v9165, %v9261
    %v9278 = vmul.f32 %v9166, %v9262
    %v9279 = vmul.f32 %v9167, %v9263
    %v9280 = vmul.f32 %v9168, %v9264
    %v9281 = vmul.f32 %v9169, %v9265
    %v9282 = vmul.f32 %v9170, %v9266
    %v9283 = vmul.f32 %v9171, %v9267
    %v9284 = vmul.f32 %v9172, %v9268
    %v9285 = vmul.f32 %v9173, %v9269
    %v9286 = vmul.f32 %v9174, %v9270
    %v9287 = vmul.f32 %v9175, %v9271
    %v9288 = vmul.f32 %v9176, %v9272
    %v9289 = vmul.f32 %v9177, %v9273
    %v9291 = vlaneseq
    %v9292 = vshrl.u32 %v9291, 7
    %v9293 = vsub.s32 0, %v9292
    %v9294 = vrot.slane %v9111, %v9293
    %v9296 = vmul.f32 %v9274, %v9294
    %v9297 = vmul.f32 %v9275, %v9294
    %v9298 = vmul.f32 %v9276, %v9294
    %v9299 = vmul.f32 %v9277, %v9294
    %v9300 = vmul.f32 %v9278, %v9294
    %v9301 = vmul.f32 %v9279, %v9294
    %v9302 = vmul.f32 %v9280, %v9294
    %v9303 = vmul.f32 %v9281, %v9294
    %v9304 = vmul.f32 %v9282, %v9294
    %v9305 = vmul.f32 %v9283, %v9294
    %v9306 = vmul.f32 %v9284, %v9294
    %v9307 = vmul.f32 %v9285, %v9294
    %v9308 = vmul.f32 %v9286, %v9294
    %v9309 = vmul.f32 %v9287, %v9294
    %v9310 = vmul.f32 %v9288, %v9294
    %v9311 = vmul.f32 %v9289, %v9294
    %v9313 = vlaneseq
    %v9314 = vshrl.u32 %v9313, 7
    %v9315 = vsub.s32 0, %v9314
    %v9316 = vrot.slane %v9113, %v9315
    %v9318 = vadd.f32 %v9296, %v9316
    %v9319 = vadd.f32 %v9297, %v9316
    %v9320 = vadd.f32 %v9298, %v9316
    %v9321 = vadd.f32 %v9299, %v9316
    %v9322 = vadd.f32 %v9300, %v9316
    %v9323 = vadd.f32 %v9301, %v9316
    %v9324 = vadd.f32 %v9302, %v9316
    %v9325 = vadd.f32 %v9303, %v9316
    %v9326 = vadd.f32 %v9304, %v9316
    %v9327 = vadd.f32 %v9305, %v9316
    %v9328 = vadd.f32 %v9306, %v9316
    %v9329 = vadd.f32 %v9307, %v9316
    %v9330 = vadd.f32 %v9308, %v9316
    %v9331 = vadd.f32 %v9309, %v9316
    %v9332 = vadd.f32 %v9310, %v9316
    %v9333 = vadd.f32 %v9311, %v9316
    %v9334 = vld [vmem:[#allocation14] sm:$0x1]
    %v9335 = vld [vmem:[#allocation16] sm:$0x1]
    %9336 = vadd.xlane.f32.xlu0 %v9318
    %v9337 = vpop.xlane.xlu0 %9336
    %9338 = vadd.xlane.f32.xlu0 %v9319
    %v9339 = vpop.xlane.xlu0 %9338
    %9340 = vadd.xlane.f32.xlu0 %v9320
    %v9341 = vpop.xlane.xlu0 %9340
    %9342 = vadd.xlane.f32.xlu0 %v9321
    %v9343 = vpop.xlane.xlu0 %9342
    %9344 = vadd.xlane.f32.xlu0 %v9322
    %v9345 = vpop.xlane.xlu0 %9344
    %9346 = vadd.xlane.f32.xlu0 %v9323
    %v9347 = vpop.xlane.xlu0 %9346
    %9348 = vadd.xlane.f32.xlu0 %v9324
    %v9349 = vpop.xlane.xlu0 %9348
    %9350 = vadd.xlane.f32.xlu0 %v9325
    %v9351 = vpop.xlane.xlu0 %9350
    %9352 = vadd.xlane.f32.xlu0 %v9326
    %v9353 = vpop.xlane.xlu0 %9352
    %9354 = vadd.xlane.f32.xlu0 %v9327
    %v9355 = vpop.xlane.xlu0 %9354
    %9356 = vadd.xlane.f32.xlu0 %v9328
    %v9357 = vpop.xlane.xlu0 %9356
    %9358 = vadd.xlane.f32.xlu0 %v9329
    %v9359 = vpop.xlane.xlu0 %9358
    %9360 = vadd.xlane.f32.xlu0 %v9330
    %v9361 = vpop.xlane.xlu0 %9360
    %9362 = vadd.xlane.f32.xlu0 %v9331
    %v9363 = vpop.xlane.xlu0 %9362
    %9364 = vadd.xlane.f32.xlu0 %v9332
    %v9365 = vpop.xlane.xlu0 %9364
    %9366 = vadd.xlane.f32.xlu0 %v9333
    %v9367 = vpop.xlane.xlu0 %9366
    %v9368 = vmul.f32 %v9337, %v3360
    %v9369 = vmul.f32 %v9339, %v3360
    %v9370 = vmul.f32 %v9341, %v3360
    %v9371 = vmul.f32 %v9343, %v3360
    %v9372 = vmul.f32 %v9345, %v3360
    %v9373 = vmul.f32 %v9347, %v3360
    %v9374 = vmul.f32 %v9349, %v3360
    %v9375 = vmul.f32 %v9351, %v3360
    %v9376 = vmul.f32 %v9353, %v3360
    %v9377 = vmul.f32 %v9355, %v3360
    %v9378 = vmul.f32 %v9357, %v3360
    %v9379 = vmul.f32 %v9359, %v3360
    %v9380 = vmul.f32 %v9361, %v3360
    %v9381 = vmul.f32 %v9363, %v3360
    %v9382 = vmul.f32 %v9365, %v3360
    %v9383 = vmul.f32 %v9367, %v3360
    %v9384 = vsub.f32 %v9318, %v9368
    %v9385 = vsub.f32 %v9319, %v9369
    %v9386 = vsub.f32 %v9320, %v9370
    %v9387 = vsub.f32 %v9321, %v9371
    %v9388 = vsub.f32 %v9322, %v9372
    %v9389 = vsub.f32 %v9323, %v9373
    %v9390 = vsub.f32 %v9324, %v9374
    %v9391 = vsub.f32 %v9325, %v9375
    %v9392 = vsub.f32 %v9326, %v9376
    %v9393 = vsub.f32 %v9327, %v9377
    %v9394 = vsub.f32 %v9328, %v9378
    %v9395 = vsub.f32 %v9329, %v9379
    %v9396 = vsub.f32 %v9330, %v9380
    %v9397 = vsub.f32 %v9331, %v9381
    %v9398 = vsub.f32 %v9332, %v9382
    %v9399 = vsub.f32 %v9333, %v9383
    %v9400 = vmul.f32 %v9384, %v9384
    %v9401 = vmul.f32 %v9385, %v9385
    %v9402 = vmul.f32 %v9386, %v9386
    %v9403 = vmul.f32 %v9387, %v9387
    %v9404 = vmul.f32 %v9388, %v9388
    %v9405 = vmul.f32 %v9389, %v9389
    %v9406 = vmul.f32 %v9390, %v9390
    %v9407 = vmul.f32 %v9391, %v9391
    %v9408 = vmul.f32 %v9392, %v9392
    %v9409 = vmul.f32 %v9393, %v9393
    %v9410 = vmul.f32 %v9394, %v9394
    %v9411 = vmul.f32 %v9395, %v9395
    %v9412 = vmul.f32 %v9396, %v9396
    %v9413 = vmul.f32 %v9397, %v9397
    %v9414 = vmul.f32 %v9398, %v9398
    %v9415 = vmul.f32 %v9399, %v9399
    %9416 = vadd.xlane.f32.xlu0 %v9400
    %v9417 = vpop.xlane.xlu0 %9416
    %9418 = vadd.xlane.f32.xlu0 %v9401
    %v9419 = vpop.xlane.xlu0 %9418
    %9420 = vadd.xlane.f32.xlu0 %v9402
    %v9421 = vpop.xlane.xlu0 %9420
    %9422 = vadd.xlane.f32.xlu0 %v9403
    %v9423 = vpop.xlane.xlu0 %9422
    %9424 = vadd.xlane.f32.xlu0 %v9404
    %v9425 = vpop.xlane.xlu0 %9424
    %9426 = vadd.xlane.f32.xlu0 %v9405
    %v9427 = vpop.xlane.xlu0 %9426
    %9428 = vadd.xlane.f32.xlu0 %v9406
    %v9429 = vpop.xlane.xlu0 %9428
    %9430 = vadd.xlane.f32.xlu0 %v9407
    %v9431 = vpop.xlane.xlu0 %9430
    %9432 = vadd.xlane.f32.xlu0 %v9408
    %v9433 = vpop.xlane.xlu0 %9432
    %9434 = vadd.xlane.f32.xlu0 %v9409
    %v9435 = vpop.xlane.xlu0 %9434
    %9436 = vadd.xlane.f32.xlu0 %v9410
    %v9437 = vpop.xlane.xlu0 %9436
    %9438 = vadd.xlane.f32.xlu0 %v9411
    %v9439 = vpop.xlane.xlu0 %9438
    %9440 = vadd.xlane.f32.xlu0 %v9412
    %v9441 = vpop.xlane.xlu0 %9440
    %9442 = vadd.xlane.f32.xlu0 %v9413
    %v9443 = vpop.xlane.xlu0 %9442
    %9444 = vadd.xlane.f32.xlu0 %v9414
    %v9445 = vpop.xlane.xlu0 %9444
    %9446 = vadd.xlane.f32.xlu0 %v9415
    %v9447 = vpop.xlane.xlu0 %9446
    %v9448 = vmul.f32 %v9417, %v3360
    %v9449 = vmul.f32 %v9419, %v3360
    %v9450 = vmul.f32 %v9421, %v3360
    %v9451 = vmul.f32 %v9423, %v3360
    %v9452 = vmul.f32 %v9425, %v3360
    %v9453 = vmul.f32 %v9427, %v3360
    %v9454 = vmul.f32 %v9429, %v3360
    %v9455 = vmul.f32 %v9431, %v3360
    %v9456 = vmul.f32 %v9433, %v3360
    %v9457 = vmul.f32 %v9435, %v3360
    %v9458 = vmul.f32 %v9437, %v3360
    %v9459 = vmul.f32 %v9439, %v3360
    %v9460 = vmul.f32 %v9441, %v3360
    %v9461 = vmul.f32 %v9443, %v3360
    %v9462 = vmul.f32 %v9445, %v3360
    %v9463 = vmul.f32 %v9447, %v3360
    %v9464 = vadd.f32 %v9448, 1e-05
    %v9465 = vadd.f32 %v9449, 1e-05
    %v9466 = vadd.f32 %v9450, 1e-05
    %v9467 = vadd.f32 %v9451, 1e-05
    %v9468 = vadd.f32 %v9452, 1e-05
    %v9469 = vadd.f32 %v9453, 1e-05
    %v9470 = vadd.f32 %v9454, 1e-05
    %v9471 = vadd.f32 %v9455, 1e-05
    %v9472 = vadd.f32 %v9456, 1e-05
    %v9473 = vadd.f32 %v9457, 1e-05
    %v9474 = vadd.f32 %v9458, 1e-05
    %v9475 = vadd.f32 %v9459, 1e-05
    %v9476 = vadd.f32 %v9460, 1e-05
    %v9477 = vadd.f32 %v9461, 1e-05
    %v9478 = vadd.f32 %v9462, 1e-05
    %v9479 = vadd.f32 %v9463, 1e-05
    %v9480 = vrsqrt.pop %v9464
    %v9481 = vrsqrt.pop %v9465
    %v9482 = vrsqrt.pop %v9466
    %v9483 = vrsqrt.pop %v9467
    %v9484 = vrsqrt.pop %v9468
    %v9485 = vrsqrt.pop %v9469
    %v9486 = vrsqrt.pop %v9470
    %v9487 = vrsqrt.pop %v9471
    %v9488 = vrsqrt.pop %v9472
    %v9489 = vrsqrt.pop %v9473
    %v9490 = vrsqrt.pop %v9474
    %v9491 = vrsqrt.pop %v9475
    %v9492 = vrsqrt.pop %v9476
    %v9493 = vrsqrt.pop %v9477
    %v9494 = vrsqrt.pop %v9478
    %v9495 = vrsqrt.pop %v9479
    %v9496 = vmul.f32 %v9384, %v9480
    %v9497 = vmul.f32 %v9385, %v9481
    %v9498 = vmul.f32 %v9386, %v9482
    %v9499 = vmul.f32 %v9387, %v9483
    %v9500 = vmul.f32 %v9388, %v9484
    %v9501 = vmul.f32 %v9389, %v9485
    %v9502 = vmul.f32 %v9390, %v9486
    %v9503 = vmul.f32 %v9391, %v9487
    %v9504 = vmul.f32 %v9392, %v9488
    %v9505 = vmul.f32 %v9393, %v9489
    %v9506 = vmul.f32 %v9394, %v9490
    %v9507 = vmul.f32 %v9395, %v9491
    %v9508 = vmul.f32 %v9396, %v9492
    %v9509 = vmul.f32 %v9397, %v9493
    %v9510 = vmul.f32 %v9398, %v9494
    %v9511 = vmul.f32 %v9399, %v9495
    %v9513 = vlaneseq
    %v9514 = vshrl.u32 %v9513, 7
    %v9515 = vsub.s32 0, %v9514
    %v9516 = vrot.slane %v9334, %v9515
    %v9518 = vmul.f32 %v9496, %v9516
    %v9519 = vmul.f32 %v9497, %v9516
    %v9520 = vmul.f32 %v9498, %v9516
    %v9521 = vmul.f32 %v9499, %v9516
    %v9522 = vmul.f32 %v9500, %v9516
    %v9523 = vmul.f32 %v9501, %v9516
    %v9524 = vmul.f32 %v9502, %v9516
    %v9525 = vmul.f32 %v9503, %v9516
    %v9526 = vmul.f32 %v9504, %v9516
    %v9527 = vmul.f32 %v9505, %v9516
    %v9528 = vmul.f32 %v9506, %v9516
    %v9529 = vmul.f32 %v9507, %v9516
    %v9530 = vmul.f32 %v9508, %v9516
    %v9531 = vmul.f32 %v9509, %v9516
    %v9532 = vmul.f32 %v9510, %v9516
    %v9533 = vmul.f32 %v9511, %v9516
    %v9535 = vlaneseq
    %v9536 = vshrl.u32 %v9535, 7
    %v9537 = vsub.s32 0, %v9536
    %v9538 = vrot.slane %v9335, %v9537
    %v9540 = vadd.f32 %v9518, %v9538
    %v9541 = vadd.f32 %v9519, %v9538
    %v9542 = vadd.f32 %v9520, %v9538
    %v9543 = vadd.f32 %v9521, %v9538
    %v9544 = vadd.f32 %v9522, %v9538
    %v9545 = vadd.f32 %v9523, %v9538
    %v9546 = vadd.f32 %v9524, %v9538
    %v9547 = vadd.f32 %v9525, %v9538
    %v9548 = vadd.f32 %v9526, %v9538
    %v9549 = vadd.f32 %v9527, %v9538
    %v9550 = vadd.f32 %v9528, %v9538
    %v9551 = vadd.f32 %v9529, %v9538
    %v9552 = vadd.f32 %v9530, %v9538
    %v9553 = vadd.f32 %v9531, %v9538
    %v9554 = vadd.f32 %v9532, %v9538
    %v9555 = vadd.f32 %v9533, %v9538
    %v9556 = vpack.c.bf16 %v9541, %v9540
    %v9557 = vpack.c.bf16 %v9543, %v9542
    %v9558 = vpack.c.bf16 %v9545, %v9544
    %v9559 = vpack.c.bf16 %v9547, %v9546
    %v9560 = vpack.c.bf16 %v9549, %v9548
    %v9561 = vpack.c.bf16 %v9551, %v9550
    %v9562 = vpack.c.bf16 %v9553, %v9552
    %v9563 = vpack.c.bf16 %v9555, %v9554
    %v9564 = vld [vmem:[#allocation17] sm:$0xf]
    %v9565 = vld [vmem:[#allocation17 + $0x4] sm:$0xf]
    %v9566 = vld [vmem:[#allocation17 + $0x8] sm:$0xf]
    %v9567 = vld [vmem:[#allocation17 + $0xc] sm:$0xf]
    %v9568 = vld [vmem:[#allocation17 + $0x10] sm:$0xf]
    %v9569 = vld [vmem:[#allocation17 + $0x14] sm:$0xf]
    %v9570 = vld [vmem:[#allocation17 + $0x18] sm:$0xf]
    %v9571 = vld [vmem:[#allocation17 + $0x1c] sm:$0xf]
    %v9572 = vld [vmem:[#allocation17 + $0x20] sm:$0xf]
    %v9573 = vld [vmem:[#allocation17 + $0x24] sm:$0xf]
    %v9574 = vld [vmem:[#allocation17 + $0x28] sm:$0xf]
    %v9575 = vld [vmem:[#allocation17 + $0x2c] sm:$0xf]
    %v9576 = vld [vmem:[#allocation17 + $0x30] sm:$0xf]
    %v9577 = vld [vmem:[#allocation17 + $0x34] sm:$0xf]
    %v9578 = vld [vmem:[#allocation17 + $0x38] sm:$0xf]
    %v9579 = vld [vmem:[#allocation17 + $0x3c] sm:$0xf]
    %v9580 = vld [vmem:[#allocation19] sm:$0x1]
    %v9582 = vlaneseq
    %v9583 = vshrl.u32 %v9582, 7
    %v9584 = vsub.s32 0, %v9583
    %v9585 = vrot.slane %v9580, %v9584
    %v9603 = vunpack.c.l.b16 %v9564
    %v9604 = vunpack.c.l.b16 %v9565
    %v9605 = vunpack.c.l.b16 %v9566
    %v9606 = vunpack.c.l.b16 %v9567
    %v9607 = vunpack.c.l.b16 %v9568
    %v9608 = vunpack.c.l.b16 %v9569
    %v9609 = vunpack.c.l.b16 %v9570
    %v9610 = vunpack.c.l.b16 %v9571
    %v9611 = vunpack.c.l.b16 %v9572
    %v9612 = vunpack.c.l.b16 %v9573
    %v9613 = vunpack.c.l.b16 %v9574
    %v9614 = vunpack.c.l.b16 %v9575
    %v9615 = vunpack.c.l.b16 %v9576
    %v9616 = vunpack.c.l.b16 %v9577
    %v9617 = vunpack.c.l.b16 %v9578
    %v9618 = vunpack.c.l.b16 %v9579
    %v9619 = vpack.c.b16 %v9604, %v9603
    %v9620 = vpack.c.b16 %v9606, %v9605
    %v9621 = vpack.c.b16 %v9608, %v9607
    %v9622 = vpack.c.b16 %v9610, %v9609
    %v9623 = vpack.c.b16 %v9612, %v9611
    %v9624 = vpack.c.b16 %v9614, %v9613
    %v9625 = vpack.c.b16 %v9616, %v9615
    %v9626 = vpack.c.b16 %v9618, %v9617
    %9635 = vmatprep.subr.bf16.mxu0 0
    %9636 = vmatpush1.bf16.msra.mxu0 %v9619
    %9637 = vmatprep.subr.bf16.mxu0 0
    %9638 = vmatpush1.bf16.msra.mxu0 %v9620
    %9639 = vmatprep.subr.bf16.mxu0 0
    %9640 = vmatpush1.bf16.msra.mxu0 %v9621
    %9641 = vmatprep.subr.bf16.mxu0 0
    %9642 = vmatpush1.bf16.msra.mxu0 %v9622
    %9643 = vmatprep.subr.bf16.mxu0 0
    %9644 = vmatpush1.bf16.msra.mxu0 %v9623
    %9645 = vmatprep.subr.bf16.mxu0 0
    %9646 = vmatpush1.bf16.msra.mxu0 %v9624
    %9647 = vmatprep.subr.bf16.mxu0 0
    %9648 = vmatpush1.bf16.msra.mxu0 %v9625
    %9649 = vmatprep.subr.bf16.mxu0 0
    %9650 = vmatpush1.bf16.msra.mxu0 %v9626
    %9651 = vmatprep.subr.bf16.mxu0 0
    %9652 = vmatpush1.bf16.msra.mxu0 0
    %9653 = vmatprep.subr.bf16.mxu0 0
    %9654 = vmatpush1.bf16.msra.mxu0 0
    %9655 = vmatprep.subr.bf16.mxu0 0
    %9656 = vmatpush1.bf16.msra.mxu0 0
    %9657 = vmatprep.subr.bf16.mxu0 0
    %9658 = vmatpush1.bf16.msra.mxu0 0
    %9659 = vmatprep.subr.bf16.mxu0 0
    %9660 = vmatpush1.bf16.msra.mxu0 0
    %9661 = vmatprep.subr.bf16.mxu0 0
    %9662 = vmatpush1.bf16.msra.mxu0 0
    %9663 = vmatprep.subr.bf16.mxu0 0
    %9664 = vmatpush1.bf16.msra.mxu0 0
    %9665 = vmatprep.subr.bf16.mxu0 0
    %9666 = vmatpush1.bf16.msra.mxu0 0
    %9667 = vmatprep.mubr.bf16.mxu0 0
    %9668 = vmatmul.mubr.bf16.gmra.mrb[0].mxu0 %v9556
    %v9669 = vpop.f32.mrb[0].mxu0
    %v9670 = vadd.f32 %v9585, %v9669
    %v9671 = vpop.f32.mrb[0].mxu0
    %v9672 = vpop.f32.mrb[0].mxu0
    %v9673 = vadd.f32 %v9585, %v9672
    %v9674 = vpop.f32.mrb[0].mxu0
    %9675 = vmatprep.mubr.bf16.mxu0 0
    %9676 = vmatmul.mubr.bf16.gmra.mrb[0].mxu0 %v9557
    %v9677 = vpop.f32.mrb[0].mxu0
    %v9678 = vadd.f32 %v9585, %v9677
    %v9679 = vpop.f32.mrb[0].mxu0
    %v9680 = vpop.f32.mrb[0].mxu0
    %v9681 = vadd.f32 %v9585, %v9680
    %v9682 = vpop.f32.mrb[0].mxu0
    %9683 = vmatprep.mubr.bf16.mxu0 0
    %9684 = vmatmul.mubr.bf16.gmra.mrb[0].mxu0 %v9558
    %v9685 = vpop.f32.mrb[0].mxu0
    %v9686 = vadd.f32 %v9585, %v9685
    %v9687 = vpop.f32.mrb[0].mxu0
    %v9688 = vpop.f32.mrb[0].mxu0
    %v9689 = vadd.f32 %v9585, %v9688
    %v9690 = vpop.f32.mrb[0].mxu0
    %9691 = vmatprep.mubr.bf16.mxu0 0
    %9692 = vmatmul.mubr.bf16.gmra.mrb[0].mxu0 %v9559
    %v9693 = vpop.f32.mrb[0].mxu0
    %v9694 = vadd.f32 %v9585, %v9693
    %v9695 = vpop.f32.mrb[0].mxu0
    %v9696 = vpop.f32.mrb[0].mxu0
    %v9697 = vadd.f32 %v9585, %v9696
    %v9698 = vpop.f32.mrb[0].mxu0
    %9699 = vmatprep.mubr.bf16.mxu0 0
    %9700 = vmatmul.mubr.bf16.gmra.mrb[0].mxu0 %v9560
    %v9701 = vpop.f32.mrb[0].mxu0
    %v9702 = vadd.f32 %v9585, %v9701
    %v9703 = vpop.f32.mrb[0].mxu0
    %v9704 = vpop.f32.mrb[0].mxu0
    %v9705 = vadd.f32 %v9585, %v9704
    %v9706 = vpop.f32.mrb[0].mxu0
    %9707 = vmatprep.mubr.bf16.mxu0 0
    %9708 = vmatmul.mubr.bf16.gmra.mrb[0].mxu0 %v9561
    %v9709 = vpop.f32.mrb[0].mxu0
    %v9710 = vadd.f32 %v9585, %v9709
    %v9711 = vpop.f32.mrb[0].mxu0
    %v9712 = vpop.f32.mrb[0].mxu0
    %v9713 = vadd.f32 %v9585, %v9712
    %v9714 = vpop.f32.mrb[0].mxu0
    %9715 = vmatprep.mubr.bf16.mxu0 0
    %9716 = vmatmul.mubr.bf16.gmra.mrb[0].mxu0 %v9562
    %v9717 = vpop.f32.mrb[0].mxu0
    %v9718 = vadd.f32 %v9585, %v9717
    %v9719 = vpop.f32.mrb[0].mxu0
    %v9720 = vpop.f32.mrb[0].mxu0
    %v9721 = vadd.f32 %v9585, %v9720
    %v9722 = vpop.f32.mrb[0].mxu0
    %9723 = vmatprep.mubr.bf16.mxu0 0
    %9724 = vmatmul.mubr.bf16.gmra.mrb[0].mxu0 %v9563
    %v9725 = vpop.f32.mrb[0].mxu0
    %v9726 = vadd.f32 %v9585, %v9725
    %v9727 = vpop.f32.mrb[0].mxu0
    %v9728 = vpop.f32.mrb[0].mxu0
    %v9729 = vadd.f32 %v9585, %v9728
    %v9730 = vpop.f32.mrb[0].mxu0
    %9731 = vdwg.mxu0
    %9732 = vst [vmem:[#allocation20] sm:$0xff] %v9670
    %9733 = vst [vmem:[#allocation20 + $0x8] sm:$0xff] %v9673
    %9734 = vst [vmem:[#allocation20 + $0x10] sm:$0xff] %v9678
    %9735 = vst [vmem:[#allocation20 + $0x18] sm:$0xff] %v9681
    %9736 = vst [vmem:[#allocation20 + $0x20] sm:$0xff] %v9686
    %9737 = vst [vmem:[#allocation20 + $0x28] sm:$0xff] %v9689
    %9738 = vst [vmem:[#allocation20 + $0x30] sm:$0xff] %v9694
    %9739 = vst [vmem:[#allocation20 + $0x38] sm:$0xff] %v9697
    %9740 = vst [vmem:[#allocation20 + $0x40] sm:$0xff] %v9702
    %9741 = vst [vmem:[#allocation20 + $0x48] sm:$0xff] %v9705
    %9742 = vst [vmem:[#allocation20 + $0x50] sm:$0xff] %v9710
    %9743 = vst [vmem:[#allocation20 + $0x58] sm:$0xff] %v9713
    %9744 = vst [vmem:[#allocation20 + $0x60] sm:$0xff] %v9718
    %9745 = vst [vmem:[#allocation20 + $0x68] sm:$0xff] %v9721
    %9746 = vst [vmem:[#allocation20 + $0x70] sm:$0xff] %v9726
    %9747 = vst [vmem:[#allocation20 + $0x78] sm:$0xff] %v9729
    // Predicated region
    $region110: #{forward.1} parent=1 // pred_check
      _
    $region111: #{forward.1} parent=1 // pred_check_branch
      %9749 = sbr.rel (0) target = $region113
    $region112: #{forward.1} parent=1 // pred_region
      %s9751 = ssub.s32 2048, 2048
      %9752 = vsyncadd [#allocation4], %s9751
      %s9753 = sshll.u32 [#allocation20], 4
      %s9754 = int_to_ptr.vmem [resolvable:$true] %s9753
      %9759 = dma.vmem_to_hbm [thread:$0]  %s9754, 2048, %s16, [#allocation4], 128, 128, 8
    $region113: #{forward.1} parent=1 // pred_fallthru
      _
    // Predicated region
    $region114: #{forward.1} parent=1 // pred_check
      _
    $region115: #{forward.1} parent=1 // pred_check_branch
      %9761 = sbr.rel (0) target = $region117
    $region116: #{forward.1} parent=1 // pred_region
      %9762 = dma.done [#allocation4], 2048
    $region117: #{forward.1} parent=1 // pred_fallthru
      _
    %9763 = vsyncpa [#allocation3], 1
    %9764 = vsyncpa [#allocation6], 1
    %9765 = vsyncpa [#allocation9], 1
    %9766 = vsyncpa [#allocation12], 1
    %9767 = vsyncpa [#allocation15], 1
    %9768 = vsyncpa [#allocation18], 1
    %9769 = vsyncpa [#allocation4], 1

</llo_original>
